<compile_context>
chip_gen: v6e
topology: v6e:2x2x1
jax: 0.10.0
libtpu: 0.0.40
codegen_flags: <defaults>
</compile_context>

<pallas_src>
import jax
import jax.numpy as jnp
from jax import lax
from jax.experimental import pallas as pl
from jax.experimental.pallas import tpu as pltpu


def _round_up(x, m):
    return (x + m - 1) // m * m


def _pad_gate_matrix(w_t, h, h_pad, in_pad):
    """(in_dim, 3H) -> (in_pad, 3*h_pad); each gate block padded independently."""
    in_dim = w_t.shape[0]
    w3 = w_t.reshape(in_dim, 3, h)
    w3 = jnp.pad(w3, ((0, in_pad - in_dim), (0, 0), (0, h_pad - h)))
    return w3.reshape(in_pad, 3 * h_pad)


def _pad_gate_vector(b, h, h_pad):
    """(3H,) -> (1, 3*h_pad); each gate block padded independently."""
    b3 = b.reshape(3, h)
    b3 = jnp.pad(b3, ((0, 0), (0, h_pad - h)))
    return b3.reshape(1, 3 * h_pad)


def _make_fused_gru_kernel(num_layers, h_pad, t_chunk, seq_len, need_mask):
    """Builds the fused multi-layer GRU kernel (time loop inside the kernel)."""

    def kernel(*refs):
        if num_layers > 1:
            (gi1_ref, h0_ref, whh_ref, bhn_ref, wihu_ref, bgiu_ref,
             y_ref, hT_ref) = refs
        else:
            gi1_ref, h0_ref, whh_ref, bhn_ref, y_ref, hT_ref = refs
            wihu_ref = bgiu_ref = None

        c = pl.program_id(0)

        # hT_ref is VMEM-resident across the (arbitrary) time-chunk axis and
        # doubles as the hidden-state carry. Initialize it once.
        @pl.when(c == 0)
        def _():
            hT_ref[...] = h0_ref[...]

        def gates(gi, gh, b_hn, h_prev):
            # PyTorch gate order (r, z, n); gate blocks are h_pad wide and
            # lane-aligned (h_pad is a multiple of 128).
            r = jax.nn.sigmoid(gi[:, :h_pad] + gh[:, :h_pad])
            z = jax.nn.sigmoid(gi[:, h_pad:2 * h_pad] + gh[:, h_pad:2 * h_pad])
            n = jnp.tanh(gi[:, 2 * h_pad:] + r * (gh[:, 2 * h_pad:] + b_hn))
            return (1.0 - z) * n + z * h_prev

        def step(i, hs):
            # Layer 0 input projection was hoisted out of the kernel.
            gi = gi1_ref[i]                                   # (Bp, 3*Hp)
            new_hs = []
            x_in = None
            for l in range(num_layers):
                h_prev = hs[l]
                if l > 0:
                    gi = jnp.dot(x_in, wihu_ref[l - 1],
                                 preferred_element_type=jnp.float32) + bgiu_ref[l - 1]
                gh = jnp.dot(h_prev, whh_ref[l],
                             preferred_element_type=jnp.float32)
                h_new = gates(gi, gh, bhn_ref[l], h_prev)
                new_hs.append(h_new)
                x_in = h_new
            if need_mask:
                valid = (c * t_chunk + i) < seq_len
                new_hs = [jnp.where(valid, hn, hp)
                          for hn, hp in zip(new_hs, hs)]
                x_in = new_hs[-1]
            y_ref[i] = x_in                                   # top-layer output
            return tuple(new_hs)

        hs0 = tuple(hT_ref[l] for l in range(num_layers))
        hs_final = lax.fori_loop(0, t_chunk, step, hs0, unroll=True)
        for l in range(num_layers):
            hT_ref[l] = hs_final[l]

    return kernel


def encoder_rnn_forward(x_bsf, hidden, params, *, time_chunk=16):
    """EncoderRNN.forward: x (B, S, input_size), hidden (num_layers, B, H).

    Returns (output (B, S, H), hidden (num_layers, B, H)) -- matches nn.GRU
    with batch_first=True.
    """
    x_bsf = jnp.asarray(x_bsf, jnp.float32)
    hidden = jnp.asarray(hidden, jnp.float32)

    B, S, _ = x_bsf.shape
    L = len(params)
    H = params[0][1].shape[-1]                 # w_hh: (3H, H)

    Bp = _round_up(B, 8)                       # sublane-aligned batch
    Hp = _round_up(H, 128)                     # lane-aligned hidden
    Ts = max(1, min(S, time_chunk))            # timesteps per grid step
    S_pad = _round_up(S, Ts)
    need_mask = (S_pad != S)

    w_ih1, w_hh1, b_ih1, b_hh1 = [jnp.asarray(a, jnp.float32) for a in params[0]]

    # Hoisted layer-0 input projection for ALL timesteps; the batch_first ->
    # time-major transpose is folded into the contraction output layout.
    # r/z biases of b_hh are pre-folded; b_hn stays inside the recurrence.
    b_gi1 = b_ih1 + jnp.concatenate(
        [b_hh1[:2 * H], jnp.zeros((H,), jnp.float32)])
    gi1 = jnp.einsum('bsi,gi->sbg', x_bsf, w_ih1) + b_gi1      # (S, B, 3H)
    gi1 = gi1.reshape(S, B, 3, H)
    gi1 = jnp.pad(gi1, ((0, S_pad - S), (0, Bp - B), (0, 0), (0, Hp - H)))
    gi1 = gi1.reshape(S_pad, Bp, 3 * Hp)

    # Recurrent weights / biases, padded gate-blockwise, stacked over layers.
    whh_stack = jnp.stack(
        [_pad_gate_matrix(jnp.asarray(p[1], jnp.float32).T, H, Hp, Hp)
         for p in params], axis=0)                             # (L, Hp, 3Hp)
    bhn_stack = jnp.stack(
        [jnp.pad(jnp.asarray(p[3], jnp.float32)[2 * H:].reshape(1, H),
                 ((0, 0), (0, Hp - H)))
         for p in params], axis=0)                             # (L, 1, Hp)

    h0 = jnp.pad(hidden, ((0, 0), (0, Bp - B), (0, Hp - H)))   # (L, Bp, Hp)

    inputs = [gi1, h0, whh_stack, bhn_stack]
    in_specs = [
        pl.BlockSpec((Ts, Bp, 3 * Hp), lambda c: (c, 0, 0)),   # gi (per chunk)
        pl.BlockSpec((L, Bp, Hp), lambda c: (0, 0, 0)),        # h0
        pl.BlockSpec((L, Hp, 3 * Hp), lambda c: (0, 0, 0)),    # W_hh^T stack
        pl.BlockSpec((L, 1, Hp), lambda c: (0, 0, 0)),         # b_hn stack
    ]
    if L > 1:
        wihu_stack = jnp.stack(
            [_pad_gate_matrix(jnp.asarray(p[0], jnp.float32).T, H, Hp, Hp)
             for p in params[1:]], axis=0)                     # (L-1, Hp, 3Hp)
        bgiu_stack = jnp.stack(
            [_pad_gate_vector(
                jnp.asarray(p[2], jnp.float32)
                + jnp.concatenate([jnp.asarray(p[3], jnp.float32)[:2 * H],
                                   jnp.zeros((H,), jnp.float32)]),
                H, Hp)
             for p in params[1:]], axis=0)                     # (L-1, 1, 3Hp)
        inputs += [wihu_stack, bgiu_stack]
        in_specs += [
            pl.BlockSpec((L - 1, Hp, 3 * Hp), lambda c: (0, 0, 0)),
            pl.BlockSpec((L - 1, 1, 3 * Hp), lambda c: (0, 0, 0)),
        ]

    kernel = _make_fused_gru_kernel(L, Hp, Ts, S, need_mask)

    y, hT = pl.pallas_call(
        kernel,
        out_shape=(
            jax.ShapeDtypeStruct((S_pad, Bp, Hp), jnp.float32),
            jax.ShapeDtypeStruct((L, Bp, Hp), jnp.float32),
        ),
        grid_spec=pltpu.PrefetchScalarGridSpec(
            num_scalar_prefetch=0,
            grid=(S_pad // Ts,),
            in_specs=in_specs,
            out_specs=[
                pl.BlockSpec((Ts, Bp, Hp), lambda c: (c, 0, 0)),   # y per chunk
                pl.BlockSpec((L, Bp, Hp), lambda c: (0, 0, 0)),    # hT (resident)
            ],
        ),
        compiler_params=pltpu.CompilerParams(
            dimension_semantics=("arbitrary",)),
    )(*inputs)

    # TODO(synk): if the caller can accept time-major output, this transpose
    # (a full HBM read+write of the activations) can be dropped entirely.
    output = jnp.transpose(y[:S, :B, :H], (1, 0, 2))           # back to batch_first
    hidden_out = hT[:, :B, :H]
    return output, hidden_out


def _reference_gru(x_bsf, hidden, params):
    """Pure-JAX reference (same math, lax.scan) for a correctness check."""
    x = jnp.transpose(x_bsf, (1, 0, 2)).astype(jnp.float32)
    h_finals = []
    for l, (w_ih, w_hh, b_ih, b_hh) in enumerate(params):
        H = w_hh.shape[1]

        def step(h, x_t, w_ih=w_ih, w_hh=w_hh, b_ih=b_ih, b_hh=b_hh, H=H):
            gi = x_t @ w_ih.T + b_ih
            gh = h @ w_hh.T + b_hh
            r = jax.nn.sigmoid(gi[:, :H] + gh[:, :H])
            z = jax.nn.sigmoid(gi[:, H:2 * H] + gh[:, H:2 * H])
            n = jnp.tanh(gi[:, 2 * H:] + r * gh[:, 2 * H:])
            h_new = (1.0 - z) * n + z * h
            return h_new, h_new

        h_T, ys = jax.lax.scan(step, hidden[l], x)
        h_finals.append(h_T)
        x = ys
    return jnp.transpose(x, (1, 0, 2)), jnp.stack(h_finals, axis=0)


def _init_params(key, input_size, hidden_size, num_layers):
    """Deterministic GRU params, PyTorch shapes & uniform(-1/sqrt(H), 1/sqrt(H))."""
    bound = 1.0 / jnp.sqrt(jnp.float32(hidden_size))
    params = []
    for l in range(num_layers):
        in_dim = input_size if l == 0 else hidden_size
        key, k1, k2, k3, k4 = jax.random.split(key, 5)
        w_ih = jax.random.uniform(k1, (3 * hidden_size, in_dim), jnp.float32,
                                  -bound, bound)
        w_hh = jax.random.uniform(k2, (3 * hidden_size, hidden_size), jnp.float32,
                                  -bound, bound)
        b_ih = jax.random.uniform(k3, (3 * hidden_size,), jnp.float32, -bound, bound)
        b_hh = jax.random.uniform(k4, (3 * hidden_size,), jnp.float32, -bound, bound)
        params.append((w_ih, w_hh, b_ih, b_hh))
    return params


if __name__ == "__main__":
    # Small shapes consistent with EncoderRNN(input_size, hidden_size, num_layers=2)
    batch, seq_len, input_size, hidden_size, num_layers = 2, 8, 16, 32, 2

    key = jax.random.PRNGKey(0)
    key, kx = jax.random.split(key)
    x = jax.random.normal(kx, (batch, seq_len, input_size), jnp.float32)
    hidden0 = jnp.zeros((num_layers, batch, hidden_size), jnp.float32)  # initHidden
    params = _init_params(key, input_size, hidden_size, num_layers)

    out, hid = encoder_rnn_forward(x, hidden0, params)
    out = jax.block_until_ready(out)
    hid = jax.block_until_ready(hid)

    # sanity check against pure-JAX reference
    ref_out, ref_hid = _reference_gru(x, hidden0, params)
    assert out.shape == (batch, seq_len, hidden_size)
    assert hid.shape == (num_layers, batch, hidden_size)
    assert jnp.allclose(out, ref_out, atol=1e-5, rtol=1e-5)
    assert jnp.allclose(hid, ref_hid, atol=1e-5, rtol=1e-5)

    print("KERNEL_OK")
</pallas_src>

<mosaic_0001>
module attributes {stable_mosaic.version = 11 : i64} {
  func.func @kernel(%arg0: i32, %arg1: memref<8x8x384xf32, #tpu.memory_space<vmem>>, %arg2: memref<2x8x128xf32, #tpu.memory_space<vmem>>, %arg3: memref<2x128x384xf32, #tpu.memory_space<vmem>>, %arg4: memref<2x1x128xf32, #tpu.memory_space<vmem>>, %arg5: memref<1x128x384xf32, #tpu.memory_space<vmem>>, %arg6: memref<1x1x384xf32, #tpu.memory_space<vmem>>, %arg7: memref<8x8x128xf32, #tpu.memory_space<vmem>>, %arg8: memref<2x8x128xf32, #tpu.memory_space<vmem>>) attributes {dimension_semantics = [#tpu.dimension_semantics<arbitrary>], iteration_bounds = array<i64: 1>, scalar_prefetch = 0 : i64, scratch_operands = 0 : i64, tpu.core_type = #tpu.core_type<tc>, window_params = [{transform_indices = @transform_0, window_bounds = array<i64: 8, 8, 384>}, {pipeline_mode = #tpu.pipeline_mode<synchronous>, transform_indices = @transform_1, window_bounds = array<i64: 2, 8, 128>}, {pipeline_mode = #tpu.pipeline_mode<synchronous>, transform_indices = @transform_2, window_bounds = array<i64: 2, 128, 384>}, {pipeline_mode = #tpu.pipeline_mode<synchronous>, transform_indices = @transform_3, window_bounds = array<i64: 2, 1, 128>}, {pipeline_mode = #tpu.pipeline_mode<synchronous>, transform_indices = @transform_4, window_bounds = array<i64: 1, 128, 384>}, {pipeline_mode = #tpu.pipeline_mode<synchronous>, transform_indices = @transform_5, window_bounds = array<i64: 1, 1, 384>}, {transform_indices = @transform_6, window_bounds = array<i64: 8, 8, 128>}, {pipeline_mode = #tpu.pipeline_mode<synchronous>, transform_indices = @transform_7, window_bounds = array<i64: 2, 8, 128>}]} {
    %c0_i32 = arith.constant 0 : i32
    %0 = arith.cmpi eq, %arg0, %c0_i32 : i32
    %1 = arith.extui %0 : i1 to i32
    %c0_i32_0 = arith.constant 0 : i32
    %2 = arith.cmpi ne, %1, %c0_i32_0 : i32
    scf.if %2 {
      %c0_259 = arith.constant 0 : index
      %c0_260 = arith.constant 0 : index
      %c0_261 = arith.constant 0 : index
      %653 = vector.load %arg2[%c0_259, %c0_260, %c0_261] : memref<2x8x128xf32, #tpu.memory_space<vmem>>, vector<2x8x128xf32>
      %c0_262 = arith.constant 0 : index
      %c0_263 = arith.constant 0 : index
      %c0_264 = arith.constant 0 : index
      %654 = vector.load %arg8[%c0_262, %c0_263, %c0_264] : memref<2x8x128xf32, #tpu.memory_space<vmem>>, vector<2x8x128xf32>
      tpu.vector_store %arg8[%c0_262, %c0_263, %c0_264], %653 {strides = array<i32>} : memref<2x8x128xf32, #tpu.memory_space<vmem>>, vector<2x8x128xf32>,
    } else {
    }
    %c0 = arith.constant 0 : index
    %c0_1 = arith.constant 0 : index
    %c0_2 = arith.constant 0 : index
    %3 = vector.load %arg8[%c0, %c0_1, %c0_2] : memref<2x8x128xf32, #tpu.memory_space<vmem>>, vector<1x8x128xf32>
    %4 = vector.shape_cast %3 : vector<1x8x128xf32> to vector<8x128xf32>
    %c1 = arith.constant 1 : index
    %c0_3 = arith.constant 0 : index
    %c0_4 = arith.constant 0 : index
    %5 = vector.load %arg8[%c1, %c0_3, %c0_4] : memref<2x8x128xf32, #tpu.memory_space<vmem>>, vector<1x8x128xf32>
    %6 = vector.shape_cast %5 : vector<1x8x128xf32> to vector<8x128xf32>
    %c0_i32_5 = arith.constant 0 : i32
    %7 = arith.index_cast %c0_i32_5 : i32 to index
    %c0_6 = arith.constant 0 : index
    %c0_7 = arith.constant 0 : index
    %8 = vector.load %arg1[%7, %c0_6, %c0_7] : memref<8x8x384xf32, #tpu.memory_space<vmem>>, vector<1x8x384xf32>
    %9 = vector.shape_cast %8 : vector<1x8x384xf32> to vector<8x384xf32>
    %c0_8 = arith.constant 0 : index
    %c0_9 = arith.constant 0 : index
    %c0_10 = arith.constant 0 : index
    %10 = vector.load %arg3[%c0_8, %c0_9, %c0_10] : memref<2x128x384xf32, #tpu.memory_space<vmem>>, vector<1x128x384xf32>
    %11 = vector.shape_cast %10 : vector<1x128x384xf32> to vector<128x384xf32>
    %cst = arith.constant dense<0.000000e+00> : vector<8x384xf32>
    %12 = tpu.matmul %4, %11, %cst {dimension_numbers = #tpu.dot_dimension_numbers<[1], [0], [0], [1], [0, 0, 1, 1], [], []>} : vector<8x128xf32>, vector<128x384xf32>, vector<8x384xf32> -> vector<8x384xf32>
    %c0_11 = arith.constant 0 : index
    %c0_12 = arith.constant 0 : index
    %c0_13 = arith.constant 0 : index
    %13 = vector.load %arg4[%c0_11, %c0_12, %c0_13] : memref<2x1x128xf32, #tpu.memory_space<vmem>>, vector<1x1x128xf32>
    %14 = vector.shape_cast %13 : vector<1x1x128xf32> to vector<1x128xf32>
    %15 = vector.extract_strided_slice %9 {offsets = [0, 0], sizes = [8, 128], strides = [1, 1]} : vector<8x384xf32> to vector<8x128xf32>
    %16 = vector.extract_strided_slice %12 {offsets = [0, 0], sizes = [8, 128], strides = [1, 1]} : vector<8x384xf32> to vector<8x128xf32>
    %17 = arith.addf %15, %16 : vector<8x128xf32>
    %18 = arith.negf %17 : vector<8x128xf32>
    %19 = math.exp %18 : vector<8x128xf32>
    %cst_14 = arith.constant 1.000000e+00 : f32
    %20 = vector.broadcast %cst_14 : f32 to vector<8x128xf32>
    %21 = arith.addf %20, %19 : vector<8x128xf32>
    %22 = arith.divf %20, %21 : vector<8x128xf32>
    %23 = vector.extract_strided_slice %9 {offsets = [0, 128], sizes = [8, 128], strides = [1, 1]} : vector<8x384xf32> to vector<8x128xf32>
    %24 = vector.extract_strided_slice %12 {offsets = [0, 128], sizes = [8, 128], strides = [1, 1]} : vector<8x384xf32> to vector<8x128xf32>
    %25 = arith.addf %23, %24 : vector<8x128xf32>
    %26 = arith.negf %25 : vector<8x128xf32>
    %27 = math.exp %26 : vector<8x128xf32>
    %cst_15 = arith.constant 1.000000e+00 : f32
    %28 = vector.broadcast %cst_15 : f32 to vector<8x128xf32>
    %29 = arith.addf %28, %27 : vector<8x128xf32>
    %30 = arith.divf %28, %29 : vector<8x128xf32>
    %31 = vector.extract_strided_slice %9 {offsets = [0, 256], sizes = [8, 128], strides = [1, 1]} : vector<8x384xf32> to vector<8x128xf32>
    %32 = vector.extract_strided_slice %12 {offsets = [0, 256], sizes = [8, 128], strides = [1, 1]} : vector<8x384xf32> to vector<8x128xf32>
    %33 = vector.broadcast %14 : vector<1x128xf32> to vector<8x128xf32>
    %34 = arith.addf %32, %33 : vector<8x128xf32>
    %35 = arith.mulf %22, %34 : vector<8x128xf32>
    %36 = arith.addf %31, %35 : vector<8x128xf32>
    %37 = math.tanh %36 : vector<8x128xf32>
    %cst_16 = arith.constant 1.000000e+00 : f32
    %38 = vector.broadcast %cst_16 : f32 to vector<8x128xf32>
    %39 = arith.subf %38, %30 : vector<8x128xf32>
    %40 = arith.mulf %39, %37 : vector<8x128xf32>
    %41 = arith.mulf %30, %4 : vector<8x128xf32>
    %42 = arith.addf %40, %41 : vector<8x128xf32>
    %c0_17 = arith.constant 0 : index
    %c0_18 = arith.constant 0 : index
    %c0_19 = arith.constant 0 : index
    %43 = vector.load %arg5[%c0_17, %c0_18, %c0_19] : memref<1x128x384xf32, #tpu.memory_space<vmem>>, vector<1x128x384xf32>
    %44 = vector.shape_cast %43 : vector<1x128x384xf32> to vector<128x384xf32>
    %cst_20 = arith.constant dense<0.000000e+00> : vector<8x384xf32>
    %45 = tpu.matmul %42, %44, %cst_20 {dimension_numbers = #tpu.dot_dimension_numbers<[1], [0], [0], [1], [0, 0, 1, 1], [], []>} : vector<8x128xf32>, vector<128x384xf32>, vector<8x384xf32> -> vector<8x384xf32>
    %c0_21 = arith.constant 0 : index
    %c0_22 = arith.constant 0 : index
    %c0_23 = arith.constant 0 : index
    %46 = vector.load %arg6[%c0_21, %c0_22, %c0_23] : memref<1x1x384xf32, #tpu.memory_space<vmem>>, vector<1x1x384xf32>
    %47 = vector.shape_cast %46 : vector<1x1x384xf32> to vector<1x384xf32>
    %48 = vector.broadcast %47 : vector<1x384xf32> to vector<8x384xf32>
    %49 = arith.addf %45, %48 : vector<8x384xf32>
    %c1_24 = arith.constant 1 : index
    %c0_25 = arith.constant 0 : index
    %c0_26 = arith.constant 0 : index
    %50 = vector.load %arg3[%c1_24, %c0_25, %c0_26] : memref<2x128x384xf32, #tpu.memory_space<vmem>>, vector<1x128x384xf32>
    %51 = vector.shape_cast %50 : vector<1x128x384xf32> to vector<128x384xf32>
    %cst_27 = arith.constant dense<0.000000e+00> : vector<8x384xf32>
    %52 = tpu.matmul %6, %51, %cst_27 {dimension_numbers = #tpu.dot_dimension_numbers<[1], [0], [0], [1], [0, 0, 1, 1], [], []>} : vector<8x128xf32>, vector<128x384xf32>, vector<8x384xf32> -> vector<8x384xf32>
    %c1_28 = arith.constant 1 : index
    %c0_29 = arith.constant 0 : index
    %c0_30 = arith.constant 0 : index
    %53 = vector.load %arg4[%c1_28, %c0_29, %c0_30] : memref<2x1x128xf32, #tpu.memory_space<vmem>>, vector<1x1x128xf32>
    %54 = vector.shape_cast %53 : vector<1x1x128xf32> to vector<1x128xf32>
    %55 = vector.extract_strided_slice %49 {offsets = [0, 0], sizes = [8, 128], strides = [1, 1]} : vector<8x384xf32> to vector<8x128xf32>
    %56 = vector.extract_strided_slice %52 {offsets = [0, 0], sizes = [8, 128], strides = [1, 1]} : vector<8x384xf32> to vector<8x128xf32>
    %57 = arith.addf %55, %56 : vector<8x128xf32>
    %58 = arith.negf %57 : vector<8x128xf32>
    %59 = math.exp %58 : vector<8x128xf32>
    %cst_31 = arith.constant 1.000000e+00 : f32
    %60 = vector.broadcast %cst_31 : f32 to vector<8x128xf32>
    %61 = arith.addf %60, %59 : vector<8x128xf32>
    %62 = arith.divf %60, %61 : vector<8x128xf32>
    %63 = vector.extract_strided_slice %49 {offsets = [0, 128], sizes = [8, 128], strides = [1, 1]} : vector<8x384xf32> to vector<8x128xf32>
    %64 = vector.extract_strided_slice %52 {offsets = [0, 128], sizes = [8, 128], strides = [1, 1]} : vector<8x384xf32> to vector<8x128xf32>
    %65 = arith.addf %63, %64 : vector<8x128xf32>
    %66 = arith.negf %65 : vector<8x128xf32>
    %67 = math.exp %66 : vector<8x128xf32>
    %cst_32 = arith.constant 1.000000e+00 : f32
    %68 = vector.broadcast %cst_32 : f32 to vector<8x128xf32>
    %69 = arith.addf %68, %67 : vector<8x128xf32>
    %70 = arith.divf %68, %69 : vector<8x128xf32>
    %71 = vector.extract_strided_slice %49 {offsets = [0, 256], sizes = [8, 128], strides = [1, 1]} : vector<8x384xf32> to vector<8x128xf32>
    %72 = vector.extract_strided_slice %52 {offsets = [0, 256], sizes = [8, 128], strides = [1, 1]} : vector<8x384xf32> to vector<8x128xf32>
    %73 = vector.broadcast %54 : vector<1x128xf32> to vector<8x128xf32>
    %74 = arith.addf %72, %73 : vector<8x128xf32>
    %75 = arith.mulf %62, %74 : vector<8x128xf32>
    %76 = arith.addf %71, %75 : vector<8x128xf32>
    %77 = math.tanh %76 : vector<8x128xf32>
    %cst_33 = arith.constant 1.000000e+00 : f32
    %78 = vector.broadcast %cst_33 : f32 to vector<8x128xf32>
    %79 = arith.subf %78, %70 : vector<8x128xf32>
    %80 = arith.mulf %79, %77 : vector<8x128xf32>
    %81 = arith.mulf %70, %6 : vector<8x128xf32>
    %82 = arith.addf %80, %81 : vector<8x128xf32>
    %83 = arith.index_cast %c0_i32_5 : i32 to index
    %c0_34 = arith.constant 0 : index
    %c0_35 = arith.constant 0 : index
    %84 = vector.load %arg7[%83, %c0_34, %c0_35] : memref<8x8x128xf32, #tpu.memory_space<vmem>>, vector<1x8x128xf32>
    %85 = vector.shape_cast %84 : vector<1x8x128xf32> to vector<8x128xf32>
    %86 = vector.shape_cast %82 : vector<8x128xf32> to vector<1x8x128xf32>
    tpu.vector_store %arg7[%83, %c0_34, %c0_35], %86 {strides = array<i32>} : memref<8x8x128xf32, #tpu.memory_space<vmem>>, vector<1x8x128xf32>,
    %c1_i32 = arith.constant 1 : i32
    %87 = arith.index_cast %c1_i32 : i32 to index
    %c0_36 = arith.constant 0 : index
    %c0_37 = arith.constant 0 : index
    %88 = vector.load %arg1[%87, %c0_36, %c0_37] : memref<8x8x384xf32, #tpu.memory_space<vmem>>, vector<1x8x384xf32>
    %89 = vector.shape_cast %88 : vector<1x8x384xf32> to vector<8x384xf32>
    %c0_38 = arith.constant 0 : index
    %c0_39 = arith.constant 0 : index
    %c0_40 = arith.constant 0 : index
    %90 = vector.load %arg3[%c0_38, %c0_39, %c0_40] : memref<2x128x384xf32, #tpu.memory_space<vmem>>, vector<1x128x384xf32>
    %91 = vector.shape_cast %90 : vector<1x128x384xf32> to vector<128x384xf32>
    %cst_41 = arith.constant dense<0.000000e+00> : vector<8x384xf32>
    %92 = tpu.matmul %42, %91, %cst_41 {dimension_numbers = #tpu.dot_dimension_numbers<[1], [0], [0], [1], [0, 0, 1, 1], [], []>} : vector<8x128xf32>, vector<128x384xf32>, vector<8x384xf32> -> vector<8x384xf32>
    %c0_42 = arith.constant 0 : index
    %c0_43 = arith.constant 0 : index
    %c0_44 = arith.constant 0 : index
    %93 = vector.load %arg4[%c0_42, %c0_43, %c0_44] : memref<2x1x128xf32, #tpu.memory_space<vmem>>, vector<1x1x128xf32>
    %94 = vector.shape_cast %93 : vector<1x1x128xf32> to vector<1x128xf32>
    %95 = vector.extract_strided_slice %89 {offsets = [0, 0], sizes = [8, 128], strides = [1, 1]} : vector<8x384xf32> to vector<8x128xf32>
    %96 = vector.extract_strided_slice %92 {offsets = [0, 0], sizes = [8, 128], strides = [1, 1]} : vector<8x384xf32> to vector<8x128xf32>
    %97 = arith.addf %95, %96 : vector<8x128xf32>
    %98 = arith.negf %97 : vector<8x128xf32>
    %99 = math.exp %98 : vector<8x128xf32>
    %cst_45 = arith.constant 1.000000e+00 : f32
    %100 = vector.broadcast %cst_45 : f32 to vector<8x128xf32>
    %101 = arith.addf %100, %99 : vector<8x128xf32>
    %102 = arith.divf %100, %101 : vector<8x128xf32>
    %103 = vector.extract_strided_slice %89 {offsets = [0, 128], sizes = [8, 128], strides = [1, 1]} : vector<8x384xf32> to vector<8x128xf32>
    %104 = vector.extract_strided_slice %92 {offsets = [0, 128], sizes = [8, 128], strides = [1, 1]} : vector<8x384xf32> to vector<8x128xf32>
    %105 = arith.addf %103, %104 : vector<8x128xf32>
    %106 = arith.negf %105 : vector<8x128xf32>
    %107 = math.exp %106 : vector<8x128xf32>
    %cst_46 = arith.constant 1.000000e+00 : f32
    %108 = vector.broadcast %cst_46 : f32 to vector<8x128xf32>
    %109 = arith.addf %108, %107 : vector<8x128xf32>
    %110 = arith.divf %108, %109 : vector<8x128xf32>
    %111 = vector.extract_strided_slice %89 {offsets = [0, 256], sizes = [8, 128], strides = [1, 1]} : vector<8x384xf32> to vector<8x128xf32>
    %112 = vector.extract_strided_slice %92 {offsets = [0, 256], sizes = [8, 128], strides = [1, 1]} : vector<8x384xf32> to vector<8x128xf32>
    %113 = vector.broadcast %94 : vector<1x128xf32> to vector<8x128xf32>
    %114 = arith.addf %112, %113 : vector<8x128xf32>
    %115 = arith.mulf %102, %114 : vector<8x128xf32>
    %116 = arith.addf %111, %115 : vector<8x128xf32>
    %117 = math.tanh %116 : vector<8x128xf32>
    %cst_47 = arith.constant 1.000000e+00 : f32
    %118 = vector.broadcast %cst_47 : f32 to vector<8x128xf32>
    %119 = arith.subf %118, %110 : vector<8x128xf32>
    %120 = arith.mulf %119, %117 : vector<8x128xf32>
    %121 = arith.mulf %110, %42 : vector<8x128xf32>
    %122 = arith.addf %120, %121 : vector<8x128xf32>
    %c0_48 = arith.constant 0 : index
    %c0_49 = arith.constant 0 : index
    %c0_50 = arith.constant 0 : index
    %123 = vector.load %arg5[%c0_48, %c0_49, %c0_50] : memref<1x128x384xf32, #tpu.memory_space<vmem>>, vector<1x128x384xf32>
    %124 = vector.shape_cast %123 : vector<1x128x384xf32> to vector<128x384xf32>
    %cst_51 = arith.constant dense<0.000000e+00> : vector<8x384xf32>
    %125 = tpu.matmul %122, %124, %cst_51 {dimension_numbers = #tpu.dot_dimension_numbers<[1], [0], [0], [1], [0, 0, 1, 1], [], []>} : vector<8x128xf32>, vector<128x384xf32>, vector<8x384xf32> -> vector<8x384xf32>
    %c0_52 = arith.constant 0 : index
    %c0_53 = arith.constant 0 : index
    %c0_54 = arith.constant 0 : index
    %126 = vector.load %arg6[%c0_52, %c0_53, %c0_54] : memref<1x1x384xf32, #tpu.memory_space<vmem>>, vector<1x1x384xf32>
    %127 = vector.shape_cast %126 : vector<1x1x384xf32> to vector<1x384xf32>
    %128 = vector.broadcast %127 : vector<1x384xf32> to vector<8x384xf32>
    %129 = arith.addf %125, %128 : vector<8x384xf32>
    %c1_55 = arith.constant 1 : index
    %c0_56 = arith.constant 0 : index
    %c0_57 = arith.constant 0 : index
    %130 = vector.load %arg3[%c1_55, %c0_56, %c0_57] : memref<2x128x384xf32, #tpu.memory_space<vmem>>, vector<1x128x384xf32>
    %131 = vector.shape_cast %130 : vector<1x128x384xf32> to vector<128x384xf32>
    %cst_58 = arith.constant dense<0.000000e+00> : vector<8x384xf32>
    %132 = tpu.matmul %82, %131, %cst_58 {dimension_numbers = #tpu.dot_dimension_numbers<[1], [0], [0], [1], [0, 0, 1, 1], [], []>} : vector<8x128xf32>, vector<128x384xf32>, vector<8x384xf32> -> vector<8x384xf32>
    %c1_59 = arith.constant 1 : index
    %c0_60 = arith.constant 0 : index
    %c0_61 = arith.constant 0 : index
    %133 = vector.load %arg4[%c1_59, %c0_60, %c0_61] : memref<2x1x128xf32, #tpu.memory_space<vmem>>, vector<1x1x128xf32>
    %134 = vector.shape_cast %133 : vector<1x1x128xf32> to vector<1x128xf32>
    %135 = vector.extract_strided_slice %129 {offsets = [0, 0], sizes = [8, 128], strides = [1, 1]} : vector<8x384xf32> to vector<8x128xf32>
    %136 = vector.extract_strided_slice %132 {offsets = [0, 0], sizes = [8, 128], strides = [1, 1]} : vector<8x384xf32> to vector<8x128xf32>
    %137 = arith.addf %135, %136 : vector<8x128xf32>
    %138 = arith.negf %137 : vector<8x128xf32>
    %139 = math.exp %138 : vector<8x128xf32>
    %cst_62 = arith.constant 1.000000e+00 : f32
    %140 = vector.broadcast %cst_62 : f32 to vector<8x128xf32>
    %141 = arith.addf %140, %139 : vector<8x128xf32>
    %142 = arith.divf %140, %141 : vector<8x128xf32>
    %143 = vector.extract_strided_slice %129 {offsets = [0, 128], sizes = [8, 128], strides = [1, 1]} : vector<8x384xf32> to vector<8x128xf32>
    %144 = vector.extract_strided_slice %132 {offsets = [0, 128], sizes = [8, 128], strides = [1, 1]} : vector<8x384xf32> to vector<8x128xf32>
    %145 = arith.addf %143, %144 : vector<8x128xf32>
    %146 = arith.negf %145 : vector<8x128xf32>
    %147 = math.exp %146 : vector<8x128xf32>
    %cst_63 = arith.constant 1.000000e+00 : f32
    %148 = vector.broadcast %cst_63 : f32 to vector<8x128xf32>
    %149 = arith.addf %148, %147 : vector<8x128xf32>
    %150 = arith.divf %148, %149 : vector<8x128xf32>
    %151 = vector.extract_strided_slice %129 {offsets = [0, 256], sizes = [8, 128], strides = [1, 1]} : vector<8x384xf32> to vector<8x128xf32>
    %152 = vector.extract_strided_slice %132 {offsets = [0, 256], sizes = [8, 128], strides = [1, 1]} : vector<8x384xf32> to vector<8x128xf32>
    %153 = vector.broadcast %134 : vector<1x128xf32> to vector<8x128xf32>
    %154 = arith.addf %152, %153 : vector<8x128xf32>
    %155 = arith.mulf %142, %154 : vector<8x128xf32>
    %156 = arith.addf %151, %155 : vector<8x128xf32>
    %157 = math.tanh %156 : vector<8x128xf32>
    %cst_64 = arith.constant 1.000000e+00 : f32
    %158 = vector.broadcast %cst_64 : f32 to vector<8x128xf32>
    %159 = arith.subf %158, %150 : vector<8x128xf32>
    %160 = arith.mulf %159, %157 : vector<8x128xf32>
    %161 = arith.mulf %150, %82 : vector<8x128xf32>
    %162 = arith.addf %160, %161 : vector<8x128xf32>
    %163 = arith.index_cast %c1_i32 : i32 to index
    %c0_65 = arith.constant 0 : index
    %c0_66 = arith.constant 0 : index
    %164 = vector.load %arg7[%163, %c0_65, %c0_66] : memref<8x8x128xf32, #tpu.memory_space<vmem>>, vector<1x8x128xf32>
    %165 = vector.shape_cast %164 : vector<1x8x128xf32> to vector<8x128xf32>
    %166 = vector.shape_cast %162 : vector<8x128xf32> to vector<1x8x128xf32>
    tpu.vector_store %arg7[%163, %c0_65, %c0_66], %166 {strides = array<i32>} : memref<8x8x128xf32, #tpu.memory_space<vmem>>, vector<1x8x128xf32>,
    %c2_i32 = arith.constant 2 : i32
    %167 = arith.index_cast %c2_i32 : i32 to index
    %c0_67 = arith.constant 0 : index
    %c0_68 = arith.constant 0 : index
    %168 = vector.load %arg1[%167, %c0_67, %c0_68] : memref<8x8x384xf32, #tpu.memory_space<vmem>>, vector<1x8x384xf32>
    %169 = vector.shape_cast %168 : vector<1x8x384xf32> to vector<8x384xf32>
    %c0_69 = arith.constant 0 : index
    %c0_70 = arith.constant 0 : index
    %c0_71 = arith.constant 0 : index
    %170 = vector.load %arg3[%c0_69, %c0_70, %c0_71] : memref<2x128x384xf32, #tpu.memory_space<vmem>>, vector<1x128x384xf32>
    %171 = vector.shape_cast %170 : vector<1x128x384xf32> to vector<128x384xf32>
    %cst_72 = arith.constant dense<0.000000e+00> : vector<8x384xf32>
    %172 = tpu.matmul %122, %171, %cst_72 {dimension_numbers = #tpu.dot_dimension_numbers<[1], [0], [0], [1], [0, 0, 1, 1], [], []>} : vector<8x128xf32>, vector<128x384xf32>, vector<8x384xf32> -> vector<8x384xf32>
    %c0_73 = arith.constant 0 : index
    %c0_74 = arith.constant 0 : index
    %c0_75 = arith.constant 0 : index
    %173 = vector.load %arg4[%c0_73, %c0_74, %c0_75] : memref<2x1x128xf32, #tpu.memory_space<vmem>>, vector<1x1x128xf32>
    %174 = vector.shape_cast %173 : vector<1x1x128xf32> to vector<1x128xf32>
    %175 = vector.extract_strided_slice %169 {offsets = [0, 0], sizes = [8, 128], strides = [1, 1]} : vector<8x384xf32> to vector<8x128xf32>
    %176 = vector.extract_strided_slice %172 {offsets = [0, 0], sizes = [8, 128], strides = [1, 1]} : vector<8x384xf32> to vector<8x128xf32>
    %177 = arith.addf %175, %176 : vector<8x128xf32>
    %178 = arith.negf %177 : vector<8x128xf32>
    %179 = math.exp %178 : vector<8x128xf32>
    %cst_76 = arith.constant 1.000000e+00 : f32
    %180 = vector.broadcast %cst_76 : f32 to vector<8x128xf32>
    %181 = arith.addf %180, %179 : vector<8x128xf32>
    %182 = arith.divf %180, %181 : vector<8x128xf32>
    %183 = vector.extract_strided_slice %169 {offsets = [0, 128], sizes = [8, 128], strides = [1, 1]} : vector<8x384xf32> to vector<8x128xf32>
    %184 = vector.extract_strided_slice %172 {offsets = [0, 128], sizes = [8, 128], strides = [1, 1]} : vector<8x384xf32> to vector<8x128xf32>
    %185 = arith.addf %183, %184 : vector<8x128xf32>
    %186 = arith.negf %185 : vector<8x128xf32>
    %187 = math.exp %186 : vector<8x128xf32>
    %cst_77 = arith.constant 1.000000e+00 : f32
    %188 = vector.broadcast %cst_77 : f32 to vector<8x128xf32>
    %189 = arith.addf %188, %187 : vector<8x128xf32>
    %190 = arith.divf %188, %189 : vector<8x128xf32>
    %191 = vector.extract_strided_slice %169 {offsets = [0, 256], sizes = [8, 128], strides = [1, 1]} : vector<8x384xf32> to vector<8x128xf32>
    %192 = vector.extract_strided_slice %172 {offsets = [0, 256], sizes = [8, 128], strides = [1, 1]} : vector<8x384xf32> to vector<8x128xf32>
    %193 = vector.broadcast %174 : vector<1x128xf32> to vector<8x128xf32>
    %194 = arith.addf %192, %193 : vector<8x128xf32>
    %195 = arith.mulf %182, %194 : vector<8x128xf32>
    %196 = arith.addf %191, %195 : vector<8x128xf32>
    %197 = math.tanh %196 : vector<8x128xf32>
    %cst_78 = arith.constant 1.000000e+00 : f32
    %198 = vector.broadcast %cst_78 : f32 to vector<8x128xf32>
    %199 = arith.subf %198, %190 : vector<8x128xf32>
    %200 = arith.mulf %199, %197 : vector<8x128xf32>
    %201 = arith.mulf %190, %122 : vector<8x128xf32>
    %202 = arith.addf %200, %201 : vector<8x128xf32>
    %c0_79 = arith.constant 0 : index
    %c0_80 = arith.constant 0 : index
    %c0_81 = arith.constant 0 : index
    %203 = vector.load %arg5[%c0_79, %c0_80, %c0_81] : memref<1x128x384xf32, #tpu.memory_space<vmem>>, vector<1x128x384xf32>
    %204 = vector.shape_cast %203 : vector<1x128x384xf32> to vector<128x384xf32>
    %cst_82 = arith.constant dense<0.000000e+00> : vector<8x384xf32>
    %205 = tpu.matmul %202, %204, %cst_82 {dimension_numbers = #tpu.dot_dimension_numbers<[1], [0], [0], [1], [0, 0, 1, 1], [], []>} : vector<8x128xf32>, vector<128x384xf32>, vector<8x384xf32> -> vector<8x384xf32>
    %c0_83 = arith.constant 0 : index
    %c0_84 = arith.constant 0 : index
    %c0_85 = arith.constant 0 : index
    %206 = vector.load %arg6[%c0_83, %c0_84, %c0_85] : memref<1x1x384xf32, #tpu.memory_space<vmem>>, vector<1x1x384xf32>
    %207 = vector.shape_cast %206 : vector<1x1x384xf32> to vector<1x384xf32>
    %208 = vector.broadcast %207 : vector<1x384xf32> to vector<8x384xf32>
    %209 = arith.addf %205, %208 : vector<8x384xf32>
    %c1_86 = arith.constant 1 : index
    %c0_87 = arith.constant 0 : index
    %c0_88 = arith.constant 0 : index
    %210 = vector.load %arg3[%c1_86, %c0_87, %c0_88] : memref<2x128x384xf32, #tpu.memory_space<vmem>>, vector<1x128x384xf32>
    %211 = vector.shape_cast %210 : vector<1x128x384xf32> to vector<128x384xf32>
    %cst_89 = arith.constant dense<0.000000e+00> : vector<8x384xf32>
    %212 = tpu.matmul %162, %211, %cst_89 {dimension_numbers = #tpu.dot_dimension_numbers<[1], [0], [0], [1], [0, 0, 1, 1], [], []>} : vector<8x128xf32>, vector<128x384xf32>, vector<8x384xf32> -> vector<8x384xf32>
    %c1_90 = arith.constant 1 : index
    %c0_91 = arith.constant 0 : index
    %c0_92 = arith.constant 0 : index
    %213 = vector.load %arg4[%c1_90, %c0_91, %c0_92] : memref<2x1x128xf32, #tpu.memory_space<vmem>>, vector<1x1x128xf32>
    %214 = vector.shape_cast %213 : vector<1x1x128xf32> to vector<1x128xf32>
    %215 = vector.extract_strided_slice %209 {offsets = [0, 0], sizes = [8, 128], strides = [1, 1]} : vector<8x384xf32> to vector<8x128xf32>
    %216 = vector.extract_strided_slice %212 {offsets = [0, 0], sizes = [8, 128], strides = [1, 1]} : vector<8x384xf32> to vector<8x128xf32>
    %217 = arith.addf %215, %216 : vector<8x128xf32>
    %218 = arith.negf %217 : vector<8x128xf32>
    %219 = math.exp %218 : vector<8x128xf32>
    %cst_93 = arith.constant 1.000000e+00 : f32
    %220 = vector.broadcast %cst_93 : f32 to vector<8x128xf32>
    %221 = arith.addf %220, %219 : vector<8x128xf32>
    %222 = arith.divf %220, %221 : vector<8x128xf32>
    %223 = vector.extract_strided_slice %209 {offsets = [0, 128], sizes = [8, 128], strides = [1, 1]} : vector<8x384xf32> to vector<8x128xf32>
    %224 = vector.extract_strided_slice %212 {offsets = [0, 128], sizes = [8, 128], strides = [1, 1]} : vector<8x384xf32> to vector<8x128xf32>
    %225 = arith.addf %223, %224 : vector<8x128xf32>
    %226 = arith.negf %225 : vector<8x128xf32>
    %227 = math.exp %226 : vector<8x128xf32>
    %cst_94 = arith.constant 1.000000e+00 : f32
    %228 = vector.broadcast %cst_94 : f32 to vector<8x128xf32>
    %229 = arith.addf %228, %227 : vector<8x128xf32>
    %230 = arith.divf %228, %229 : vector<8x128xf32>
    %231 = vector.extract_strided_slice %209 {offsets = [0, 256], sizes = [8, 128], strides = [1, 1]} : vector<8x384xf32> to vector<8x128xf32>
    %232 = vector.extract_strided_slice %212 {offsets = [0, 256], sizes = [8, 128], strides = [1, 1]} : vector<8x384xf32> to vector<8x128xf32>
    %233 = vector.broadcast %214 : vector<1x128xf32> to vector<8x128xf32>
    %234 = arith.addf %232, %233 : vector<8x128xf32>
    %235 = arith.mulf %222, %234 : vector<8x128xf32>
    %236 = arith.addf %231, %235 : vector<8x128xf32>
    %237 = math.tanh %236 : vector<8x128xf32>
    %cst_95 = arith.constant 1.000000e+00 : f32
    %238 = vector.broadcast %cst_95 : f32 to vector<8x128xf32>
    %239 = arith.subf %238, %230 : vector<8x128xf32>
    %240 = arith.mulf %239, %237 : vector<8x128xf32>
    %241 = arith.mulf %230, %162 : vector<8x128xf32>
    %242 = arith.addf %240, %241 : vector<8x128xf32>
    %243 = arith.index_cast %c2_i32 : i32 to index
    %c0_96 = arith.constant 0 : index
    %c0_97 = arith.constant 0 : index
    %244 = vector.load %arg7[%243, %c0_96, %c0_97] : memref<8x8x128xf32, #tpu.memory_space<vmem>>, vector<1x8x128xf32>
    %245 = vector.shape_cast %244 : vector<1x8x128xf32> to vector<8x128xf32>
    %246 = vector.shape_cast %242 : vector<8x128xf32> to vector<1x8x128xf32>
    tpu.vector_store %arg7[%243, %c0_96, %c0_97], %246 {strides = array<i32>} : memref<8x8x128xf32, #tpu.memory_space<vmem>>, vector<1x8x128xf32>,
    %c3_i32 = arith.constant 3 : i32
    %247 = arith.index_cast %c3_i32 : i32 to index
    %c0_98 = arith.constant 0 : index
    %c0_99 = arith.constant 0 : index
    %248 = vector.load %arg1[%247, %c0_98, %c0_99] : memref<8x8x384xf32, #tpu.memory_space<vmem>>, vector<1x8x384xf32>
    %249 = vector.shape_cast %248 : vector<1x8x384xf32> to vector<8x384xf32>
    %c0_100 = arith.constant 0 : index
    %c0_101 = arith.constant 0 : index
    %c0_102 = arith.constant 0 : index
    %250 = vector.load %arg3[%c0_100, %c0_101, %c0_102] : memref<2x128x384xf32, #tpu.memory_space<vmem>>, vector<1x128x384xf32>
    %251 = vector.shape_cast %250 : vector<1x128x384xf32> to vector<128x384xf32>
    %cst_103 = arith.constant dense<0.000000e+00> : vector<8x384xf32>
    %252 = tpu.matmul %202, %251, %cst_103 {dimension_numbers = #tpu.dot_dimension_numbers<[1], [0], [0], [1], [0, 0, 1, 1], [], []>} : vector<8x128xf32>, vector<128x384xf32>, vector<8x384xf32> -> vector<8x384xf32>
    %c0_104 = arith.constant 0 : index
    %c0_105 = arith.constant 0 : index
    %c0_106 = arith.constant 0 : index
    %253 = vector.load %arg4[%c0_104, %c0_105, %c0_106] : memref<2x1x128xf32, #tpu.memory_space<vmem>>, vector<1x1x128xf32>
    %254 = vector.shape_cast %253 : vector<1x1x128xf32> to vector<1x128xf32>
    %255 = vector.extract_strided_slice %249 {offsets = [0, 0], sizes = [8, 128], strides = [1, 1]} : vector<8x384xf32> to vector<8x128xf32>
    %256 = vector.extract_strided_slice %252 {offsets = [0, 0], sizes = [8, 128], strides = [1, 1]} : vector<8x384xf32> to vector<8x128xf32>
    %257 = arith.addf %255, %256 : vector<8x128xf32>
    %258 = arith.negf %257 : vector<8x128xf32>
    %259 = math.exp %258 : vector<8x128xf32>
    %cst_107 = arith.constant 1.000000e+00 : f32
    %260 = vector.broadcast %cst_107 : f32 to vector<8x128xf32>
    %261 = arith.addf %260, %259 : vector<8x128xf32>
    %262 = arith.divf %260, %261 : vector<8x128xf32>
    %263 = vector.extract_strided_slice %249 {offsets = [0, 128], sizes = [8, 128], strides = [1, 1]} : vector<8x384xf32> to vector<8x128xf32>
    %264 = vector.extract_strided_slice %252 {offsets = [0, 128], sizes = [8, 128], strides = [1, 1]} : vector<8x384xf32> to vector<8x128xf32>
    %265 = arith.addf %263, %264 : vector<8x128xf32>
    %266 = arith.negf %265 : vector<8x128xf32>
    %267 = math.exp %266 : vector<8x128xf32>
    %cst_108 = arith.constant 1.000000e+00 : f32
    %268 = vector.broadcast %cst_108 : f32 to vector<8x128xf32>
    %269 = arith.addf %268, %267 : vector<8x128xf32>
    %270 = arith.divf %268, %269 : vector<8x128xf32>
    %271 = vector.extract_strided_slice %249 {offsets = [0, 256], sizes = [8, 128], strides = [1, 1]} : vector<8x384xf32> to vector<8x128xf32>
    %272 = vector.extract_strided_slice %252 {offsets = [0, 256], sizes = [8, 128], strides = [1, 1]} : vector<8x384xf32> to vector<8x128xf32>
    %273 = vector.broadcast %254 : vector<1x128xf32> to vector<8x128xf32>
    %274 = arith.addf %272, %273 : vector<8x128xf32>
    %275 = arith.mulf %262, %274 : vector<8x128xf32>
    %276 = arith.addf %271, %275 : vector<8x128xf32>
    %277 = math.tanh %276 : vector<8x128xf32>
    %cst_109 = arith.constant 1.000000e+00 : f32
    %278 = vector.broadcast %cst_109 : f32 to vector<8x128xf32>
    %279 = arith.subf %278, %270 : vector<8x128xf32>
    %280 = arith.mulf %279, %277 : vector<8x128xf32>
    %281 = arith.mulf %270, %202 : vector<8x128xf32>
    %282 = arith.addf %280, %281 : vector<8x128xf32>
    %c0_110 = arith.constant 0 : index
    %c0_111 = arith.constant 0 : index
    %c0_112 = arith.constant 0 : index
    %283 = vector.load %arg5[%c0_110, %c0_111, %c0_112] : memref<1x128x384xf32, #tpu.memory_space<vmem>>, vector<1x128x384xf32>
    %284 = vector.shape_cast %283 : vector<1x128x384xf32> to vector<128x384xf32>
    %cst_113 = arith.constant dense<0.000000e+00> : vector<8x384xf32>
    %285 = tpu.matmul %282, %284, %cst_113 {dimension_numbers = #tpu.dot_dimension_numbers<[1], [0], [0], [1], [0, 0, 1, 1], [], []>} : vector<8x128xf32>, vector<128x384xf32>, vector<8x384xf32> -> vector<8x384xf32>
    %c0_114 = arith.constant 0 : index
    %c0_115 = arith.constant 0 : index
    %c0_116 = arith.constant 0 : index
    %286 = vector.load %arg6[%c0_114, %c0_115, %c0_116] : memref<1x1x384xf32, #tpu.memory_space<vmem>>, vector<1x1x384xf32>
    %287 = vector.shape_cast %286 : vector<1x1x384xf32> to vector<1x384xf32>
    %288 = vector.broadcast %287 : vector<1x384xf32> to vector<8x384xf32>
    %289 = arith.addf %285, %288 : vector<8x384xf32>
    %c1_117 = arith.constant 1 : index
    %c0_118 = arith.constant 0 : index
    %c0_119 = arith.constant 0 : index
    %290 = vector.load %arg3[%c1_117, %c0_118, %c0_119] : memref<2x128x384xf32, #tpu.memory_space<vmem>>, vector<1x128x384xf32>
    %291 = vector.shape_cast %290 : vector<1x128x384xf32> to vector<128x384xf32>
    %cst_120 = arith.constant dense<0.000000e+00> : vector<8x384xf32>
    %292 = tpu.matmul %242, %291, %cst_120 {dimension_numbers = #tpu.dot_dimension_numbers<[1], [0], [0], [1], [0, 0, 1, 1], [], []>} : vector<8x128xf32>, vector<128x384xf32>, vector<8x384xf32> -> vector<8x384xf32>
    %c1_121 = arith.constant 1 : index
    %c0_122 = arith.constant 0 : index
    %c0_123 = arith.constant 0 : index
    %293 = vector.load %arg4[%c1_121, %c0_122, %c0_123] : memref<2x1x128xf32, #tpu.memory_space<vmem>>, vector<1x1x128xf32>
    %294 = vector.shape_cast %293 : vector<1x1x128xf32> to vector<1x128xf32>
    %295 = vector.extract_strided_slice %289 {offsets = [0, 0], sizes = [8, 128], strides = [1, 1]} : vector<8x384xf32> to vector<8x128xf32>
    %296 = vector.extract_strided_slice %292 {offsets = [0, 0], sizes = [8, 128], strides = [1, 1]} : vector<8x384xf32> to vector<8x128xf32>
    %297 = arith.addf %295, %296 : vector<8x128xf32>
    %298 = arith.negf %297 : vector<8x128xf32>
    %299 = math.exp %298 : vector<8x128xf32>
    %cst_124 = arith.constant 1.000000e+00 : f32
    %300 = vector.broadcast %cst_124 : f32 to vector<8x128xf32>
    %301 = arith.addf %300, %299 : vector<8x128xf32>
    %302 = arith.divf %300, %301 : vector<8x128xf32>
    %303 = vector.extract_strided_slice %289 {offsets = [0, 128], sizes = [8, 128], strides = [1, 1]} : vector<8x384xf32> to vector<8x128xf32>
    %304 = vector.extract_strided_slice %292 {offsets = [0, 128], sizes = [8, 128], strides = [1, 1]} : vector<8x384xf32> to vector<8x128xf32>
    %305 = arith.addf %303, %304 : vector<8x128xf32>
    %306 = arith.negf %305 : vector<8x128xf32>
    %307 = math.exp %306 : vector<8x128xf32>
    %cst_125 = arith.constant 1.000000e+00 : f32
    %308 = vector.broadcast %cst_125 : f32 to vector<8x128xf32>
    %309 = arith.addf %308, %307 : vector<8x128xf32>
    %310 = arith.divf %308, %309 : vector<8x128xf32>
    %311 = vector.extract_strided_slice %289 {offsets = [0, 256], sizes = [8, 128], strides = [1, 1]} : vector<8x384xf32> to vector<8x128xf32>
    %312 = vector.extract_strided_slice %292 {offsets = [0, 256], sizes = [8, 128], strides = [1, 1]} : vector<8x384xf32> to vector<8x128xf32>
    %313 = vector.broadcast %294 : vector<1x128xf32> to vector<8x128xf32>
    %314 = arith.addf %312, %313 : vector<8x128xf32>
    %315 = arith.mulf %302, %314 : vector<8x128xf32>
    %316 = arith.addf %311, %315 : vector<8x128xf32>
    %317 = math.tanh %316 : vector<8x128xf32>
    %cst_126 = arith.constant 1.000000e+00 : f32
    %318 = vector.broadcast %cst_126 : f32 to vector<8x128xf32>
    %319 = arith.subf %318, %310 : vector<8x128xf32>
    %320 = arith.mulf %319, %317 : vector<8x128xf32>
    %321 = arith.mulf %310, %242 : vector<8x128xf32>
    %322 = arith.addf %320, %321 : vector<8x128xf32>
    %323 = arith.index_cast %c3_i32 : i32 to index
    %c0_127 = arith.constant 0 : index
    %c0_128 = arith.constant 0 : index
    %324 = vector.load %arg7[%323, %c0_127, %c0_128] : memref<8x8x128xf32, #tpu.memory_space<vmem>>, vector<1x8x128xf32>
    %325 = vector.shape_cast %324 : vector<1x8x128xf32> to vector<8x128xf32>
    %326 = vector.shape_cast %322 : vector<8x128xf32> to vector<1x8x128xf32>
    tpu.vector_store %arg7[%323, %c0_127, %c0_128], %326 {strides = array<i32>} : memref<8x8x128xf32, #tpu.memory_space<vmem>>, vector<1x8x128xf32>,
    %c4_i32 = arith.constant 4 : i32
    %327 = arith.index_cast %c4_i32 : i32 to index
    %c0_129 = arith.constant 0 : index
    %c0_130 = arith.constant 0 : index
    %328 = vector.load %arg1[%327, %c0_129, %c0_130] : memref<8x8x384xf32, #tpu.memory_space<vmem>>, vector<1x8x384xf32>
    %329 = vector.shape_cast %328 : vector<1x8x384xf32> to vector<8x384xf32>
    %c0_131 = arith.constant 0 : index
    %c0_132 = arith.constant 0 : index
    %c0_133 = arith.constant 0 : index
    %330 = vector.load %arg3[%c0_131, %c0_132, %c0_133] : memref<2x128x384xf32, #tpu.memory_space<vmem>>, vector<1x128x384xf32>
    %331 = vector.shape_cast %330 : vector<1x128x384xf32> to vector<128x384xf32>
    %cst_134 = arith.constant dense<0.000000e+00> : vector<8x384xf32>
    %332 = tpu.matmul %282, %331, %cst_134 {dimension_numbers = #tpu.dot_dimension_numbers<[1], [0], [0], [1], [0, 0, 1, 1], [], []>} : vector<8x128xf32>, vector<128x384xf32>, vector<8x384xf32> -> vector<8x384xf32>
    %c0_135 = arith.constant 0 : index
    %c0_136 = arith.constant 0 : index
    %c0_137 = arith.constant 0 : index
    %333 = vector.load %arg4[%c0_135, %c0_136, %c0_137] : memref<2x1x128xf32, #tpu.memory_space<vmem>>, vector<1x1x128xf32>
    %334 = vector.shape_cast %333 : vector<1x1x128xf32> to vector<1x128xf32>
    %335 = vector.extract_strided_slice %329 {offsets = [0, 0], sizes = [8, 128], strides = [1, 1]} : vector<8x384xf32> to vector<8x128xf32>
    %336 = vector.extract_strided_slice %332 {offsets = [0, 0], sizes = [8, 128], strides = [1, 1]} : vector<8x384xf32> to vector<8x128xf32>
    %337 = arith.addf %335, %336 : vector<8x128xf32>
    %338 = arith.negf %337 : vector<8x128xf32>
    %339 = math.exp %338 : vector<8x128xf32>
    %cst_138 = arith.constant 1.000000e+00 : f32
    %340 = vector.broadcast %cst_138 : f32 to vector<8x128xf32>
    %341 = arith.addf %340, %339 : vector<8x128xf32>
    %342 = arith.divf %340, %341 : vector<8x128xf32>
    %343 = vector.extract_strided_slice %329 {offsets = [0, 128], sizes = [8, 128], strides = [1, 1]} : vector<8x384xf32> to vector<8x128xf32>
    %344 = vector.extract_strided_slice %332 {offsets = [0, 128], sizes = [8, 128], strides = [1, 1]} : vector<8x384xf32> to vector<8x128xf32>
    %345 = arith.addf %343, %344 : vector<8x128xf32>
    %346 = arith.negf %345 : vector<8x128xf32>
    %347 = math.exp %346 : vector<8x128xf32>
    %cst_139 = arith.constant 1.000000e+00 : f32
    %348 = vector.broadcast %cst_139 : f32 to vector<8x128xf32>
    %349 = arith.addf %348, %347 : vector<8x128xf32>
    %350 = arith.divf %348, %349 : vector<8x128xf32>
    %351 = vector.extract_strided_slice %329 {offsets = [0, 256], sizes = [8, 128], strides = [1, 1]} : vector<8x384xf32> to vector<8x128xf32>
    %352 = vector.extract_strided_slice %332 {offsets = [0, 256], sizes = [8, 128], strides = [1, 1]} : vector<8x384xf32> to vector<8x128xf32>
    %353 = vector.broadcast %334 : vector<1x128xf32> to vector<8x128xf32>
    %354 = arith.addf %352, %353 : vector<8x128xf32>
    %355 = arith.mulf %342, %354 : vector<8x128xf32>
    %356 = arith.addf %351, %355 : vector<8x128xf32>
    %357 = math.tanh %356 : vector<8x128xf32>
    %cst_140 = arith.constant 1.000000e+00 : f32
    %358 = vector.broadcast %cst_140 : f32 to vector<8x128xf32>
    %359 = arith.subf %358, %350 : vector<8x128xf32>
    %360 = arith.mulf %359, %357 : vector<8x128xf32>
    %361 = arith.mulf %350, %282 : vector<8x128xf32>
    %362 = arith.addf %360, %361 : vector<8x128xf32>
    %c0_141 = arith.constant 0 : index
    %c0_142 = arith.constant 0 : index
    %c0_143 = arith.constant 0 : index
    %363 = vector.load %arg5[%c0_141, %c0_142, %c0_143] : memref<1x128x384xf32, #tpu.memory_space<vmem>>, vector<1x128x384xf32>
    %364 = vector.shape_cast %363 : vector<1x128x384xf32> to vector<128x384xf32>
    %cst_144 = arith.constant dense<0.000000e+00> : vector<8x384xf32>
    %365 = tpu.matmul %362, %364, %cst_144 {dimension_numbers = #tpu.dot_dimension_numbers<[1], [0], [0], [1], [0, 0, 1, 1], [], []>} : vector<8x128xf32>, vector<128x384xf32>, vector<8x384xf32> -> vector<8x384xf32>
    %c0_145 = arith.constant 0 : index
    %c0_146 = arith.constant 0 : index
    %c0_147 = arith.constant 0 : index
    %366 = vector.load %arg6[%c0_145, %c0_146, %c0_147] : memref<1x1x384xf32, #tpu.memory_space<vmem>>, vector<1x1x384xf32>
    %367 = vector.shape_cast %366 : vector<1x1x384xf32> to vector<1x384xf32>
    %368 = vector.broadcast %367 : vector<1x384xf32> to vector<8x384xf32>
    %369 = arith.addf %365, %368 : vector<8x384xf32>
    %c1_148 = arith.constant 1 : index
    %c0_149 = arith.constant 0 : index
    %c0_150 = arith.constant 0 : index
    %370 = vector.load %arg3[%c1_148, %c0_149, %c0_150] : memref<2x128x384xf32, #tpu.memory_space<vmem>>, vector<1x128x384xf32>
    %371 = vector.shape_cast %370 : vector<1x128x384xf32> to vector<128x384xf32>
    %cst_151 = arith.constant dense<0.000000e+00> : vector<8x384xf32>
    %372 = tpu.matmul %322, %371, %cst_151 {dimension_numbers = #tpu.dot_dimension_numbers<[1], [0], [0], [1], [0, 0, 1, 1], [], []>} : vector<8x128xf32>, vector<128x384xf32>, vector<8x384xf32> -> vector<8x384xf32>
    %c1_152 = arith.constant 1 : index
    %c0_153 = arith.constant 0 : index
    %c0_154 = arith.constant 0 : index
    %373 = vector.load %arg4[%c1_152, %c0_153, %c0_154] : memref<2x1x128xf32, #tpu.memory_space<vmem>>, vector<1x1x128xf32>
    %374 = vector.shape_cast %373 : vector<1x1x128xf32> to vector<1x128xf32>
    %375 = vector.extract_strided_slice %369 {offsets = [0, 0], sizes = [8, 128], strides = [1, 1]} : vector<8x384xf32> to vector<8x128xf32>
    %376 = vector.extract_strided_slice %372 {offsets = [0, 0], sizes = [8, 128], strides = [1, 1]} : vector<8x384xf32> to vector<8x128xf32>
    %377 = arith.addf %375, %376 : vector<8x128xf32>
    %378 = arith.negf %377 : vector<8x128xf32>
    %379 = math.exp %378 : vector<8x128xf32>
    %cst_155 = arith.constant 1.000000e+00 : f32
    %380 = vector.broadcast %cst_155 : f32 to vector<8x128xf32>
    %381 = arith.addf %380, %379 : vector<8x128xf32>
    %382 = arith.divf %380, %381 : vector<8x128xf32>
    %383 = vector.extract_strided_slice %369 {offsets = [0, 128], sizes = [8, 128], strides = [1, 1]} : vector<8x384xf32> to vector<8x128xf32>
    %384 = vector.extract_strided_slice %372 {offsets = [0, 128], sizes = [8, 128], strides = [1, 1]} : vector<8x384xf32> to vector<8x128xf32>
    %385 = arith.addf %383, %384 : vector<8x128xf32>
    %386 = arith.negf %385 : vector<8x128xf32>
    %387 = math.exp %386 : vector<8x128xf32>
    %cst_156 = arith.constant 1.000000e+00 : f32
    %388 = vector.broadcast %cst_156 : f32 to vector<8x128xf32>
    %389 = arith.addf %388, %387 : vector<8x128xf32>
    %390 = arith.divf %388, %389 : vector<8x128xf32>
    %391 = vector.extract_strided_slice %369 {offsets = [0, 256], sizes = [8, 128], strides = [1, 1]} : vector<8x384xf32> to vector<8x128xf32>
    %392 = vector.extract_strided_slice %372 {offsets = [0, 256], sizes = [8, 128], strides = [1, 1]} : vector<8x384xf32> to vector<8x128xf32>
    %393 = vector.broadcast %374 : vector<1x128xf32> to vector<8x128xf32>
    %394 = arith.addf %392, %393 : vector<8x128xf32>
    %395 = arith.mulf %382, %394 : vector<8x128xf32>
    %396 = arith.addf %391, %395 : vector<8x128xf32>
    %397 = math.tanh %396 : vector<8x128xf32>
    %cst_157 = arith.constant 1.000000e+00 : f32
    %398 = vector.broadcast %cst_157 : f32 to vector<8x128xf32>
    %399 = arith.subf %398, %390 : vector<8x128xf32>
    %400 = arith.mulf %399, %397 : vector<8x128xf32>
    %401 = arith.mulf %390, %322 : vector<8x128xf32>
    %402 = arith.addf %400, %401 : vector<8x128xf32>
    %403 = arith.index_cast %c4_i32 : i32 to index
    %c0_158 = arith.constant 0 : index
    %c0_159 = arith.constant 0 : index
    %404 = vector.load %arg7[%403, %c0_158, %c0_159] : memref<8x8x128xf32, #tpu.memory_space<vmem>>, vector<1x8x128xf32>
    %405 = vector.shape_cast %404 : vector<1x8x128xf32> to vector<8x128xf32>
    %406 = vector.shape_cast %402 : vector<8x128xf32> to vector<1x8x128xf32>
    tpu.vector_store %arg7[%403, %c0_158, %c0_159], %406 {strides = array<i32>} : memref<8x8x128xf32, #tpu.memory_space<vmem>>, vector<1x8x128xf32>,
    %c5_i32 = arith.constant 5 : i32
    %407 = arith.index_cast %c5_i32 : i32 to index
    %c0_160 = arith.constant 0 : index
    %c0_161 = arith.constant 0 : index
    %408 = vector.load %arg1[%407, %c0_160, %c0_161] : memref<8x8x384xf32, #tpu.memory_space<vmem>>, vector<1x8x384xf32>
    %409 = vector.shape_cast %408 : vector<1x8x384xf32> to vector<8x384xf32>
    %c0_162 = arith.constant 0 : index
    %c0_163 = arith.constant 0 : index
    %c0_164 = arith.constant 0 : index
    %410 = vector.load %arg3[%c0_162, %c0_163, %c0_164] : memref<2x128x384xf32, #tpu.memory_space<vmem>>, vector<1x128x384xf32>
    %411 = vector.shape_cast %410 : vector<1x128x384xf32> to vector<128x384xf32>
    %cst_165 = arith.constant dense<0.000000e+00> : vector<8x384xf32>
    %412 = tpu.matmul %362, %411, %cst_165 {dimension_numbers = #tpu.dot_dimension_numbers<[1], [0], [0], [1], [0, 0, 1, 1], [], []>} : vector<8x128xf32>, vector<128x384xf32>, vector<8x384xf32> -> vector<8x384xf32>
    %c0_166 = arith.constant 0 : index
    %c0_167 = arith.constant 0 : index
    %c0_168 = arith.constant 0 : index
    %413 = vector.load %arg4[%c0_166, %c0_167, %c0_168] : memref<2x1x128xf32, #tpu.memory_space<vmem>>, vector<1x1x128xf32>
    %414 = vector.shape_cast %413 : vector<1x1x128xf32> to vector<1x128xf32>
    %415 = vector.extract_strided_slice %409 {offsets = [0, 0], sizes = [8, 128], strides = [1, 1]} : vector<8x384xf32> to vector<8x128xf32>
    %416 = vector.extract_strided_slice %412 {offsets = [0, 0], sizes = [8, 128], strides = [1, 1]} : vector<8x384xf32> to vector<8x128xf32>
    %417 = arith.addf %415, %416 : vector<8x128xf32>
    %418 = arith.negf %417 : vector<8x128xf32>
    %419 = math.exp %418 : vector<8x128xf32>
    %cst_169 = arith.constant 1.000000e+00 : f32
    %420 = vector.broadcast %cst_169 : f32 to vector<8x128xf32>
    %421 = arith.addf %420, %419 : vector<8x128xf32>
    %422 = arith.divf %420, %421 : vector<8x128xf32>
    %423 = vector.extract_strided_slice %409 {offsets = [0, 128], sizes = [8, 128], strides = [1, 1]} : vector<8x384xf32> to vector<8x128xf32>
    %424 = vector.extract_strided_slice %412 {offsets = [0, 128], sizes = [8, 128], strides = [1, 1]} : vector<8x384xf32> to vector<8x128xf32>
    %425 = arith.addf %423, %424 : vector<8x128xf32>
    %426 = arith.negf %425 : vector<8x128xf32>
    %427 = math.exp %426 : vector<8x128xf32>
    %cst_170 = arith.constant 1.000000e+00 : f32
    %428 = vector.broadcast %cst_170 : f32 to vector<8x128xf32>
    %429 = arith.addf %428, %427 : vector<8x128xf32>
    %430 = arith.divf %428, %429 : vector<8x128xf32>
    %431 = vector.extract_strided_slice %409 {offsets = [0, 256], sizes = [8, 128], strides = [1, 1]} : vector<8x384xf32> to vector<8x128xf32>
    %432 = vector.extract_strided_slice %412 {offsets = [0, 256], sizes = [8, 128], strides = [1, 1]} : vector<8x384xf32> to vector<8x128xf32>
    %433 = vector.broadcast %414 : vector<1x128xf32> to vector<8x128xf32>
    %434 = arith.addf %432, %433 : vector<8x128xf32>
    %435 = arith.mulf %422, %434 : vector<8x128xf32>
    %436 = arith.addf %431, %435 : vector<8x128xf32>
    %437 = math.tanh %436 : vector<8x128xf32>
    %cst_171 = arith.constant 1.000000e+00 : f32
    %438 = vector.broadcast %cst_171 : f32 to vector<8x128xf32>
    %439 = arith.subf %438, %430 : vector<8x128xf32>
    %440 = arith.mulf %439, %437 : vector<8x128xf32>
    %441 = arith.mulf %430, %362 : vector<8x128xf32>
    %442 = arith.addf %440, %441 : vector<8x128xf32>
    %c0_172 = arith.constant 0 : index
    %c0_173 = arith.constant 0 : index
    %c0_174 = arith.constant 0 : index
    %443 = vector.load %arg5[%c0_172, %c0_173, %c0_174] : memref<1x128x384xf32, #tpu.memory_space<vmem>>, vector<1x128x384xf32>
    %444 = vector.shape_cast %443 : vector<1x128x384xf32> to vector<128x384xf32>
    %cst_175 = arith.constant dense<0.000000e+00> : vector<8x384xf32>
    %445 = tpu.matmul %442, %444, %cst_175 {dimension_numbers = #tpu.dot_dimension_numbers<[1], [0], [0], [1], [0, 0, 1, 1], [], []>} : vector<8x128xf32>, vector<128x384xf32>, vector<8x384xf32> -> vector<8x384xf32>
    %c0_176 = arith.constant 0 : index
    %c0_177 = arith.constant 0 : index
    %c0_178 = arith.constant 0 : index
    %446 = vector.load %arg6[%c0_176, %c0_177, %c0_178] : memref<1x1x384xf32, #tpu.memory_space<vmem>>, vector<1x1x384xf32>
    %447 = vector.shape_cast %446 : vector<1x1x384xf32> to vector<1x384xf32>
    %448 = vector.broadcast %447 : vector<1x384xf32> to vector<8x384xf32>
    %449 = arith.addf %445, %448 : vector<8x384xf32>
    %c1_179 = arith.constant 1 : index
    %c0_180 = arith.constant 0 : index
    %c0_181 = arith.constant 0 : index
    %450 = vector.load %arg3[%c1_179, %c0_180, %c0_181] : memref<2x128x384xf32, #tpu.memory_space<vmem>>, vector<1x128x384xf32>
    %451 = vector.shape_cast %450 : vector<1x128x384xf32> to vector<128x384xf32>
    %cst_182 = arith.constant dense<0.000000e+00> : vector<8x384xf32>
    %452 = tpu.matmul %402, %451, %cst_182 {dimension_numbers = #tpu.dot_dimension_numbers<[1], [0], [0], [1], [0, 0, 1, 1], [], []>} : vector<8x128xf32>, vector<128x384xf32>, vector<8x384xf32> -> vector<8x384xf32>
    %c1_183 = arith.constant 1 : index
    %c0_184 = arith.constant 0 : index
    %c0_185 = arith.constant 0 : index
    %453 = vector.load %arg4[%c1_183, %c0_184, %c0_185] : memref<2x1x128xf32, #tpu.memory_space<vmem>>, vector<1x1x128xf32>
    %454 = vector.shape_cast %453 : vector<1x1x128xf32> to vector<1x128xf32>
    %455 = vector.extract_strided_slice %449 {offsets = [0, 0], sizes = [8, 128], strides = [1, 1]} : vector<8x384xf32> to vector<8x128xf32>
    %456 = vector.extract_strided_slice %452 {offsets = [0, 0], sizes = [8, 128], strides = [1, 1]} : vector<8x384xf32> to vector<8x128xf32>
    %457 = arith.addf %455, %456 : vector<8x128xf32>
    %458 = arith.negf %457 : vector<8x128xf32>
    %459 = math.exp %458 : vector<8x128xf32>
    %cst_186 = arith.constant 1.000000e+00 : f32
    %460 = vector.broadcast %cst_186 : f32 to vector<8x128xf32>
    %461 = arith.addf %460, %459 : vector<8x128xf32>
    %462 = arith.divf %460, %461 : vector<8x128xf32>
    %463 = vector.extract_strided_slice %449 {offsets = [0, 128], sizes = [8, 128], strides = [1, 1]} : vector<8x384xf32> to vector<8x128xf32>
    %464 = vector.extract_strided_slice %452 {offsets = [0, 128], sizes = [8, 128], strides = [1, 1]} : vector<8x384xf32> to vector<8x128xf32>
    %465 = arith.addf %463, %464 : vector<8x128xf32>
    %466 = arith.negf %465 : vector<8x128xf32>
    %467 = math.exp %466 : vector<8x128xf32>
    %cst_187 = arith.constant 1.000000e+00 : f32
    %468 = vector.broadcast %cst_187 : f32 to vector<8x128xf32>
    %469 = arith.addf %468, %467 : vector<8x128xf32>
    %470 = arith.divf %468, %469 : vector<8x128xf32>
    %471 = vector.extract_strided_slice %449 {offsets = [0, 256], sizes = [8, 128], strides = [1, 1]} : vector<8x384xf32> to vector<8x128xf32>
    %472 = vector.extract_strided_slice %452 {offsets = [0, 256], sizes = [8, 128], strides = [1, 1]} : vector<8x384xf32> to vector<8x128xf32>
    %473 = vector.broadcast %454 : vector<1x128xf32> to vector<8x128xf32>
    %474 = arith.addf %472, %473 : vector<8x128xf32>
    %475 = arith.mulf %462, %474 : vector<8x128xf32>
    %476 = arith.addf %471, %475 : vector<8x128xf32>
    %477 = math.tanh %476 : vector<8x128xf32>
    %cst_188 = arith.constant 1.000000e+00 : f32
    %478 = vector.broadcast %cst_188 : f32 to vector<8x128xf32>
    %479 = arith.subf %478, %470 : vector<8x128xf32>
    %480 = arith.mulf %479, %477 : vector<8x128xf32>
    %481 = arith.mulf %470, %402 : vector<8x128xf32>
    %482 = arith.addf %480, %481 : vector<8x128xf32>
    %483 = arith.index_cast %c5_i32 : i32 to index
    %c0_189 = arith.constant 0 : index
    %c0_190 = arith.constant 0 : index
    %484 = vector.load %arg7[%483, %c0_189, %c0_190] : memref<8x8x128xf32, #tpu.memory_space<vmem>>, vector<1x8x128xf32>
    %485 = vector.shape_cast %484 : vector<1x8x128xf32> to vector<8x128xf32>
    %486 = vector.shape_cast %482 : vector<8x128xf32> to vector<1x8x128xf32>
    tpu.vector_store %arg7[%483, %c0_189, %c0_190], %486 {strides = array<i32>} : memref<8x8x128xf32, #tpu.memory_space<vmem>>, vector<1x8x128xf32>,
    %c6_i32 = arith.constant 6 : i32
    %487 = arith.index_cast %c6_i32 : i32 to index
    %c0_191 = arith.constant 0 : index
    %c0_192 = arith.constant 0 : index
    %488 = vector.load %arg1[%487, %c0_191, %c0_192] : memref<8x8x384xf32, #tpu.memory_space<vmem>>, vector<1x8x384xf32>
    %489 = vector.shape_cast %488 : vector<1x8x384xf32> to vector<8x384xf32>
    %c0_193 = arith.constant 0 : index
    %c0_194 = arith.constant 0 : index
    %c0_195 = arith.constant 0 : index
    %490 = vector.load %arg3[%c0_193, %c0_194, %c0_195] : memref<2x128x384xf32, #tpu.memory_space<vmem>>, vector<1x128x384xf32>
    %491 = vector.shape_cast %490 : vector<1x128x384xf32> to vector<128x384xf32>
    %cst_196 = arith.constant dense<0.000000e+00> : vector<8x384xf32>
    %492 = tpu.matmul %442, %491, %cst_196 {dimension_numbers = #tpu.dot_dimension_numbers<[1], [0], [0], [1], [0, 0, 1, 1], [], []>} : vector<8x128xf32>, vector<128x384xf32>, vector<8x384xf32> -> vector<8x384xf32>
    %c0_197 = arith.constant 0 : index
    %c0_198 = arith.constant 0 : index
    %c0_199 = arith.constant 0 : index
    %493 = vector.load %arg4[%c0_197, %c0_198, %c0_199] : memref<2x1x128xf32, #tpu.memory_space<vmem>>, vector<1x1x128xf32>
    %494 = vector.shape_cast %493 : vector<1x1x128xf32> to vector<1x128xf32>
    %495 = vector.extract_strided_slice %489 {offsets = [0, 0], sizes = [8, 128], strides = [1, 1]} : vector<8x384xf32> to vector<8x128xf32>
    %496 = vector.extract_strided_slice %492 {offsets = [0, 0], sizes = [8, 128], strides = [1, 1]} : vector<8x384xf32> to vector<8x128xf32>
    %497 = arith.addf %495, %496 : vector<8x128xf32>
    %498 = arith.negf %497 : vector<8x128xf32>
    %499 = math.exp %498 : vector<8x128xf32>
    %cst_200 = arith.constant 1.000000e+00 : f32
    %500 = vector.broadcast %cst_200 : f32 to vector<8x128xf32>
    %501 = arith.addf %500, %499 : vector<8x128xf32>
    %502 = arith.divf %500, %501 : vector<8x128xf32>
    %503 = vector.extract_strided_slice %489 {offsets = [0, 128], sizes = [8, 128], strides = [1, 1]} : vector<8x384xf32> to vector<8x128xf32>
    %504 = vector.extract_strided_slice %492 {offsets = [0, 128], sizes = [8, 128], strides = [1, 1]} : vector<8x384xf32> to vector<8x128xf32>
    %505 = arith.addf %503, %504 : vector<8x128xf32>
    %506 = arith.negf %505 : vector<8x128xf32>
    %507 = math.exp %506 : vector<8x128xf32>
    %cst_201 = arith.constant 1.000000e+00 : f32
    %508 = vector.broadcast %cst_201 : f32 to vector<8x128xf32>
    %509 = arith.addf %508, %507 : vector<8x128xf32>
    %510 = arith.divf %508, %509 : vector<8x128xf32>
    %511 = vector.extract_strided_slice %489 {offsets = [0, 256], sizes = [8, 128], strides = [1, 1]} : vector<8x384xf32> to vector<8x128xf32>
    %512 = vector.extract_strided_slice %492 {offsets = [0, 256], sizes = [8, 128], strides = [1, 1]} : vector<8x384xf32> to vector<8x128xf32>
    %513 = vector.broadcast %494 : vector<1x128xf32> to vector<8x128xf32>
    %514 = arith.addf %512, %513 : vector<8x128xf32>
    %515 = arith.mulf %502, %514 : vector<8x128xf32>
    %516 = arith.addf %511, %515 : vector<8x128xf32>
    %517 = math.tanh %516 : vector<8x128xf32>
    %cst_202 = arith.constant 1.000000e+00 : f32
    %518 = vector.broadcast %cst_202 : f32 to vector<8x128xf32>
    %519 = arith.subf %518, %510 : vector<8x128xf32>
    %520 = arith.mulf %519, %517 : vector<8x128xf32>
    %521 = arith.mulf %510, %442 : vector<8x128xf32>
    %522 = arith.addf %520, %521 : vector<8x128xf32>
    %c0_203 = arith.constant 0 : index
    %c0_204 = arith.constant 0 : index
    %c0_205 = arith.constant 0 : index
    %523 = vector.load %arg5[%c0_203, %c0_204, %c0_205] : memref<1x128x384xf32, #tpu.memory_space<vmem>>, vector<1x128x384xf32>
    %524 = vector.shape_cast %523 : vector<1x128x384xf32> to vector<128x384xf32>
    %cst_206 = arith.constant dense<0.000000e+00> : vector<8x384xf32>
    %525 = tpu.matmul %522, %524, %cst_206 {dimension_numbers = #tpu.dot_dimension_numbers<[1], [0], [0], [1], [0, 0, 1, 1], [], []>} : vector<8x128xf32>, vector<128x384xf32>, vector<8x384xf32> -> vector<8x384xf32>
    %c0_207 = arith.constant 0 : index
    %c0_208 = arith.constant 0 : index
    %c0_209 = arith.constant 0 : index
    %526 = vector.load %arg6[%c0_207, %c0_208, %c0_209] : memref<1x1x384xf32, #tpu.memory_space<vmem>>, vector<1x1x384xf32>
    %527 = vector.shape_cast %526 : vector<1x1x384xf32> to vector<1x384xf32>
    %528 = vector.broadcast %527 : vector<1x384xf32> to vector<8x384xf32>
    %529 = arith.addf %525, %528 : vector<8x384xf32>
    %c1_210 = arith.constant 1 : index
    %c0_211 = arith.constant 0 : index
    %c0_212 = arith.constant 0 : index
    %530 = vector.load %arg3[%c1_210, %c0_211, %c0_212] : memref<2x128x384xf32, #tpu.memory_space<vmem>>, vector<1x128x384xf32>
    %531 = vector.shape_cast %530 : vector<1x128x384xf32> to vector<128x384xf32>
    %cst_213 = arith.constant dense<0.000000e+00> : vector<8x384xf32>
    %532 = tpu.matmul %482, %531, %cst_213 {dimension_numbers = #tpu.dot_dimension_numbers<[1], [0], [0], [1], [0, 0, 1, 1], [], []>} : vector<8x128xf32>, vector<128x384xf32>, vector<8x384xf32> -> vector<8x384xf32>
    %c1_214 = arith.constant 1 : index
    %c0_215 = arith.constant 0 : index
    %c0_216 = arith.constant 0 : index
    %533 = vector.load %arg4[%c1_214, %c0_215, %c0_216] : memref<2x1x128xf32, #tpu.memory_space<vmem>>, vector<1x1x128xf32>
    %534 = vector.shape_cast %533 : vector<1x1x128xf32> to vector<1x128xf32>
    %535 = vector.extract_strided_slice %529 {offsets = [0, 0], sizes = [8, 128], strides = [1, 1]} : vector<8x384xf32> to vector<8x128xf32>
    %536 = vector.extract_strided_slice %532 {offsets = [0, 0], sizes = [8, 128], strides = [1, 1]} : vector<8x384xf32> to vector<8x128xf32>
    %537 = arith.addf %535, %536 : vector<8x128xf32>
    %538 = arith.negf %537 : vector<8x128xf32>
    %539 = math.exp %538 : vector<8x128xf32>
    %cst_217 = arith.constant 1.000000e+00 : f32
    %540 = vector.broadcast %cst_217 : f32 to vector<8x128xf32>
    %541 = arith.addf %540, %539 : vector<8x128xf32>
    %542 = arith.divf %540, %541 : vector<8x128xf32>
    %543 = vector.extract_strided_slice %529 {offsets = [0, 128], sizes = [8, 128], strides = [1, 1]} : vector<8x384xf32> to vector<8x128xf32>
    %544 = vector.extract_strided_slice %532 {offsets = [0, 128], sizes = [8, 128], strides = [1, 1]} : vector<8x384xf32> to vector<8x128xf32>
    %545 = arith.addf %543, %544 : vector<8x128xf32>
    %546 = arith.negf %545 : vector<8x128xf32>
    %547 = math.exp %546 : vector<8x128xf32>
    %cst_218 = arith.constant 1.000000e+00 : f32
    %548 = vector.broadcast %cst_218 : f32 to vector<8x128xf32>
    %549 = arith.addf %548, %547 : vector<8x128xf32>
    %550 = arith.divf %548, %549 : vector<8x128xf32>
    %551 = vector.extract_strided_slice %529 {offsets = [0, 256], sizes = [8, 128], strides = [1, 1]} : vector<8x384xf32> to vector<8x128xf32>
    %552 = vector.extract_strided_slice %532 {offsets = [0, 256], sizes = [8, 128], strides = [1, 1]} : vector<8x384xf32> to vector<8x128xf32>
    %553 = vector.broadcast %534 : vector<1x128xf32> to vector<8x128xf32>
    %554 = arith.addf %552, %553 : vector<8x128xf32>
    %555 = arith.mulf %542, %554 : vector<8x128xf32>
    %556 = arith.addf %551, %555 : vector<8x128xf32>
    %557 = math.tanh %556 : vector<8x128xf32>
    %cst_219 = arith.constant 1.000000e+00 : f32
    %558 = vector.broadcast %cst_219 : f32 to vector<8x128xf32>
    %559 = arith.subf %558, %550 : vector<8x128xf32>
    %560 = arith.mulf %559, %557 : vector<8x128xf32>
    %561 = arith.mulf %550, %482 : vector<8x128xf32>
    %562 = arith.addf %560, %561 : vector<8x128xf32>
    %563 = arith.index_cast %c6_i32 : i32 to index
    %c0_220 = arith.constant 0 : index
    %c0_221 = arith.constant 0 : index
    %564 = vector.load %arg7[%563, %c0_220, %c0_221] : memref<8x8x128xf32, #tpu.memory_space<vmem>>, vector<1x8x128xf32>
    %565 = vector.shape_cast %564 : vector<1x8x128xf32> to vector<8x128xf32>
    %566 = vector.shape_cast %562 : vector<8x128xf32> to vector<1x8x128xf32>
    tpu.vector_store %arg7[%563, %c0_220, %c0_221], %566 {strides = array<i32>} : memref<8x8x128xf32, #tpu.memory_space<vmem>>, vector<1x8x128xf32>,
    %c7_i32 = arith.constant 7 : i32
    %567 = arith.index_cast %c7_i32 : i32 to index
    %c0_222 = arith.constant 0 : index
    %c0_223 = arith.constant 0 : index
    %568 = vector.load %arg1[%567, %c0_222, %c0_223] : memref<8x8x384xf32, #tpu.memory_space<vmem>>, vector<1x8x384xf32>
    %569 = vector.shape_cast %568 : vector<1x8x384xf32> to vector<8x384xf32>
    %c0_224 = arith.constant 0 : index
    %c0_225 = arith.constant 0 : index
    %c0_226 = arith.constant 0 : index
    %570 = vector.load %arg3[%c0_224, %c0_225, %c0_226] : memref<2x128x384xf32, #tpu.memory_space<vmem>>, vector<1x128x384xf32>
    %571 = vector.shape_cast %570 : vector<1x128x384xf32> to vector<128x384xf32>
    %cst_227 = arith.constant dense<0.000000e+00> : vector<8x384xf32>
    %572 = tpu.matmul %522, %571, %cst_227 {dimension_numbers = #tpu.dot_dimension_numbers<[1], [0], [0], [1], [0, 0, 1, 1], [], []>} : vector<8x128xf32>, vector<128x384xf32>, vector<8x384xf32> -> vector<8x384xf32>
    %c0_228 = arith.constant 0 : index
    %c0_229 = arith.constant 0 : index
    %c0_230 = arith.constant 0 : index
    %573 = vector.load %arg4[%c0_228, %c0_229, %c0_230] : memref<2x1x128xf32, #tpu.memory_space<vmem>>, vector<1x1x128xf32>
    %574 = vector.shape_cast %573 : vector<1x1x128xf32> to vector<1x128xf32>
    %575 = vector.extract_strided_slice %569 {offsets = [0, 0], sizes = [8, 128], strides = [1, 1]} : vector<8x384xf32> to vector<8x128xf32>
    %576 = vector.extract_strided_slice %572 {offsets = [0, 0], sizes = [8, 128], strides = [1, 1]} : vector<8x384xf32> to vector<8x128xf32>
    %577 = arith.addf %575, %576 : vector<8x128xf32>
    %578 = arith.negf %577 : vector<8x128xf32>
    %579 = math.exp %578 : vector<8x128xf32>
    %cst_231 = arith.constant 1.000000e+00 : f32
    %580 = vector.broadcast %cst_231 : f32 to vector<8x128xf32>
    %581 = arith.addf %580, %579 : vector<8x128xf32>
    %582 = arith.divf %580, %581 : vector<8x128xf32>
    %583 = vector.extract_strided_slice %569 {offsets = [0, 128], sizes = [8, 128], strides = [1, 1]} : vector<8x384xf32> to vector<8x128xf32>
    %584 = vector.extract_strided_slice %572 {offsets = [0, 128], sizes = [8, 128], strides = [1, 1]} : vector<8x384xf32> to vector<8x128xf32>
    %585 = arith.addf %583, %584 : vector<8x128xf32>
    %586 = arith.negf %585 : vector<8x128xf32>
    %587 = math.exp %586 : vector<8x128xf32>
    %cst_232 = arith.constant 1.000000e+00 : f32
    %588 = vector.broadcast %cst_232 : f32 to vector<8x128xf32>
    %589 = arith.addf %588, %587 : vector<8x128xf32>
    %590 = arith.divf %588, %589 : vector<8x128xf32>
    %591 = vector.extract_strided_slice %569 {offsets = [0, 256], sizes = [8, 128], strides = [1, 1]} : vector<8x384xf32> to vector<8x128xf32>
    %592 = vector.extract_strided_slice %572 {offsets = [0, 256], sizes = [8, 128], strides = [1, 1]} : vector<8x384xf32> to vector<8x128xf32>
    %593 = vector.broadcast %574 : vector<1x128xf32> to vector<8x128xf32>
    %594 = arith.addf %592, %593 : vector<8x128xf32>
    %595 = arith.mulf %582, %594 : vector<8x128xf32>
    %596 = arith.addf %591, %595 : vector<8x128xf32>
    %597 = math.tanh %596 : vector<8x128xf32>
    %cst_233 = arith.constant 1.000000e+00 : f32
    %598 = vector.broadcast %cst_233 : f32 to vector<8x128xf32>
    %599 = arith.subf %598, %590 : vector<8x128xf32>
    %600 = arith.mulf %599, %597 : vector<8x128xf32>
    %601 = arith.mulf %590, %522 : vector<8x128xf32>
    %602 = arith.addf %600, %601 : vector<8x128xf32>
    %c0_234 = arith.constant 0 : index
    %c0_235 = arith.constant 0 : index
    %c0_236 = arith.constant 0 : index
    %603 = vector.load %arg5[%c0_234, %c0_235, %c0_236] : memref<1x128x384xf32, #tpu.memory_space<vmem>>, vector<1x128x384xf32>
    %604 = vector.shape_cast %603 : vector<1x128x384xf32> to vector<128x384xf32>
    %cst_237 = arith.constant dense<0.000000e+00> : vector<8x384xf32>
    %605 = tpu.matmul %602, %604, %cst_237 {dimension_numbers = #tpu.dot_dimension_numbers<[1], [0], [0], [1], [0, 0, 1, 1], [], []>} : vector<8x128xf32>, vector<128x384xf32>, vector<8x384xf32> -> vector<8x384xf32>
    %c0_238 = arith.constant 0 : index
    %c0_239 = arith.constant 0 : index
    %c0_240 = arith.constant 0 : index
    %606 = vector.load %arg6[%c0_238, %c0_239, %c0_240] : memref<1x1x384xf32, #tpu.memory_space<vmem>>, vector<1x1x384xf32>
    %607 = vector.shape_cast %606 : vector<1x1x384xf32> to vector<1x384xf32>
    %608 = vector.broadcast %607 : vector<1x384xf32> to vector<8x384xf32>
    %609 = arith.addf %605, %608 : vector<8x384xf32>
    %c1_241 = arith.constant 1 : index
    %c0_242 = arith.constant 0 : index
    %c0_243 = arith.constant 0 : index
    %610 = vector.load %arg3[%c1_241, %c0_242, %c0_243] : memref<2x128x384xf32, #tpu.memory_space<vmem>>, vector<1x128x384xf32>
    %611 = vector.shape_cast %610 : vector<1x128x384xf32> to vector<128x384xf32>
    %cst_244 = arith.constant dense<0.000000e+00> : vector<8x384xf32>
    %612 = tpu.matmul %562, %611, %cst_244 {dimension_numbers = #tpu.dot_dimension_numbers<[1], [0], [0], [1], [0, 0, 1, 1], [], []>} : vector<8x128xf32>, vector<128x384xf32>, vector<8x384xf32> -> vector<8x384xf32>
    %c1_245 = arith.constant 1 : index
    %c0_246 = arith.constant 0 : index
    %c0_247 = arith.constant 0 : index
    %613 = vector.load %arg4[%c1_245, %c0_246, %c0_247] : memref<2x1x128xf32, #tpu.memory_space<vmem>>, vector<1x1x128xf32>
    %614 = vector.shape_cast %613 : vector<1x1x128xf32> to vector<1x128xf32>
    %615 = vector.extract_strided_slice %609 {offsets = [0, 0], sizes = [8, 128], strides = [1, 1]} : vector<8x384xf32> to vector<8x128xf32>
    %616 = vector.extract_strided_slice %612 {offsets = [0, 0], sizes = [8, 128], strides = [1, 1]} : vector<8x384xf32> to vector<8x128xf32>
    %617 = arith.addf %615, %616 : vector<8x128xf32>
    %618 = arith.negf %617 : vector<8x128xf32>
    %619 = math.exp %618 : vector<8x128xf32>
    %cst_248 = arith.constant 1.000000e+00 : f32
    %620 = vector.broadcast %cst_248 : f32 to vector<8x128xf32>
    %621 = arith.addf %620, %619 : vector<8x128xf32>
    %622 = arith.divf %620, %621 : vector<8x128xf32>
    %623 = vector.extract_strided_slice %609 {offsets = [0, 128], sizes = [8, 128], strides = [1, 1]} : vector<8x384xf32> to vector<8x128xf32>
    %624 = vector.extract_strided_slice %612 {offsets = [0, 128], sizes = [8, 128], strides = [1, 1]} : vector<8x384xf32> to vector<8x128xf32>
    %625 = arith.addf %623, %624 : vector<8x128xf32>
    %626 = arith.negf %625 : vector<8x128xf32>
    %627 = math.exp %626 : vector<8x128xf32>
    %cst_249 = arith.constant 1.000000e+00 : f32
    %628 = vector.broadcast %cst_249 : f32 to vector<8x128xf32>
    %629 = arith.addf %628, %627 : vector<8x128xf32>
    %630 = arith.divf %628, %629 : vector<8x128xf32>
    %631 = vector.extract_strided_slice %609 {offsets = [0, 256], sizes = [8, 128], strides = [1, 1]} : vector<8x384xf32> to vector<8x128xf32>
    %632 = vector.extract_strided_slice %612 {offsets = [0, 256], sizes = [8, 128], strides = [1, 1]} : vector<8x384xf32> to vector<8x128xf32>
    %633 = vector.broadcast %614 : vector<1x128xf32> to vector<8x128xf32>
    %634 = arith.addf %632, %633 : vector<8x128xf32>
    %635 = arith.mulf %622, %634 : vector<8x128xf32>
    %636 = arith.addf %631, %635 : vector<8x128xf32>
    %637 = math.tanh %636 : vector<8x128xf32>
    %cst_250 = arith.constant 1.000000e+00 : f32
    %638 = vector.broadcast %cst_250 : f32 to vector<8x128xf32>
    %639 = arith.subf %638, %630 : vector<8x128xf32>
    %640 = arith.mulf %639, %637 : vector<8x128xf32>
    %641 = arith.mulf %630, %562 : vector<8x128xf32>
    %642 = arith.addf %640, %641 : vector<8x128xf32>
    %643 = arith.index_cast %c7_i32 : i32 to index
    %c0_251 = arith.constant 0 : index
    %c0_252 = arith.constant 0 : index
    %644 = vector.load %arg7[%643, %c0_251, %c0_252] : memref<8x8x128xf32, #tpu.memory_space<vmem>>, vector<1x8x128xf32>
    %645 = vector.shape_cast %644 : vector<1x8x128xf32> to vector<8x128xf32>
    %646 = vector.shape_cast %642 : vector<8x128xf32> to vector<1x8x128xf32>
    tpu.vector_store %arg7[%643, %c0_251, %c0_252], %646 {strides = array<i32>} : memref<8x8x128xf32, #tpu.memory_space<vmem>>, vector<1x8x128xf32>,
    %c8_i32 = arith.constant 8 : i32
    %c0_253 = arith.constant 0 : index
    %c0_254 = arith.constant 0 : index
    %c0_255 = arith.constant 0 : index
    %647 = vector.load %arg8[%c0_253, %c0_254, %c0_255] : memref<2x8x128xf32, #tpu.memory_space<vmem>>, vector<1x8x128xf32>
    %648 = vector.shape_cast %647 : vector<1x8x128xf32> to vector<8x128xf32>
    %649 = vector.shape_cast %602 : vector<8x128xf32> to vector<1x8x128xf32>
    tpu.vector_store %arg8[%c0_253, %c0_254, %c0_255], %649 {strides = array<i32>} : memref<2x8x128xf32, #tpu.memory_space<vmem>>, vector<1x8x128xf32>,
    %c1_256 = arith.constant 1 : index
    %c0_257 = arith.constant 0 : index
    %c0_258 = arith.constant 0 : index
    %650 = vector.load %arg8[%c1_256, %c0_257, %c0_258] : memref<2x8x128xf32, #tpu.memory_space<vmem>>, vector<1x8x128xf32>
    %651 = vector.shape_cast %650 : vector<1x8x128xf32> to vector<8x128xf32>
    %652 = vector.shape_cast %642 : vector<8x128xf32> to vector<1x8x128xf32>
    tpu.vector_store %arg8[%c1_256, %c0_257, %c0_258], %652 {strides = array<i32>} : memref<2x8x128xf32, #tpu.memory_space<vmem>>, vector<1x8x128xf32>,
    return
  }
  func.func @transform_0(%arg0: i32) -> (i32, i32, i32) {
    %c0_i32 = arith.constant 0 : i32
    %c0_i32_0 = arith.constant 0 : i32
    %c0_i32_1 = arith.constant 0 : i32
    return %arg0, %c0_i32, %c0_i32_0 : i32, i32, i32
  }
  func.func @transform_1(%arg0: i32) -> (i32, i32, i32) {
    %c0_i32 = arith.constant 0 : i32
    %c0_i32_0 = arith.constant 0 : i32
    %c0_i32_1 = arith.constant 0 : i32
    %c0_i32_2 = arith.constant 0 : i32
    return %c0_i32, %c0_i32_0, %c0_i32_1 : i32, i32, i32
  }
  func.func @transform_2(%arg0: i32) -> (i32, i32, i32) {
    %c0_i32 = arith.constant 0 : i32
    %c0_i32_0 = arith.constant 0 : i32
    %c0_i32_1 = arith.constant 0 : i32
    %c0_i32_2 = arith.constant 0 : i32
    return %c0_i32, %c0_i32_0, %c0_i32_1 : i32, i32, i32
  }
  func.func @transform_3(%arg0: i32) -> (i32, i32, i32) {
    %c0_i32 = arith.constant 0 : i32
    %c0_i32_0 = arith.constant 0 : i32
    %c0_i32_1 = arith.constant 0 : i32
    %c0_i32_2 = arith.constant 0 : i32
    return %c0_i32, %c0_i32_0, %c0_i32_1 : i32, i32, i32
  }
  func.func @transform_4(%arg0: i32) -> (i32, i32, i32) {
    %c0_i32 = arith.constant 0 : i32
    %c0_i32_0 = arith.constant 0 : i32
    %c0_i32_1 = arith.constant 0 : i32
    %c0_i32_2 = arith.constant 0 : i32
    return %c0_i32, %c0_i32_0, %c0_i32_1 : i32, i32, i32
  }
  func.func @transform_5(%arg0: i32) -> (i32, i32, i32) {
    %c0_i32 = arith.constant 0 : i32
    %c0_i32_0 = arith.constant 0 : i32
    %c0_i32_1 = arith.constant 0 : i32
    %c0_i32_2 = arith.constant 0 : i32
    return %c0_i32, %c0_i32_0, %c0_i32_1 : i32, i32, i32
  }
  func.func @transform_6(%arg0: i32) -> (i32, i32, i32) {
    %c0_i32 = arith.constant 0 : i32
    %c0_i32_0 = arith.constant 0 : i32
    %c0_i32_1 = arith.constant 0 : i32
    return %arg0, %c0_i32, %c0_i32_0 : i32, i32, i32
  }
  func.func @transform_7(%arg0: i32) -> (i32, i32, i32) {
    %c0_i32 = arith.constant 0 : i32
    %c0_i32_0 = arith.constant 0 : i32
    %c0_i32_1 = arith.constant 0 : i32
    %c0_i32_2 = arith.constant 0 : i32
    return %c0_i32, %c0_i32_0, %c0_i32_1 : i32, i32, i32
  }
}

</mosaic_0001>

<llo_original>
// kernel: tpu_custom_call.1
$region0: #{tpu_custom_call.1}
  #allocation0 [shape = 'u32[]', space=smem, size = 0x4, offset = 0x4, fixed_abs, tag = 'smem constant byte address 0x4 - core index']
  #allocation1 [shape = 'u32[144,128]{1,0:T(1,128)}', space=vmem, size = 0x12000, scoped, tag = 'internal scratch']
  %s0 = inlined_call_operand.hbm [shape: f32[8,8,384], index: 0, kind: input, shape index: {}]
  %s1 = inlined_call_operand.hbm [shape: f32[2,8,128], index: 1, kind: input, shape index: {}]
  %s2 = inlined_call_operand.hbm [shape: f32[2,128,384], index: 2, kind: input, shape index: {}]
  %s3 = inlined_call_operand.vmem [shape: f32[2,1,128], index: 3, kind: input, shape index: {}]
  %s4 = inlined_call_operand.hbm [shape: f32[1,128,384], index: 4, kind: input, shape index: {}]
  %s5 = inlined_call_operand.vmem [shape: f32[1,1,384], index: 5, kind: input, shape index: {}]
  %s6 = inlined_call_operand.hbm [shape: f32[8,8,128], index: 6, kind: output, shape index: {0}]
  %s7 = inlined_call_operand.hbm [shape: f32[2,8,128], index: 7, kind: output, shape index: {1}]
  %8 = xla_tuple %s6, %s7
  %s9 = sld [smem:[#allocation0]]
  $region62: #{tpu_custom_call.1} parent=0
    _
  %s11 = ssub.s32 1, %s9
  %s12 = scalar_select 0, %s11, %s9
  $region1: #{tpu_custom_call.1} parent=0
    #allocation2 [shape = 'u8[98304]{0}', space=vmem, size = 0x18000, scoped, tag = 'input window, operand 0, single buffered']
    #allocation3 [shape = 's32[1]{0}', space=sflag, size = 0x4, scoped, tag = 'scoped memory for tpu_custom_call.1']
    #allocation4 [shape = 's32[1]{0}', space=sflag, size = 0x4, scoped, tag = 'scoped memory for tpu_custom_call.1']
    #allocation5 [shape = 'u8[8192]{0}', space=vmem, size = 0x2000, scoped, tag = 'input window, operand 1, single buffered']
    #allocation6 [shape = 's32[1]{0}', space=sflag, size = 0x4, scoped, tag = 'scoped memory for tpu_custom_call.1']
    #allocation7 [shape = 'u8[393216]{0}', space=vmem, size = 0x60000, scoped, tag = 'input window, operand 2, single buffered']
    #allocation8 [shape = 'u8[196608]{0}', space=vmem, size = 0x30000, scoped, tag = 'input window, operand 4, single buffered']
    #allocation9 [shape = 's32[1]{0}', space=sflag, size = 0x4, scoped, tag = 'scoped memory for tpu_custom_call.1']
    #allocation10 [shape = 'u8[32768]{0}', space=vmem, size = 0x8000, scoped, tag = 'output window, operand 0, single buffered']
    #allocation11 [shape = 'u8[8192]{0}', space=vmem, size = 0x2000, scoped, tag = 'output window, operand 1, single buffered']
    #allocation12 [shape = 's32[1]{0}', space=sflag, size = 0x4, scoped, tag = 'scoped memory for tpu_custom_call.1']
    %13 = vsyncpa [#allocation3], 0
    %14 = vsyncpa [#allocation6], 0
    %15 = vsyncpa [#allocation9], 0
    %16 = vsyncpa [#allocation4], 0
    %17 = vsyncpa [#allocation12], 0
    // Predicated region
    $region2: #{tpu_custom_call.1} parent=1 // pred_check
      _
    $region3: #{tpu_custom_call.1} parent=1 // pred_check_branch
      %19 = sbr.rel (0) target = $region5
    $region4: #{tpu_custom_call.1} parent=1 // pred_region
      %s21 = ssub.s32 3072, 3072
      %22 = vsyncadd [#allocation3], %s21
      %s23 = sshll.u32 [#allocation2], 4
      %s24 = int_to_ptr.vmem [resolvable:$true] %s23
      %29 = dma.hbm_to_vmem [thread:$0]  %s0, 3072, %s24, [#allocation3], 384, 384, 24
    $region5: #{tpu_custom_call.1} parent=1 // pred_fallthru
      _
    // Predicated region
    $region6: #{tpu_custom_call.1} parent=1 // pred_check
      _
    $region7: #{tpu_custom_call.1} parent=1 // pred_check_branch
      %31 = sbr.rel (0) target = $region9
    $region8: #{tpu_custom_call.1} parent=1 // pred_region
      %s33 = ssub.s32 256, 256
      %34 = vsyncadd [#allocation6], %s33
      %s35 = sshll.u32 [#allocation5], 4
      %s36 = int_to_ptr.vmem [resolvable:$true] %s35
      %41 = dma.hbm_to_vmem [thread:$0]  %s1, 256, %s36, [#allocation6], 128, 128, 8
    $region9: #{tpu_custom_call.1} parent=1 // pred_fallthru
      _
    // Predicated region
    $region10: #{tpu_custom_call.1} parent=1 // pred_check
      _
    $region11: #{tpu_custom_call.1} parent=1 // pred_check_branch
      %43 = sbr.rel (0) target = $region13
    $region12: #{tpu_custom_call.1} parent=1 // pred_region
      %s45 = ssub.s32 12288, 12288
      %46 = vsyncadd [#allocation6], %s45
      %s47 = sshll.u32 [#allocation7], 4
      %s48 = int_to_ptr.vmem [resolvable:$true] %s47
      %53 = dma.hbm_to_vmem [thread:$0]  %s2, 12288, %s48, [#allocation6], 384, 384, 24
    $region13: #{tpu_custom_call.1} parent=1 // pred_fallthru
      _
    // Predicated region
    $region14: #{tpu_custom_call.1} parent=1 // pred_check
      _
    $region15: #{tpu_custom_call.1} parent=1 // pred_check_branch
      %55 = sbr.rel (0) target = $region17
    $region16: #{tpu_custom_call.1} parent=1 // pred_region
      _
    $region17: #{tpu_custom_call.1} parent=1 // pred_fallthru
      _
    // Predicated region
    $region18: #{tpu_custom_call.1} parent=1 // pred_check
      _
    $region19: #{tpu_custom_call.1} parent=1 // pred_check_branch
      %57 = sbr.rel (0) target = $region21
    $region20: #{tpu_custom_call.1} parent=1 // pred_region
      %s59 = ssub.s32 6144, 6144
      %60 = vsyncadd [#allocation9], %s59
      %s61 = sshll.u32 [#allocation8], 4
      %s62 = int_to_ptr.vmem [resolvable:$true] %s61
      %67 = dma.hbm_to_vmem [thread:$0]  %s4, 6144, %s62, [#allocation9], 384, 384, 24
    $region21: #{tpu_custom_call.1} parent=1 // pred_fallthru
      _
    // Predicated region
    $region22: #{tpu_custom_call.1} parent=1 // pred_check
      _
    $region23: #{tpu_custom_call.1} parent=1 // pred_check_branch
      %69 = sbr.rel (0) target = $region25
    $region24: #{tpu_custom_call.1} parent=1 // pred_region
      _
    $region25: #{tpu_custom_call.1} parent=1 // pred_fallthru
      _
    // Predicated region
    $region26: #{tpu_custom_call.1} parent=1 // pred_check
      _
    $region27: #{tpu_custom_call.1} parent=1 // pred_check_branch
      %71 = sbr.rel (0) target = $region29
    $region28: #{tpu_custom_call.1} parent=1 // pred_region
      %72 = dma.done [#allocation3], 3072
    $region29: #{tpu_custom_call.1} parent=1 // pred_fallthru
      _
    // Predicated region
    $region30: #{tpu_custom_call.1} parent=1 // pred_check
      _
    $region31: #{tpu_custom_call.1} parent=1 // pred_check_branch
      %74 = sbr.rel (0) target = $region33
    $region32: #{tpu_custom_call.1} parent=1 // pred_region
      %75 = dma.done [#allocation6], 256
    $region33: #{tpu_custom_call.1} parent=1 // pred_fallthru
      _
    // Predicated region
    $region34: #{tpu_custom_call.1} parent=1 // pred_check
      _
    $region35: #{tpu_custom_call.1} parent=1 // pred_check_branch
      %77 = sbr.rel (0) target = $region37
    $region36: #{tpu_custom_call.1} parent=1 // pred_region
      %78 = dma.done [#allocation6], 12288
    $region37: #{tpu_custom_call.1} parent=1 // pred_fallthru
      _
    // Predicated region
    $region38: #{tpu_custom_call.1} parent=1 // pred_check
      _
    $region39: #{tpu_custom_call.1} parent=1 // pred_check_branch
      %80 = sbr.rel (0) target = $region41
    $region40: #{tpu_custom_call.1} parent=1 // pred_region
      %81 = dma.done [#allocation9], 6144
    $region41: #{tpu_custom_call.1} parent=1 // pred_fallthru
      _
    %p82 = scmp.eq.s32.totalorder 0, 0
    // Predicated region
    $region42: #{tpu_custom_call.1} parent=1 // pred_check
      %p83 = pneg %p82
    $region43: #{tpu_custom_call.1} parent=1 // pred_check_branch
      %85 = sbr.rel (%p83) target = $region45
    $region44: #{tpu_custom_call.1} parent=1 // pred_region
      %v86 = vld [vmem:[#allocation5] sm:$0xff]
      %v87 = vld [vmem:[#allocation5 + $0x8] sm:$0xff]
      %88 = vst [vmem:[#allocation11] sm:$0xff] %v86
      %89 = vst [vmem:[#allocation11 + $0x8] sm:$0xff] %v87
    $region45: #{tpu_custom_call.1} parent=1 // pred_fallthru
      _
    %v90 = vld [vmem:[#allocation11] sm:$0xff]
    %s91 = scalar_lea.vmem [#allocation11], 8
    %v92 = vld [vmem:[%s91] sm:$0xff]
    %v93 = vld [vmem:[#allocation2] sm:$0xff]
    %v94 = vld [vmem:[#allocation2 + $0x8] sm:$0xff]
    %v95 = vld [vmem:[#allocation2 + $0x10] sm:$0xff]
    %v96 = vld [vmem:[#allocation7] sm:$0xff]
    %v97 = vld [vmem:[#allocation7 + $0x8] sm:$0xff]
    %v98 = vld [vmem:[#allocation7 + $0x10] sm:$0xff]
    %v99 = vld [vmem:[#allocation7 + $0x18] sm:$0xff]
    %v100 = vld [vmem:[#allocation7 + $0x20] sm:$0xff]
    %v101 = vld [vmem:[#allocation7 + $0x28] sm:$0xff]
    %v102 = vld [vmem:[#allocation7 + $0x30] sm:$0xff]
    %v103 = vld [vmem:[#allocation7 + $0x38] sm:$0xff]
    %v104 = vld [vmem:[#allocation7 + $0x40] sm:$0xff]
    %v105 = vld [vmem:[#allocation7 + $0x48] sm:$0xff]
    %v106 = vld [vmem:[#allocation7 + $0x50] sm:$0xff]
    %v107 = vld [vmem:[#allocation7 + $0x58] sm:$0xff]
    %v108 = vld [vmem:[#allocation7 + $0x60] sm:$0xff]
    %v109 = vld [vmem:[#allocation7 + $0x68] sm:$0xff]
    %v110 = vld [vmem:[#allocation7 + $0x70] sm:$0xff]
    %v111 = vld [vmem:[#allocation7 + $0x78] sm:$0xff]
    %v112 = vld [vmem:[#allocation7 + $0x80] sm:$0xff]
    %v113 = vld [vmem:[#allocation7 + $0x88] sm:$0xff]
    %v114 = vld [vmem:[#allocation7 + $0x90] sm:$0xff]
    %v115 = vld [vmem:[#allocation7 + $0x98] sm:$0xff]
    %v116 = vld [vmem:[#allocation7 + $0xa0] sm:$0xff]
    %v117 = vld [vmem:[#allocation7 + $0xa8] sm:$0xff]
    %v118 = vld [vmem:[#allocation7 + $0xb0] sm:$0xff]
    %v119 = vld [vmem:[#allocation7 + $0xb8] sm:$0xff]
    %v120 = vld [vmem:[#allocation7 + $0xc0] sm:$0xff]
    %v121 = vld [vmem:[#allocation7 + $0xc8] sm:$0xff]
    %v122 = vld [vmem:[#allocation7 + $0xd0] sm:$0xff]
    %v123 = vld [vmem:[#allocation7 + $0xd8] sm:$0xff]
    %v124 = vld [vmem:[#allocation7 + $0xe0] sm:$0xff]
    %v125 = vld [vmem:[#allocation7 + $0xe8] sm:$0xff]
    %v126 = vld [vmem:[#allocation7 + $0xf0] sm:$0xff]
    %v127 = vld [vmem:[#allocation7 + $0xf8] sm:$0xff]
    %v128 = vld [vmem:[#allocation7 + $0x100] sm:$0xff]
    %v129 = vld [vmem:[#allocation7 + $0x108] sm:$0xff]
    %v130 = vld [vmem:[#allocation7 + $0x110] sm:$0xff]
    %v131 = vld [vmem:[#allocation7 + $0x118] sm:$0xff]
    %v132 = vld [vmem:[#allocation7 + $0x120] sm:$0xff]
    %v133 = vld [vmem:[#allocation7 + $0x128] sm:$0xff]
    %v134 = vld [vmem:[#allocation7 + $0x130] sm:$0xff]
    %v135 = vld [vmem:[#allocation7 + $0x138] sm:$0xff]
    %v136 = vld [vmem:[#allocation7 + $0x140] sm:$0xff]
    %v137 = vld [vmem:[#allocation7 + $0x148] sm:$0xff]
    %v138 = vld [vmem:[#allocation7 + $0x150] sm:$0xff]
    %v139 = vld [vmem:[#allocation7 + $0x158] sm:$0xff]
    %v140 = vld [vmem:[#allocation7 + $0x160] sm:$0xff]
    %v141 = vld [vmem:[#allocation7 + $0x168] sm:$0xff]
    %v142 = vld [vmem:[#allocation7 + $0x170] sm:$0xff]
    %v143 = vld [vmem:[#allocation7 + $0x178] sm:$0xff]
    %144 = vmatprep.subr.mxu0 %v142
    %145 = vmatpush1.msra.mxu0 %v141
    %146 = vmatprep.subr.mxu0 %v139
    %147 = vmatpush1.msra.mxu0 %v138
    %148 = vmatprep.subr.mxu0 %v136
    %149 = vmatpush1.msra.mxu0 %v135
    %150 = vmatprep.subr.mxu0 %v133
    %151 = vmatpush1.msra.mxu0 %v132
    %152 = vmatprep.subr.mxu0 %v130
    %153 = vmatpush1.msra.mxu0 %v129
    %154 = vmatprep.subr.mxu0 %v127
    %155 = vmatpush1.msra.mxu0 %v126
    %156 = vmatprep.subr.mxu0 %v124
    %157 = vmatpush1.msra.mxu0 %v123
    %158 = vmatprep.subr.mxu0 %v121
    %159 = vmatpush1.msra.mxu0 %v120
    %160 = vmatprep.subr.mxu0 %v118
    %161 = vmatpush1.msra.mxu0 %v117
    %162 = vmatprep.subr.mxu0 %v115
    %163 = vmatpush1.msra.mxu0 %v114
    %164 = vmatprep.subr.mxu0 %v112
    %165 = vmatpush1.msra.mxu0 %v111
    %166 = vmatprep.subr.mxu0 %v109
    %167 = vmatpush1.msra.mxu0 %v108
    %168 = vmatprep.subr.mxu0 %v106
    %169 = vmatpush1.msra.mxu0 %v105
    %170 = vmatprep.subr.mxu0 %v103
    %171 = vmatpush1.msra.mxu0 %v102
    %172 = vmatprep.subr.mxu0 %v100
    %173 = vmatpush1.msra.mxu0 %v99
    %174 = vmatprep.subr.mxu0 %v97
    %175 = vmatpush1.msra.mxu0 %v96
    %176 = vmatprep.subr.mxu0 0.0
    %177 = vmatpush2.msra.mxu0 0.0
    %178 = vmatprep.subr.mxu0 0.0
    %179 = vmatpush2.msra.mxu0 0.0
    %180 = vmatprep.subr.mxu0 0.0
    %181 = vmatpush2.msra.mxu0 0.0
    %182 = vmatprep.subr.mxu0 0.0
    %183 = vmatpush2.msra.mxu0 0.0
    %184 = vmatprep.subr.mxu0 0.0
    %185 = vmatpush2.msra.mxu0 0.0
    %186 = vmatprep.subr.mxu0 0.0
    %187 = vmatpush2.msra.mxu0 0.0
    %188 = vmatprep.subr.mxu0 0.0
    %189 = vmatpush2.msra.mxu0 0.0
    %190 = vmatprep.subr.mxu0 0.0
    %191 = vmatpush2.msra.mxu0 0.0
    %192 = vmatprep.subr.mxu0 0.0
    %193 = vmatpush2.msra.mxu0 0.0
    %194 = vmatprep.subr.mxu0 0.0
    %195 = vmatpush2.msra.mxu0 0.0
    %196 = vmatprep.subr.mxu0 0.0
    %197 = vmatpush2.msra.mxu0 0.0
    %198 = vmatprep.subr.mxu0 0.0
    %199 = vmatpush2.msra.mxu0 0.0
    %200 = vmatprep.subr.mxu0 0.0
    %201 = vmatpush2.msra.mxu0 0.0
    %202 = vmatprep.subr.mxu0 0.0
    %203 = vmatpush2.msra.mxu0 0.0
    %204 = vmatprep.subr.mxu0 0.0
    %205 = vmatpush2.msra.mxu0 0.0
    %206 = vmatprep.subr.mxu0 0.0
    %207 = vmatpush2.msra.mxu0 0.0
    %208 = vmatprep.mubr.f32.mxu0 0.0
    %209 = vmatmul.mubr.f32.gmra.mxu0 %v90
    %v210 = vpop.f32.mrf.mxu0
    %v211 = vadd.f32 0.0, %v210
    %v212 = vpop.f32.mrf.mxu0
    %v213 = vadd.f32 0.0, %v212
    %214 = vdwg.mxu0
    %215 = vmatprep.subr.mxu0 0.0
    %216 = vmatpush1.msra.mxu0 %v143
    %217 = vmatprep.subr.mxu0 0.0
    %218 = vmatpush1.msra.mxu0 %v140
    %219 = vmatprep.subr.mxu0 0.0
    %220 = vmatpush1.msra.mxu0 %v137
    %221 = vmatprep.subr.mxu0 0.0
    %222 = vmatpush1.msra.mxu0 %v134
    %223 = vmatprep.subr.mxu0 0.0
    %224 = vmatpush1.msra.mxu0 %v131
    %225 = vmatprep.subr.mxu0 0.0
    %226 = vmatpush1.msra.mxu0 %v128
    %227 = vmatprep.subr.mxu0 0.0
    %228 = vmatpush1.msra.mxu0 %v125
    %229 = vmatprep.subr.mxu0 0.0
    %230 = vmatpush1.msra.mxu0 %v122
    %231 = vmatprep.subr.mxu0 0.0
    %232 = vmatpush1.msra.mxu0 %v119
    %233 = vmatprep.subr.mxu0 0.0
    %234 = vmatpush1.msra.mxu0 %v116
    %235 = vmatprep.subr.mxu0 0.0
    %236 = vmatpush1.msra.mxu0 %v113
    %237 = vmatprep.subr.mxu0 0.0
    %238 = vmatpush1.msra.mxu0 %v110
    %239 = vmatprep.subr.mxu0 0.0
    %240 = vmatpush1.msra.mxu0 %v107
    %241 = vmatprep.subr.mxu0 0.0
    %242 = vmatpush1.msra.mxu0 %v104
    %243 = vmatprep.subr.mxu0 0.0
    %244 = vmatpush1.msra.mxu0 %v101
    %245 = vmatprep.subr.mxu0 0.0
    %246 = vmatpush1.msra.mxu0 %v98
    %247 = vmatprep.subr.mxu0 0.0
    %248 = vmatpush2.msra.mxu0 0.0
    %249 = vmatprep.subr.mxu0 0.0
    %250 = vmatpush2.msra.mxu0 0.0
    %251 = vmatprep.subr.mxu0 0.0
    %252 = vmatpush2.msra.mxu0 0.0
    %253 = vmatprep.subr.mxu0 0.0
    %254 = vmatpush2.msra.mxu0 0.0
    %255 = vmatprep.subr.mxu0 0.0
    %256 = vmatpush2.msra.mxu0 0.0
    %257 = vmatprep.subr.mxu0 0.0
    %258 = vmatpush2.msra.mxu0 0.0
    %259 = vmatprep.subr.mxu0 0.0
    %260 = vmatpush2.msra.mxu0 0.0
    %261 = vmatprep.subr.mxu0 0.0
    %262 = vmatpush2.msra.mxu0 0.0
    %263 = vmatprep.subr.mxu0 0.0
    %264 = vmatpush2.msra.mxu0 0.0
    %265 = vmatprep.subr.mxu0 0.0
    %266 = vmatpush2.msra.mxu0 0.0
    %267 = vmatprep.subr.mxu0 0.0
    %268 = vmatpush2.msra.mxu0 0.0
    %269 = vmatprep.subr.mxu0 0.0
    %270 = vmatpush2.msra.mxu0 0.0
    %271 = vmatprep.subr.mxu0 0.0
    %272 = vmatpush2.msra.mxu0 0.0
    %273 = vmatprep.subr.mxu0 0.0
    %274 = vmatpush2.msra.mxu0 0.0
    %275 = vmatprep.subr.mxu0 0.0
    %276 = vmatpush2.msra.mxu0 0.0
    %277 = vmatprep.subr.mxu0 0.0
    %278 = vmatpush2.msra.mxu0 0.0
    %279 = vmatprep.mubr.f32.mxu0 0.0
    %280 = vmatmul.mubr.f32.gmra.mxu0 %v90
    %v281 = vpop.f32.mrf.mxu0
    %v282 = vadd.f32 0.0, %v281
    %v283 = vpop.f32.mrf.mxu0
    %284 = vdwg.mxu0
    %v285 = vld [vmem:[%s3] sm:$0x1]
    %v286 = vadd.f32 %v93, %v211
    %v287 = vxor.u32 %v286, 2147483648
    %v288 = vmul.f32 %v287, 1.442695
    %v289 = vpow.pop %v288
    %v290 = vadd.f32 %v289, 1.0
    %v291 = vrcp.pop %v290
    %v292 = vmul.f32 1.0, %v291
    %v293 = vadd.f32 %v94, %v213
    %v294 = vxor.u32 %v293, 2147483648
    %v295 = vmul.f32 %v294, 1.442695
    %v296 = vpow.pop %v295
    %v297 = vadd.f32 %v296, 1.0
    %v298 = vrcp.pop %v297
    %v299 = vmul.f32 1.0, %v298
    %v301 = vlaneseq
    %v302 = vshrl.u32 %v301, 7
    %v303 = vsub.s32 0, %v302
    %v304 = vrot.slane %v285, %v303
    %v306 = vadd.f32 %v282, %v304
    %v307 = vmul.f32 %v292, %v306
    %v308 = vadd.f32 %v95, %v307
    %v309 = vtanh.pop %v308
    %v310 = vsub.f32 1.0, %v299
    %v311 = vmul.f32 %v310, %v309
    %v312 = vmul.f32 %v299, %v90
    %v313 = vadd.f32 %v311, %v312
    %v314 = vld [vmem:[#allocation8] sm:$0xff]
    %v315 = vld [vmem:[#allocation8 + $0x8] sm:$0xff]
    %v316 = vld [vmem:[#allocation8 + $0x10] sm:$0xff]
    %v317 = vld [vmem:[#allocation8 + $0x18] sm:$0xff]
    %v318 = vld [vmem:[#allocation8 + $0x20] sm:$0xff]
    %v319 = vld [vmem:[#allocation8 + $0x28] sm:$0xff]
    %v320 = vld [vmem:[#allocation8 + $0x30] sm:$0xff]
    %v321 = vld [vmem:[#allocation8 + $0x38] sm:$0xff]
    %v322 = vld [vmem:[#allocation8 + $0x40] sm:$0xff]
    %v323 = vld [vmem:[#allocation8 + $0x48] sm:$0xff]
    %v324 = vld [vmem:[#allocation8 + $0x50] sm:$0xff]
    %v325 = vld [vmem:[#allocation8 + $0x58] sm:$0xff]
    %v326 = vld [vmem:[#allocation8 + $0x60] sm:$0xff]
    %v327 = vld [vmem:[#allocation8 + $0x68] sm:$0xff]
    %v328 = vld [vmem:[#allocation8 + $0x70] sm:$0xff]
    %v329 = vld [vmem:[#allocation8 + $0x78] sm:$0xff]
    %v330 = vld [vmem:[#allocation8 + $0x80] sm:$0xff]
    %v331 = vld [vmem:[#allocation8 + $0x88] sm:$0xff]
    %v332 = vld [vmem:[#allocation8 + $0x90] sm:$0xff]
    %v333 = vld [vmem:[#allocation8 + $0x98] sm:$0xff]
    %v334 = vld [vmem:[#allocation8 + $0xa0] sm:$0xff]
    %v335 = vld [vmem:[#allocation8 + $0xa8] sm:$0xff]
    %v336 = vld [vmem:[#allocation8 + $0xb0] sm:$0xff]
    %v337 = vld [vmem:[#allocation8 + $0xb8] sm:$0xff]
    %v338 = vld [vmem:[#allocation8 + $0xc0] sm:$0xff]
    %v339 = vld [vmem:[#allocation8 + $0xc8] sm:$0xff]
    %v340 = vld [vmem:[#allocation8 + $0xd0] sm:$0xff]
    %v341 = vld [vmem:[#allocation8 + $0xd8] sm:$0xff]
    %v342 = vld [vmem:[#allocation8 + $0xe0] sm:$0xff]
    %v343 = vld [vmem:[#allocation8 + $0xe8] sm:$0xff]
    %v344 = vld [vmem:[#allocation8 + $0xf0] sm:$0xff]
    %v345 = vld [vmem:[#allocation8 + $0xf8] sm:$0xff]
    %v346 = vld [vmem:[#allocation8 + $0x100] sm:$0xff]
    %v347 = vld [vmem:[#allocation8 + $0x108] sm:$0xff]
    %v348 = vld [vmem:[#allocation8 + $0x110] sm:$0xff]
    %v349 = vld [vmem:[#allocation8 + $0x118] sm:$0xff]
    %v350 = vld [vmem:[#allocation8 + $0x120] sm:$0xff]
    %v351 = vld [vmem:[#allocation8 + $0x128] sm:$0xff]
    %v352 = vld [vmem:[#allocation8 + $0x130] sm:$0xff]
    %v353 = vld [vmem:[#allocation8 + $0x138] sm:$0xff]
    %v354 = vld [vmem:[#allocation8 + $0x140] sm:$0xff]
    %v355 = vld [vmem:[#allocation8 + $0x148] sm:$0xff]
    %v356 = vld [vmem:[#allocation8 + $0x150] sm:$0xff]
    %v357 = vld [vmem:[#allocation8 + $0x158] sm:$0xff]
    %v358 = vld [vmem:[#allocation8 + $0x160] sm:$0xff]
    %v359 = vld [vmem:[#allocation8 + $0x168] sm:$0xff]
    %v360 = vld [vmem:[#allocation8 + $0x170] sm:$0xff]
    %v361 = vld [vmem:[#allocation8 + $0x178] sm:$0xff]
    %v362 = vld [vmem:[%s5] sm:$0x7]
    %v364 = vlaneseq
    %v365 = vshrl.u32 %v364, 7
    %v366 = vsub.s32 0, %v365
    %v367 = vrot.slane %v362, %v366
    %v368 = vlaneseq
    %v369 = vshrl.u32 %v368, 7
    %v370 = vsub.s32 1, %v369
    %v371 = vrot.slane %v362, %v370
    %v372 = vlaneseq
    %v373 = vshrl.u32 %v372, 7
    %v374 = vsub.s32 2, %v373
    %v375 = vrot.slane %v362, %v374
    %379 = vmatprep.subr.mxu0 %v360
    %380 = vmatpush1.msra.mxu0 %v359
    %381 = vmatprep.subr.mxu0 %v357
    %382 = vmatpush1.msra.mxu0 %v356
    %383 = vmatprep.subr.mxu0 %v354
    %384 = vmatpush1.msra.mxu0 %v353
    %385 = vmatprep.subr.mxu0 %v351
    %386 = vmatpush1.msra.mxu0 %v350
    %387 = vmatprep.subr.mxu0 %v348
    %388 = vmatpush1.msra.mxu0 %v347
    %389 = vmatprep.subr.mxu0 %v345
    %390 = vmatpush1.msra.mxu0 %v344
    %391 = vmatprep.subr.mxu0 %v342
    %392 = vmatpush1.msra.mxu0 %v341
    %393 = vmatprep.subr.mxu0 %v339
    %394 = vmatpush1.msra.mxu0 %v338
    %395 = vmatprep.subr.mxu0 %v336
    %396 = vmatpush1.msra.mxu0 %v335
    %397 = vmatprep.subr.mxu0 %v333
    %398 = vmatpush1.msra.mxu0 %v332
    %399 = vmatprep.subr.mxu0 %v330
    %400 = vmatpush1.msra.mxu0 %v329
    %401 = vmatprep.subr.mxu0 %v327
    %402 = vmatpush1.msra.mxu0 %v326
    %403 = vmatprep.subr.mxu0 %v324
    %404 = vmatpush1.msra.mxu0 %v323
    %405 = vmatprep.subr.mxu0 %v321
    %406 = vmatpush1.msra.mxu0 %v320
    %407 = vmatprep.subr.mxu0 %v318
    %408 = vmatpush1.msra.mxu0 %v317
    %409 = vmatprep.subr.mxu0 %v315
    %410 = vmatpush1.msra.mxu0 %v314
    %411 = vmatprep.subr.mxu0 0.0
    %412 = vmatpush2.msra.mxu0 0.0
    %413 = vmatprep.subr.mxu0 0.0
    %414 = vmatpush2.msra.mxu0 0.0
    %415 = vmatprep.subr.mxu0 0.0
    %416 = vmatpush2.msra.mxu0 0.0
    %417 = vmatprep.subr.mxu0 0.0
    %418 = vmatpush2.msra.mxu0 0.0
    %419 = vmatprep.subr.mxu0 0.0
    %420 = vmatpush2.msra.mxu0 0.0
    %421 = vmatprep.subr.mxu0 0.0
    %422 = vmatpush2.msra.mxu0 0.0
    %423 = vmatprep.subr.mxu0 0.0
    %424 = vmatpush2.msra.mxu0 0.0
    %425 = vmatprep.subr.mxu0 0.0
    %426 = vmatpush2.msra.mxu0 0.0
    %427 = vmatprep.subr.mxu0 0.0
    %428 = vmatpush2.msra.mxu0 0.0
    %429 = vmatprep.subr.mxu0 0.0
    %430 = vmatpush2.msra.mxu0 0.0
    %431 = vmatprep.subr.mxu0 0.0
    %432 = vmatpush2.msra.mxu0 0.0
    %433 = vmatprep.subr.mxu0 0.0
    %434 = vmatpush2.msra.mxu0 0.0
    %435 = vmatprep.subr.mxu0 0.0
    %436 = vmatpush2.msra.mxu0 0.0
    %437 = vmatprep.subr.mxu0 0.0
    %438 = vmatpush2.msra.mxu0 0.0
    %439 = vmatprep.subr.mxu0 0.0
    %440 = vmatpush2.msra.mxu0 0.0
    %441 = vmatprep.subr.mxu0 0.0
    %442 = vmatpush2.msra.mxu0 0.0
    %443 = vmatprep.mubr.f32.mxu0 0.0
    %444 = vmatmul.mubr.f32.gmra.mxu0 %v313
    %v445 = vpop.f32.mrf.mxu0
    %v446 = vadd.f32 %v367, %v445
    %v447 = vpop.f32.mrf.mxu0
    %v448 = vadd.f32 %v371, %v447
    %449 = vdwg.mxu0
    %450 = vmatprep.subr.mxu0 0.0
    %451 = vmatpush1.msra.mxu0 %v361
    %452 = vmatprep.subr.mxu0 0.0
    %453 = vmatpush1.msra.mxu0 %v358
    %454 = vmatprep.subr.mxu0 0.0
    %455 = vmatpush1.msra.mxu0 %v355
    %456 = vmatprep.subr.mxu0 0.0
    %457 = vmatpush1.msra.mxu0 %v352
    %458 = vmatprep.subr.mxu0 0.0
    %459 = vmatpush1.msra.mxu0 %v349
    %460 = vmatprep.subr.mxu0 0.0
    %461 = vmatpush1.msra.mxu0 %v346
    %462 = vmatprep.subr.mxu0 0.0
    %463 = vmatpush1.msra.mxu0 %v343
    %464 = vmatprep.subr.mxu0 0.0
    %465 = vmatpush1.msra.mxu0 %v340
    %466 = vmatprep.subr.mxu0 0.0
    %467 = vmatpush1.msra.mxu0 %v337
    %468 = vmatprep.subr.mxu0 0.0
    %469 = vmatpush1.msra.mxu0 %v334
    %470 = vmatprep.subr.mxu0 0.0
    %471 = vmatpush1.msra.mxu0 %v331
    %472 = vmatprep.subr.mxu0 0.0
    %473 = vmatpush1.msra.mxu0 %v328
    %474 = vmatprep.subr.mxu0 0.0
    %475 = vmatpush1.msra.mxu0 %v325
    %476 = vmatprep.subr.mxu0 0.0
    %477 = vmatpush1.msra.mxu0 %v322
    %478 = vmatprep.subr.mxu0 0.0
    %479 = vmatpush1.msra.mxu0 %v319
    %480 = vmatprep.subr.mxu0 0.0
    %481 = vmatpush1.msra.mxu0 %v316
    %482 = vmatprep.subr.mxu0 0.0
    %483 = vmatpush2.msra.mxu0 0.0
    %484 = vmatprep.subr.mxu0 0.0
    %485 = vmatpush2.msra.mxu0 0.0
    %486 = vmatprep.subr.mxu0 0.0
    %487 = vmatpush2.msra.mxu0 0.0
    %488 = vmatprep.subr.mxu0 0.0
    %489 = vmatpush2.msra.mxu0 0.0
    %490 = vmatprep.subr.mxu0 0.0
    %491 = vmatpush2.msra.mxu0 0.0
    %492 = vmatprep.subr.mxu0 0.0
    %493 = vmatpush2.msra.mxu0 0.0
    %494 = vmatprep.subr.mxu0 0.0
    %495 = vmatpush2.msra.mxu0 0.0
    %496 = vmatprep.subr.mxu0 0.0
    %497 = vmatpush2.msra.mxu0 0.0
    %498 = vmatprep.subr.mxu0 0.0
    %499 = vmatpush2.msra.mxu0 0.0
    %500 = vmatprep.subr.mxu0 0.0
    %501 = vmatpush2.msra.mxu0 0.0
    %502 = vmatprep.subr.mxu0 0.0
    %503 = vmatpush2.msra.mxu0 0.0
    %504 = vmatprep.subr.mxu0 0.0
    %505 = vmatpush2.msra.mxu0 0.0
    %506 = vmatprep.subr.mxu0 0.0
    %507 = vmatpush2.msra.mxu0 0.0
    %508 = vmatprep.subr.mxu0 0.0
    %509 = vmatpush2.msra.mxu0 0.0
    %510 = vmatprep.subr.mxu0 0.0
    %511 = vmatpush2.msra.mxu0 0.0
    %512 = vmatprep.subr.mxu0 0.0
    %513 = vmatpush2.msra.mxu0 0.0
    %514 = vmatprep.mubr.f32.mxu0 0.0
    %515 = vmatmul.mubr.f32.gmra.mxu0 %v313
    %v516 = vpop.f32.mrf.mxu0
    %v517 = vadd.f32 %v375, %v516
    %v518 = vpop.f32.mrf.mxu0
    %519 = vdwg.mxu0
    %s520 = scalar_lea.vmem [#allocation7], 384
    %v521 = vld [vmem:[%s520] sm:$0xff]
    %v522 = vld [vmem:[%s520 + $0x8] sm:$0xff]
    %v523 = vld [vmem:[%s520 + $0x10] sm:$0xff]
    %v524 = vld [vmem:[%s520 + $0x18] sm:$0xff]
    %v525 = vld [vmem:[%s520 + $0x20] sm:$0xff]
    %v526 = vld [vmem:[%s520 + $0x28] sm:$0xff]
    %v527 = vld [vmem:[%s520 + $0x30] sm:$0xff]
    %v528 = vld [vmem:[%s520 + $0x38] sm:$0xff]
    %v529 = vld [vmem:[%s520 + $0x40] sm:$0xff]
    %v530 = vld [vmem:[%s520 + $0x48] sm:$0xff]
    %v531 = vld [vmem:[%s520 + $0x50] sm:$0xff]
    %v532 = vld [vmem:[%s520 + $0x58] sm:$0xff]
    %v533 = vld [vmem:[%s520 + $0x60] sm:$0xff]
    %v534 = vld [vmem:[%s520 + $0x68] sm:$0xff]
    %v535 = vld [vmem:[%s520 + $0x70] sm:$0xff]
    %v536 = vld [vmem:[%s520 + $0x78] sm:$0xff]
    %v537 = vld [vmem:[%s520 + $0x80] sm:$0xff]
    %v538 = vld [vmem:[%s520 + $0x88] sm:$0xff]
    %v539 = vld [vmem:[%s520 + $0x90] sm:$0xff]
    %v540 = vld [vmem:[%s520 + $0x98] sm:$0xff]
    %v541 = vld [vmem:[%s520 + $0xa0] sm:$0xff]
    %v542 = vld [vmem:[%s520 + $0xa8] sm:$0xff]
    %v543 = vld [vmem:[%s520 + $0xb0] sm:$0xff]
    %v544 = vld [vmem:[%s520 + $0xb8] sm:$0xff]
    %v545 = vld [vmem:[%s520 + $0xc0] sm:$0xff]
    %v546 = vld [vmem:[%s520 + $0xc8] sm:$0xff]
    %v547 = vld [vmem:[%s520 + $0xd0] sm:$0xff]
    %v548 = vld [vmem:[%s520 + $0xd8] sm:$0xff]
    %v549 = vld [vmem:[%s520 + $0xe0] sm:$0xff]
    %v550 = vld [vmem:[%s520 + $0xe8] sm:$0xff]
    %v551 = vld [vmem:[%s520 + $0xf0] sm:$0xff]
    %v552 = vld [vmem:[%s520 + $0xf8] sm:$0xff]
    %v553 = vld [vmem:[%s520 + $0x100] sm:$0xff]
    %v554 = vld [vmem:[%s520 + $0x108] sm:$0xff]
    %v555 = vld [vmem:[%s520 + $0x110] sm:$0xff]
    %v556 = vld [vmem:[%s520 + $0x118] sm:$0xff]
    %v557 = vld [vmem:[%s520 + $0x120] sm:$0xff]
    %v558 = vld [vmem:[%s520 + $0x128] sm:$0xff]
    %v559 = vld [vmem:[%s520 + $0x130] sm:$0xff]
    %v560 = vld [vmem:[%s520 + $0x138] sm:$0xff]
    %v561 = vld [vmem:[%s520 + $0x140] sm:$0xff]
    %v562 = vld [vmem:[%s520 + $0x148] sm:$0xff]
    %v563 = vld [vmem:[%s520 + $0x150] sm:$0xff]
    %v564 = vld [vmem:[%s520 + $0x158] sm:$0xff]
    %v565 = vld [vmem:[%s520 + $0x160] sm:$0xff]
    %v566 = vld [vmem:[%s520 + $0x168] sm:$0xff]
    %v567 = vld [vmem:[%s520 + $0x170] sm:$0xff]
    %v568 = vld [vmem:[%s520 + $0x178] sm:$0xff]
    %569 = vmatprep.subr.mxu0 %v567
    %570 = vmatpush1.msra.mxu0 %v566
    %571 = vmatprep.subr.mxu0 %v564
    %572 = vmatpush1.msra.mxu0 %v563
    %573 = vmatprep.subr.mxu0 %v561
    %574 = vmatpush1.msra.mxu0 %v560
    %575 = vmatprep.subr.mxu0 %v558
    %576 = vmatpush1.msra.mxu0 %v557
    %577 = vmatprep.subr.mxu0 %v555
    %578 = vmatpush1.msra.mxu0 %v554
    %579 = vmatprep.subr.mxu0 %v552
    %580 = vmatpush1.msra.mxu0 %v551
    %581 = vmatprep.subr.mxu0 %v549
    %582 = vmatpush1.msra.mxu0 %v548
    %583 = vmatprep.subr.mxu0 %v546
    %584 = vmatpush1.msra.mxu0 %v545
    %585 = vmatprep.subr.mxu0 %v543
    %586 = vmatpush1.msra.mxu0 %v542
    %587 = vmatprep.subr.mxu0 %v540
    %588 = vmatpush1.msra.mxu0 %v539
    %589 = vmatprep.subr.mxu0 %v537
    %590 = vmatpush1.msra.mxu0 %v536
    %591 = vmatprep.subr.mxu0 %v534
    %592 = vmatpush1.msra.mxu0 %v533
    %593 = vmatprep.subr.mxu0 %v531
    %594 = vmatpush1.msra.mxu0 %v530
    %595 = vmatprep.subr.mxu0 %v528
    %596 = vmatpush1.msra.mxu0 %v527
    %597 = vmatprep.subr.mxu0 %v525
    %598 = vmatpush1.msra.mxu0 %v524
    %599 = vmatprep.subr.mxu0 %v522
    %600 = vmatpush1.msra.mxu0 %v521
    %601 = vmatprep.subr.mxu0 0.0
    %602 = vmatpush2.msra.mxu0 0.0
    %603 = vmatprep.subr.mxu0 0.0
    %604 = vmatpush2.msra.mxu0 0.0
    %605 = vmatprep.subr.mxu0 0.0
    %606 = vmatpush2.msra.mxu0 0.0
    %607 = vmatprep.subr.mxu0 0.0
    %608 = vmatpush2.msra.mxu0 0.0
    %609 = vmatprep.subr.mxu0 0.0
    %610 = vmatpush2.msra.mxu0 0.0
    %611 = vmatprep.subr.mxu0 0.0
    %612 = vmatpush2.msra.mxu0 0.0
    %613 = vmatprep.subr.mxu0 0.0
    %614 = vmatpush2.msra.mxu0 0.0
    %615 = vmatprep.subr.mxu0 0.0
    %616 = vmatpush2.msra.mxu0 0.0
    %617 = vmatprep.subr.mxu0 0.0
    %618 = vmatpush2.msra.mxu0 0.0
    %619 = vmatprep.subr.mxu0 0.0
    %620 = vmatpush2.msra.mxu0 0.0
    %621 = vmatprep.subr.mxu0 0.0
    %622 = vmatpush2.msra.mxu0 0.0
    %623 = vmatprep.subr.mxu0 0.0
    %624 = vmatpush2.msra.mxu0 0.0
    %625 = vmatprep.subr.mxu0 0.0
    %626 = vmatpush2.msra.mxu0 0.0
    %627 = vmatprep.subr.mxu0 0.0
    %628 = vmatpush2.msra.mxu0 0.0
    %629 = vmatprep.subr.mxu0 0.0
    %630 = vmatpush2.msra.mxu0 0.0
    %631 = vmatprep.subr.mxu0 0.0
    %632 = vmatpush2.msra.mxu0 0.0
    %633 = vmatprep.mubr.f32.mxu0 0.0
    %634 = vmatmul.mubr.f32.gmra.mxu0 %v92
    %v635 = vpop.f32.mrf.mxu0
    %v636 = vadd.f32 0.0, %v635
    %v637 = vpop.f32.mrf.mxu0
    %v638 = vadd.f32 0.0, %v637
    %639 = vdwg.mxu0
    %640 = vmatprep.subr.mxu0 0.0
    %641 = vmatpush1.msra.mxu0 %v568
    %642 = vmatprep.subr.mxu0 0.0
    %643 = vmatpush1.msra.mxu0 %v565
    %644 = vmatprep.subr.mxu0 0.0
    %645 = vmatpush1.msra.mxu0 %v562
    %646 = vmatprep.subr.mxu0 0.0
    %647 = vmatpush1.msra.mxu0 %v559
    %648 = vmatprep.subr.mxu0 0.0
    %649 = vmatpush1.msra.mxu0 %v556
    %650 = vmatprep.subr.mxu0 0.0
    %651 = vmatpush1.msra.mxu0 %v553
    %652 = vmatprep.subr.mxu0 0.0
    %653 = vmatpush1.msra.mxu0 %v550
    %654 = vmatprep.subr.mxu0 0.0
    %655 = vmatpush1.msra.mxu0 %v547
    %656 = vmatprep.subr.mxu0 0.0
    %657 = vmatpush1.msra.mxu0 %v544
    %658 = vmatprep.subr.mxu0 0.0
    %659 = vmatpush1.msra.mxu0 %v541
    %660 = vmatprep.subr.mxu0 0.0
    %661 = vmatpush1.msra.mxu0 %v538
    %662 = vmatprep.subr.mxu0 0.0
    %663 = vmatpush1.msra.mxu0 %v535
    %664 = vmatprep.subr.mxu0 0.0
    %665 = vmatpush1.msra.mxu0 %v532
    %666 = vmatprep.subr.mxu0 0.0
    %667 = vmatpush1.msra.mxu0 %v529
    %668 = vmatprep.subr.mxu0 0.0
    %669 = vmatpush1.msra.mxu0 %v526
    %670 = vmatprep.subr.mxu0 0.0
    %671 = vmatpush1.msra.mxu0 %v523
    %672 = vmatprep.subr.mxu0 0.0
    %673 = vmatpush2.msra.mxu0 0.0
    %674 = vmatprep.subr.mxu0 0.0
    %675 = vmatpush2.msra.mxu0 0.0
    %676 = vmatprep.subr.mxu0 0.0
    %677 = vmatpush2.msra.mxu0 0.0
    %678 = vmatprep.subr.mxu0 0.0
    %679 = vmatpush2.msra.mxu0 0.0
    %680 = vmatprep.subr.mxu0 0.0
    %681 = vmatpush2.msra.mxu0 0.0
    %682 = vmatprep.subr.mxu0 0.0
    %683 = vmatpush2.msra.mxu0 0.0
    %684 = vmatprep.subr.mxu0 0.0
    %685 = vmatpush2.msra.mxu0 0.0
    %686 = vmatprep.subr.mxu0 0.0
    %687 = vmatpush2.msra.mxu0 0.0
    %688 = vmatprep.subr.mxu0 0.0
    %689 = vmatpush2.msra.mxu0 0.0
    %690 = vmatprep.subr.mxu0 0.0
    %691 = vmatpush2.msra.mxu0 0.0
    %692 = vmatprep.subr.mxu0 0.0
    %693 = vmatpush2.msra.mxu0 0.0
    %694 = vmatprep.subr.mxu0 0.0
    %695 = vmatpush2.msra.mxu0 0.0
    %696 = vmatprep.subr.mxu0 0.0
    %697 = vmatpush2.msra.mxu0 0.0
    %698 = vmatprep.subr.mxu0 0.0
    %699 = vmatpush2.msra.mxu0 0.0
    %700 = vmatprep.subr.mxu0 0.0
    %701 = vmatpush2.msra.mxu0 0.0
    %702 = vmatprep.subr.mxu0 0.0
    %703 = vmatpush2.msra.mxu0 0.0
    %704 = vmatprep.mubr.f32.mxu0 0.0
    %705 = vmatmul.mubr.f32.gmra.mxu0 %v92
    %v706 = vpop.f32.mrf.mxu0
    %v707 = vadd.f32 0.0, %v706
    %v708 = vpop.f32.mrf.mxu0
    %709 = vdwg.mxu0
    %s710 = scalar_lea.vmem %s3, 1
    %v711 = vld [vmem:[%s710] sm:$0x1]
    %v712 = vadd.f32 %v446, %v636
    %v713 = vxor.u32 %v712, 2147483648
    %v714 = vmul.f32 %v713, 1.442695
    %v715 = vpow.pop %v714
    %v716 = vadd.f32 %v715, 1.0
    %v717 = vrcp.pop %v716
    %v718 = vmul.f32 1.0, %v717
    %v719 = vadd.f32 %v448, %v638
    %v720 = vxor.u32 %v719, 2147483648
    %v721 = vmul.f32 %v720, 1.442695
    %v722 = vpow.pop %v721
    %v723 = vadd.f32 %v722, 1.0
    %v724 = vrcp.pop %v723
    %v725 = vmul.f32 1.0, %v724
    %v727 = vlaneseq
    %v728 = vshrl.u32 %v727, 7
    %v729 = vsub.s32 0, %v728
    %v730 = vrot.slane %v711, %v729
    %v732 = vadd.f32 %v707, %v730
    %v733 = vmul.f32 %v718, %v732
    %v734 = vadd.f32 %v517, %v733
    %v735 = vtanh.pop %v734
    %v736 = vsub.f32 1.0, %v725
    %v737 = vmul.f32 %v736, %v735
    %v738 = vmul.f32 %v725, %v92
    %v739 = vadd.f32 %v737, %v738
    %740 = vst [vmem:[#allocation10] sm:$0xff] %v739
    %s741 = scalar_lea.vmem [#allocation2], 24
    %v742 = vld [vmem:[%s741] sm:$0xff]
    %v743 = vld [vmem:[%s741 + $0x8] sm:$0xff]
    %v744 = vld [vmem:[%s741 + $0x10] sm:$0xff]
    %v745 = vld [vmem:[#allocation7] sm:$0xff]
    %v746 = vld [vmem:[#allocation7 + $0x8] sm:$0xff]
    %v747 = vld [vmem:[#allocation7 + $0x10] sm:$0xff]
    %v748 = vld [vmem:[#allocation7 + $0x18] sm:$0xff]
    %v749 = vld [vmem:[#allocation7 + $0x20] sm:$0xff]
    %v750 = vld [vmem:[#allocation7 + $0x28] sm:$0xff]
    %v751 = vld [vmem:[#allocation7 + $0x30] sm:$0xff]
    %v752 = vld [vmem:[#allocation7 + $0x38] sm:$0xff]
    %v753 = vld [vmem:[#allocation7 + $0x40] sm:$0xff]
    %v754 = vld [vmem:[#allocation7 + $0x48] sm:$0xff]
    %v755 = vld [vmem:[#allocation7 + $0x50] sm:$0xff]
    %v756 = vld [vmem:[#allocation7 + $0x58] sm:$0xff]
    %v757 = vld [vmem:[#allocation7 + $0x60] sm:$0xff]
    %v758 = vld [vmem:[#allocation7 + $0x68] sm:$0xff]
    %v759 = vld [vmem:[#allocation7 + $0x70] sm:$0xff]
    %v760 = vld [vmem:[#allocation7 + $0x78] sm:$0xff]
    %v761 = vld [vmem:[#allocation7 + $0x80] sm:$0xff]
    %v762 = vld [vmem:[#allocation7 + $0x88] sm:$0xff]
    %v763 = vld [vmem:[#allocation7 + $0x90] sm:$0xff]
    %v764 = vld [vmem:[#allocation7 + $0x98] sm:$0xff]
    %v765 = vld [vmem:[#allocation7 + $0xa0] sm:$0xff]
    %v766 = vld [vmem:[#allocation7 + $0xa8] sm:$0xff]
    %v767 = vld [vmem:[#allocation7 + $0xb0] sm:$0xff]
    %v768 = vld [vmem:[#allocation7 + $0xb8] sm:$0xff]
    %v769 = vld [vmem:[#allocation7 + $0xc0] sm:$0xff]
    %v770 = vld [vmem:[#allocation7 + $0xc8] sm:$0xff]
    %v771 = vld [vmem:[#allocation7 + $0xd0] sm:$0xff]
    %v772 = vld [vmem:[#allocation7 + $0xd8] sm:$0xff]
    %v773 = vld [vmem:[#allocation7 + $0xe0] sm:$0xff]
    %v774 = vld [vmem:[#allocation7 + $0xe8] sm:$0xff]
    %v775 = vld [vmem:[#allocation7 + $0xf0] sm:$0xff]
    %v776 = vld [vmem:[#allocation7 + $0xf8] sm:$0xff]
    %v777 = vld [vmem:[#allocation7 + $0x100] sm:$0xff]
    %v778 = vld [vmem:[#allocation7 + $0x108] sm:$0xff]
    %v779 = vld [vmem:[#allocation7 + $0x110] sm:$0xff]
    %v780 = vld [vmem:[#allocation7 + $0x118] sm:$0xff]
    %v781 = vld [vmem:[#allocation7 + $0x120] sm:$0xff]
    %v782 = vld [vmem:[#allocation7 + $0x128] sm:$0xff]
    %v783 = vld [vmem:[#allocation7 + $0x130] sm:$0xff]
    %v784 = vld [vmem:[#allocation7 + $0x138] sm:$0xff]
    %v785 = vld [vmem:[#allocation7 + $0x140] sm:$0xff]
    %v786 = vld [vmem:[#allocation7 + $0x148] sm:$0xff]
    %v787 = vld [vmem:[#allocation7 + $0x150] sm:$0xff]
    %v788 = vld [vmem:[#allocation7 + $0x158] sm:$0xff]
    %v789 = vld [vmem:[#allocation7 + $0x160] sm:$0xff]
    %v790 = vld [vmem:[#allocation7 + $0x168] sm:$0xff]
    %v791 = vld [vmem:[#allocation7 + $0x170] sm:$0xff]
    %v792 = vld [vmem:[#allocation7 + $0x178] sm:$0xff]
    %793 = vmatprep.subr.mxu0 %v791
    %794 = vmatpush1.msra.mxu0 %v790
    %795 = vmatprep.subr.mxu0 %v788
    %796 = vmatpush1.msra.mxu0 %v787
    %797 = vmatprep.subr.mxu0 %v785
    %798 = vmatpush1.msra.mxu0 %v784
    %799 = vmatprep.subr.mxu0 %v782
    %800 = vmatpush1.msra.mxu0 %v781
    %801 = vmatprep.subr.mxu0 %v779
    %802 = vmatpush1.msra.mxu0 %v778
    %803 = vmatprep.subr.mxu0 %v776
    %804 = vmatpush1.msra.mxu0 %v775
    %805 = vmatprep.subr.mxu0 %v773
    %806 = vmatpush1.msra.mxu0 %v772
    %807 = vmatprep.subr.mxu0 %v770
    %808 = vmatpush1.msra.mxu0 %v769
    %809 = vmatprep.subr.mxu0 %v767
    %810 = vmatpush1.msra.mxu0 %v766
    %811 = vmatprep.subr.mxu0 %v764
    %812 = vmatpush1.msra.mxu0 %v763
    %813 = vmatprep.subr.mxu0 %v761
    %814 = vmatpush1.msra.mxu0 %v760
    %815 = vmatprep.subr.mxu0 %v758
    %816 = vmatpush1.msra.mxu0 %v757
    %817 = vmatprep.subr.mxu0 %v755
    %818 = vmatpush1.msra.mxu0 %v754
    %819 = vmatprep.subr.mxu0 %v752
    %820 = vmatpush1.msra.mxu0 %v751
    %821 = vmatprep.subr.mxu0 %v749
    %822 = vmatpush1.msra.mxu0 %v748
    %823 = vmatprep.subr.mxu0 %v746
    %824 = vmatpush1.msra.mxu0 %v745
    %825 = vmatprep.subr.mxu0 0.0
    %826 = vmatpush2.msra.mxu0 0.0
    %827 = vmatprep.subr.mxu0 0.0
    %828 = vmatpush2.msra.mxu0 0.0
    %829 = vmatprep.subr.mxu0 0.0
    %830 = vmatpush2.msra.mxu0 0.0
    %831 = vmatprep.subr.mxu0 0.0
    %832 = vmatpush2.msra.mxu0 0.0
    %833 = vmatprep.subr.mxu0 0.0
    %834 = vmatpush2.msra.mxu0 0.0
    %835 = vmatprep.subr.mxu0 0.0
    %836 = vmatpush2.msra.mxu0 0.0
    %837 = vmatprep.subr.mxu0 0.0
    %838 = vmatpush2.msra.mxu0 0.0
    %839 = vmatprep.subr.mxu0 0.0
    %840 = vmatpush2.msra.mxu0 0.0
    %841 = vmatprep.subr.mxu0 0.0
    %842 = vmatpush2.msra.mxu0 0.0
    %843 = vmatprep.subr.mxu0 0.0
    %844 = vmatpush2.msra.mxu0 0.0
    %845 = vmatprep.subr.mxu0 0.0
    %846 = vmatpush2.msra.mxu0 0.0
    %847 = vmatprep.subr.mxu0 0.0
    %848 = vmatpush2.msra.mxu0 0.0
    %849 = vmatprep.subr.mxu0 0.0
    %850 = vmatpush2.msra.mxu0 0.0
    %851 = vmatprep.subr.mxu0 0.0
    %852 = vmatpush2.msra.mxu0 0.0
    %853 = vmatprep.subr.mxu0 0.0
    %854 = vmatpush2.msra.mxu0 0.0
    %855 = vmatprep.subr.mxu0 0.0
    %856 = vmatpush2.msra.mxu0 0.0
    %857 = vmatprep.mubr.f32.mxu0 0.0
    %858 = vmatmul.mubr.f32.gmra.mxu0 %v313
    %v859 = vpop.f32.mrf.mxu0
    %v860 = vadd.f32 0.0, %v859
    %v861 = vpop.f32.mrf.mxu0
    %v862 = vadd.f32 0.0, %v861
    %863 = vdwg.mxu0
    %864 = vmatprep.subr.mxu0 0.0
    %865 = vmatpush1.msra.mxu0 %v792
    %866 = vmatprep.subr.mxu0 0.0
    %867 = vmatpush1.msra.mxu0 %v789
    %868 = vmatprep.subr.mxu0 0.0
    %869 = vmatpush1.msra.mxu0 %v786
    %870 = vmatprep.subr.mxu0 0.0
    %871 = vmatpush1.msra.mxu0 %v783
    %872 = vmatprep.subr.mxu0 0.0
    %873 = vmatpush1.msra.mxu0 %v780
    %874 = vmatprep.subr.mxu0 0.0
    %875 = vmatpush1.msra.mxu0 %v777
    %876 = vmatprep.subr.mxu0 0.0
    %877 = vmatpush1.msra.mxu0 %v774
    %878 = vmatprep.subr.mxu0 0.0
    %879 = vmatpush1.msra.mxu0 %v771
    %880 = vmatprep.subr.mxu0 0.0
    %881 = vmatpush1.msra.mxu0 %v768
    %882 = vmatprep.subr.mxu0 0.0
    %883 = vmatpush1.msra.mxu0 %v765
    %884 = vmatprep.subr.mxu0 0.0
    %885 = vmatpush1.msra.mxu0 %v762
    %886 = vmatprep.subr.mxu0 0.0
    %887 = vmatpush1.msra.mxu0 %v759
    %888 = vmatprep.subr.mxu0 0.0
    %889 = vmatpush1.msra.mxu0 %v756
    %890 = vmatprep.subr.mxu0 0.0
    %891 = vmatpush1.msra.mxu0 %v753
    %892 = vmatprep.subr.mxu0 0.0
    %893 = vmatpush1.msra.mxu0 %v750
    %894 = vmatprep.subr.mxu0 0.0
    %895 = vmatpush1.msra.mxu0 %v747
    %896 = vmatprep.subr.mxu0 0.0
    %897 = vmatpush2.msra.mxu0 0.0
    %898 = vmatprep.subr.mxu0 0.0
    %899 = vmatpush2.msra.mxu0 0.0
    %900 = vmatprep.subr.mxu0 0.0
    %901 = vmatpush2.msra.mxu0 0.0
    %902 = vmatprep.subr.mxu0 0.0
    %903 = vmatpush2.msra.mxu0 0.0
    %904 = vmatprep.subr.mxu0 0.0
    %905 = vmatpush2.msra.mxu0 0.0
    %906 = vmatprep.subr.mxu0 0.0
    %907 = vmatpush2.msra.mxu0 0.0
    %908 = vmatprep.subr.mxu0 0.0
    %909 = vmatpush2.msra.mxu0 0.0
    %910 = vmatprep.subr.mxu0 0.0
    %911 = vmatpush2.msra.mxu0 0.0
    %912 = vmatprep.subr.mxu0 0.0
    %913 = vmatpush2.msra.mxu0 0.0
    %914 = vmatprep.subr.mxu0 0.0
    %915 = vmatpush2.msra.mxu0 0.0
    %916 = vmatprep.subr.mxu0 0.0
    %917 = vmatpush2.msra.mxu0 0.0
    %918 = vmatprep.subr.mxu0 0.0
    %919 = vmatpush2.msra.mxu0 0.0
    %920 = vmatprep.subr.mxu0 0.0
    %921 = vmatpush2.msra.mxu0 0.0
    %922 = vmatprep.subr.mxu0 0.0
    %923 = vmatpush2.msra.mxu0 0.0
    %924 = vmatprep.subr.mxu0 0.0
    %925 = vmatpush2.msra.mxu0 0.0
    %926 = vmatprep.subr.mxu0 0.0
    %927 = vmatpush2.msra.mxu0 0.0
    %928 = vmatprep.mubr.f32.mxu0 0.0
    %929 = vmatmul.mubr.f32.gmra.mxu0 %v313
    %v930 = vpop.f32.mrf.mxu0
    %v931 = vadd.f32 0.0, %v930
    %v932 = vpop.f32.mrf.mxu0
    %933 = vdwg.mxu0
    %v934 = vld [vmem:[%s3] sm:$0x1]
    %v935 = vadd.f32 %v742, %v860
    %v936 = vxor.u32 %v935, 2147483648
    %v937 = vmul.f32 %v936, 1.442695
    %v938 = vpow.pop %v937
    %v939 = vadd.f32 %v938, 1.0
    %v940 = vrcp.pop %v939
    %v941 = vmul.f32 1.0, %v940
    %v942 = vadd.f32 %v743, %v862
    %v943 = vxor.u32 %v942, 2147483648
    %v944 = vmul.f32 %v943, 1.442695
    %v945 = vpow.pop %v944
    %v946 = vadd.f32 %v945, 1.0
    %v947 = vrcp.pop %v946
    %v948 = vmul.f32 1.0, %v947
    %v950 = vlaneseq
    %v951 = vshrl.u32 %v950, 7
    %v952 = vsub.s32 0, %v951
    %v953 = vrot.slane %v934, %v952
    %v955 = vadd.f32 %v931, %v953
    %v956 = vmul.f32 %v941, %v955
    %v957 = vadd.f32 %v744, %v956
    %v958 = vtanh.pop %v957
    %v959 = vsub.f32 1.0, %v948
    %v960 = vmul.f32 %v959, %v958
    %v961 = vmul.f32 %v948, %v313
    %v962 = vadd.f32 %v960, %v961
    %v963 = vld [vmem:[#allocation8] sm:$0xff]
    %v964 = vld [vmem:[#allocation8 + $0x8] sm:$0xff]
    %v965 = vld [vmem:[#allocation8 + $0x10] sm:$0xff]
    %v966 = vld [vmem:[#allocation8 + $0x18] sm:$0xff]
    %v967 = vld [vmem:[#allocation8 + $0x20] sm:$0xff]
    %v968 = vld [vmem:[#allocation8 + $0x28] sm:$0xff]
    %v969 = vld [vmem:[#allocation8 + $0x30] sm:$0xff]
    %v970 = vld [vmem:[#allocation8 + $0x38] sm:$0xff]
    %v971 = vld [vmem:[#allocation8 + $0x40] sm:$0xff]
    %v972 = vld [vmem:[#allocation8 + $0x48] sm:$0xff]
    %v973 = vld [vmem:[#allocation8 + $0x50] sm:$0xff]
    %v974 = vld [vmem:[#allocation8 + $0x58] sm:$0xff]
    %v975 = vld [vmem:[#allocation8 + $0x60] sm:$0xff]
    %v976 = vld [vmem:[#allocation8 + $0x68] sm:$0xff]
    %v977 = vld [vmem:[#allocation8 + $0x70] sm:$0xff]
    %v978 = vld [vmem:[#allocation8 + $0x78] sm:$0xff]
    %v979 = vld [vmem:[#allocation8 + $0x80] sm:$0xff]
    %v980 = vld [vmem:[#allocation8 + $0x88] sm:$0xff]
    %v981 = vld [vmem:[#allocation8 + $0x90] sm:$0xff]
    %v982 = vld [vmem:[#allocation8 + $0x98] sm:$0xff]
    %v983 = vld [vmem:[#allocation8 + $0xa0] sm:$0xff]
    %v984 = vld [vmem:[#allocation8 + $0xa8] sm:$0xff]
    %v985 = vld [vmem:[#allocation8 + $0xb0] sm:$0xff]
    %v986 = vld [vmem:[#allocation8 + $0xb8] sm:$0xff]
    %v987 = vld [vmem:[#allocation8 + $0xc0] sm:$0xff]
    %v988 = vld [vmem:[#allocation8 + $0xc8] sm:$0xff]
    %v989 = vld [vmem:[#allocation8 + $0xd0] sm:$0xff]
    %v990 = vld [vmem:[#allocation8 + $0xd8] sm:$0xff]
    %v991 = vld [vmem:[#allocation8 + $0xe0] sm:$0xff]
    %v992 = vld [vmem:[#allocation8 + $0xe8] sm:$0xff]
    %v993 = vld [vmem:[#allocation8 + $0xf0] sm:$0xff]
    %v994 = vld [vmem:[#allocation8 + $0xf8] sm:$0xff]
    %v995 = vld [vmem:[#allocation8 + $0x100] sm:$0xff]
    %v996 = vld [vmem:[#allocation8 + $0x108] sm:$0xff]
    %v997 = vld [vmem:[#allocation8 + $0x110] sm:$0xff]
    %v998 = vld [vmem:[#allocation8 + $0x118] sm:$0xff]
    %v999 = vld [vmem:[#allocation8 + $0x120] sm:$0xff]
    %v1000 = vld [vmem:[#allocation8 + $0x128] sm:$0xff]
    %v1001 = vld [vmem:[#allocation8 + $0x130] sm:$0xff]
    %v1002 = vld [vmem:[#allocation8 + $0x138] sm:$0xff]
    %v1003 = vld [vmem:[#allocation8 + $0x140] sm:$0xff]
    %v1004 = vld [vmem:[#allocation8 + $0x148] sm:$0xff]
    %v1005 = vld [vmem:[#allocation8 + $0x150] sm:$0xff]
    %v1006 = vld [vmem:[#allocation8 + $0x158] sm:$0xff]
    %v1007 = vld [vmem:[#allocation8 + $0x160] sm:$0xff]
    %v1008 = vld [vmem:[#allocation8 + $0x168] sm:$0xff]
    %v1009 = vld [vmem:[#allocation8 + $0x170] sm:$0xff]
    %v1010 = vld [vmem:[#allocation8 + $0x178] sm:$0xff]
    %v1011 = vld [vmem:[%s5] sm:$0x7]
    %v1013 = vlaneseq
    %v1014 = vshrl.u32 %v1013, 7
    %v1015 = vsub.s32 0, %v1014
    %v1016 = vrot.slane %v1011, %v1015
    %v1017 = vlaneseq
    %v1018 = vshrl.u32 %v1017, 7
    %v1019 = vsub.s32 1, %v1018
    %v1020 = vrot.slane %v1011, %v1019
    %v1021 = vlaneseq
    %v1022 = vshrl.u32 %v1021, 7
    %v1023 = vsub.s32 2, %v1022
    %v1024 = vrot.slane %v1011, %v1023
    %1028 = vmatprep.subr.mxu0 %v1009
    %1029 = vmatpush1.msra.mxu0 %v1008
    %1030 = vmatprep.subr.mxu0 %v1006
    %1031 = vmatpush1.msra.mxu0 %v1005
    %1032 = vmatprep.subr.mxu0 %v1003
    %1033 = vmatpush1.msra.mxu0 %v1002
    %1034 = vmatprep.subr.mxu0 %v1000
    %1035 = vmatpush1.msra.mxu0 %v999
    %1036 = vmatprep.subr.mxu0 %v997
    %1037 = vmatpush1.msra.mxu0 %v996
    %1038 = vmatprep.subr.mxu0 %v994
    %1039 = vmatpush1.msra.mxu0 %v993
    %1040 = vmatprep.subr.mxu0 %v991
    %1041 = vmatpush1.msra.mxu0 %v990
    %1042 = vmatprep.subr.mxu0 %v988
    %1043 = vmatpush1.msra.mxu0 %v987
    %1044 = vmatprep.subr.mxu0 %v985
    %1045 = vmatpush1.msra.mxu0 %v984
    %1046 = vmatprep.subr.mxu0 %v982
    %1047 = vmatpush1.msra.mxu0 %v981
    %1048 = vmatprep.subr.mxu0 %v979
    %1049 = vmatpush1.msra.mxu0 %v978
    %1050 = vmatprep.subr.mxu0 %v976
    %1051 = vmatpush1.msra.mxu0 %v975
    %1052 = vmatprep.subr.mxu0 %v973
    %1053 = vmatpush1.msra.mxu0 %v972
    %1054 = vmatprep.subr.mxu0 %v970
    %1055 = vmatpush1.msra.mxu0 %v969
    %1056 = vmatprep.subr.mxu0 %v967
    %1057 = vmatpush1.msra.mxu0 %v966
    %1058 = vmatprep.subr.mxu0 %v964
    %1059 = vmatpush1.msra.mxu0 %v963
    %1060 = vmatprep.subr.mxu0 0.0
    %1061 = vmatpush2.msra.mxu0 0.0
    %1062 = vmatprep.subr.mxu0 0.0
    %1063 = vmatpush2.msra.mxu0 0.0
    %1064 = vmatprep.subr.mxu0 0.0
    %1065 = vmatpush2.msra.mxu0 0.0
    %1066 = vmatprep.subr.mxu0 0.0
    %1067 = vmatpush2.msra.mxu0 0.0
    %1068 = vmatprep.subr.mxu0 0.0
    %1069 = vmatpush2.msra.mxu0 0.0
    %1070 = vmatprep.subr.mxu0 0.0
    %1071 = vmatpush2.msra.mxu0 0.0
    %1072 = vmatprep.subr.mxu0 0.0
    %1073 = vmatpush2.msra.mxu0 0.0
    %1074 = vmatprep.subr.mxu0 0.0
    %1075 = vmatpush2.msra.mxu0 0.0
    %1076 = vmatprep.subr.mxu0 0.0
    %1077 = vmatpush2.msra.mxu0 0.0
    %1078 = vmatprep.subr.mxu0 0.0
    %1079 = vmatpush2.msra.mxu0 0.0
    %1080 = vmatprep.subr.mxu0 0.0
    %1081 = vmatpush2.msra.mxu0 0.0
    %1082 = vmatprep.subr.mxu0 0.0
    %1083 = vmatpush2.msra.mxu0 0.0
    %1084 = vmatprep.subr.mxu0 0.0
    %1085 = vmatpush2.msra.mxu0 0.0
    %1086 = vmatprep.subr.mxu0 0.0
    %1087 = vmatpush2.msra.mxu0 0.0
    %1088 = vmatprep.subr.mxu0 0.0
    %1089 = vmatpush2.msra.mxu0 0.0
    %1090 = vmatprep.subr.mxu0 0.0
    %1091 = vmatpush2.msra.mxu0 0.0
    %1092 = vmatprep.mubr.f32.mxu0 0.0
    %1093 = vmatmul.mubr.f32.gmra.mxu0 %v962
    %v1094 = vpop.f32.mrf.mxu0
    %v1095 = vadd.f32 %v1016, %v1094
    %v1096 = vpop.f32.mrf.mxu0
    %v1097 = vadd.f32 %v1020, %v1096
    %1098 = vdwg.mxu0
    %1099 = vmatprep.subr.mxu0 0.0
    %1100 = vmatpush1.msra.mxu0 %v1010
    %1101 = vmatprep.subr.mxu0 0.0
    %1102 = vmatpush1.msra.mxu0 %v1007
    %1103 = vmatprep.subr.mxu0 0.0
    %1104 = vmatpush1.msra.mxu0 %v1004
    %1105 = vmatprep.subr.mxu0 0.0
    %1106 = vmatpush1.msra.mxu0 %v1001
    %1107 = vmatprep.subr.mxu0 0.0
    %1108 = vmatpush1.msra.mxu0 %v998
    %1109 = vmatprep.subr.mxu0 0.0
    %1110 = vmatpush1.msra.mxu0 %v995
    %1111 = vmatprep.subr.mxu0 0.0
    %1112 = vmatpush1.msra.mxu0 %v992
    %1113 = vmatprep.subr.mxu0 0.0
    %1114 = vmatpush1.msra.mxu0 %v989
    %1115 = vmatprep.subr.mxu0 0.0
    %1116 = vmatpush1.msra.mxu0 %v986
    %1117 = vmatprep.subr.mxu0 0.0
    %1118 = vmatpush1.msra.mxu0 %v983
    %1119 = vmatprep.subr.mxu0 0.0
    %1120 = vmatpush1.msra.mxu0 %v980
    %1121 = vmatprep.subr.mxu0 0.0
    %1122 = vmatpush1.msra.mxu0 %v977
    %1123 = vmatprep.subr.mxu0 0.0
    %1124 = vmatpush1.msra.mxu0 %v974
    %1125 = vmatprep.subr.mxu0 0.0
    %1126 = vmatpush1.msra.mxu0 %v971
    %1127 = vmatprep.subr.mxu0 0.0
    %1128 = vmatpush1.msra.mxu0 %v968
    %1129 = vmatprep.subr.mxu0 0.0
    %1130 = vmatpush1.msra.mxu0 %v965
    %1131 = vmatprep.subr.mxu0 0.0
    %1132 = vmatpush2.msra.mxu0 0.0
    %1133 = vmatprep.subr.mxu0 0.0
    %1134 = vmatpush2.msra.mxu0 0.0
    %1135 = vmatprep.subr.mxu0 0.0
    %1136 = vmatpush2.msra.mxu0 0.0
    %1137 = vmatprep.subr.mxu0 0.0
    %1138 = vmatpush2.msra.mxu0 0.0
    %1139 = vmatprep.subr.mxu0 0.0
    %1140 = vmatpush2.msra.mxu0 0.0
    %1141 = vmatprep.subr.mxu0 0.0
    %1142 = vmatpush2.msra.mxu0 0.0
    %1143 = vmatprep.subr.mxu0 0.0
    %1144 = vmatpush2.msra.mxu0 0.0
    %1145 = vmatprep.subr.mxu0 0.0
    %1146 = vmatpush2.msra.mxu0 0.0
    %1147 = vmatprep.subr.mxu0 0.0
    %1148 = vmatpush2.msra.mxu0 0.0
    %1149 = vmatprep.subr.mxu0 0.0
    %1150 = vmatpush2.msra.mxu0 0.0
    %1151 = vmatprep.subr.mxu0 0.0
    %1152 = vmatpush2.msra.mxu0 0.0
    %1153 = vmatprep.subr.mxu0 0.0
    %1154 = vmatpush2.msra.mxu0 0.0
    %1155 = vmatprep.subr.mxu0 0.0
    %1156 = vmatpush2.msra.mxu0 0.0
    %1157 = vmatprep.subr.mxu0 0.0
    %1158 = vmatpush2.msra.mxu0 0.0
    %1159 = vmatprep.subr.mxu0 0.0
    %1160 = vmatpush2.msra.mxu0 0.0
    %1161 = vmatprep.subr.mxu0 0.0
    %1162 = vmatpush2.msra.mxu0 0.0
    %1163 = vmatprep.mubr.f32.mxu0 0.0
    %1164 = vmatmul.mubr.f32.gmra.mxu0 %v962
    %v1165 = vpop.f32.mrf.mxu0
    %v1166 = vadd.f32 %v1024, %v1165
    %v1167 = vpop.f32.mrf.mxu0
    %1168 = vdwg.mxu0
    %v1169 = vld [vmem:[%s520] sm:$0xff]
    %v1170 = vld [vmem:[%s520 + $0x8] sm:$0xff]
    %v1171 = vld [vmem:[%s520 + $0x10] sm:$0xff]
    %v1172 = vld [vmem:[%s520 + $0x18] sm:$0xff]
    %v1173 = vld [vmem:[%s520 + $0x20] sm:$0xff]
    %v1174 = vld [vmem:[%s520 + $0x28] sm:$0xff]
    %v1175 = vld [vmem:[%s520 + $0x30] sm:$0xff]
    %v1176 = vld [vmem:[%s520 + $0x38] sm:$0xff]
    %v1177 = vld [vmem:[%s520 + $0x40] sm:$0xff]
    %v1178 = vld [vmem:[%s520 + $0x48] sm:$0xff]
    %v1179 = vld [vmem:[%s520 + $0x50] sm:$0xff]
    %v1180 = vld [vmem:[%s520 + $0x58] sm:$0xff]
    %v1181 = vld [vmem:[%s520 + $0x60] sm:$0xff]
    %v1182 = vld [vmem:[%s520 + $0x68] sm:$0xff]
    %v1183 = vld [vmem:[%s520 + $0x70] sm:$0xff]
    %v1184 = vld [vmem:[%s520 + $0x78] sm:$0xff]
    %v1185 = vld [vmem:[%s520 + $0x80] sm:$0xff]
    %v1186 = vld [vmem:[%s520 + $0x88] sm:$0xff]
    %v1187 = vld [vmem:[%s520 + $0x90] sm:$0xff]
    %v1188 = vld [vmem:[%s520 + $0x98] sm:$0xff]
    %v1189 = vld [vmem:[%s520 + $0xa0] sm:$0xff]
    %v1190 = vld [vmem:[%s520 + $0xa8] sm:$0xff]
    %v1191 = vld [vmem:[%s520 + $0xb0] sm:$0xff]
    %v1192 = vld [vmem:[%s520 + $0xb8] sm:$0xff]
    %v1193 = vld [vmem:[%s520 + $0xc0] sm:$0xff]
    %v1194 = vld [vmem:[%s520 + $0xc8] sm:$0xff]
    %v1195 = vld [vmem:[%s520 + $0xd0] sm:$0xff]
    %v1196 = vld [vmem:[%s520 + $0xd8] sm:$0xff]
    %v1197 = vld [vmem:[%s520 + $0xe0] sm:$0xff]
    %v1198 = vld [vmem:[%s520 + $0xe8] sm:$0xff]
    %v1199 = vld [vmem:[%s520 + $0xf0] sm:$0xff]
    %v1200 = vld [vmem:[%s520 + $0xf8] sm:$0xff]
    %v1201 = vld [vmem:[%s520 + $0x100] sm:$0xff]
    %v1202 = vld [vmem:[%s520 + $0x108] sm:$0xff]
    %v1203 = vld [vmem:[%s520 + $0x110] sm:$0xff]
    %v1204 = vld [vmem:[%s520 + $0x118] sm:$0xff]
    %v1205 = vld [vmem:[%s520 + $0x120] sm:$0xff]
    %v1206 = vld [vmem:[%s520 + $0x128] sm:$0xff]
    %v1207 = vld [vmem:[%s520 + $0x130] sm:$0xff]
    %v1208 = vld [vmem:[%s520 + $0x138] sm:$0xff]
    %v1209 = vld [vmem:[%s520 + $0x140] sm:$0xff]
    %v1210 = vld [vmem:[%s520 + $0x148] sm:$0xff]
    %v1211 = vld [vmem:[%s520 + $0x150] sm:$0xff]
    %v1212 = vld [vmem:[%s520 + $0x158] sm:$0xff]
    %v1213 = vld [vmem:[%s520 + $0x160] sm:$0xff]
    %v1214 = vld [vmem:[%s520 + $0x168] sm:$0xff]
    %v1215 = vld [vmem:[%s520 + $0x170] sm:$0xff]
    %v1216 = vld [vmem:[%s520 + $0x178] sm:$0xff]
    %1217 = vmatprep.subr.mxu0 %v1215
    %1218 = vmatpush1.msra.mxu0 %v1214
    %1219 = vmatprep.subr.mxu0 %v1212
    %1220 = vmatpush1.msra.mxu0 %v1211
    %1221 = vmatprep.subr.mxu0 %v1209
    %1222 = vmatpush1.msra.mxu0 %v1208
    %1223 = vmatprep.subr.mxu0 %v1206
    %1224 = vmatpush1.msra.mxu0 %v1205
    %1225 = vmatprep.subr.mxu0 %v1203
    %1226 = vmatpush1.msra.mxu0 %v1202
    %1227 = vmatprep.subr.mxu0 %v1200
    %1228 = vmatpush1.msra.mxu0 %v1199
    %1229 = vmatprep.subr.mxu0 %v1197
    %1230 = vmatpush1.msra.mxu0 %v1196
    %1231 = vmatprep.subr.mxu0 %v1194
    %1232 = vmatpush1.msra.mxu0 %v1193
    %1233 = vmatprep.subr.mxu0 %v1191
    %1234 = vmatpush1.msra.mxu0 %v1190
    %1235 = vmatprep.subr.mxu0 %v1188
    %1236 = vmatpush1.msra.mxu0 %v1187
    %1237 = vmatprep.subr.mxu0 %v1185
    %1238 = vmatpush1.msra.mxu0 %v1184
    %1239 = vmatprep.subr.mxu0 %v1182
    %1240 = vmatpush1.msra.mxu0 %v1181
    %1241 = vmatprep.subr.mxu0 %v1179
    %1242 = vmatpush1.msra.mxu0 %v1178
    %1243 = vmatprep.subr.mxu0 %v1176
    %1244 = vmatpush1.msra.mxu0 %v1175
    %1245 = vmatprep.subr.mxu0 %v1173
    %1246 = vmatpush1.msra.mxu0 %v1172
    %1247 = vmatprep.subr.mxu0 %v1170
    %1248 = vmatpush1.msra.mxu0 %v1169
    %1249 = vmatprep.subr.mxu0 0.0
    %1250 = vmatpush2.msra.mxu0 0.0
    %1251 = vmatprep.subr.mxu0 0.0
    %1252 = vmatpush2.msra.mxu0 0.0
    %1253 = vmatprep.subr.mxu0 0.0
    %1254 = vmatpush2.msra.mxu0 0.0
    %1255 = vmatprep.subr.mxu0 0.0
    %1256 = vmatpush2.msra.mxu0 0.0
    %1257 = vmatprep.subr.mxu0 0.0
    %1258 = vmatpush2.msra.mxu0 0.0
    %1259 = vmatprep.subr.mxu0 0.0
    %1260 = vmatpush2.msra.mxu0 0.0
    %1261 = vmatprep.subr.mxu0 0.0
    %1262 = vmatpush2.msra.mxu0 0.0
    %1263 = vmatprep.subr.mxu0 0.0
    %1264 = vmatpush2.msra.mxu0 0.0
    %1265 = vmatprep.subr.mxu0 0.0
    %1266 = vmatpush2.msra.mxu0 0.0
    %1267 = vmatprep.subr.mxu0 0.0
    %1268 = vmatpush2.msra.mxu0 0.0
    %1269 = vmatprep.subr.mxu0 0.0
    %1270 = vmatpush2.msra.mxu0 0.0
    %1271 = vmatprep.subr.mxu0 0.0
    %1272 = vmatpush2.msra.mxu0 0.0
    %1273 = vmatprep.subr.mxu0 0.0
    %1274 = vmatpush2.msra.mxu0 0.0
    %1275 = vmatprep.subr.mxu0 0.0
    %1276 = vmatpush2.msra.mxu0 0.0
    %1277 = vmatprep.subr.mxu0 0.0
    %1278 = vmatpush2.msra.mxu0 0.0
    %1279 = vmatprep.subr.mxu0 0.0
    %1280 = vmatpush2.msra.mxu0 0.0
    %1281 = vmatprep.mubr.f32.mxu0 0.0
    %1282 = vmatmul.mubr.f32.gmra.mxu0 %v739
    %v1283 = vpop.f32.mrf.mxu0
    %v1284 = vadd.f32 0.0, %v1283
    %v1285 = vpop.f32.mrf.mxu0
    %v1286 = vadd.f32 0.0, %v1285
    %1287 = vdwg.mxu0
    %1288 = vmatprep.subr.mxu0 0.0
    %1289 = vmatpush1.msra.mxu0 %v1216
    %1290 = vmatprep.subr.mxu0 0.0
    %1291 = vmatpush1.msra.mxu0 %v1213
    %1292 = vmatprep.subr.mxu0 0.0
    %1293 = vmatpush1.msra.mxu0 %v1210
    %1294 = vmatprep.subr.mxu0 0.0
    %1295 = vmatpush1.msra.mxu0 %v1207
    %1296 = vmatprep.subr.mxu0 0.0
    %1297 = vmatpush1.msra.mxu0 %v1204
    %1298 = vmatprep.subr.mxu0 0.0
    %1299 = vmatpush1.msra.mxu0 %v1201
    %1300 = vmatprep.subr.mxu0 0.0
    %1301 = vmatpush1.msra.mxu0 %v1198
    %1302 = vmatprep.subr.mxu0 0.0
    %1303 = vmatpush1.msra.mxu0 %v1195
    %1304 = vmatprep.subr.mxu0 0.0
    %1305 = vmatpush1.msra.mxu0 %v1192
    %1306 = vmatprep.subr.mxu0 0.0
    %1307 = vmatpush1.msra.mxu0 %v1189
    %1308 = vmatprep.subr.mxu0 0.0
    %1309 = vmatpush1.msra.mxu0 %v1186
    %1310 = vmatprep.subr.mxu0 0.0
    %1311 = vmatpush1.msra.mxu0 %v1183
    %1312 = vmatprep.subr.mxu0 0.0
    %1313 = vmatpush1.msra.mxu0 %v1180
    %1314 = vmatprep.subr.mxu0 0.0
    %1315 = vmatpush1.msra.mxu0 %v1177
    %1316 = vmatprep.subr.mxu0 0.0
    %1317 = vmatpush1.msra.mxu0 %v1174
    %1318 = vmatprep.subr.mxu0 0.0
    %1319 = vmatpush1.msra.mxu0 %v1171
    %1320 = vmatprep.subr.mxu0 0.0
    %1321 = vmatpush2.msra.mxu0 0.0
    %1322 = vmatprep.subr.mxu0 0.0
    %1323 = vmatpush2.msra.mxu0 0.0
    %1324 = vmatprep.subr.mxu0 0.0
    %1325 = vmatpush2.msra.mxu0 0.0
    %1326 = vmatprep.subr.mxu0 0.0
    %1327 = vmatpush2.msra.mxu0 0.0
    %1328 = vmatprep.subr.mxu0 0.0
    %1329 = vmatpush2.msra.mxu0 0.0
    %1330 = vmatprep.subr.mxu0 0.0
    %1331 = vmatpush2.msra.mxu0 0.0
    %1332 = vmatprep.subr.mxu0 0.0
    %1333 = vmatpush2.msra.mxu0 0.0
    %1334 = vmatprep.subr.mxu0 0.0
    %1335 = vmatpush2.msra.mxu0 0.0
    %1336 = vmatprep.subr.mxu0 0.0
    %1337 = vmatpush2.msra.mxu0 0.0
    %1338 = vmatprep.subr.mxu0 0.0
    %1339 = vmatpush2.msra.mxu0 0.0
    %1340 = vmatprep.subr.mxu0 0.0
    %1341 = vmatpush2.msra.mxu0 0.0
    %1342 = vmatprep.subr.mxu0 0.0
    %1343 = vmatpush2.msra.mxu0 0.0
    %1344 = vmatprep.subr.mxu0 0.0
    %1345 = vmatpush2.msra.mxu0 0.0
    %1346 = vmatprep.subr.mxu0 0.0
    %1347 = vmatpush2.msra.mxu0 0.0
    %1348 = vmatprep.subr.mxu0 0.0
    %1349 = vmatpush2.msra.mxu0 0.0
    %1350 = vmatprep.subr.mxu0 0.0
    %1351 = vmatpush2.msra.mxu0 0.0
    %1352 = vmatprep.mubr.f32.mxu0 0.0
    %1353 = vmatmul.mubr.f32.gmra.mxu0 %v739
    %v1354 = vpop.f32.mrf.mxu0
    %v1355 = vadd.f32 0.0, %v1354
    %v1356 = vpop.f32.mrf.mxu0
    %1357 = vdwg.mxu0
    %v1358 = vld [vmem:[%s710] sm:$0x1]
    %v1359 = vadd.f32 %v1095, %v1284
    %v1360 = vxor.u32 %v1359, 2147483648
    %v1361 = vmul.f32 %v1360, 1.442695
    %v1362 = vpow.pop %v1361
    %v1363 = vadd.f32 %v1362, 1.0
    %v1364 = vrcp.pop %v1363
    %v1365 = vmul.f32 1.0, %v1364
    %v1366 = vadd.f32 %v1097, %v1286
    %v1367 = vxor.u32 %v1366, 2147483648
    %v1368 = vmul.f32 %v1367, 1.442695
    %v1369 = vpow.pop %v1368
    %v1370 = vadd.f32 %v1369, 1.0
    %v1371 = vrcp.pop %v1370
    %v1372 = vmul.f32 1.0, %v1371
    %v1374 = vlaneseq
    %v1375 = vshrl.u32 %v1374, 7
    %v1376 = vsub.s32 0, %v1375
    %v1377 = vrot.slane %v1358, %v1376
    %v1379 = vadd.f32 %v1355, %v1377
    %v1380 = vmul.f32 %v1365, %v1379
    %v1381 = vadd.f32 %v1166, %v1380
    %v1382 = vtanh.pop %v1381
    %v1383 = vsub.f32 1.0, %v1372
    %v1384 = vmul.f32 %v1383, %v1382
    %v1385 = vmul.f32 %v1372, %v739
    %v1386 = vadd.f32 %v1384, %v1385
    %s1387 = scalar_lea.vmem [#allocation10], 8
    %1388 = vst [vmem:[%s1387] sm:$0xff] %v1386
    %s1389 = scalar_lea.vmem [#allocation2], 48
    %v1390 = vld [vmem:[%s1389] sm:$0xff]
    %v1391 = vld [vmem:[%s1389 + $0x8] sm:$0xff]
    %v1392 = vld [vmem:[%s1389 + $0x10] sm:$0xff]
    %v1393 = vld [vmem:[#allocation7] sm:$0xff]
    %v1394 = vld [vmem:[#allocation7 + $0x8] sm:$0xff]
    %v1395 = vld [vmem:[#allocation7 + $0x10] sm:$0xff]
    %v1396 = vld [vmem:[#allocation7 + $0x18] sm:$0xff]
    %v1397 = vld [vmem:[#allocation7 + $0x20] sm:$0xff]
    %v1398 = vld [vmem:[#allocation7 + $0x28] sm:$0xff]
    %v1399 = vld [vmem:[#allocation7 + $0x30] sm:$0xff]
    %v1400 = vld [vmem:[#allocation7 + $0x38] sm:$0xff]
    %v1401 = vld [vmem:[#allocation7 + $0x40] sm:$0xff]
    %v1402 = vld [vmem:[#allocation7 + $0x48] sm:$0xff]
    %v1403 = vld [vmem:[#allocation7 + $0x50] sm:$0xff]
    %v1404 = vld [vmem:[#allocation7 + $0x58] sm:$0xff]
    %v1405 = vld [vmem:[#allocation7 + $0x60] sm:$0xff]
    %v1406 = vld [vmem:[#allocation7 + $0x68] sm:$0xff]
    %v1407 = vld [vmem:[#allocation7 + $0x70] sm:$0xff]
    %v1408 = vld [vmem:[#allocation7 + $0x78] sm:$0xff]
    %v1409 = vld [vmem:[#allocation7 + $0x80] sm:$0xff]
    %v1410 = vld [vmem:[#allocation7 + $0x88] sm:$0xff]
    %v1411 = vld [vmem:[#allocation7 + $0x90] sm:$0xff]
    %v1412 = vld [vmem:[#allocation7 + $0x98] sm:$0xff]
    %v1413 = vld [vmem:[#allocation7 + $0xa0] sm:$0xff]
    %v1414 = vld [vmem:[#allocation7 + $0xa8] sm:$0xff]
    %v1415 = vld [vmem:[#allocation7 + $0xb0] sm:$0xff]
    %v1416 = vld [vmem:[#allocation7 + $0xb8] sm:$0xff]
    %v1417 = vld [vmem:[#allocation7 + $0xc0] sm:$0xff]
    %v1418 = vld [vmem:[#allocation7 + $0xc8] sm:$0xff]
    %v1419 = vld [vmem:[#allocation7 + $0xd0] sm:$0xff]
    %v1420 = vld [vmem:[#allocation7 + $0xd8] sm:$0xff]
    %v1421 = vld [vmem:[#allocation7 + $0xe0] sm:$0xff]
    %v1422 = vld [vmem:[#allocation7 + $0xe8] sm:$0xff]
    %v1423 = vld [vmem:[#allocation7 + $0xf0] sm:$0xff]
    %v1424 = vld [vmem:[#allocation7 + $0xf8] sm:$0xff]
    %v1425 = vld [vmem:[#allocation7 + $0x100] sm:$0xff]
    %v1426 = vld [vmem:[#allocation7 + $0x108] sm:$0xff]
    %v1427 = vld [vmem:[#allocation7 + $0x110] sm:$0xff]
    %v1428 = vld [vmem:[#allocation7 + $0x118] sm:$0xff]
    %v1429 = vld [vmem:[#allocation7 + $0x120] sm:$0xff]
    %v1430 = vld [vmem:[#allocation7 + $0x128] sm:$0xff]
    %v1431 = vld [vmem:[#allocation7 + $0x130] sm:$0xff]
    %v1432 = vld [vmem:[#allocation7 + $0x138] sm:$0xff]
    %v1433 = vld [vmem:[#allocation7 + $0x140] sm:$0xff]
    %v1434 = vld [vmem:[#allocation7 + $0x148] sm:$0xff]
    %v1435 = vld [vmem:[#allocation7 + $0x150] sm:$0xff]
    %v1436 = vld [vmem:[#allocation7 + $0x158] sm:$0xff]
    %v1437 = vld [vmem:[#allocation7 + $0x160] sm:$0xff]
    %v1438 = vld [vmem:[#allocation7 + $0x168] sm:$0xff]
    %v1439 = vld [vmem:[#allocation7 + $0x170] sm:$0xff]
    %v1440 = vld [vmem:[#allocation7 + $0x178] sm:$0xff]
    %1441 = vmatprep.subr.mxu0 %v1439
    %1442 = vmatpush1.msra.mxu0 %v1438
    %1443 = vmatprep.subr.mxu0 %v1436
    %1444 = vmatpush1.msra.mxu0 %v1435
    %1445 = vmatprep.subr.mxu0 %v1433
    %1446 = vmatpush1.msra.mxu0 %v1432
    %1447 = vmatprep.subr.mxu0 %v1430
    %1448 = vmatpush1.msra.mxu0 %v1429
    %1449 = vmatprep.subr.mxu0 %v1427
    %1450 = vmatpush1.msra.mxu0 %v1426
    %1451 = vmatprep.subr.mxu0 %v1424
    %1452 = vmatpush1.msra.mxu0 %v1423
    %1453 = vmatprep.subr.mxu0 %v1421
    %1454 = vmatpush1.msra.mxu0 %v1420
    %1455 = vmatprep.subr.mxu0 %v1418
    %1456 = vmatpush1.msra.mxu0 %v1417
    %1457 = vmatprep.subr.mxu0 %v1415
    %1458 = vmatpush1.msra.mxu0 %v1414
    %1459 = vmatprep.subr.mxu0 %v1412
    %1460 = vmatpush1.msra.mxu0 %v1411
    %1461 = vmatprep.subr.mxu0 %v1409
    %1462 = vmatpush1.msra.mxu0 %v1408
    %1463 = vmatprep.subr.mxu0 %v1406
    %1464 = vmatpush1.msra.mxu0 %v1405
    %1465 = vmatprep.subr.mxu0 %v1403
    %1466 = vmatpush1.msra.mxu0 %v1402
    %1467 = vmatprep.subr.mxu0 %v1400
    %1468 = vmatpush1.msra.mxu0 %v1399
    %1469 = vmatprep.subr.mxu0 %v1397
    %1470 = vmatpush1.msra.mxu0 %v1396
    %1471 = vmatprep.subr.mxu0 %v1394
    %1472 = vmatpush1.msra.mxu0 %v1393
    %1473 = vmatprep.subr.mxu0 0.0
    %1474 = vmatpush2.msra.mxu0 0.0
    %1475 = vmatprep.subr.mxu0 0.0
    %1476 = vmatpush2.msra.mxu0 0.0
    %1477 = vmatprep.subr.mxu0 0.0
    %1478 = vmatpush2.msra.mxu0 0.0
    %1479 = vmatprep.subr.mxu0 0.0
    %1480 = vmatpush2.msra.mxu0 0.0
    %1481 = vmatprep.subr.mxu0 0.0
    %1482 = vmatpush2.msra.mxu0 0.0
    %1483 = vmatprep.subr.mxu0 0.0
    %1484 = vmatpush2.msra.mxu0 0.0
    %1485 = vmatprep.subr.mxu0 0.0
    %1486 = vmatpush2.msra.mxu0 0.0
    %1487 = vmatprep.subr.mxu0 0.0
    %1488 = vmatpush2.msra.mxu0 0.0
    %1489 = vmatprep.subr.mxu0 0.0
    %1490 = vmatpush2.msra.mxu0 0.0
    %1491 = vmatprep.subr.mxu0 0.0
    %1492 = vmatpush2.msra.mxu0 0.0
    %1493 = vmatprep.subr.mxu0 0.0
    %1494 = vmatpush2.msra.mxu0 0.0
    %1495 = vmatprep.subr.mxu0 0.0
    %1496 = vmatpush2.msra.mxu0 0.0
    %1497 = vmatprep.subr.mxu0 0.0
    %1498 = vmatpush2.msra.mxu0 0.0
    %1499 = vmatprep.subr.mxu0 0.0
    %1500 = vmatpush2.msra.mxu0 0.0
    %1501 = vmatprep.subr.mxu0 0.0
    %1502 = vmatpush2.msra.mxu0 0.0
    %1503 = vmatprep.subr.mxu0 0.0
    %1504 = vmatpush2.msra.mxu0 0.0
    %1505 = vmatprep.mubr.f32.mxu0 0.0
    %1506 = vmatmul.mubr.f32.gmra.mxu0 %v962
    %v1507 = vpop.f32.mrf.mxu0
    %v1508 = vadd.f32 0.0, %v1507
    %v1509 = vpop.f32.mrf.mxu0
    %v1510 = vadd.f32 0.0, %v1509
    %1511 = vdwg.mxu0
    %1512 = vmatprep.subr.mxu0 0.0
    %1513 = vmatpush1.msra.mxu0 %v1440
    %1514 = vmatprep.subr.mxu0 0.0
    %1515 = vmatpush1.msra.mxu0 %v1437
    %1516 = vmatprep.subr.mxu0 0.0
    %1517 = vmatpush1.msra.mxu0 %v1434
    %1518 = vmatprep.subr.mxu0 0.0
    %1519 = vmatpush1.msra.mxu0 %v1431
    %1520 = vmatprep.subr.mxu0 0.0
    %1521 = vmatpush1.msra.mxu0 %v1428
    %1522 = vmatprep.subr.mxu0 0.0
    %1523 = vmatpush1.msra.mxu0 %v1425
    %1524 = vmatprep.subr.mxu0 0.0
    %1525 = vmatpush1.msra.mxu0 %v1422
    %1526 = vmatprep.subr.mxu0 0.0
    %1527 = vmatpush1.msra.mxu0 %v1419
    %1528 = vmatprep.subr.mxu0 0.0
    %1529 = vmatpush1.msra.mxu0 %v1416
    %1530 = vmatprep.subr.mxu0 0.0
    %1531 = vmatpush1.msra.mxu0 %v1413
    %1532 = vmatprep.subr.mxu0 0.0
    %1533 = vmatpush1.msra.mxu0 %v1410
    %1534 = vmatprep.subr.mxu0 0.0
    %1535 = vmatpush1.msra.mxu0 %v1407
    %1536 = vmatprep.subr.mxu0 0.0
    %1537 = vmatpush1.msra.mxu0 %v1404
    %1538 = vmatprep.subr.mxu0 0.0
    %1539 = vmatpush1.msra.mxu0 %v1401
    %1540 = vmatprep.subr.mxu0 0.0
    %1541 = vmatpush1.msra.mxu0 %v1398
    %1542 = vmatprep.subr.mxu0 0.0
    %1543 = vmatpush1.msra.mxu0 %v1395
    %1544 = vmatprep.subr.mxu0 0.0
    %1545 = vmatpush2.msra.mxu0 0.0
    %1546 = vmatprep.subr.mxu0 0.0
    %1547 = vmatpush2.msra.mxu0 0.0
    %1548 = vmatprep.subr.mxu0 0.0
    %1549 = vmatpush2.msra.mxu0 0.0
    %1550 = vmatprep.subr.mxu0 0.0
    %1551 = vmatpush2.msra.mxu0 0.0
    %1552 = vmatprep.subr.mxu0 0.0
    %1553 = vmatpush2.msra.mxu0 0.0
    %1554 = vmatprep.subr.mxu0 0.0
    %1555 = vmatpush2.msra.mxu0 0.0
    %1556 = vmatprep.subr.mxu0 0.0
    %1557 = vmatpush2.msra.mxu0 0.0
    %1558 = vmatprep.subr.mxu0 0.0
    %1559 = vmatpush2.msra.mxu0 0.0
    %1560 = vmatprep.subr.mxu0 0.0
    %1561 = vmatpush2.msra.mxu0 0.0
    %1562 = vmatprep.subr.mxu0 0.0
    %1563 = vmatpush2.msra.mxu0 0.0
    %1564 = vmatprep.subr.mxu0 0.0
    %1565 = vmatpush2.msra.mxu0 0.0
    %1566 = vmatprep.subr.mxu0 0.0
    %1567 = vmatpush2.msra.mxu0 0.0
    %1568 = vmatprep.subr.mxu0 0.0
    %1569 = vmatpush2.msra.mxu0 0.0
    %1570 = vmatprep.subr.mxu0 0.0
    %1571 = vmatpush2.msra.mxu0 0.0
    %1572 = vmatprep.subr.mxu0 0.0
    %1573 = vmatpush2.msra.mxu0 0.0
    %1574 = vmatprep.subr.mxu0 0.0
    %1575 = vmatpush2.msra.mxu0 0.0
    %1576 = vmatprep.mubr.f32.mxu0 0.0
    %1577 = vmatmul.mubr.f32.gmra.mxu0 %v962
    %v1578 = vpop.f32.mrf.mxu0
    %v1579 = vadd.f32 0.0, %v1578
    %v1580 = vpop.f32.mrf.mxu0
    %1581 = vdwg.mxu0
    %v1582 = vld [vmem:[%s3] sm:$0x1]
    %v1583 = vadd.f32 %v1390, %v1508
    %v1584 = vxor.u32 %v1583, 2147483648
    %v1585 = vmul.f32 %v1584, 1.442695
    %v1586 = vpow.pop %v1585
    %v1587 = vadd.f32 %v1586, 1.0
    %v1588 = vrcp.pop %v1587
    %v1589 = vmul.f32 1.0, %v1588
    %v1590 = vadd.f32 %v1391, %v1510
    %v1591 = vxor.u32 %v1590, 2147483648
    %v1592 = vmul.f32 %v1591, 1.442695
    %v1593 = vpow.pop %v1592
    %v1594 = vadd.f32 %v1593, 1.0
    %v1595 = vrcp.pop %v1594
    %v1596 = vmul.f32 1.0, %v1595
    %v1598 = vlaneseq
    %v1599 = vshrl.u32 %v1598, 7
    %v1600 = vsub.s32 0, %v1599
    %v1601 = vrot.slane %v1582, %v1600
    %v1603 = vadd.f32 %v1579, %v1601
    %v1604 = vmul.f32 %v1589, %v1603
    %v1605 = vadd.f32 %v1392, %v1604
    %v1606 = vtanh.pop %v1605
    %v1607 = vsub.f32 1.0, %v1596
    %v1608 = vmul.f32 %v1607, %v1606
    %v1609 = vmul.f32 %v1596, %v962
    %v1610 = vadd.f32 %v1608, %v1609
    %v1611 = vld [vmem:[#allocation8] sm:$0xff]
    %v1612 = vld [vmem:[#allocation8 + $0x8] sm:$0xff]
    %v1613 = vld [vmem:[#allocation8 + $0x10] sm:$0xff]
    %v1614 = vld [vmem:[#allocation8 + $0x18] sm:$0xff]
    %v1615 = vld [vmem:[#allocation8 + $0x20] sm:$0xff]
    %v1616 = vld [vmem:[#allocation8 + $0x28] sm:$0xff]
    %v1617 = vld [vmem:[#allocation8 + $0x30] sm:$0xff]
    %v1618 = vld [vmem:[#allocation8 + $0x38] sm:$0xff]
    %v1619 = vld [vmem:[#allocation8 + $0x40] sm:$0xff]
    %v1620 = vld [vmem:[#allocation8 + $0x48] sm:$0xff]
    %v1621 = vld [vmem:[#allocation8 + $0x50] sm:$0xff]
    %v1622 = vld [vmem:[#allocation8 + $0x58] sm:$0xff]
    %v1623 = vld [vmem:[#allocation8 + $0x60] sm:$0xff]
    %v1624 = vld [vmem:[#allocation8 + $0x68] sm:$0xff]
    %v1625 = vld [vmem:[#allocation8 + $0x70] sm:$0xff]
    %v1626 = vld [vmem:[#allocation8 + $0x78] sm:$0xff]
    %v1627 = vld [vmem:[#allocation8 + $0x80] sm:$0xff]
    %v1628 = vld [vmem:[#allocation8 + $0x88] sm:$0xff]
    %v1629 = vld [vmem:[#allocation8 + $0x90] sm:$0xff]
    %v1630 = vld [vmem:[#allocation8 + $0x98] sm:$0xff]
    %v1631 = vld [vmem:[#allocation8 + $0xa0] sm:$0xff]
    %v1632 = vld [vmem:[#allocation8 + $0xa8] sm:$0xff]
    %v1633 = vld [vmem:[#allocation8 + $0xb0] sm:$0xff]
    %v1634 = vld [vmem:[#allocation8 + $0xb8] sm:$0xff]
    %v1635 = vld [vmem:[#allocation8 + $0xc0] sm:$0xff]
    %v1636 = vld [vmem:[#allocation8 + $0xc8] sm:$0xff]
    %v1637 = vld [vmem:[#allocation8 + $0xd0] sm:$0xff]
    %v1638 = vld [vmem:[#allocation8 + $0xd8] sm:$0xff]
    %v1639 = vld [vmem:[#allocation8 + $0xe0] sm:$0xff]
    %v1640 = vld [vmem:[#allocation8 + $0xe8] sm:$0xff]
    %v1641 = vld [vmem:[#allocation8 + $0xf0] sm:$0xff]
    %v1642 = vld [vmem:[#allocation8 + $0xf8] sm:$0xff]
    %v1643 = vld [vmem:[#allocation8 + $0x100] sm:$0xff]
    %v1644 = vld [vmem:[#allocation8 + $0x108] sm:$0xff]
    %v1645 = vld [vmem:[#allocation8 + $0x110] sm:$0xff]
    %v1646 = vld [vmem:[#allocation8 + $0x118] sm:$0xff]
    %v1647 = vld [vmem:[#allocation8 + $0x120] sm:$0xff]
    %v1648 = vld [vmem:[#allocation8 + $0x128] sm:$0xff]
    %v1649 = vld [vmem:[#allocation8 + $0x130] sm:$0xff]
    %v1650 = vld [vmem:[#allocation8 + $0x138] sm:$0xff]
    %v1651 = vld [vmem:[#allocation8 + $0x140] sm:$0xff]
    %v1652 = vld [vmem:[#allocation8 + $0x148] sm:$0xff]
    %v1653 = vld [vmem:[#allocation8 + $0x150] sm:$0xff]
    %v1654 = vld [vmem:[#allocation8 + $0x158] sm:$0xff]
    %v1655 = vld [vmem:[#allocation8 + $0x160] sm:$0xff]
    %v1656 = vld [vmem:[#allocation8 + $0x168] sm:$0xff]
    %v1657 = vld [vmem:[#allocation8 + $0x170] sm:$0xff]
    %v1658 = vld [vmem:[#allocation8 + $0x178] sm:$0xff]
    %v1659 = vld [vmem:[%s5] sm:$0x7]
    %v1661 = vlaneseq
    %v1662 = vshrl.u32 %v1661, 7
    %v1663 = vsub.s32 0, %v1662
    %v1664 = vrot.slane %v1659, %v1663
    %v1665 = vlaneseq
    %v1666 = vshrl.u32 %v1665, 7
    %v1667 = vsub.s32 1, %v1666
    %v1668 = vrot.slane %v1659, %v1667
    %v1669 = vlaneseq
    %v1670 = vshrl.u32 %v1669, 7
    %v1671 = vsub.s32 2, %v1670
    %v1672 = vrot.slane %v1659, %v1671
    %1676 = vmatprep.subr.mxu0 %v1657
    %1677 = vmatpush1.msra.mxu0 %v1656
    %1678 = vmatprep.subr.mxu0 %v1654
    %1679 = vmatpush1.msra.mxu0 %v1653
    %1680 = vmatprep.subr.mxu0 %v1651
    %1681 = vmatpush1.msra.mxu0 %v1650
    %1682 = vmatprep.subr.mxu0 %v1648
    %1683 = vmatpush1.msra.mxu0 %v1647
    %1684 = vmatprep.subr.mxu0 %v1645
    %1685 = vmatpush1.msra.mxu0 %v1644
    %1686 = vmatprep.subr.mxu0 %v1642
    %1687 = vmatpush1.msra.mxu0 %v1641
    %1688 = vmatprep.subr.mxu0 %v1639
    %1689 = vmatpush1.msra.mxu0 %v1638
    %1690 = vmatprep.subr.mxu0 %v1636
    %1691 = vmatpush1.msra.mxu0 %v1635
    %1692 = vmatprep.subr.mxu0 %v1633
    %1693 = vmatpush1.msra.mxu0 %v1632
    %1694 = vmatprep.subr.mxu0 %v1630
    %1695 = vmatpush1.msra.mxu0 %v1629
    %1696 = vmatprep.subr.mxu0 %v1627
    %1697 = vmatpush1.msra.mxu0 %v1626
    %1698 = vmatprep.subr.mxu0 %v1624
    %1699 = vmatpush1.msra.mxu0 %v1623
    %1700 = vmatprep.subr.mxu0 %v1621
    %1701 = vmatpush1.msra.mxu0 %v1620
    %1702 = vmatprep.subr.mxu0 %v1618
    %1703 = vmatpush1.msra.mxu0 %v1617
    %1704 = vmatprep.subr.mxu0 %v1615
    %1705 = vmatpush1.msra.mxu0 %v1614
    %1706 = vmatprep.subr.mxu0 %v1612
    %1707 = vmatpush1.msra.mxu0 %v1611
    %1708 = vmatprep.subr.mxu0 0.0
    %1709 = vmatpush2.msra.mxu0 0.0
    %1710 = vmatprep.subr.mxu0 0.0
    %1711 = vmatpush2.msra.mxu0 0.0
    %1712 = vmatprep.subr.mxu0 0.0
    %1713 = vmatpush2.msra.mxu0 0.0
    %1714 = vmatprep.subr.mxu0 0.0
    %1715 = vmatpush2.msra.mxu0 0.0
    %1716 = vmatprep.subr.mxu0 0.0
    %1717 = vmatpush2.msra.mxu0 0.0
    %1718 = vmatprep.subr.mxu0 0.0
    %1719 = vmatpush2.msra.mxu0 0.0
    %1720 = vmatprep.subr.mxu0 0.0
    %1721 = vmatpush2.msra.mxu0 0.0
    %1722 = vmatprep.subr.mxu0 0.0
    %1723 = vmatpush2.msra.mxu0 0.0
    %1724 = vmatprep.subr.mxu0 0.0
    %1725 = vmatpush2.msra.mxu0 0.0
    %1726 = vmatprep.subr.mxu0 0.0
    %1727 = vmatpush2.msra.mxu0 0.0
    %1728 = vmatprep.subr.mxu0 0.0
    %1729 = vmatpush2.msra.mxu0 0.0
    %1730 = vmatprep.subr.mxu0 0.0
    %1731 = vmatpush2.msra.mxu0 0.0
    %1732 = vmatprep.subr.mxu0 0.0
    %1733 = vmatpush2.msra.mxu0 0.0
    %1734 = vmatprep.subr.mxu0 0.0
    %1735 = vmatpush2.msra.mxu0 0.0
    %1736 = vmatprep.subr.mxu0 0.0
    %1737 = vmatpush2.msra.mxu0 0.0
    %1738 = vmatprep.subr.mxu0 0.0
    %1739 = vmatpush2.msra.mxu0 0.0
    %1740 = vmatprep.mubr.f32.mxu0 0.0
    %1741 = vmatmul.mubr.f32.gmra.mxu0 %v1610
    %v1742 = vpop.f32.mrf.mxu0
    %v1743 = vadd.f32 %v1664, %v1742
    %v1744 = vpop.f32.mrf.mxu0
    %v1745 = vadd.f32 %v1668, %v1744
    %1746 = vdwg.mxu0
    %1747 = vmatprep.subr.mxu0 0.0
    %1748 = vmatpush1.msra.mxu0 %v1658
    %1749 = vmatprep.subr.mxu0 0.0
    %1750 = vmatpush1.msra.mxu0 %v1655
    %1751 = vmatprep.subr.mxu0 0.0
    %1752 = vmatpush1.msra.mxu0 %v1652
    %1753 = vmatprep.subr.mxu0 0.0
    %1754 = vmatpush1.msra.mxu0 %v1649
    %1755 = vmatprep.subr.mxu0 0.0
    %1756 = vmatpush1.msra.mxu0 %v1646
    %1757 = vmatprep.subr.mxu0 0.0
    %1758 = vmatpush1.msra.mxu0 %v1643
    %1759 = vmatprep.subr.mxu0 0.0
    %1760 = vmatpush1.msra.mxu0 %v1640
    %1761 = vmatprep.subr.mxu0 0.0
    %1762 = vmatpush1.msra.mxu0 %v1637
    %1763 = vmatprep.subr.mxu0 0.0
    %1764 = vmatpush1.msra.mxu0 %v1634
    %1765 = vmatprep.subr.mxu0 0.0
    %1766 = vmatpush1.msra.mxu0 %v1631
    %1767 = vmatprep.subr.mxu0 0.0
    %1768 = vmatpush1.msra.mxu0 %v1628
    %1769 = vmatprep.subr.mxu0 0.0
    %1770 = vmatpush1.msra.mxu0 %v1625
    %1771 = vmatprep.subr.mxu0 0.0
    %1772 = vmatpush1.msra.mxu0 %v1622
    %1773 = vmatprep.subr.mxu0 0.0
    %1774 = vmatpush1.msra.mxu0 %v1619
    %1775 = vmatprep.subr.mxu0 0.0
    %1776 = vmatpush1.msra.mxu0 %v1616
    %1777 = vmatprep.subr.mxu0 0.0
    %1778 = vmatpush1.msra.mxu0 %v1613
    %1779 = vmatprep.subr.mxu0 0.0
    %1780 = vmatpush2.msra.mxu0 0.0
    %1781 = vmatprep.subr.mxu0 0.0
    %1782 = vmatpush2.msra.mxu0 0.0
    %1783 = vmatprep.subr.mxu0 0.0
    %1784 = vmatpush2.msra.mxu0 0.0
    %1785 = vmatprep.subr.mxu0 0.0
    %1786 = vmatpush2.msra.mxu0 0.0
    %1787 = vmatprep.subr.mxu0 0.0
    %1788 = vmatpush2.msra.mxu0 0.0
    %1789 = vmatprep.subr.mxu0 0.0
    %1790 = vmatpush2.msra.mxu0 0.0
    %1791 = vmatprep.subr.mxu0 0.0
    %1792 = vmatpush2.msra.mxu0 0.0
    %1793 = vmatprep.subr.mxu0 0.0
    %1794 = vmatpush2.msra.mxu0 0.0
    %1795 = vmatprep.subr.mxu0 0.0
    %1796 = vmatpush2.msra.mxu0 0.0
    %1797 = vmatprep.subr.mxu0 0.0
    %1798 = vmatpush2.msra.mxu0 0.0
    %1799 = vmatprep.subr.mxu0 0.0
    %1800 = vmatpush2.msra.mxu0 0.0
    %1801 = vmatprep.subr.mxu0 0.0
    %1802 = vmatpush2.msra.mxu0 0.0
    %1803 = vmatprep.subr.mxu0 0.0
    %1804 = vmatpush2.msra.mxu0 0.0
    %1805 = vmatprep.subr.mxu0 0.0
    %1806 = vmatpush2.msra.mxu0 0.0
    %1807 = vmatprep.subr.mxu0 0.0
    %1808 = vmatpush2.msra.mxu0 0.0
    %1809 = vmatprep.subr.mxu0 0.0
    %1810 = vmatpush2.msra.mxu0 0.0
    %1811 = vmatprep.mubr.f32.mxu0 0.0
    %1812 = vmatmul.mubr.f32.gmra.mxu0 %v1610
    %v1813 = vpop.f32.mrf.mxu0
    %v1814 = vadd.f32 %v1672, %v1813
    %v1815 = vpop.f32.mrf.mxu0
    %1816 = vdwg.mxu0
    %v1817 = vld [vmem:[%s520] sm:$0xff]
    %v1818 = vld [vmem:[%s520 + $0x8] sm:$0xff]
    %v1819 = vld [vmem:[%s520 + $0x10] sm:$0xff]
    %v1820 = vld [vmem:[%s520 + $0x18] sm:$0xff]
    %v1821 = vld [vmem:[%s520 + $0x20] sm:$0xff]
    %v1822 = vld [vmem:[%s520 + $0x28] sm:$0xff]
    %v1823 = vld [vmem:[%s520 + $0x30] sm:$0xff]
    %v1824 = vld [vmem:[%s520 + $0x38] sm:$0xff]
    %v1825 = vld [vmem:[%s520 + $0x40] sm:$0xff]
    %v1826 = vld [vmem:[%s520 + $0x48] sm:$0xff]
    %v1827 = vld [vmem:[%s520 + $0x50] sm:$0xff]
    %v1828 = vld [vmem:[%s520 + $0x58] sm:$0xff]
    %v1829 = vld [vmem:[%s520 + $0x60] sm:$0xff]
    %v1830 = vld [vmem:[%s520 + $0x68] sm:$0xff]
    %v1831 = vld [vmem:[%s520 + $0x70] sm:$0xff]
    %v1832 = vld [vmem:[%s520 + $0x78] sm:$0xff]
    %v1833 = vld [vmem:[%s520 + $0x80] sm:$0xff]
    %v1834 = vld [vmem:[%s520 + $0x88] sm:$0xff]
    %v1835 = vld [vmem:[%s520 + $0x90] sm:$0xff]
    %v1836 = vld [vmem:[%s520 + $0x98] sm:$0xff]
    %v1837 = vld [vmem:[%s520 + $0xa0] sm:$0xff]
    %v1838 = vld [vmem:[%s520 + $0xa8] sm:$0xff]
    %v1839 = vld [vmem:[%s520 + $0xb0] sm:$0xff]
    %v1840 = vld [vmem:[%s520 + $0xb8] sm:$0xff]
    %v1841 = vld [vmem:[%s520 + $0xc0] sm:$0xff]
    %v1842 = vld [vmem:[%s520 + $0xc8] sm:$0xff]
    %v1843 = vld [vmem:[%s520 + $0xd0] sm:$0xff]
    %v1844 = vld [vmem:[%s520 + $0xd8] sm:$0xff]
    %v1845 = vld [vmem:[%s520 + $0xe0] sm:$0xff]
    %v1846 = vld [vmem:[%s520 + $0xe8] sm:$0xff]
    %v1847 = vld [vmem:[%s520 + $0xf0] sm:$0xff]
    %v1848 = vld [vmem:[%s520 + $0xf8] sm:$0xff]
    %v1849 = vld [vmem:[%s520 + $0x100] sm:$0xff]
    %v1850 = vld [vmem:[%s520 + $0x108] sm:$0xff]
    %v1851 = vld [vmem:[%s520 + $0x110] sm:$0xff]
    %v1852 = vld [vmem:[%s520 + $0x118] sm:$0xff]
    %v1853 = vld [vmem:[%s520 + $0x120] sm:$0xff]
    %v1854 = vld [vmem:[%s520 + $0x128] sm:$0xff]
    %v1855 = vld [vmem:[%s520 + $0x130] sm:$0xff]
    %v1856 = vld [vmem:[%s520 + $0x138] sm:$0xff]
    %v1857 = vld [vmem:[%s520 + $0x140] sm:$0xff]
    %v1858 = vld [vmem:[%s520 + $0x148] sm:$0xff]
    %v1859 = vld [vmem:[%s520 + $0x150] sm:$0xff]
    %v1860 = vld [vmem:[%s520 + $0x158] sm:$0xff]
    %v1861 = vld [vmem:[%s520 + $0x160] sm:$0xff]
    %v1862 = vld [vmem:[%s520 + $0x168] sm:$0xff]
    %v1863 = vld [vmem:[%s520 + $0x170] sm:$0xff]
    %v1864 = vld [vmem:[%s520 + $0x178] sm:$0xff]
    %1865 = vmatprep.subr.mxu0 %v1863
    %1866 = vmatpush1.msra.mxu0 %v1862
    %1867 = vmatprep.subr.mxu0 %v1860
    %1868 = vmatpush1.msra.mxu0 %v1859
    %1869 = vmatprep.subr.mxu0 %v1857
    %1870 = vmatpush1.msra.mxu0 %v1856
    %1871 = vmatprep.subr.mxu0 %v1854
    %1872 = vmatpush1.msra.mxu0 %v1853
    %1873 = vmatprep.subr.mxu0 %v1851
    %1874 = vmatpush1.msra.mxu0 %v1850
    %1875 = vmatprep.subr.mxu0 %v1848
    %1876 = vmatpush1.msra.mxu0 %v1847
    %1877 = vmatprep.subr.mxu0 %v1845
    %1878 = vmatpush1.msra.mxu0 %v1844
    %1879 = vmatprep.subr.mxu0 %v1842
    %1880 = vmatpush1.msra.mxu0 %v1841
    %1881 = vmatprep.subr.mxu0 %v1839
    %1882 = vmatpush1.msra.mxu0 %v1838
    %1883 = vmatprep.subr.mxu0 %v1836
    %1884 = vmatpush1.msra.mxu0 %v1835
    %1885 = vmatprep.subr.mxu0 %v1833
    %1886 = vmatpush1.msra.mxu0 %v1832
    %1887 = vmatprep.subr.mxu0 %v1830
    %1888 = vmatpush1.msra.mxu0 %v1829
    %1889 = vmatprep.subr.mxu0 %v1827
    %1890 = vmatpush1.msra.mxu0 %v1826
    %1891 = vmatprep.subr.mxu0 %v1824
    %1892 = vmatpush1.msra.mxu0 %v1823
    %1893 = vmatprep.subr.mxu0 %v1821
    %1894 = vmatpush1.msra.mxu0 %v1820
    %1895 = vmatprep.subr.mxu0 %v1818
    %1896 = vmatpush1.msra.mxu0 %v1817
    %1897 = vmatprep.subr.mxu0 0.0
    %1898 = vmatpush2.msra.mxu0 0.0
    %1899 = vmatprep.subr.mxu0 0.0
    %1900 = vmatpush2.msra.mxu0 0.0
    %1901 = vmatprep.subr.mxu0 0.0
    %1902 = vmatpush2.msra.mxu0 0.0
    %1903 = vmatprep.subr.mxu0 0.0
    %1904 = vmatpush2.msra.mxu0 0.0
    %1905 = vmatprep.subr.mxu0 0.0
    %1906 = vmatpush2.msra.mxu0 0.0
    %1907 = vmatprep.subr.mxu0 0.0
    %1908 = vmatpush2.msra.mxu0 0.0
    %1909 = vmatprep.subr.mxu0 0.0
    %1910 = vmatpush2.msra.mxu0 0.0
    %1911 = vmatprep.subr.mxu0 0.0
    %1912 = vmatpush2.msra.mxu0 0.0
    %1913 = vmatprep.subr.mxu0 0.0
    %1914 = vmatpush2.msra.mxu0 0.0
    %1915 = vmatprep.subr.mxu0 0.0
    %1916 = vmatpush2.msra.mxu0 0.0
    %1917 = vmatprep.subr.mxu0 0.0
    %1918 = vmatpush2.msra.mxu0 0.0
    %1919 = vmatprep.subr.mxu0 0.0
    %1920 = vmatpush2.msra.mxu0 0.0
    %1921 = vmatprep.subr.mxu0 0.0
    %1922 = vmatpush2.msra.mxu0 0.0
    %1923 = vmatprep.subr.mxu0 0.0
    %1924 = vmatpush2.msra.mxu0 0.0
    %1925 = vmatprep.subr.mxu0 0.0
    %1926 = vmatpush2.msra.mxu0 0.0
    %1927 = vmatprep.subr.mxu0 0.0
    %1928 = vmatpush2.msra.mxu0 0.0
    %1929 = vmatprep.mubr.f32.mxu0 0.0
    %1930 = vmatmul.mubr.f32.gmra.mxu0 %v1386
    %v1931 = vpop.f32.mrf.mxu0
    %v1932 = vadd.f32 0.0, %v1931
    %v1933 = vpop.f32.mrf.mxu0
    %v1934 = vadd.f32 0.0, %v1933
    %1935 = vdwg.mxu0
    %1936 = vmatprep.subr.mxu0 0.0
    %1937 = vmatpush1.msra.mxu0 %v1864
    %1938 = vmatprep.subr.mxu0 0.0
    %1939 = vmatpush1.msra.mxu0 %v1861
    %1940 = vmatprep.subr.mxu0 0.0
    %1941 = vmatpush1.msra.mxu0 %v1858
    %1942 = vmatprep.subr.mxu0 0.0
    %1943 = vmatpush1.msra.mxu0 %v1855
    %1944 = vmatprep.subr.mxu0 0.0
    %1945 = vmatpush1.msra.mxu0 %v1852
    %1946 = vmatprep.subr.mxu0 0.0
    %1947 = vmatpush1.msra.mxu0 %v1849
    %1948 = vmatprep.subr.mxu0 0.0
    %1949 = vmatpush1.msra.mxu0 %v1846
    %1950 = vmatprep.subr.mxu0 0.0
    %1951 = vmatpush1.msra.mxu0 %v1843
    %1952 = vmatprep.subr.mxu0 0.0
    %1953 = vmatpush1.msra.mxu0 %v1840
    %1954 = vmatprep.subr.mxu0 0.0
    %1955 = vmatpush1.msra.mxu0 %v1837
    %1956 = vmatprep.subr.mxu0 0.0
    %1957 = vmatpush1.msra.mxu0 %v1834
    %1958 = vmatprep.subr.mxu0 0.0
    %1959 = vmatpush1.msra.mxu0 %v1831
    %1960 = vmatprep.subr.mxu0 0.0
    %1961 = vmatpush1.msra.mxu0 %v1828
    %1962 = vmatprep.subr.mxu0 0.0
    %1963 = vmatpush1.msra.mxu0 %v1825
    %1964 = vmatprep.subr.mxu0 0.0
    %1965 = vmatpush1.msra.mxu0 %v1822
    %1966 = vmatprep.subr.mxu0 0.0
    %1967 = vmatpush1.msra.mxu0 %v1819
    %1968 = vmatprep.subr.mxu0 0.0
    %1969 = vmatpush2.msra.mxu0 0.0
    %1970 = vmatprep.subr.mxu0 0.0
    %1971 = vmatpush2.msra.mxu0 0.0
    %1972 = vmatprep.subr.mxu0 0.0
    %1973 = vmatpush2.msra.mxu0 0.0
    %1974 = vmatprep.subr.mxu0 0.0
    %1975 = vmatpush2.msra.mxu0 0.0
    %1976 = vmatprep.subr.mxu0 0.0
    %1977 = vmatpush2.msra.mxu0 0.0
    %1978 = vmatprep.subr.mxu0 0.0
    %1979 = vmatpush2.msra.mxu0 0.0
    %1980 = vmatprep.subr.mxu0 0.0
    %1981 = vmatpush2.msra.mxu0 0.0
    %1982 = vmatprep.subr.mxu0 0.0
    %1983 = vmatpush2.msra.mxu0 0.0
    %1984 = vmatprep.subr.mxu0 0.0
    %1985 = vmatpush2.msra.mxu0 0.0
    %1986 = vmatprep.subr.mxu0 0.0
    %1987 = vmatpush2.msra.mxu0 0.0
    %1988 = vmatprep.subr.mxu0 0.0
    %1989 = vmatpush2.msra.mxu0 0.0
    %1990 = vmatprep.subr.mxu0 0.0
    %1991 = vmatpush2.msra.mxu0 0.0
    %1992 = vmatprep.subr.mxu0 0.0
    %1993 = vmatpush2.msra.mxu0 0.0
    %1994 = vmatprep.subr.mxu0 0.0
    %1995 = vmatpush2.msra.mxu0 0.0
    %1996 = vmatprep.subr.mxu0 0.0
    %1997 = vmatpush2.msra.mxu0 0.0
    %1998 = vmatprep.subr.mxu0 0.0
    %1999 = vmatpush2.msra.mxu0 0.0
    %2000 = vmatprep.mubr.f32.mxu0 0.0
    %2001 = vmatmul.mubr.f32.gmra.mxu0 %v1386
    %v2002 = vpop.f32.mrf.mxu0
    %v2003 = vadd.f32 0.0, %v2002
    %v2004 = vpop.f32.mrf.mxu0
    %2005 = vdwg.mxu0
    %v2006 = vld [vmem:[%s710] sm:$0x1]
    %v2007 = vadd.f32 %v1743, %v1932
    %v2008 = vxor.u32 %v2007, 2147483648
    %v2009 = vmul.f32 %v2008, 1.442695
    %v2010 = vpow.pop %v2009
    %v2011 = vadd.f32 %v2010, 1.0
    %v2012 = vrcp.pop %v2011
    %v2013 = vmul.f32 1.0, %v2012
    %v2014 = vadd.f32 %v1745, %v1934
    %v2015 = vxor.u32 %v2014, 2147483648
    %v2016 = vmul.f32 %v2015, 1.442695
    %v2017 = vpow.pop %v2016
    %v2018 = vadd.f32 %v2017, 1.0
    %v2019 = vrcp.pop %v2018
    %v2020 = vmul.f32 1.0, %v2019
    %v2022 = vlaneseq
    %v2023 = vshrl.u32 %v2022, 7
    %v2024 = vsub.s32 0, %v2023
    %v2025 = vrot.slane %v2006, %v2024
    %v2027 = vadd.f32 %v2003, %v2025
    %v2028 = vmul.f32 %v2013, %v2027
    %v2029 = vadd.f32 %v1814, %v2028
    %v2030 = vtanh.pop %v2029
    %v2031 = vsub.f32 1.0, %v2020
    %v2032 = vmul.f32 %v2031, %v2030
    %v2033 = vmul.f32 %v2020, %v1386
    %v2034 = vadd.f32 %v2032, %v2033
    %s2035 = scalar_lea.vmem [#allocation10], 16
    %2036 = vst [vmem:[%s2035] sm:$0xff] %v2034
    %s2037 = scalar_lea.vmem [#allocation2], 72
    %v2038 = vld [vmem:[%s2037] sm:$0xff]
    %v2039 = vld [vmem:[%s2037 + $0x8] sm:$0xff]
    %v2040 = vld [vmem:[%s2037 + $0x10] sm:$0xff]
    %v2041 = vld [vmem:[#allocation7] sm:$0xff]
    %v2042 = vld [vmem:[#allocation7 + $0x8] sm:$0xff]
    %v2043 = vld [vmem:[#allocation7 + $0x10] sm:$0xff]
    %v2044 = vld [vmem:[#allocation7 + $0x18] sm:$0xff]
    %v2045 = vld [vmem:[#allocation7 + $0x20] sm:$0xff]
    %v2046 = vld [vmem:[#allocation7 + $0x28] sm:$0xff]
    %v2047 = vld [vmem:[#allocation7 + $0x30] sm:$0xff]
    %v2048 = vld [vmem:[#allocation7 + $0x38] sm:$0xff]
    %v2049 = vld [vmem:[#allocation7 + $0x40] sm:$0xff]
    %v2050 = vld [vmem:[#allocation7 + $0x48] sm:$0xff]
    %v2051 = vld [vmem:[#allocation7 + $0x50] sm:$0xff]
    %v2052 = vld [vmem:[#allocation7 + $0x58] sm:$0xff]
    %v2053 = vld [vmem:[#allocation7 + $0x60] sm:$0xff]
    %v2054 = vld [vmem:[#allocation7 + $0x68] sm:$0xff]
    %v2055 = vld [vmem:[#allocation7 + $0x70] sm:$0xff]
    %v2056 = vld [vmem:[#allocation7 + $0x78] sm:$0xff]
    %v2057 = vld [vmem:[#allocation7 + $0x80] sm:$0xff]
    %v2058 = vld [vmem:[#allocation7 + $0x88] sm:$0xff]
    %v2059 = vld [vmem:[#allocation7 + $0x90] sm:$0xff]
    %v2060 = vld [vmem:[#allocation7 + $0x98] sm:$0xff]
    %v2061 = vld [vmem:[#allocation7 + $0xa0] sm:$0xff]
    %v2062 = vld [vmem:[#allocation7 + $0xa8] sm:$0xff]
    %v2063 = vld [vmem:[#allocation7 + $0xb0] sm:$0xff]
    %v2064 = vld [vmem:[#allocation7 + $0xb8] sm:$0xff]
    %v2065 = vld [vmem:[#allocation7 + $0xc0] sm:$0xff]
    %v2066 = vld [vmem:[#allocation7 + $0xc8] sm:$0xff]
    %v2067 = vld [vmem:[#allocation7 + $0xd0] sm:$0xff]
    %v2068 = vld [vmem:[#allocation7 + $0xd8] sm:$0xff]
    %v2069 = vld [vmem:[#allocation7 + $0xe0] sm:$0xff]
    %v2070 = vld [vmem:[#allocation7 + $0xe8] sm:$0xff]
    %v2071 = vld [vmem:[#allocation7 + $0xf0] sm:$0xff]
    %v2072 = vld [vmem:[#allocation7 + $0xf8] sm:$0xff]
    %v2073 = vld [vmem:[#allocation7 + $0x100] sm:$0xff]
    %v2074 = vld [vmem:[#allocation7 + $0x108] sm:$0xff]
    %v2075 = vld [vmem:[#allocation7 + $0x110] sm:$0xff]
    %v2076 = vld [vmem:[#allocation7 + $0x118] sm:$0xff]
    %v2077 = vld [vmem:[#allocation7 + $0x120] sm:$0xff]
    %v2078 = vld [vmem:[#allocation7 + $0x128] sm:$0xff]
    %v2079 = vld [vmem:[#allocation7 + $0x130] sm:$0xff]
    %v2080 = vld [vmem:[#allocation7 + $0x138] sm:$0xff]
    %v2081 = vld [vmem:[#allocation7 + $0x140] sm:$0xff]
    %v2082 = vld [vmem:[#allocation7 + $0x148] sm:$0xff]
    %v2083 = vld [vmem:[#allocation7 + $0x150] sm:$0xff]
    %v2084 = vld [vmem:[#allocation7 + $0x158] sm:$0xff]
    %v2085 = vld [vmem:[#allocation7 + $0x160] sm:$0xff]
    %v2086 = vld [vmem:[#allocation7 + $0x168] sm:$0xff]
    %v2087 = vld [vmem:[#allocation7 + $0x170] sm:$0xff]
    %v2088 = vld [vmem:[#allocation7 + $0x178] sm:$0xff]
    %2089 = vmatprep.subr.mxu0 %v2087
    %2090 = vmatpush1.msra.mxu0 %v2086
    %2091 = vmatprep.subr.mxu0 %v2084
    %2092 = vmatpush1.msra.mxu0 %v2083
    %2093 = vmatprep.subr.mxu0 %v2081
    %2094 = vmatpush1.msra.mxu0 %v2080
    %2095 = vmatprep.subr.mxu0 %v2078
    %2096 = vmatpush1.msra.mxu0 %v2077
    %2097 = vmatprep.subr.mxu0 %v2075
    %2098 = vmatpush1.msra.mxu0 %v2074
    %2099 = vmatprep.subr.mxu0 %v2072
    %2100 = vmatpush1.msra.mxu0 %v2071
    %2101 = vmatprep.subr.mxu0 %v2069
    %2102 = vmatpush1.msra.mxu0 %v2068
    %2103 = vmatprep.subr.mxu0 %v2066
    %2104 = vmatpush1.msra.mxu0 %v2065
    %2105 = vmatprep.subr.mxu0 %v2063
    %2106 = vmatpush1.msra.mxu0 %v2062
    %2107 = vmatprep.subr.mxu0 %v2060
    %2108 = vmatpush1.msra.mxu0 %v2059
    %2109 = vmatprep.subr.mxu0 %v2057
    %2110 = vmatpush1.msra.mxu0 %v2056
    %2111 = vmatprep.subr.mxu0 %v2054
    %2112 = vmatpush1.msra.mxu0 %v2053
    %2113 = vmatprep.subr.mxu0 %v2051
    %2114 = vmatpush1.msra.mxu0 %v2050
    %2115 = vmatprep.subr.mxu0 %v2048
    %2116 = vmatpush1.msra.mxu0 %v2047
    %2117 = vmatprep.subr.mxu0 %v2045
    %2118 = vmatpush1.msra.mxu0 %v2044
    %2119 = vmatprep.subr.mxu0 %v2042
    %2120 = vmatpush1.msra.mxu0 %v2041
    %2121 = vmatprep.subr.mxu0 0.0
    %2122 = vmatpush2.msra.mxu0 0.0
    %2123 = vmatprep.subr.mxu0 0.0
    %2124 = vmatpush2.msra.mxu0 0.0
    %2125 = vmatprep.subr.mxu0 0.0
    %2126 = vmatpush2.msra.mxu0 0.0
    %2127 = vmatprep.subr.mxu0 0.0
    %2128 = vmatpush2.msra.mxu0 0.0
    %2129 = vmatprep.subr.mxu0 0.0
    %2130 = vmatpush2.msra.mxu0 0.0
    %2131 = vmatprep.subr.mxu0 0.0
    %2132 = vmatpush2.msra.mxu0 0.0
    %2133 = vmatprep.subr.mxu0 0.0
    %2134 = vmatpush2.msra.mxu0 0.0
    %2135 = vmatprep.subr.mxu0 0.0
    %2136 = vmatpush2.msra.mxu0 0.0
    %2137 = vmatprep.subr.mxu0 0.0
    %2138 = vmatpush2.msra.mxu0 0.0
    %2139 = vmatprep.subr.mxu0 0.0
    %2140 = vmatpush2.msra.mxu0 0.0
    %2141 = vmatprep.subr.mxu0 0.0
    %2142 = vmatpush2.msra.mxu0 0.0
    %2143 = vmatprep.subr.mxu0 0.0
    %2144 = vmatpush2.msra.mxu0 0.0
    %2145 = vmatprep.subr.mxu0 0.0
    %2146 = vmatpush2.msra.mxu0 0.0
    %2147 = vmatprep.subr.mxu0 0.0
    %2148 = vmatpush2.msra.mxu0 0.0
    %2149 = vmatprep.subr.mxu0 0.0
    %2150 = vmatpush2.msra.mxu0 0.0
    %2151 = vmatprep.subr.mxu0 0.0
    %2152 = vmatpush2.msra.mxu0 0.0
    %2153 = vmatprep.mubr.f32.mxu0 0.0
    %2154 = vmatmul.mubr.f32.gmra.mxu0 %v1610
    %v2155 = vpop.f32.mrf.mxu0
    %v2156 = vadd.f32 0.0, %v2155
    %v2157 = vpop.f32.mrf.mxu0
    %v2158 = vadd.f32 0.0, %v2157
    %2159 = vdwg.mxu0
    %2160 = vmatprep.subr.mxu0 0.0
    %2161 = vmatpush1.msra.mxu0 %v2088
    %2162 = vmatprep.subr.mxu0 0.0
    %2163 = vmatpush1.msra.mxu0 %v2085
    %2164 = vmatprep.subr.mxu0 0.0
    %2165 = vmatpush1.msra.mxu0 %v2082
    %2166 = vmatprep.subr.mxu0 0.0
    %2167 = vmatpush1.msra.mxu0 %v2079
    %2168 = vmatprep.subr.mxu0 0.0
    %2169 = vmatpush1.msra.mxu0 %v2076
    %2170 = vmatprep.subr.mxu0 0.0
    %2171 = vmatpush1.msra.mxu0 %v2073
    %2172 = vmatprep.subr.mxu0 0.0
    %2173 = vmatpush1.msra.mxu0 %v2070
    %2174 = vmatprep.subr.mxu0 0.0
    %2175 = vmatpush1.msra.mxu0 %v2067
    %2176 = vmatprep.subr.mxu0 0.0
    %2177 = vmatpush1.msra.mxu0 %v2064
    %2178 = vmatprep.subr.mxu0 0.0
    %2179 = vmatpush1.msra.mxu0 %v2061
    %2180 = vmatprep.subr.mxu0 0.0
    %2181 = vmatpush1.msra.mxu0 %v2058
    %2182 = vmatprep.subr.mxu0 0.0
    %2183 = vmatpush1.msra.mxu0 %v2055
    %2184 = vmatprep.subr.mxu0 0.0
    %2185 = vmatpush1.msra.mxu0 %v2052
    %2186 = vmatprep.subr.mxu0 0.0
    %2187 = vmatpush1.msra.mxu0 %v2049
    %2188 = vmatprep.subr.mxu0 0.0
    %2189 = vmatpush1.msra.mxu0 %v2046
    %2190 = vmatprep.subr.mxu0 0.0
    %2191 = vmatpush1.msra.mxu0 %v2043
    %2192 = vmatprep.subr.mxu0 0.0
    %2193 = vmatpush2.msra.mxu0 0.0
    %2194 = vmatprep.subr.mxu0 0.0
    %2195 = vmatpush2.msra.mxu0 0.0
    %2196 = vmatprep.subr.mxu0 0.0
    %2197 = vmatpush2.msra.mxu0 0.0
    %2198 = vmatprep.subr.mxu0 0.0
    %2199 = vmatpush2.msra.mxu0 0.0
    %2200 = vmatprep.subr.mxu0 0.0
    %2201 = vmatpush2.msra.mxu0 0.0
    %2202 = vmatprep.subr.mxu0 0.0
    %2203 = vmatpush2.msra.mxu0 0.0
    %2204 = vmatprep.subr.mxu0 0.0
    %2205 = vmatpush2.msra.mxu0 0.0
    %2206 = vmatprep.subr.mxu0 0.0
    %2207 = vmatpush2.msra.mxu0 0.0
    %2208 = vmatprep.subr.mxu0 0.0
    %2209 = vmatpush2.msra.mxu0 0.0
    %2210 = vmatprep.subr.mxu0 0.0
    %2211 = vmatpush2.msra.mxu0 0.0
    %2212 = vmatprep.subr.mxu0 0.0
    %2213 = vmatpush2.msra.mxu0 0.0
    %2214 = vmatprep.subr.mxu0 0.0
    %2215 = vmatpush2.msra.mxu0 0.0
    %2216 = vmatprep.subr.mxu0 0.0
    %2217 = vmatpush2.msra.mxu0 0.0
    %2218 = vmatprep.subr.mxu0 0.0
    %2219 = vmatpush2.msra.mxu0 0.0
    %2220 = vmatprep.subr.mxu0 0.0
    %2221 = vmatpush2.msra.mxu0 0.0
    %2222 = vmatprep.subr.mxu0 0.0
    %2223 = vmatpush2.msra.mxu0 0.0
    %2224 = vmatprep.mubr.f32.mxu0 0.0
    %2225 = vmatmul.mubr.f32.gmra.mxu0 %v1610
    %v2226 = vpop.f32.mrf.mxu0
    %v2227 = vadd.f32 0.0, %v2226
    %v2228 = vpop.f32.mrf.mxu0
    %2229 = vdwg.mxu0
    %v2230 = vld [vmem:[%s3] sm:$0x1]
    %v2231 = vadd.f32 %v2038, %v2156
    %v2232 = vxor.u32 %v2231, 2147483648
    %v2233 = vmul.f32 %v2232, 1.442695
    %v2234 = vpow.pop %v2233
    %v2235 = vadd.f32 %v2234, 1.0
    %v2236 = vrcp.pop %v2235
    %v2237 = vmul.f32 1.0, %v2236
    %v2238 = vadd.f32 %v2039, %v2158
    %v2239 = vxor.u32 %v2238, 2147483648
    %v2240 = vmul.f32 %v2239, 1.442695
    %v2241 = vpow.pop %v2240
    %v2242 = vadd.f32 %v2241, 1.0
    %v2243 = vrcp.pop %v2242
    %v2244 = vmul.f32 1.0, %v2243
    %v2246 = vlaneseq
    %v2247 = vshrl.u32 %v2246, 7
    %v2248 = vsub.s32 0, %v2247
    %v2249 = vrot.slane %v2230, %v2248
    %v2251 = vadd.f32 %v2227, %v2249
    %v2252 = vmul.f32 %v2237, %v2251
    %v2253 = vadd.f32 %v2040, %v2252
    %v2254 = vtanh.pop %v2253
    %v2255 = vsub.f32 1.0, %v2244
    %v2256 = vmul.f32 %v2255, %v2254
    %v2257 = vmul.f32 %v2244, %v1610
    %v2258 = vadd.f32 %v2256, %v2257
    %v2259 = vld [vmem:[#allocation8] sm:$0xff]
    %v2260 = vld [vmem:[#allocation8 + $0x8] sm:$0xff]
    %v2261 = vld [vmem:[#allocation8 + $0x10] sm:$0xff]
    %v2262 = vld [vmem:[#allocation8 + $0x18] sm:$0xff]
    %v2263 = vld [vmem:[#allocation8 + $0x20] sm:$0xff]
    %v2264 = vld [vmem:[#allocation8 + $0x28] sm:$0xff]
    %v2265 = vld [vmem:[#allocation8 + $0x30] sm:$0xff]
    %v2266 = vld [vmem:[#allocation8 + $0x38] sm:$0xff]
    %v2267 = vld [vmem:[#allocation8 + $0x40] sm:$0xff]
    %v2268 = vld [vmem:[#allocation8 + $0x48] sm:$0xff]
    %v2269 = vld [vmem:[#allocation8 + $0x50] sm:$0xff]
    %v2270 = vld [vmem:[#allocation8 + $0x58] sm:$0xff]
    %v2271 = vld [vmem:[#allocation8 + $0x60] sm:$0xff]
    %v2272 = vld [vmem:[#allocation8 + $0x68] sm:$0xff]
    %v2273 = vld [vmem:[#allocation8 + $0x70] sm:$0xff]
    %v2274 = vld [vmem:[#allocation8 + $0x78] sm:$0xff]
    %v2275 = vld [vmem:[#allocation8 + $0x80] sm:$0xff]
    %v2276 = vld [vmem:[#allocation8 + $0x88] sm:$0xff]
    %v2277 = vld [vmem:[#allocation8 + $0x90] sm:$0xff]
    %v2278 = vld [vmem:[#allocation8 + $0x98] sm:$0xff]
    %v2279 = vld [vmem:[#allocation8 + $0xa0] sm:$0xff]
    %v2280 = vld [vmem:[#allocation8 + $0xa8] sm:$0xff]
    %v2281 = vld [vmem:[#allocation8 + $0xb0] sm:$0xff]
    %v2282 = vld [vmem:[#allocation8 + $0xb8] sm:$0xff]
    %v2283 = vld [vmem:[#allocation8 + $0xc0] sm:$0xff]
    %v2284 = vld [vmem:[#allocation8 + $0xc8] sm:$0xff]
    %v2285 = vld [vmem:[#allocation8 + $0xd0] sm:$0xff]
    %v2286 = vld [vmem:[#allocation8 + $0xd8] sm:$0xff]
    %v2287 = vld [vmem:[#allocation8 + $0xe0] sm:$0xff]
    %v2288 = vld [vmem:[#allocation8 + $0xe8] sm:$0xff]
    %v2289 = vld [vmem:[#allocation8 + $0xf0] sm:$0xff]
    %v2290 = vld [vmem:[#allocation8 + $0xf8] sm:$0xff]
    %v2291 = vld [vmem:[#allocation8 + $0x100] sm:$0xff]
    %v2292 = vld [vmem:[#allocation8 + $0x108] sm:$0xff]
    %v2293 = vld [vmem:[#allocation8 + $0x110] sm:$0xff]
    %v2294 = vld [vmem:[#allocation8 + $0x118] sm:$0xff]
    %v2295 = vld [vmem:[#allocation8 + $0x120] sm:$0xff]
    %v2296 = vld [vmem:[#allocation8 + $0x128] sm:$0xff]
    %v2297 = vld [vmem:[#allocation8 + $0x130] sm:$0xff]
    %v2298 = vld [vmem:[#allocation8 + $0x138] sm:$0xff]
    %v2299 = vld [vmem:[#allocation8 + $0x140] sm:$0xff]
    %v2300 = vld [vmem:[#allocation8 + $0x148] sm:$0xff]
    %v2301 = vld [vmem:[#allocation8 + $0x150] sm:$0xff]
    %v2302 = vld [vmem:[#allocation8 + $0x158] sm:$0xff]
    %v2303 = vld [vmem:[#allocation8 + $0x160] sm:$0xff]
    %v2304 = vld [vmem:[#allocation8 + $0x168] sm:$0xff]
    %v2305 = vld [vmem:[#allocation8 + $0x170] sm:$0xff]
    %v2306 = vld [vmem:[#allocation8 + $0x178] sm:$0xff]
    %v2307 = vld [vmem:[%s5] sm:$0x7]
    %v2309 = vlaneseq
    %v2310 = vshrl.u32 %v2309, 7
    %v2311 = vsub.s32 0, %v2310
    %v2312 = vrot.slane %v2307, %v2311
    %v2313 = vlaneseq
    %v2314 = vshrl.u32 %v2313, 7
    %v2315 = vsub.s32 1, %v2314
    %v2316 = vrot.slane %v2307, %v2315
    %v2317 = vlaneseq
    %v2318 = vshrl.u32 %v2317, 7
    %v2319 = vsub.s32 2, %v2318
    %v2320 = vrot.slane %v2307, %v2319
    %2324 = vmatprep.subr.mxu0 %v2305
    %2325 = vmatpush1.msra.mxu0 %v2304
    %2326 = vmatprep.subr.mxu0 %v2302
    %2327 = vmatpush1.msra.mxu0 %v2301
    %2328 = vmatprep.subr.mxu0 %v2299
    %2329 = vmatpush1.msra.mxu0 %v2298
    %2330 = vmatprep.subr.mxu0 %v2296
    %2331 = vmatpush1.msra.mxu0 %v2295
    %2332 = vmatprep.subr.mxu0 %v2293
    %2333 = vmatpush1.msra.mxu0 %v2292
    %2334 = vmatprep.subr.mxu0 %v2290
    %2335 = vmatpush1.msra.mxu0 %v2289
    %2336 = vmatprep.subr.mxu0 %v2287
    %2337 = vmatpush1.msra.mxu0 %v2286
    %2338 = vmatprep.subr.mxu0 %v2284
    %2339 = vmatpush1.msra.mxu0 %v2283
    %2340 = vmatprep.subr.mxu0 %v2281
    %2341 = vmatpush1.msra.mxu0 %v2280
    %2342 = vmatprep.subr.mxu0 %v2278
    %2343 = vmatpush1.msra.mxu0 %v2277
    %2344 = vmatprep.subr.mxu0 %v2275
    %2345 = vmatpush1.msra.mxu0 %v2274
    %2346 = vmatprep.subr.mxu0 %v2272
    %2347 = vmatpush1.msra.mxu0 %v2271
    %2348 = vmatprep.subr.mxu0 %v2269
    %2349 = vmatpush1.msra.mxu0 %v2268
    %2350 = vmatprep.subr.mxu0 %v2266
    %2351 = vmatpush1.msra.mxu0 %v2265
    %2352 = vmatprep.subr.mxu0 %v2263
    %2353 = vmatpush1.msra.mxu0 %v2262
    %2354 = vmatprep.subr.mxu0 %v2260
    %2355 = vmatpush1.msra.mxu0 %v2259
    %2356 = vmatprep.subr.mxu0 0.0
    %2357 = vmatpush2.msra.mxu0 0.0
    %2358 = vmatprep.subr.mxu0 0.0
    %2359 = vmatpush2.msra.mxu0 0.0
    %2360 = vmatprep.subr.mxu0 0.0
    %2361 = vmatpush2.msra.mxu0 0.0
    %2362 = vmatprep.subr.mxu0 0.0
    %2363 = vmatpush2.msra.mxu0 0.0
    %2364 = vmatprep.subr.mxu0 0.0
    %2365 = vmatpush2.msra.mxu0 0.0
    %2366 = vmatprep.subr.mxu0 0.0
    %2367 = vmatpush2.msra.mxu0 0.0
    %2368 = vmatprep.subr.mxu0 0.0
    %2369 = vmatpush2.msra.mxu0 0.0
    %2370 = vmatprep.subr.mxu0 0.0
    %2371 = vmatpush2.msra.mxu0 0.0
    %2372 = vmatprep.subr.mxu0 0.0
    %2373 = vmatpush2.msra.mxu0 0.0
    %2374 = vmatprep.subr.mxu0 0.0
    %2375 = vmatpush2.msra.mxu0 0.0
    %2376 = vmatprep.subr.mxu0 0.0
    %2377 = vmatpush2.msra.mxu0 0.0
    %2378 = vmatprep.subr.mxu0 0.0
    %2379 = vmatpush2.msra.mxu0 0.0
    %2380 = vmatprep.subr.mxu0 0.0
    %2381 = vmatpush2.msra.mxu0 0.0
    %2382 = vmatprep.subr.mxu0 0.0
    %2383 = vmatpush2.msra.mxu0 0.0
    %2384 = vmatprep.subr.mxu0 0.0
    %2385 = vmatpush2.msra.mxu0 0.0
    %2386 = vmatprep.subr.mxu0 0.0
    %2387 = vmatpush2.msra.mxu0 0.0
    %2388 = vmatprep.mubr.f32.mxu0 0.0
    %2389 = vmatmul.mubr.f32.gmra.mxu0 %v2258
    %v2390 = vpop.f32.mrf.mxu0
    %v2391 = vadd.f32 %v2312, %v2390
    %v2392 = vpop.f32.mrf.mxu0
    %v2393 = vadd.f32 %v2316, %v2392
    %2394 = vdwg.mxu0
    %2395 = vmatprep.subr.mxu0 0.0
    %2396 = vmatpush1.msra.mxu0 %v2306
    %2397 = vmatprep.subr.mxu0 0.0
    %2398 = vmatpush1.msra.mxu0 %v2303
    %2399 = vmatprep.subr.mxu0 0.0
    %2400 = vmatpush1.msra.mxu0 %v2300
    %2401 = vmatprep.subr.mxu0 0.0
    %2402 = vmatpush1.msra.mxu0 %v2297
    %2403 = vmatprep.subr.mxu0 0.0
    %2404 = vmatpush1.msra.mxu0 %v2294
    %2405 = vmatprep.subr.mxu0 0.0
    %2406 = vmatpush1.msra.mxu0 %v2291
    %2407 = vmatprep.subr.mxu0 0.0
    %2408 = vmatpush1.msra.mxu0 %v2288
    %2409 = vmatprep.subr.mxu0 0.0
    %2410 = vmatpush1.msra.mxu0 %v2285
    %2411 = vmatprep.subr.mxu0 0.0
    %2412 = vmatpush1.msra.mxu0 %v2282
    %2413 = vmatprep.subr.mxu0 0.0
    %2414 = vmatpush1.msra.mxu0 %v2279
    %2415 = vmatprep.subr.mxu0 0.0
    %2416 = vmatpush1.msra.mxu0 %v2276
    %2417 = vmatprep.subr.mxu0 0.0
    %2418 = vmatpush1.msra.mxu0 %v2273
    %2419 = vmatprep.subr.mxu0 0.0
    %2420 = vmatpush1.msra.mxu0 %v2270
    %2421 = vmatprep.subr.mxu0 0.0
    %2422 = vmatpush1.msra.mxu0 %v2267
    %2423 = vmatprep.subr.mxu0 0.0
    %2424 = vmatpush1.msra.mxu0 %v2264
    %2425 = vmatprep.subr.mxu0 0.0
    %2426 = vmatpush1.msra.mxu0 %v2261
    %2427 = vmatprep.subr.mxu0 0.0
    %2428 = vmatpush2.msra.mxu0 0.0
    %2429 = vmatprep.subr.mxu0 0.0
    %2430 = vmatpush2.msra.mxu0 0.0
    %2431 = vmatprep.subr.mxu0 0.0
    %2432 = vmatpush2.msra.mxu0 0.0
    %2433 = vmatprep.subr.mxu0 0.0
    %2434 = vmatpush2.msra.mxu0 0.0
    %2435 = vmatprep.subr.mxu0 0.0
    %2436 = vmatpush2.msra.mxu0 0.0
    %2437 = vmatprep.subr.mxu0 0.0
    %2438 = vmatpush2.msra.mxu0 0.0
    %2439 = vmatprep.subr.mxu0 0.0
    %2440 = vmatpush2.msra.mxu0 0.0
    %2441 = vmatprep.subr.mxu0 0.0
    %2442 = vmatpush2.msra.mxu0 0.0
    %2443 = vmatprep.subr.mxu0 0.0
    %2444 = vmatpush2.msra.mxu0 0.0
    %2445 = vmatprep.subr.mxu0 0.0
    %2446 = vmatpush2.msra.mxu0 0.0
    %2447 = vmatprep.subr.mxu0 0.0
    %2448 = vmatpush2.msra.mxu0 0.0
    %2449 = vmatprep.subr.mxu0 0.0
    %2450 = vmatpush2.msra.mxu0 0.0
    %2451 = vmatprep.subr.mxu0 0.0
    %2452 = vmatpush2.msra.mxu0 0.0
    %2453 = vmatprep.subr.mxu0 0.0
    %2454 = vmatpush2.msra.mxu0 0.0
    %2455 = vmatprep.subr.mxu0 0.0
    %2456 = vmatpush2.msra.mxu0 0.0
    %2457 = vmatprep.subr.mxu0 0.0
    %2458 = vmatpush2.msra.mxu0 0.0
    %2459 = vmatprep.mubr.f32.mxu0 0.0
    %2460 = vmatmul.mubr.f32.gmra.mxu0 %v2258
    %v2461 = vpop.f32.mrf.mxu0
    %v2462 = vadd.f32 %v2320, %v2461
    %v2463 = vpop.f32.mrf.mxu0
    %2464 = vdwg.mxu0
    %v2465 = vld [vmem:[%s520] sm:$0xff]
    %v2466 = vld [vmem:[%s520 + $0x8] sm:$0xff]
    %v2467 = vld [vmem:[%s520 + $0x10] sm:$0xff]
    %v2468 = vld [vmem:[%s520 + $0x18] sm:$0xff]
    %v2469 = vld [vmem:[%s520 + $0x20] sm:$0xff]
    %v2470 = vld [vmem:[%s520 + $0x28] sm:$0xff]
    %v2471 = vld [vmem:[%s520 + $0x30] sm:$0xff]
    %v2472 = vld [vmem:[%s520 + $0x38] sm:$0xff]
    %v2473 = vld [vmem:[%s520 + $0x40] sm:$0xff]
    %v2474 = vld [vmem:[%s520 + $0x48] sm:$0xff]
    %v2475 = vld [vmem:[%s520 + $0x50] sm:$0xff]
    %v2476 = vld [vmem:[%s520 + $0x58] sm:$0xff]
    %v2477 = vld [vmem:[%s520 + $0x60] sm:$0xff]
    %v2478 = vld [vmem:[%s520 + $0x68] sm:$0xff]
    %v2479 = vld [vmem:[%s520 + $0x70] sm:$0xff]
    %v2480 = vld [vmem:[%s520 + $0x78] sm:$0xff]
    %v2481 = vld [vmem:[%s520 + $0x80] sm:$0xff]
    %v2482 = vld [vmem:[%s520 + $0x88] sm:$0xff]
    %v2483 = vld [vmem:[%s520 + $0x90] sm:$0xff]
    %v2484 = vld [vmem:[%s520 + $0x98] sm:$0xff]
    %v2485 = vld [vmem:[%s520 + $0xa0] sm:$0xff]
    %v2486 = vld [vmem:[%s520 + $0xa8] sm:$0xff]
    %v2487 = vld [vmem:[%s520 + $0xb0] sm:$0xff]
    %v2488 = vld [vmem:[%s520 + $0xb8] sm:$0xff]
    %v2489 = vld [vmem:[%s520 + $0xc0] sm:$0xff]
    %v2490 = vld [vmem:[%s520 + $0xc8] sm:$0xff]
    %v2491 = vld [vmem:[%s520 + $0xd0] sm:$0xff]
    %v2492 = vld [vmem:[%s520 + $0xd8] sm:$0xff]
    %v2493 = vld [vmem:[%s520 + $0xe0] sm:$0xff]
    %v2494 = vld [vmem:[%s520 + $0xe8] sm:$0xff]
    %v2495 = vld [vmem:[%s520 + $0xf0] sm:$0xff]
    %v2496 = vld [vmem:[%s520 + $0xf8] sm:$0xff]
    %v2497 = vld [vmem:[%s520 + $0x100] sm:$0xff]
    %v2498 = vld [vmem:[%s520 + $0x108] sm:$0xff]
    %v2499 = vld [vmem:[%s520 + $0x110] sm:$0xff]
    %v2500 = vld [vmem:[%s520 + $0x118] sm:$0xff]
    %v2501 = vld [vmem:[%s520 + $0x120] sm:$0xff]
    %v2502 = vld [vmem:[%s520 + $0x128] sm:$0xff]
    %v2503 = vld [vmem:[%s520 + $0x130] sm:$0xff]
    %v2504 = vld [vmem:[%s520 + $0x138] sm:$0xff]
    %v2505 = vld [vmem:[%s520 + $0x140] sm:$0xff]
    %v2506 = vld [vmem:[%s520 + $0x148] sm:$0xff]
    %v2507 = vld [vmem:[%s520 + $0x150] sm:$0xff]
    %v2508 = vld [vmem:[%s520 + $0x158] sm:$0xff]
    %v2509 = vld [vmem:[%s520 + $0x160] sm:$0xff]
    %v2510 = vld [vmem:[%s520 + $0x168] sm:$0xff]
    %v2511 = vld [vmem:[%s520 + $0x170] sm:$0xff]
    %v2512 = vld [vmem:[%s520 + $0x178] sm:$0xff]
    %2513 = vmatprep.subr.mxu0 %v2511
    %2514 = vmatpush1.msra.mxu0 %v2510
    %2515 = vmatprep.subr.mxu0 %v2508
    %2516 = vmatpush1.msra.mxu0 %v2507
    %2517 = vmatprep.subr.mxu0 %v2505
    %2518 = vmatpush1.msra.mxu0 %v2504
    %2519 = vmatprep.subr.mxu0 %v2502
    %2520 = vmatpush1.msra.mxu0 %v2501
    %2521 = vmatprep.subr.mxu0 %v2499
    %2522 = vmatpush1.msra.mxu0 %v2498
    %2523 = vmatprep.subr.mxu0 %v2496
    %2524 = vmatpush1.msra.mxu0 %v2495
    %2525 = vmatprep.subr.mxu0 %v2493
    %2526 = vmatpush1.msra.mxu0 %v2492
    %2527 = vmatprep.subr.mxu0 %v2490
    %2528 = vmatpush1.msra.mxu0 %v2489
    %2529 = vmatprep.subr.mxu0 %v2487
    %2530 = vmatpush1.msra.mxu0 %v2486
    %2531 = vmatprep.subr.mxu0 %v2484
    %2532 = vmatpush1.msra.mxu0 %v2483
    %2533 = vmatprep.subr.mxu0 %v2481
    %2534 = vmatpush1.msra.mxu0 %v2480
    %2535 = vmatprep.subr.mxu0 %v2478
    %2536 = vmatpush1.msra.mxu0 %v2477
    %2537 = vmatprep.subr.mxu0 %v2475
    %2538 = vmatpush1.msra.mxu0 %v2474
    %2539 = vmatprep.subr.mxu0 %v2472
    %2540 = vmatpush1.msra.mxu0 %v2471
    %2541 = vmatprep.subr.mxu0 %v2469
    %2542 = vmatpush1.msra.mxu0 %v2468
    %2543 = vmatprep.subr.mxu0 %v2466
    %2544 = vmatpush1.msra.mxu0 %v2465
    %2545 = vmatprep.subr.mxu0 0.0
    %2546 = vmatpush2.msra.mxu0 0.0
    %2547 = vmatprep.subr.mxu0 0.0
    %2548 = vmatpush2.msra.mxu0 0.0
    %2549 = vmatprep.subr.mxu0 0.0
    %2550 = vmatpush2.msra.mxu0 0.0
    %2551 = vmatprep.subr.mxu0 0.0
    %2552 = vmatpush2.msra.mxu0 0.0
    %2553 = vmatprep.subr.mxu0 0.0
    %2554 = vmatpush2.msra.mxu0 0.0
    %2555 = vmatprep.subr.mxu0 0.0
    %2556 = vmatpush2.msra.mxu0 0.0
    %2557 = vmatprep.subr.mxu0 0.0
    %2558 = vmatpush2.msra.mxu0 0.0
    %2559 = vmatprep.subr.mxu0 0.0
    %2560 = vmatpush2.msra.mxu0 0.0
    %2561 = vmatprep.subr.mxu0 0.0
    %2562 = vmatpush2.msra.mxu0 0.0
    %2563 = vmatprep.subr.mxu0 0.0
    %2564 = vmatpush2.msra.mxu0 0.0
    %2565 = vmatprep.subr.mxu0 0.0
    %2566 = vmatpush2.msra.mxu0 0.0
    %2567 = vmatprep.subr.mxu0 0.0
    %2568 = vmatpush2.msra.mxu0 0.0
    %2569 = vmatprep.subr.mxu0 0.0
    %2570 = vmatpush2.msra.mxu0 0.0
    %2571 = vmatprep.subr.mxu0 0.0
    %2572 = vmatpush2.msra.mxu0 0.0
    %2573 = vmatprep.subr.mxu0 0.0
    %2574 = vmatpush2.msra.mxu0 0.0
    %2575 = vmatprep.subr.mxu0 0.0
    %2576 = vmatpush2.msra.mxu0 0.0
    %2577 = vmatprep.mubr.f32.mxu0 0.0
    %2578 = vmatmul.mubr.f32.gmra.mxu0 %v2034
    %v2579 = vpop.f32.mrf.mxu0
    %v2580 = vadd.f32 0.0, %v2579
    %v2581 = vpop.f32.mrf.mxu0
    %v2582 = vadd.f32 0.0, %v2581
    %2583 = vdwg.mxu0
    %2584 = vmatprep.subr.mxu0 0.0
    %2585 = vmatpush1.msra.mxu0 %v2512
    %2586 = vmatprep.subr.mxu0 0.0
    %2587 = vmatpush1.msra.mxu0 %v2509
    %2588 = vmatprep.subr.mxu0 0.0
    %2589 = vmatpush1.msra.mxu0 %v2506
    %2590 = vmatprep.subr.mxu0 0.0
    %2591 = vmatpush1.msra.mxu0 %v2503
    %2592 = vmatprep.subr.mxu0 0.0
    %2593 = vmatpush1.msra.mxu0 %v2500
    %2594 = vmatprep.subr.mxu0 0.0
    %2595 = vmatpush1.msra.mxu0 %v2497
    %2596 = vmatprep.subr.mxu0 0.0
    %2597 = vmatpush1.msra.mxu0 %v2494
    %2598 = vmatprep.subr.mxu0 0.0
    %2599 = vmatpush1.msra.mxu0 %v2491
    %2600 = vmatprep.subr.mxu0 0.0
    %2601 = vmatpush1.msra.mxu0 %v2488
    %2602 = vmatprep.subr.mxu0 0.0
    %2603 = vmatpush1.msra.mxu0 %v2485
    %2604 = vmatprep.subr.mxu0 0.0
    %2605 = vmatpush1.msra.mxu0 %v2482
    %2606 = vmatprep.subr.mxu0 0.0
    %2607 = vmatpush1.msra.mxu0 %v2479
    %2608 = vmatprep.subr.mxu0 0.0
    %2609 = vmatpush1.msra.mxu0 %v2476
    %2610 = vmatprep.subr.mxu0 0.0
    %2611 = vmatpush1.msra.mxu0 %v2473
    %2612 = vmatprep.subr.mxu0 0.0
    %2613 = vmatpush1.msra.mxu0 %v2470
    %2614 = vmatprep.subr.mxu0 0.0
    %2615 = vmatpush1.msra.mxu0 %v2467
    %2616 = vmatprep.subr.mxu0 0.0
    %2617 = vmatpush2.msra.mxu0 0.0
    %2618 = vmatprep.subr.mxu0 0.0
    %2619 = vmatpush2.msra.mxu0 0.0
    %2620 = vmatprep.subr.mxu0 0.0
    %2621 = vmatpush2.msra.mxu0 0.0
    %2622 = vmatprep.subr.mxu0 0.0
    %2623 = vmatpush2.msra.mxu0 0.0
    %2624 = vmatprep.subr.mxu0 0.0
    %2625 = vmatpush2.msra.mxu0 0.0
    %2626 = vmatprep.subr.mxu0 0.0
    %2627 = vmatpush2.msra.mxu0 0.0
    %2628 = vmatprep.subr.mxu0 0.0
    %2629 = vmatpush2.msra.mxu0 0.0
    %2630 = vmatprep.subr.mxu0 0.0
    %2631 = vmatpush2.msra.mxu0 0.0
    %2632 = vmatprep.subr.mxu0 0.0
    %2633 = vmatpush2.msra.mxu0 0.0
    %2634 = vmatprep.subr.mxu0 0.0
    %2635 = vmatpush2.msra.mxu0 0.0
    %2636 = vmatprep.subr.mxu0 0.0
    %2637 = vmatpush2.msra.mxu0 0.0
    %2638 = vmatprep.subr.mxu0 0.0
    %2639 = vmatpush2.msra.mxu0 0.0
    %2640 = vmatprep.subr.mxu0 0.0
    %2641 = vmatpush2.msra.mxu0 0.0
    %2642 = vmatprep.subr.mxu0 0.0
    %2643 = vmatpush2.msra.mxu0 0.0
    %2644 = vmatprep.subr.mxu0 0.0
    %2645 = vmatpush2.msra.mxu0 0.0
    %2646 = vmatprep.subr.mxu0 0.0
    %2647 = vmatpush2.msra.mxu0 0.0
    %2648 = vmatprep.mubr.f32.mxu0 0.0
    %2649 = vmatmul.mubr.f32.gmra.mxu0 %v2034
    %v2650 = vpop.f32.mrf.mxu0
    %v2651 = vadd.f32 0.0, %v2650
    %v2652 = vpop.f32.mrf.mxu0
    %2653 = vdwg.mxu0
    %v2654 = vld [vmem:[%s710] sm:$0x1]
    %v2655 = vadd.f32 %v2391, %v2580
    %v2656 = vxor.u32 %v2655, 2147483648
    %v2657 = vmul.f32 %v2656, 1.442695
    %v2658 = vpow.pop %v2657
    %v2659 = vadd.f32 %v2658, 1.0
    %v2660 = vrcp.pop %v2659
    %v2661 = vmul.f32 1.0, %v2660
    %v2662 = vadd.f32 %v2393, %v2582
    %v2663 = vxor.u32 %v2662, 2147483648
    %v2664 = vmul.f32 %v2663, 1.442695
    %v2665 = vpow.pop %v2664
    %v2666 = vadd.f32 %v2665, 1.0
    %v2667 = vrcp.pop %v2666
    %v2668 = vmul.f32 1.0, %v2667
    %v2670 = vlaneseq
    %v2671 = vshrl.u32 %v2670, 7
    %v2672 = vsub.s32 0, %v2671
    %v2673 = vrot.slane %v2654, %v2672
    %v2675 = vadd.f32 %v2651, %v2673
    %v2676 = vmul.f32 %v2661, %v2675
    %v2677 = vadd.f32 %v2462, %v2676
    %v2678 = vtanh.pop %v2677
    %v2679 = vsub.f32 1.0, %v2668
    %v2680 = vmul.f32 %v2679, %v2678
    %v2681 = vmul.f32 %v2668, %v2034
    %v2682 = vadd.f32 %v2680, %v2681
    %s2683 = scalar_lea.vmem [#allocation10], 24
    %2684 = vst [vmem:[%s2683] sm:$0xff] %v2682
    %s2685 = scalar_lea.vmem [#allocation2], 96
    %v2686 = vld [vmem:[%s2685] sm:$0xff]
    %v2687 = vld [vmem:[%s2685 + $0x8] sm:$0xff]
    %v2688 = vld [vmem:[%s2685 + $0x10] sm:$0xff]
    %v2689 = vld [vmem:[#allocation7] sm:$0xff]
    %v2690 = vld [vmem:[#allocation7 + $0x8] sm:$0xff]
    %v2691 = vld [vmem:[#allocation7 + $0x10] sm:$0xff]
    %v2692 = vld [vmem:[#allocation7 + $0x18] sm:$0xff]
    %v2693 = vld [vmem:[#allocation7 + $0x20] sm:$0xff]
    %v2694 = vld [vmem:[#allocation7 + $0x28] sm:$0xff]
    %v2695 = vld [vmem:[#allocation7 + $0x30] sm:$0xff]
    %v2696 = vld [vmem:[#allocation7 + $0x38] sm:$0xff]
    %v2697 = vld [vmem:[#allocation7 + $0x40] sm:$0xff]
    %v2698 = vld [vmem:[#allocation7 + $0x48] sm:$0xff]
    %v2699 = vld [vmem:[#allocation7 + $0x50] sm:$0xff]
    %v2700 = vld [vmem:[#allocation7 + $0x58] sm:$0xff]
    %v2701 = vld [vmem:[#allocation7 + $0x60] sm:$0xff]
    %v2702 = vld [vmem:[#allocation7 + $0x68] sm:$0xff]
    %v2703 = vld [vmem:[#allocation7 + $0x70] sm:$0xff]
    %v2704 = vld [vmem:[#allocation7 + $0x78] sm:$0xff]
    %v2705 = vld [vmem:[#allocation7 + $0x80] sm:$0xff]
    %v2706 = vld [vmem:[#allocation7 + $0x88] sm:$0xff]
    %v2707 = vld [vmem:[#allocation7 + $0x90] sm:$0xff]
    %v2708 = vld [vmem:[#allocation7 + $0x98] sm:$0xff]
    %v2709 = vld [vmem:[#allocation7 + $0xa0] sm:$0xff]
    %v2710 = vld [vmem:[#allocation7 + $0xa8] sm:$0xff]
    %v2711 = vld [vmem:[#allocation7 + $0xb0] sm:$0xff]
    %v2712 = vld [vmem:[#allocation7 + $0xb8] sm:$0xff]
    %v2713 = vld [vmem:[#allocation7 + $0xc0] sm:$0xff]
    %v2714 = vld [vmem:[#allocation7 + $0xc8] sm:$0xff]
    %v2715 = vld [vmem:[#allocation7 + $0xd0] sm:$0xff]
    %v2716 = vld [vmem:[#allocation7 + $0xd8] sm:$0xff]
    %v2717 = vld [vmem:[#allocation7 + $0xe0] sm:$0xff]
    %v2718 = vld [vmem:[#allocation7 + $0xe8] sm:$0xff]
    %v2719 = vld [vmem:[#allocation7 + $0xf0] sm:$0xff]
    %v2720 = vld [vmem:[#allocation7 + $0xf8] sm:$0xff]
    %v2721 = vld [vmem:[#allocation7 + $0x100] sm:$0xff]
    %v2722 = vld [vmem:[#allocation7 + $0x108] sm:$0xff]
    %v2723 = vld [vmem:[#allocation7 + $0x110] sm:$0xff]
    %v2724 = vld [vmem:[#allocation7 + $0x118] sm:$0xff]
    %v2725 = vld [vmem:[#allocation7 + $0x120] sm:$0xff]
    %v2726 = vld [vmem:[#allocation7 + $0x128] sm:$0xff]
    %v2727 = vld [vmem:[#allocation7 + $0x130] sm:$0xff]
    %v2728 = vld [vmem:[#allocation7 + $0x138] sm:$0xff]
    %v2729 = vld [vmem:[#allocation7 + $0x140] sm:$0xff]
    %v2730 = vld [vmem:[#allocation7 + $0x148] sm:$0xff]
    %v2731 = vld [vmem:[#allocation7 + $0x150] sm:$0xff]
    %v2732 = vld [vmem:[#allocation7 + $0x158] sm:$0xff]
    %v2733 = vld [vmem:[#allocation7 + $0x160] sm:$0xff]
    %v2734 = vld [vmem:[#allocation7 + $0x168] sm:$0xff]
    %v2735 = vld [vmem:[#allocation7 + $0x170] sm:$0xff]
    %v2736 = vld [vmem:[#allocation7 + $0x178] sm:$0xff]
    %2737 = vmatprep.subr.mxu0 %v2735
    %2738 = vmatpush1.msra.mxu0 %v2734
    %2739 = vmatprep.subr.mxu0 %v2732
    %2740 = vmatpush1.msra.mxu0 %v2731
    %2741 = vmatprep.subr.mxu0 %v2729
    %2742 = vmatpush1.msra.mxu0 %v2728
    %2743 = vmatprep.subr.mxu0 %v2726
    %2744 = vmatpush1.msra.mxu0 %v2725
    %2745 = vmatprep.subr.mxu0 %v2723
    %2746 = vmatpush1.msra.mxu0 %v2722
    %2747 = vmatprep.subr.mxu0 %v2720
    %2748 = vmatpush1.msra.mxu0 %v2719
    %2749 = vmatprep.subr.mxu0 %v2717
    %2750 = vmatpush1.msra.mxu0 %v2716
    %2751 = vmatprep.subr.mxu0 %v2714
    %2752 = vmatpush1.msra.mxu0 %v2713
    %2753 = vmatprep.subr.mxu0 %v2711
    %2754 = vmatpush1.msra.mxu0 %v2710
    %2755 = vmatprep.subr.mxu0 %v2708
    %2756 = vmatpush1.msra.mxu0 %v2707
    %2757 = vmatprep.subr.mxu0 %v2705
    %2758 = vmatpush1.msra.mxu0 %v2704
    %2759 = vmatprep.subr.mxu0 %v2702
    %2760 = vmatpush1.msra.mxu0 %v2701
    %2761 = vmatprep.subr.mxu0 %v2699
    %2762 = vmatpush1.msra.mxu0 %v2698
    %2763 = vmatprep.subr.mxu0 %v2696
    %2764 = vmatpush1.msra.mxu0 %v2695
    %2765 = vmatprep.subr.mxu0 %v2693
    %2766 = vmatpush1.msra.mxu0 %v2692
    %2767 = vmatprep.subr.mxu0 %v2690
    %2768 = vmatpush1.msra.mxu0 %v2689
    %2769 = vmatprep.subr.mxu0 0.0
    %2770 = vmatpush2.msra.mxu0 0.0
    %2771 = vmatprep.subr.mxu0 0.0
    %2772 = vmatpush2.msra.mxu0 0.0
    %2773 = vmatprep.subr.mxu0 0.0
    %2774 = vmatpush2.msra.mxu0 0.0
    %2775 = vmatprep.subr.mxu0 0.0
    %2776 = vmatpush2.msra.mxu0 0.0
    %2777 = vmatprep.subr.mxu0 0.0
    %2778 = vmatpush2.msra.mxu0 0.0
    %2779 = vmatprep.subr.mxu0 0.0
    %2780 = vmatpush2.msra.mxu0 0.0
    %2781 = vmatprep.subr.mxu0 0.0
    %2782 = vmatpush2.msra.mxu0 0.0
    %2783 = vmatprep.subr.mxu0 0.0
    %2784 = vmatpush2.msra.mxu0 0.0
    %2785 = vmatprep.subr.mxu0 0.0
    %2786 = vmatpush2.msra.mxu0 0.0
    %2787 = vmatprep.subr.mxu0 0.0
    %2788 = vmatpush2.msra.mxu0 0.0
    %2789 = vmatprep.subr.mxu0 0.0
    %2790 = vmatpush2.msra.mxu0 0.0
    %2791 = vmatprep.subr.mxu0 0.0
    %2792 = vmatpush2.msra.mxu0 0.0
    %2793 = vmatprep.subr.mxu0 0.0
    %2794 = vmatpush2.msra.mxu0 0.0
    %2795 = vmatprep.subr.mxu0 0.0
    %2796 = vmatpush2.msra.mxu0 0.0
    %2797 = vmatprep.subr.mxu0 0.0
    %2798 = vmatpush2.msra.mxu0 0.0
    %2799 = vmatprep.subr.mxu0 0.0
    %2800 = vmatpush2.msra.mxu0 0.0
    %2801 = vmatprep.mubr.f32.mxu0 0.0
    %2802 = vmatmul.mubr.f32.gmra.mxu0 %v2258
    %v2803 = vpop.f32.mrf.mxu0
    %v2804 = vadd.f32 0.0, %v2803
    %v2805 = vpop.f32.mrf.mxu0
    %v2806 = vadd.f32 0.0, %v2805
    %2807 = vdwg.mxu0
    %2808 = vmatprep.subr.mxu0 0.0
    %2809 = vmatpush1.msra.mxu0 %v2736
    %2810 = vmatprep.subr.mxu0 0.0
    %2811 = vmatpush1.msra.mxu0 %v2733
    %2812 = vmatprep.subr.mxu0 0.0
    %2813 = vmatpush1.msra.mxu0 %v2730
    %2814 = vmatprep.subr.mxu0 0.0
    %2815 = vmatpush1.msra.mxu0 %v2727
    %2816 = vmatprep.subr.mxu0 0.0
    %2817 = vmatpush1.msra.mxu0 %v2724
    %2818 = vmatprep.subr.mxu0 0.0
    %2819 = vmatpush1.msra.mxu0 %v2721
    %2820 = vmatprep.subr.mxu0 0.0
    %2821 = vmatpush1.msra.mxu0 %v2718
    %2822 = vmatprep.subr.mxu0 0.0
    %2823 = vmatpush1.msra.mxu0 %v2715
    %2824 = vmatprep.subr.mxu0 0.0
    %2825 = vmatpush1.msra.mxu0 %v2712
    %2826 = vmatprep.subr.mxu0 0.0
    %2827 = vmatpush1.msra.mxu0 %v2709
    %2828 = vmatprep.subr.mxu0 0.0
    %2829 = vmatpush1.msra.mxu0 %v2706
    %2830 = vmatprep.subr.mxu0 0.0
    %2831 = vmatpush1.msra.mxu0 %v2703
    %2832 = vmatprep.subr.mxu0 0.0
    %2833 = vmatpush1.msra.mxu0 %v2700
    %2834 = vmatprep.subr.mxu0 0.0
    %2835 = vmatpush1.msra.mxu0 %v2697
    %2836 = vmatprep.subr.mxu0 0.0
    %2837 = vmatpush1.msra.mxu0 %v2694
    %2838 = vmatprep.subr.mxu0 0.0
    %2839 = vmatpush1.msra.mxu0 %v2691
    %2840 = vmatprep.subr.mxu0 0.0
    %2841 = vmatpush2.msra.mxu0 0.0
    %2842 = vmatprep.subr.mxu0 0.0
    %2843 = vmatpush2.msra.mxu0 0.0
    %2844 = vmatprep.subr.mxu0 0.0
    %2845 = vmatpush2.msra.mxu0 0.0
    %2846 = vmatprep.subr.mxu0 0.0
    %2847 = vmatpush2.msra.mxu0 0.0
    %2848 = vmatprep.subr.mxu0 0.0
    %2849 = vmatpush2.msra.mxu0 0.0
    %2850 = vmatprep.subr.mxu0 0.0
    %2851 = vmatpush2.msra.mxu0 0.0
    %2852 = vmatprep.subr.mxu0 0.0
    %2853 = vmatpush2.msra.mxu0 0.0
    %2854 = vmatprep.subr.mxu0 0.0
    %2855 = vmatpush2.msra.mxu0 0.0
    %2856 = vmatprep.subr.mxu0 0.0
    %2857 = vmatpush2.msra.mxu0 0.0
    %2858 = vmatprep.subr.mxu0 0.0
    %2859 = vmatpush2.msra.mxu0 0.0
    %2860 = vmatprep.subr.mxu0 0.0
    %2861 = vmatpush2.msra.mxu0 0.0
    %2862 = vmatprep.subr.mxu0 0.0
    %2863 = vmatpush2.msra.mxu0 0.0
    %2864 = vmatprep.subr.mxu0 0.0
    %2865 = vmatpush2.msra.mxu0 0.0
    %2866 = vmatprep.subr.mxu0 0.0
    %2867 = vmatpush2.msra.mxu0 0.0
    %2868 = vmatprep.subr.mxu0 0.0
    %2869 = vmatpush2.msra.mxu0 0.0
    %2870 = vmatprep.subr.mxu0 0.0
    %2871 = vmatpush2.msra.mxu0 0.0
    %2872 = vmatprep.mubr.f32.mxu0 0.0
    %2873 = vmatmul.mubr.f32.gmra.mxu0 %v2258
    %v2874 = vpop.f32.mrf.mxu0
    %v2875 = vadd.f32 0.0, %v2874
    %v2876 = vpop.f32.mrf.mxu0
    %2877 = vdwg.mxu0
    %v2878 = vld [vmem:[%s3] sm:$0x1]
    %v2879 = vadd.f32 %v2686, %v2804
    %v2880 = vxor.u32 %v2879, 2147483648
    %v2881 = vmul.f32 %v2880, 1.442695
    %v2882 = vpow.pop %v2881
    %v2883 = vadd.f32 %v2882, 1.0
    %v2884 = vrcp.pop %v2883
    %v2885 = vmul.f32 1.0, %v2884
    %v2886 = vadd.f32 %v2687, %v2806
    %v2887 = vxor.u32 %v2886, 2147483648
    %v2888 = vmul.f32 %v2887, 1.442695
    %v2889 = vpow.pop %v2888
    %v2890 = vadd.f32 %v2889, 1.0
    %v2891 = vrcp.pop %v2890
    %v2892 = vmul.f32 1.0, %v2891
    %v2894 = vlaneseq
    %v2895 = vshrl.u32 %v2894, 7
    %v2896 = vsub.s32 0, %v2895
    %v2897 = vrot.slane %v2878, %v2896
    %v2899 = vadd.f32 %v2875, %v2897
    %v2900 = vmul.f32 %v2885, %v2899
    %v2901 = vadd.f32 %v2688, %v2900
    %v2902 = vtanh.pop %v2901
    %v2903 = vsub.f32 1.0, %v2892
    %v2904 = vmul.f32 %v2903, %v2902
    %v2905 = vmul.f32 %v2892, %v2258
    %v2906 = vadd.f32 %v2904, %v2905
    %v2907 = vld [vmem:[#allocation8] sm:$0xff]
    %v2908 = vld [vmem:[#allocation8 + $0x8] sm:$0xff]
    %v2909 = vld [vmem:[#allocation8 + $0x10] sm:$0xff]
    %v2910 = vld [vmem:[#allocation8 + $0x18] sm:$0xff]
    %v2911 = vld [vmem:[#allocation8 + $0x20] sm:$0xff]
    %v2912 = vld [vmem:[#allocation8 + $0x28] sm:$0xff]
    %v2913 = vld [vmem:[#allocation8 + $0x30] sm:$0xff]
    %v2914 = vld [vmem:[#allocation8 + $0x38] sm:$0xff]
    %v2915 = vld [vmem:[#allocation8 + $0x40] sm:$0xff]
    %v2916 = vld [vmem:[#allocation8 + $0x48] sm:$0xff]
    %v2917 = vld [vmem:[#allocation8 + $0x50] sm:$0xff]
    %v2918 = vld [vmem:[#allocation8 + $0x58] sm:$0xff]
    %v2919 = vld [vmem:[#allocation8 + $0x60] sm:$0xff]
    %v2920 = vld [vmem:[#allocation8 + $0x68] sm:$0xff]
    %v2921 = vld [vmem:[#allocation8 + $0x70] sm:$0xff]
    %v2922 = vld [vmem:[#allocation8 + $0x78] sm:$0xff]
    %v2923 = vld [vmem:[#allocation8 + $0x80] sm:$0xff]
    %v2924 = vld [vmem:[#allocation8 + $0x88] sm:$0xff]
    %v2925 = vld [vmem:[#allocation8 + $0x90] sm:$0xff]
    %v2926 = vld [vmem:[#allocation8 + $0x98] sm:$0xff]
    %v2927 = vld [vmem:[#allocation8 + $0xa0] sm:$0xff]
    %v2928 = vld [vmem:[#allocation8 + $0xa8] sm:$0xff]
    %v2929 = vld [vmem:[#allocation8 + $0xb0] sm:$0xff]
    %v2930 = vld [vmem:[#allocation8 + $0xb8] sm:$0xff]
    %v2931 = vld [vmem:[#allocation8 + $0xc0] sm:$0xff]
    %v2932 = vld [vmem:[#allocation8 + $0xc8] sm:$0xff]
    %v2933 = vld [vmem:[#allocation8 + $0xd0] sm:$0xff]
    %v2934 = vld [vmem:[#allocation8 + $0xd8] sm:$0xff]
    %v2935 = vld [vmem:[#allocation8 + $0xe0] sm:$0xff]
    %v2936 = vld [vmem:[#allocation8 + $0xe8] sm:$0xff]
    %v2937 = vld [vmem:[#allocation8 + $0xf0] sm:$0xff]
    %v2938 = vld [vmem:[#allocation8 + $0xf8] sm:$0xff]
    %v2939 = vld [vmem:[#allocation8 + $0x100] sm:$0xff]
    %v2940 = vld [vmem:[#allocation8 + $0x108] sm:$0xff]
    %v2941 = vld [vmem:[#allocation8 + $0x110] sm:$0xff]
    %v2942 = vld [vmem:[#allocation8 + $0x118] sm:$0xff]
    %v2943 = vld [vmem:[#allocation8 + $0x120] sm:$0xff]
    %v2944 = vld [vmem:[#allocation8 + $0x128] sm:$0xff]
    %v2945 = vld [vmem:[#allocation8 + $0x130] sm:$0xff]
    %v2946 = vld [vmem:[#allocation8 + $0x138] sm:$0xff]
    %v2947 = vld [vmem:[#allocation8 + $0x140] sm:$0xff]
    %v2948 = vld [vmem:[#allocation8 + $0x148] sm:$0xff]
    %v2949 = vld [vmem:[#allocation8 + $0x150] sm:$0xff]
    %v2950 = vld [vmem:[#allocation8 + $0x158] sm:$0xff]
    %v2951 = vld [vmem:[#allocation8 + $0x160] sm:$0xff]
    %v2952 = vld [vmem:[#allocation8 + $0x168] sm:$0xff]
    %v2953 = vld [vmem:[#allocation8 + $0x170] sm:$0xff]
    %v2954 = vld [vmem:[#allocation8 + $0x178] sm:$0xff]
    %v2955 = vld [vmem:[%s5] sm:$0x7]
    %v2957 = vlaneseq
    %v2958 = vshrl.u32 %v2957, 7
    %v2959 = vsub.s32 0, %v2958
    %v2960 = vrot.slane %v2955, %v2959
    %v2961 = vlaneseq
    %v2962 = vshrl.u32 %v2961, 7
    %v2963 = vsub.s32 1, %v2962
    %v2964 = vrot.slane %v2955, %v2963
    %v2965 = vlaneseq
    %v2966 = vshrl.u32 %v2965, 7
    %v2967 = vsub.s32 2, %v2966
    %v2968 = vrot.slane %v2955, %v2967
    %2972 = vmatprep.subr.mxu0 %v2953
    %2973 = vmatpush1.msra.mxu0 %v2952
    %2974 = vmatprep.subr.mxu0 %v2950
    %2975 = vmatpush1.msra.mxu0 %v2949
    %2976 = vmatprep.subr.mxu0 %v2947
    %2977 = vmatpush1.msra.mxu0 %v2946
    %2978 = vmatprep.subr.mxu0 %v2944
    %2979 = vmatpush1.msra.mxu0 %v2943
    %2980 = vmatprep.subr.mxu0 %v2941
    %2981 = vmatpush1.msra.mxu0 %v2940
    %2982 = vmatprep.subr.mxu0 %v2938
    %2983 = vmatpush1.msra.mxu0 %v2937
    %2984 = vmatprep.subr.mxu0 %v2935
    %2985 = vmatpush1.msra.mxu0 %v2934
    %2986 = vmatprep.subr.mxu0 %v2932
    %2987 = vmatpush1.msra.mxu0 %v2931
    %2988 = vmatprep.subr.mxu0 %v2929
    %2989 = vmatpush1.msra.mxu0 %v2928
    %2990 = vmatprep.subr.mxu0 %v2926
    %2991 = vmatpush1.msra.mxu0 %v2925
    %2992 = vmatprep.subr.mxu0 %v2923
    %2993 = vmatpush1.msra.mxu0 %v2922
    %2994 = vmatprep.subr.mxu0 %v2920
    %2995 = vmatpush1.msra.mxu0 %v2919
    %2996 = vmatprep.subr.mxu0 %v2917
    %2997 = vmatpush1.msra.mxu0 %v2916
    %2998 = vmatprep.subr.mxu0 %v2914
    %2999 = vmatpush1.msra.mxu0 %v2913
    %3000 = vmatprep.subr.mxu0 %v2911
    %3001 = vmatpush1.msra.mxu0 %v2910
    %3002 = vmatprep.subr.mxu0 %v2908
    %3003 = vmatpush1.msra.mxu0 %v2907
    %3004 = vmatprep.subr.mxu0 0.0
    %3005 = vmatpush2.msra.mxu0 0.0
    %3006 = vmatprep.subr.mxu0 0.0
    %3007 = vmatpush2.msra.mxu0 0.0
    %3008 = vmatprep.subr.mxu0 0.0
    %3009 = vmatpush2.msra.mxu0 0.0
    %3010 = vmatprep.subr.mxu0 0.0
    %3011 = vmatpush2.msra.mxu0 0.0
    %3012 = vmatprep.subr.mxu0 0.0
    %3013 = vmatpush2.msra.mxu0 0.0
    %3014 = vmatprep.subr.mxu0 0.0
    %3015 = vmatpush2.msra.mxu0 0.0
    %3016 = vmatprep.subr.mxu0 0.0
    %3017 = vmatpush2.msra.mxu0 0.0
    %3018 = vmatprep.subr.mxu0 0.0
    %3019 = vmatpush2.msra.mxu0 0.0
    %3020 = vmatprep.subr.mxu0 0.0
    %3021 = vmatpush2.msra.mxu0 0.0
    %3022 = vmatprep.subr.mxu0 0.0
    %3023 = vmatpush2.msra.mxu0 0.0
    %3024 = vmatprep.subr.mxu0 0.0
    %3025 = vmatpush2.msra.mxu0 0.0
    %3026 = vmatprep.subr.mxu0 0.0
    %3027 = vmatpush2.msra.mxu0 0.0
    %3028 = vmatprep.subr.mxu0 0.0
    %3029 = vmatpush2.msra.mxu0 0.0
    %3030 = vmatprep.subr.mxu0 0.0
    %3031 = vmatpush2.msra.mxu0 0.0
    %3032 = vmatprep.subr.mxu0 0.0
    %3033 = vmatpush2.msra.mxu0 0.0
    %3034 = vmatprep.subr.mxu0 0.0
    %3035 = vmatpush2.msra.mxu0 0.0
    %3036 = vmatprep.mubr.f32.mxu0 0.0
    %3037 = vmatmul.mubr.f32.gmra.mxu0 %v2906
    %v3038 = vpop.f32.mrf.mxu0
    %v3039 = vadd.f32 %v2960, %v3038
    %v3040 = vpop.f32.mrf.mxu0
    %v3041 = vadd.f32 %v2964, %v3040
    %3042 = vdwg.mxu0
    %3043 = vmatprep.subr.mxu0 0.0
    %3044 = vmatpush1.msra.mxu0 %v2954
    %3045 = vmatprep.subr.mxu0 0.0
    %3046 = vmatpush1.msra.mxu0 %v2951
    %3047 = vmatprep.subr.mxu0 0.0
    %3048 = vmatpush1.msra.mxu0 %v2948
    %3049 = vmatprep.subr.mxu0 0.0
    %3050 = vmatpush1.msra.mxu0 %v2945
    %3051 = vmatprep.subr.mxu0 0.0
    %3052 = vmatpush1.msra.mxu0 %v2942
    %3053 = vmatprep.subr.mxu0 0.0
    %3054 = vmatpush1.msra.mxu0 %v2939
    %3055 = vmatprep.subr.mxu0 0.0
    %3056 = vmatpush1.msra.mxu0 %v2936
    %3057 = vmatprep.subr.mxu0 0.0
    %3058 = vmatpush1.msra.mxu0 %v2933
    %3059 = vmatprep.subr.mxu0 0.0
    %3060 = vmatpush1.msra.mxu0 %v2930
    %3061 = vmatprep.subr.mxu0 0.0
    %3062 = vmatpush1.msra.mxu0 %v2927
    %3063 = vmatprep.subr.mxu0 0.0
    %3064 = vmatpush1.msra.mxu0 %v2924
    %3065 = vmatprep.subr.mxu0 0.0
    %3066 = vmatpush1.msra.mxu0 %v2921
    %3067 = vmatprep.subr.mxu0 0.0
    %3068 = vmatpush1.msra.mxu0 %v2918
    %3069 = vmatprep.subr.mxu0 0.0
    %3070 = vmatpush1.msra.mxu0 %v2915
    %3071 = vmatprep.subr.mxu0 0.0
    %3072 = vmatpush1.msra.mxu0 %v2912
    %3073 = vmatprep.subr.mxu0 0.0
    %3074 = vmatpush1.msra.mxu0 %v2909
    %3075 = vmatprep.subr.mxu0 0.0
    %3076 = vmatpush2.msra.mxu0 0.0
    %3077 = vmatprep.subr.mxu0 0.0
    %3078 = vmatpush2.msra.mxu0 0.0
    %3079 = vmatprep.subr.mxu0 0.0
    %3080 = vmatpush2.msra.mxu0 0.0
    %3081 = vmatprep.subr.mxu0 0.0
    %3082 = vmatpush2.msra.mxu0 0.0
    %3083 = vmatprep.subr.mxu0 0.0
    %3084 = vmatpush2.msra.mxu0 0.0
    %3085 = vmatprep.subr.mxu0 0.0
    %3086 = vmatpush2.msra.mxu0 0.0
    %3087 = vmatprep.subr.mxu0 0.0
    %3088 = vmatpush2.msra.mxu0 0.0
    %3089 = vmatprep.subr.mxu0 0.0
    %3090 = vmatpush2.msra.mxu0 0.0
    %3091 = vmatprep.subr.mxu0 0.0
    %3092 = vmatpush2.msra.mxu0 0.0
    %3093 = vmatprep.subr.mxu0 0.0
    %3094 = vmatpush2.msra.mxu0 0.0
    %3095 = vmatprep.subr.mxu0 0.0
    %3096 = vmatpush2.msra.mxu0 0.0
    %3097 = vmatprep.subr.mxu0 0.0
    %3098 = vmatpush2.msra.mxu0 0.0
    %3099 = vmatprep.subr.mxu0 0.0
    %3100 = vmatpush2.msra.mxu0 0.0
    %3101 = vmatprep.subr.mxu0 0.0
    %3102 = vmatpush2.msra.mxu0 0.0
    %3103 = vmatprep.subr.mxu0 0.0
    %3104 = vmatpush2.msra.mxu0 0.0
    %3105 = vmatprep.subr.mxu0 0.0
    %3106 = vmatpush2.msra.mxu0 0.0
    %3107 = vmatprep.mubr.f32.mxu0 0.0
    %3108 = vmatmul.mubr.f32.gmra.mxu0 %v2906
    %v3109 = vpop.f32.mrf.mxu0
    %v3110 = vadd.f32 %v2968, %v3109
    %v3111 = vpop.f32.mrf.mxu0
    %3112 = vdwg.mxu0
    %v3113 = vld [vmem:[%s520] sm:$0xff]
    %v3114 = vld [vmem:[%s520 + $0x8] sm:$0xff]
    %v3115 = vld [vmem:[%s520 + $0x10] sm:$0xff]
    %v3116 = vld [vmem:[%s520 + $0x18] sm:$0xff]
    %v3117 = vld [vmem:[%s520 + $0x20] sm:$0xff]
    %v3118 = vld [vmem:[%s520 + $0x28] sm:$0xff]
    %v3119 = vld [vmem:[%s520 + $0x30] sm:$0xff]
    %v3120 = vld [vmem:[%s520 + $0x38] sm:$0xff]
    %v3121 = vld [vmem:[%s520 + $0x40] sm:$0xff]
    %v3122 = vld [vmem:[%s520 + $0x48] sm:$0xff]
    %v3123 = vld [vmem:[%s520 + $0x50] sm:$0xff]
    %v3124 = vld [vmem:[%s520 + $0x58] sm:$0xff]
    %v3125 = vld [vmem:[%s520 + $0x60] sm:$0xff]
    %v3126 = vld [vmem:[%s520 + $0x68] sm:$0xff]
    %v3127 = vld [vmem:[%s520 + $0x70] sm:$0xff]
    %v3128 = vld [vmem:[%s520 + $0x78] sm:$0xff]
    %v3129 = vld [vmem:[%s520 + $0x80] sm:$0xff]
    %v3130 = vld [vmem:[%s520 + $0x88] sm:$0xff]
    %v3131 = vld [vmem:[%s520 + $0x90] sm:$0xff]
    %v3132 = vld [vmem:[%s520 + $0x98] sm:$0xff]
    %v3133 = vld [vmem:[%s520 + $0xa0] sm:$0xff]
    %v3134 = vld [vmem:[%s520 + $0xa8] sm:$0xff]
    %v3135 = vld [vmem:[%s520 + $0xb0] sm:$0xff]
    %v3136 = vld [vmem:[%s520 + $0xb8] sm:$0xff]
    %v3137 = vld [vmem:[%s520 + $0xc0] sm:$0xff]
    %v3138 = vld [vmem:[%s520 + $0xc8] sm:$0xff]
    %v3139 = vld [vmem:[%s520 + $0xd0] sm:$0xff]
    %v3140 = vld [vmem:[%s520 + $0xd8] sm:$0xff]
    %v3141 = vld [vmem:[%s520 + $0xe0] sm:$0xff]
    %v3142 = vld [vmem:[%s520 + $0xe8] sm:$0xff]
    %v3143 = vld [vmem:[%s520 + $0xf0] sm:$0xff]
    %v3144 = vld [vmem:[%s520 + $0xf8] sm:$0xff]
    %v3145 = vld [vmem:[%s520 + $0x100] sm:$0xff]
    %v3146 = vld [vmem:[%s520 + $0x108] sm:$0xff]
    %v3147 = vld [vmem:[%s520 + $0x110] sm:$0xff]
    %v3148 = vld [vmem:[%s520 + $0x118] sm:$0xff]
    %v3149 = vld [vmem:[%s520 + $0x120] sm:$0xff]
    %v3150 = vld [vmem:[%s520 + $0x128] sm:$0xff]
    %v3151 = vld [vmem:[%s520 + $0x130] sm:$0xff]
    %v3152 = vld [vmem:[%s520 + $0x138] sm:$0xff]
    %v3153 = vld [vmem:[%s520 + $0x140] sm:$0xff]
    %v3154 = vld [vmem:[%s520 + $0x148] sm:$0xff]
    %v3155 = vld [vmem:[%s520 + $0x150] sm:$0xff]
    %v3156 = vld [vmem:[%s520 + $0x158] sm:$0xff]
    %v3157 = vld [vmem:[%s520 + $0x160] sm:$0xff]
    %v3158 = vld [vmem:[%s520 + $0x168] sm:$0xff]
    %v3159 = vld [vmem:[%s520 + $0x170] sm:$0xff]
    %v3160 = vld [vmem:[%s520 + $0x178] sm:$0xff]
    %3161 = vmatprep.subr.mxu0 %v3159
    %3162 = vmatpush1.msra.mxu0 %v3158
    %3163 = vmatprep.subr.mxu0 %v3156
    %3164 = vmatpush1.msra.mxu0 %v3155
    %3165 = vmatprep.subr.mxu0 %v3153
    %3166 = vmatpush1.msra.mxu0 %v3152
    %3167 = vmatprep.subr.mxu0 %v3150
    %3168 = vmatpush1.msra.mxu0 %v3149
    %3169 = vmatprep.subr.mxu0 %v3147
    %3170 = vmatpush1.msra.mxu0 %v3146
    %3171 = vmatprep.subr.mxu0 %v3144
    %3172 = vmatpush1.msra.mxu0 %v3143
    %3173 = vmatprep.subr.mxu0 %v3141
    %3174 = vmatpush1.msra.mxu0 %v3140
    %3175 = vmatprep.subr.mxu0 %v3138
    %3176 = vmatpush1.msra.mxu0 %v3137
    %3177 = vmatprep.subr.mxu0 %v3135
    %3178 = vmatpush1.msra.mxu0 %v3134
    %3179 = vmatprep.subr.mxu0 %v3132
    %3180 = vmatpush1.msra.mxu0 %v3131
    %3181 = vmatprep.subr.mxu0 %v3129
    %3182 = vmatpush1.msra.mxu0 %v3128
    %3183 = vmatprep.subr.mxu0 %v3126
    %3184 = vmatpush1.msra.mxu0 %v3125
    %3185 = vmatprep.subr.mxu0 %v3123
    %3186 = vmatpush1.msra.mxu0 %v3122
    %3187 = vmatprep.subr.mxu0 %v3120
    %3188 = vmatpush1.msra.mxu0 %v3119
    %3189 = vmatprep.subr.mxu0 %v3117
    %3190 = vmatpush1.msra.mxu0 %v3116
    %3191 = vmatprep.subr.mxu0 %v3114
    %3192 = vmatpush1.msra.mxu0 %v3113
    %3193 = vmatprep.subr.mxu0 0.0
    %3194 = vmatpush2.msra.mxu0 0.0
    %3195 = vmatprep.subr.mxu0 0.0
    %3196 = vmatpush2.msra.mxu0 0.0
    %3197 = vmatprep.subr.mxu0 0.0
    %3198 = vmatpush2.msra.mxu0 0.0
    %3199 = vmatprep.subr.mxu0 0.0
    %3200 = vmatpush2.msra.mxu0 0.0
    %3201 = vmatprep.subr.mxu0 0.0
    %3202 = vmatpush2.msra.mxu0 0.0
    %3203 = vmatprep.subr.mxu0 0.0
    %3204 = vmatpush2.msra.mxu0 0.0
    %3205 = vmatprep.subr.mxu0 0.0
    %3206 = vmatpush2.msra.mxu0 0.0
    %3207 = vmatprep.subr.mxu0 0.0
    %3208 = vmatpush2.msra.mxu0 0.0
    %3209 = vmatprep.subr.mxu0 0.0
    %3210 = vmatpush2.msra.mxu0 0.0
    %3211 = vmatprep.subr.mxu0 0.0
    %3212 = vmatpush2.msra.mxu0 0.0
    %3213 = vmatprep.subr.mxu0 0.0
    %3214 = vmatpush2.msra.mxu0 0.0
    %3215 = vmatprep.subr.mxu0 0.0
    %3216 = vmatpush2.msra.mxu0 0.0
    %3217 = vmatprep.subr.mxu0 0.0
    %3218 = vmatpush2.msra.mxu0 0.0
    %3219 = vmatprep.subr.mxu0 0.0
    %3220 = vmatpush2.msra.mxu0 0.0
    %3221 = vmatprep.subr.mxu0 0.0
    %3222 = vmatpush2.msra.mxu0 0.0
    %3223 = vmatprep.subr.mxu0 0.0
    %3224 = vmatpush2.msra.mxu0 0.0
    %3225 = vmatprep.mubr.f32.mxu0 0.0
    %3226 = vmatmul.mubr.f32.gmra.mxu0 %v2682
    %v3227 = vpop.f32.mrf.mxu0
    %v3228 = vadd.f32 0.0, %v3227
    %v3229 = vpop.f32.mrf.mxu0
    %v3230 = vadd.f32 0.0, %v3229
    %3231 = vdwg.mxu0
    %3232 = vmatprep.subr.mxu0 0.0
    %3233 = vmatpush1.msra.mxu0 %v3160
    %3234 = vmatprep.subr.mxu0 0.0
    %3235 = vmatpush1.msra.mxu0 %v3157
    %3236 = vmatprep.subr.mxu0 0.0
    %3237 = vmatpush1.msra.mxu0 %v3154
    %3238 = vmatprep.subr.mxu0 0.0
    %3239 = vmatpush1.msra.mxu0 %v3151
    %3240 = vmatprep.subr.mxu0 0.0
    %3241 = vmatpush1.msra.mxu0 %v3148
    %3242 = vmatprep.subr.mxu0 0.0
    %3243 = vmatpush1.msra.mxu0 %v3145
    %3244 = vmatprep.subr.mxu0 0.0
    %3245 = vmatpush1.msra.mxu0 %v3142
    %3246 = vmatprep.subr.mxu0 0.0
    %3247 = vmatpush1.msra.mxu0 %v3139
    %3248 = vmatprep.subr.mxu0 0.0
    %3249 = vmatpush1.msra.mxu0 %v3136
    %3250 = vmatprep.subr.mxu0 0.0
    %3251 = vmatpush1.msra.mxu0 %v3133
    %3252 = vmatprep.subr.mxu0 0.0
    %3253 = vmatpush1.msra.mxu0 %v3130
    %3254 = vmatprep.subr.mxu0 0.0
    %3255 = vmatpush1.msra.mxu0 %v3127
    %3256 = vmatprep.subr.mxu0 0.0
    %3257 = vmatpush1.msra.mxu0 %v3124
    %3258 = vmatprep.subr.mxu0 0.0
    %3259 = vmatpush1.msra.mxu0 %v3121
    %3260 = vmatprep.subr.mxu0 0.0
    %3261 = vmatpush1.msra.mxu0 %v3118
    %3262 = vmatprep.subr.mxu0 0.0
    %3263 = vmatpush1.msra.mxu0 %v3115
    %3264 = vmatprep.subr.mxu0 0.0
    %3265 = vmatpush2.msra.mxu0 0.0
    %3266 = vmatprep.subr.mxu0 0.0
    %3267 = vmatpush2.msra.mxu0 0.0
    %3268 = vmatprep.subr.mxu0 0.0
    %3269 = vmatpush2.msra.mxu0 0.0
    %3270 = vmatprep.subr.mxu0 0.0
    %3271 = vmatpush2.msra.mxu0 0.0
    %3272 = vmatprep.subr.mxu0 0.0
    %3273 = vmatpush2.msra.mxu0 0.0
    %3274 = vmatprep.subr.mxu0 0.0
    %3275 = vmatpush2.msra.mxu0 0.0
    %3276 = vmatprep.subr.mxu0 0.0
    %3277 = vmatpush2.msra.mxu0 0.0
    %3278 = vmatprep.subr.mxu0 0.0
    %3279 = vmatpush2.msra.mxu0 0.0
    %3280 = vmatprep.subr.mxu0 0.0
    %3281 = vmatpush2.msra.mxu0 0.0
    %3282 = vmatprep.subr.mxu0 0.0
    %3283 = vmatpush2.msra.mxu0 0.0
    %3284 = vmatprep.subr.mxu0 0.0
    %3285 = vmatpush2.msra.mxu0 0.0
    %3286 = vmatprep.subr.mxu0 0.0
    %3287 = vmatpush2.msra.mxu0 0.0
    %3288 = vmatprep.subr.mxu0 0.0
    %3289 = vmatpush2.msra.mxu0 0.0
    %3290 = vmatprep.subr.mxu0 0.0
    %3291 = vmatpush2.msra.mxu0 0.0
    %3292 = vmatprep.subr.mxu0 0.0
    %3293 = vmatpush2.msra.mxu0 0.0
    %3294 = vmatprep.subr.mxu0 0.0
    %3295 = vmatpush2.msra.mxu0 0.0
    %3296 = vmatprep.mubr.f32.mxu0 0.0
    %3297 = vmatmul.mubr.f32.gmra.mxu0 %v2682
    %v3298 = vpop.f32.mrf.mxu0
    %v3299 = vadd.f32 0.0, %v3298
    %v3300 = vpop.f32.mrf.mxu0
    %3301 = vdwg.mxu0
    %v3302 = vld [vmem:[%s710] sm:$0x1]
    %v3303 = vadd.f32 %v3039, %v3228
    %v3304 = vxor.u32 %v3303, 2147483648
    %v3305 = vmul.f32 %v3304, 1.442695
    %v3306 = vpow.pop %v3305
    %v3307 = vadd.f32 %v3306, 1.0
    %v3308 = vrcp.pop %v3307
    %v3309 = vmul.f32 1.0, %v3308
    %v3310 = vadd.f32 %v3041, %v3230
    %v3311 = vxor.u32 %v3310, 2147483648
    %v3312 = vmul.f32 %v3311, 1.442695
    %v3313 = vpow.pop %v3312
    %v3314 = vadd.f32 %v3313, 1.0
    %v3315 = vrcp.pop %v3314
    %v3316 = vmul.f32 1.0, %v3315
    %v3318 = vlaneseq
    %v3319 = vshrl.u32 %v3318, 7
    %v3320 = vsub.s32 0, %v3319
    %v3321 = vrot.slane %v3302, %v3320
    %v3323 = vadd.f32 %v3299, %v3321
    %v3324 = vmul.f32 %v3309, %v3323
    %v3325 = vadd.f32 %v3110, %v3324
    %v3326 = vtanh.pop %v3325
    %v3327 = vsub.f32 1.0, %v3316
    %v3328 = vmul.f32 %v3327, %v3326
    %v3329 = vmul.f32 %v3316, %v2682
    %v3330 = vadd.f32 %v3328, %v3329
    %s3331 = scalar_lea.vmem [#allocation10], 32
    %3332 = vst [vmem:[%s3331] sm:$0xff] %v3330
    %s3333 = scalar_lea.vmem [#allocation2], 120
    %v3334 = vld [vmem:[%s3333] sm:$0xff]
    %v3335 = vld [vmem:[%s3333 + $0x8] sm:$0xff]
    %v3336 = vld [vmem:[%s3333 + $0x10] sm:$0xff]
    %v3337 = vld [vmem:[#allocation7] sm:$0xff]
    %v3338 = vld [vmem:[#allocation7 + $0x8] sm:$0xff]
    %v3339 = vld [vmem:[#allocation7 + $0x10] sm:$0xff]
    %v3340 = vld [vmem:[#allocation7 + $0x18] sm:$0xff]
    %v3341 = vld [vmem:[#allocation7 + $0x20] sm:$0xff]
    %v3342 = vld [vmem:[#allocation7 + $0x28] sm:$0xff]
    %v3343 = vld [vmem:[#allocation7 + $0x30] sm:$0xff]
    %v3344 = vld [vmem:[#allocation7 + $0x38] sm:$0xff]
    %v3345 = vld [vmem:[#allocation7 + $0x40] sm:$0xff]
    %v3346 = vld [vmem:[#allocation7 + $0x48] sm:$0xff]
    %v3347 = vld [vmem:[#allocation7 + $0x50] sm:$0xff]
    %v3348 = vld [vmem:[#allocation7 + $0x58] sm:$0xff]
    %v3349 = vld [vmem:[#allocation7 + $0x60] sm:$0xff]
    %v3350 = vld [vmem:[#allocation7 + $0x68] sm:$0xff]
    %v3351 = vld [vmem:[#allocation7 + $0x70] sm:$0xff]
    %v3352 = vld [vmem:[#allocation7 + $0x78] sm:$0xff]
    %v3353 = vld [vmem:[#allocation7 + $0x80] sm:$0xff]
    %v3354 = vld [vmem:[#allocation7 + $0x88] sm:$0xff]
    %v3355 = vld [vmem:[#allocation7 + $0x90] sm:$0xff]
    %v3356 = vld [vmem:[#allocation7 + $0x98] sm:$0xff]
    %v3357 = vld [vmem:[#allocation7 + $0xa0] sm:$0xff]
    %v3358 = vld [vmem:[#allocation7 + $0xa8] sm:$0xff]
    %v3359 = vld [vmem:[#allocation7 + $0xb0] sm:$0xff]
    %v3360 = vld [vmem:[#allocation7 + $0xb8] sm:$0xff]
    %v3361 = vld [vmem:[#allocation7 + $0xc0] sm:$0xff]
    %v3362 = vld [vmem:[#allocation7 + $0xc8] sm:$0xff]
    %v3363 = vld [vmem:[#allocation7 + $0xd0] sm:$0xff]
    %v3364 = vld [vmem:[#allocation7 + $0xd8] sm:$0xff]
    %v3365 = vld [vmem:[#allocation7 + $0xe0] sm:$0xff]
    %v3366 = vld [vmem:[#allocation7 + $0xe8] sm:$0xff]
    %v3367 = vld [vmem:[#allocation7 + $0xf0] sm:$0xff]
    %v3368 = vld [vmem:[#allocation7 + $0xf8] sm:$0xff]
    %v3369 = vld [vmem:[#allocation7 + $0x100] sm:$0xff]
    %v3370 = vld [vmem:[#allocation7 + $0x108] sm:$0xff]
    %v3371 = vld [vmem:[#allocation7 + $0x110] sm:$0xff]
    %v3372 = vld [vmem:[#allocation7 + $0x118] sm:$0xff]
    %v3373 = vld [vmem:[#allocation7 + $0x120] sm:$0xff]
    %v3374 = vld [vmem:[#allocation7 + $0x128] sm:$0xff]
    %v3375 = vld [vmem:[#allocation7 + $0x130] sm:$0xff]
    %v3376 = vld [vmem:[#allocation7 + $0x138] sm:$0xff]
    %v3377 = vld [vmem:[#allocation7 + $0x140] sm:$0xff]
    %v3378 = vld [vmem:[#allocation7 + $0x148] sm:$0xff]
    %v3379 = vld [vmem:[#allocation7 + $0x150] sm:$0xff]
    %v3380 = vld [vmem:[#allocation7 + $0x158] sm:$0xff]
    %v3381 = vld [vmem:[#allocation7 + $0x160] sm:$0xff]
    %v3382 = vld [vmem:[#allocation7 + $0x168] sm:$0xff]
    %v3383 = vld [vmem:[#allocation7 + $0x170] sm:$0xff]
    %v3384 = vld [vmem:[#allocation7 + $0x178] sm:$0xff]
    %3385 = vmatprep.subr.mxu0 %v3383
    %3386 = vmatpush1.msra.mxu0 %v3382
    %3387 = vmatprep.subr.mxu0 %v3380
    %3388 = vmatpush1.msra.mxu0 %v3379
    %3389 = vmatprep.subr.mxu0 %v3377
    %3390 = vmatpush1.msra.mxu0 %v3376
    %3391 = vmatprep.subr.mxu0 %v3374
    %3392 = vmatpush1.msra.mxu0 %v3373
    %3393 = vmatprep.subr.mxu0 %v3371
    %3394 = vmatpush1.msra.mxu0 %v3370
    %3395 = vmatprep.subr.mxu0 %v3368
    %3396 = vmatpush1.msra.mxu0 %v3367
    %3397 = vmatprep.subr.mxu0 %v3365
    %3398 = vmatpush1.msra.mxu0 %v3364
    %3399 = vmatprep.subr.mxu0 %v3362
    %3400 = vmatpush1.msra.mxu0 %v3361
    %3401 = vmatprep.subr.mxu0 %v3359
    %3402 = vmatpush1.msra.mxu0 %v3358
    %3403 = vmatprep.subr.mxu0 %v3356
    %3404 = vmatpush1.msra.mxu0 %v3355
    %3405 = vmatprep.subr.mxu0 %v3353
    %3406 = vmatpush1.msra.mxu0 %v3352
    %3407 = vmatprep.subr.mxu0 %v3350
    %3408 = vmatpush1.msra.mxu0 %v3349
    %3409 = vmatprep.subr.mxu0 %v3347
    %3410 = vmatpush1.msra.mxu0 %v3346
    %3411 = vmatprep.subr.mxu0 %v3344
    %3412 = vmatpush1.msra.mxu0 %v3343
    %3413 = vmatprep.subr.mxu0 %v3341
    %3414 = vmatpush1.msra.mxu0 %v3340
    %3415 = vmatprep.subr.mxu0 %v3338
    %3416 = vmatpush1.msra.mxu0 %v3337
    %3417 = vmatprep.subr.mxu0 0.0
    %3418 = vmatpush2.msra.mxu0 0.0
    %3419 = vmatprep.subr.mxu0 0.0
    %3420 = vmatpush2.msra.mxu0 0.0
    %3421 = vmatprep.subr.mxu0 0.0
    %3422 = vmatpush2.msra.mxu0 0.0
    %3423 = vmatprep.subr.mxu0 0.0
    %3424 = vmatpush2.msra.mxu0 0.0
    %3425 = vmatprep.subr.mxu0 0.0
    %3426 = vmatpush2.msra.mxu0 0.0
    %3427 = vmatprep.subr.mxu0 0.0
    %3428 = vmatpush2.msra.mxu0 0.0
    %3429 = vmatprep.subr.mxu0 0.0
    %3430 = vmatpush2.msra.mxu0 0.0
    %3431 = vmatprep.subr.mxu0 0.0
    %3432 = vmatpush2.msra.mxu0 0.0
    %3433 = vmatprep.subr.mxu0 0.0
    %3434 = vmatpush2.msra.mxu0 0.0
    %3435 = vmatprep.subr.mxu0 0.0
    %3436 = vmatpush2.msra.mxu0 0.0
    %3437 = vmatprep.subr.mxu0 0.0
    %3438 = vmatpush2.msra.mxu0 0.0
    %3439 = vmatprep.subr.mxu0 0.0
    %3440 = vmatpush2.msra.mxu0 0.0
    %3441 = vmatprep.subr.mxu0 0.0
    %3442 = vmatpush2.msra.mxu0 0.0
    %3443 = vmatprep.subr.mxu0 0.0
    %3444 = vmatpush2.msra.mxu0 0.0
    %3445 = vmatprep.subr.mxu0 0.0
    %3446 = vmatpush2.msra.mxu0 0.0
    %3447 = vmatprep.subr.mxu0 0.0
    %3448 = vmatpush2.msra.mxu0 0.0
    %3449 = vmatprep.mubr.f32.mxu0 0.0
    %3450 = vmatmul.mubr.f32.gmra.mxu0 %v2906
    %v3451 = vpop.f32.mrf.mxu0
    %v3452 = vadd.f32 0.0, %v3451
    %v3453 = vpop.f32.mrf.mxu0
    %v3454 = vadd.f32 0.0, %v3453
    %3455 = vdwg.mxu0
    %3456 = vmatprep.subr.mxu0 0.0
    %3457 = vmatpush1.msra.mxu0 %v3384
    %3458 = vmatprep.subr.mxu0 0.0
    %3459 = vmatpush1.msra.mxu0 %v3381
    %3460 = vmatprep.subr.mxu0 0.0
    %3461 = vmatpush1.msra.mxu0 %v3378
    %3462 = vmatprep.subr.mxu0 0.0
    %3463 = vmatpush1.msra.mxu0 %v3375
    %3464 = vmatprep.subr.mxu0 0.0
    %3465 = vmatpush1.msra.mxu0 %v3372
    %3466 = vmatprep.subr.mxu0 0.0
    %3467 = vmatpush1.msra.mxu0 %v3369
    %3468 = vmatprep.subr.mxu0 0.0
    %3469 = vmatpush1.msra.mxu0 %v3366
    %3470 = vmatprep.subr.mxu0 0.0
    %3471 = vmatpush1.msra.mxu0 %v3363
    %3472 = vmatprep.subr.mxu0 0.0
    %3473 = vmatpush1.msra.mxu0 %v3360
    %3474 = vmatprep.subr.mxu0 0.0
    %3475 = vmatpush1.msra.mxu0 %v3357
    %3476 = vmatprep.subr.mxu0 0.0
    %3477 = vmatpush1.msra.mxu0 %v3354
    %3478 = vmatprep.subr.mxu0 0.0
    %3479 = vmatpush1.msra.mxu0 %v3351
    %3480 = vmatprep.subr.mxu0 0.0
    %3481 = vmatpush1.msra.mxu0 %v3348
    %3482 = vmatprep.subr.mxu0 0.0
    %3483 = vmatpush1.msra.mxu0 %v3345
    %3484 = vmatprep.subr.mxu0 0.0
    %3485 = vmatpush1.msra.mxu0 %v3342
    %3486 = vmatprep.subr.mxu0 0.0
    %3487 = vmatpush1.msra.mxu0 %v3339
    %3488 = vmatprep.subr.mxu0 0.0
    %3489 = vmatpush2.msra.mxu0 0.0
    %3490 = vmatprep.subr.mxu0 0.0
    %3491 = vmatpush2.msra.mxu0 0.0
    %3492 = vmatprep.subr.mxu0 0.0
    %3493 = vmatpush2.msra.mxu0 0.0
    %3494 = vmatprep.subr.mxu0 0.0
    %3495 = vmatpush2.msra.mxu0 0.0
    %3496 = vmatprep.subr.mxu0 0.0
    %3497 = vmatpush2.msra.mxu0 0.0
    %3498 = vmatprep.subr.mxu0 0.0
    %3499 = vmatpush2.msra.mxu0 0.0
    %3500 = vmatprep.subr.mxu0 0.0
    %3501 = vmatpush2.msra.mxu0 0.0
    %3502 = vmatprep.subr.mxu0 0.0
    %3503 = vmatpush2.msra.mxu0 0.0
    %3504 = vmatprep.subr.mxu0 0.0
    %3505 = vmatpush2.msra.mxu0 0.0
    %3506 = vmatprep.subr.mxu0 0.0
    %3507 = vmatpush2.msra.mxu0 0.0
    %3508 = vmatprep.subr.mxu0 0.0
    %3509 = vmatpush2.msra.mxu0 0.0
    %3510 = vmatprep.subr.mxu0 0.0
    %3511 = vmatpush2.msra.mxu0 0.0
    %3512 = vmatprep.subr.mxu0 0.0
    %3513 = vmatpush2.msra.mxu0 0.0
    %3514 = vmatprep.subr.mxu0 0.0
    %3515 = vmatpush2.msra.mxu0 0.0
    %3516 = vmatprep.subr.mxu0 0.0
    %3517 = vmatpush2.msra.mxu0 0.0
    %3518 = vmatprep.subr.mxu0 0.0
    %3519 = vmatpush2.msra.mxu0 0.0
    %3520 = vmatprep.mubr.f32.mxu0 0.0
    %3521 = vmatmul.mubr.f32.gmra.mxu0 %v2906
    %v3522 = vpop.f32.mrf.mxu0
    %v3523 = vadd.f32 0.0, %v3522
    %v3524 = vpop.f32.mrf.mxu0
    %3525 = vdwg.mxu0
    %v3526 = vld [vmem:[%s3] sm:$0x1]
    %v3527 = vadd.f32 %v3334, %v3452
    %v3528 = vxor.u32 %v3527, 2147483648
    %v3529 = vmul.f32 %v3528, 1.442695
    %v3530 = vpow.pop %v3529
    %v3531 = vadd.f32 %v3530, 1.0
    %v3532 = vrcp.pop %v3531
    %v3533 = vmul.f32 1.0, %v3532
    %v3534 = vadd.f32 %v3335, %v3454
    %v3535 = vxor.u32 %v3534, 2147483648
    %v3536 = vmul.f32 %v3535, 1.442695
    %v3537 = vpow.pop %v3536
    %v3538 = vadd.f32 %v3537, 1.0
    %v3539 = vrcp.pop %v3538
    %v3540 = vmul.f32 1.0, %v3539
    %v3542 = vlaneseq
    %v3543 = vshrl.u32 %v3542, 7
    %v3544 = vsub.s32 0, %v3543
    %v3545 = vrot.slane %v3526, %v3544
    %v3547 = vadd.f32 %v3523, %v3545
    %v3548 = vmul.f32 %v3533, %v3547
    %v3549 = vadd.f32 %v3336, %v3548
    %v3550 = vtanh.pop %v3549
    %v3551 = vsub.f32 1.0, %v3540
    %v3552 = vmul.f32 %v3551, %v3550
    %v3553 = vmul.f32 %v3540, %v2906
    %v3554 = vadd.f32 %v3552, %v3553
    %v3555 = vld [vmem:[#allocation8] sm:$0xff]
    %v3556 = vld [vmem:[#allocation8 + $0x8] sm:$0xff]
    %v3557 = vld [vmem:[#allocation8 + $0x10] sm:$0xff]
    %v3558 = vld [vmem:[#allocation8 + $0x18] sm:$0xff]
    %v3559 = vld [vmem:[#allocation8 + $0x20] sm:$0xff]
    %v3560 = vld [vmem:[#allocation8 + $0x28] sm:$0xff]
    %v3561 = vld [vmem:[#allocation8 + $0x30] sm:$0xff]
    %v3562 = vld [vmem:[#allocation8 + $0x38] sm:$0xff]
    %v3563 = vld [vmem:[#allocation8 + $0x40] sm:$0xff]
    %v3564 = vld [vmem:[#allocation8 + $0x48] sm:$0xff]
    %v3565 = vld [vmem:[#allocation8 + $0x50] sm:$0xff]
    %v3566 = vld [vmem:[#allocation8 + $0x58] sm:$0xff]
    %v3567 = vld [vmem:[#allocation8 + $0x60] sm:$0xff]
    %v3568 = vld [vmem:[#allocation8 + $0x68] sm:$0xff]
    %v3569 = vld [vmem:[#allocation8 + $0x70] sm:$0xff]
    %v3570 = vld [vmem:[#allocation8 + $0x78] sm:$0xff]
    %v3571 = vld [vmem:[#allocation8 + $0x80] sm:$0xff]
    %v3572 = vld [vmem:[#allocation8 + $0x88] sm:$0xff]
    %v3573 = vld [vmem:[#allocation8 + $0x90] sm:$0xff]
    %v3574 = vld [vmem:[#allocation8 + $0x98] sm:$0xff]
    %v3575 = vld [vmem:[#allocation8 + $0xa0] sm:$0xff]
    %v3576 = vld [vmem:[#allocation8 + $0xa8] sm:$0xff]
    %v3577 = vld [vmem:[#allocation8 + $0xb0] sm:$0xff]
    %v3578 = vld [vmem:[#allocation8 + $0xb8] sm:$0xff]
    %v3579 = vld [vmem:[#allocation8 + $0xc0] sm:$0xff]
    %v3580 = vld [vmem:[#allocation8 + $0xc8] sm:$0xff]
    %v3581 = vld [vmem:[#allocation8 + $0xd0] sm:$0xff]
    %v3582 = vld [vmem:[#allocation8 + $0xd8] sm:$0xff]
    %v3583 = vld [vmem:[#allocation8 + $0xe0] sm:$0xff]
    %v3584 = vld [vmem:[#allocation8 + $0xe8] sm:$0xff]
    %v3585 = vld [vmem:[#allocation8 + $0xf0] sm:$0xff]
    %v3586 = vld [vmem:[#allocation8 + $0xf8] sm:$0xff]
    %v3587 = vld [vmem:[#allocation8 + $0x100] sm:$0xff]
    %v3588 = vld [vmem:[#allocation8 + $0x108] sm:$0xff]
    %v3589 = vld [vmem:[#allocation8 + $0x110] sm:$0xff]
    %v3590 = vld [vmem:[#allocation8 + $0x118] sm:$0xff]
    %v3591 = vld [vmem:[#allocation8 + $0x120] sm:$0xff]
    %v3592 = vld [vmem:[#allocation8 + $0x128] sm:$0xff]
    %v3593 = vld [vmem:[#allocation8 + $0x130] sm:$0xff]
    %v3594 = vld [vmem:[#allocation8 + $0x138] sm:$0xff]
    %v3595 = vld [vmem:[#allocation8 + $0x140] sm:$0xff]
    %v3596 = vld [vmem:[#allocation8 + $0x148] sm:$0xff]
    %v3597 = vld [vmem:[#allocation8 + $0x150] sm:$0xff]
    %v3598 = vld [vmem:[#allocation8 + $0x158] sm:$0xff]
    %v3599 = vld [vmem:[#allocation8 + $0x160] sm:$0xff]
    %v3600 = vld [vmem:[#allocation8 + $0x168] sm:$0xff]
    %v3601 = vld [vmem:[#allocation8 + $0x170] sm:$0xff]
    %v3602 = vld [vmem:[#allocation8 + $0x178] sm:$0xff]
    %v3603 = vld [vmem:[%s5] sm:$0x7]
    %v3605 = vlaneseq
    %v3606 = vshrl.u32 %v3605, 7
    %v3607 = vsub.s32 0, %v3606
    %v3608 = vrot.slane %v3603, %v3607
    %v3609 = vlaneseq
    %v3610 = vshrl.u32 %v3609, 7
    %v3611 = vsub.s32 1, %v3610
    %v3612 = vrot.slane %v3603, %v3611
    %v3613 = vlaneseq
    %v3614 = vshrl.u32 %v3613, 7
    %v3615 = vsub.s32 2, %v3614
    %v3616 = vrot.slane %v3603, %v3615
    %3620 = vmatprep.subr.mxu0 %v3601
    %3621 = vmatpush1.msra.mxu0 %v3600
    %3622 = vmatprep.subr.mxu0 %v3598
    %3623 = vmatpush1.msra.mxu0 %v3597
    %3624 = vmatprep.subr.mxu0 %v3595
    %3625 = vmatpush1.msra.mxu0 %v3594
    %3626 = vmatprep.subr.mxu0 %v3592
    %3627 = vmatpush1.msra.mxu0 %v3591
    %3628 = vmatprep.subr.mxu0 %v3589
    %3629 = vmatpush1.msra.mxu0 %v3588
    %3630 = vmatprep.subr.mxu0 %v3586
    %3631 = vmatpush1.msra.mxu0 %v3585
    %3632 = vmatprep.subr.mxu0 %v3583
    %3633 = vmatpush1.msra.mxu0 %v3582
    %3634 = vmatprep.subr.mxu0 %v3580
    %3635 = vmatpush1.msra.mxu0 %v3579
    %3636 = vmatprep.subr.mxu0 %v3577
    %3637 = vmatpush1.msra.mxu0 %v3576
    %3638 = vmatprep.subr.mxu0 %v3574
    %3639 = vmatpush1.msra.mxu0 %v3573
    %3640 = vmatprep.subr.mxu0 %v3571
    %3641 = vmatpush1.msra.mxu0 %v3570
    %3642 = vmatprep.subr.mxu0 %v3568
    %3643 = vmatpush1.msra.mxu0 %v3567
    %3644 = vmatprep.subr.mxu0 %v3565
    %3645 = vmatpush1.msra.mxu0 %v3564
    %3646 = vmatprep.subr.mxu0 %v3562
    %3647 = vmatpush1.msra.mxu0 %v3561
    %3648 = vmatprep.subr.mxu0 %v3559
    %3649 = vmatpush1.msra.mxu0 %v3558
    %3650 = vmatprep.subr.mxu0 %v3556
    %3651 = vmatpush1.msra.mxu0 %v3555
    %3652 = vmatprep.subr.mxu0 0.0
    %3653 = vmatpush2.msra.mxu0 0.0
    %3654 = vmatprep.subr.mxu0 0.0
    %3655 = vmatpush2.msra.mxu0 0.0
    %3656 = vmatprep.subr.mxu0 0.0
    %3657 = vmatpush2.msra.mxu0 0.0
    %3658 = vmatprep.subr.mxu0 0.0
    %3659 = vmatpush2.msra.mxu0 0.0
    %3660 = vmatprep.subr.mxu0 0.0
    %3661 = vmatpush2.msra.mxu0 0.0
    %3662 = vmatprep.subr.mxu0 0.0
    %3663 = vmatpush2.msra.mxu0 0.0
    %3664 = vmatprep.subr.mxu0 0.0
    %3665 = vmatpush2.msra.mxu0 0.0
    %3666 = vmatprep.subr.mxu0 0.0
    %3667 = vmatpush2.msra.mxu0 0.0
    %3668 = vmatprep.subr.mxu0 0.0
    %3669 = vmatpush2.msra.mxu0 0.0
    %3670 = vmatprep.subr.mxu0 0.0
    %3671 = vmatpush2.msra.mxu0 0.0
    %3672 = vmatprep.subr.mxu0 0.0
    %3673 = vmatpush2.msra.mxu0 0.0
    %3674 = vmatprep.subr.mxu0 0.0
    %3675 = vmatpush2.msra.mxu0 0.0
    %3676 = vmatprep.subr.mxu0 0.0
    %3677 = vmatpush2.msra.mxu0 0.0
    %3678 = vmatprep.subr.mxu0 0.0
    %3679 = vmatpush2.msra.mxu0 0.0
    %3680 = vmatprep.subr.mxu0 0.0
    %3681 = vmatpush2.msra.mxu0 0.0
    %3682 = vmatprep.subr.mxu0 0.0
    %3683 = vmatpush2.msra.mxu0 0.0
    %3684 = vmatprep.mubr.f32.mxu0 0.0
    %3685 = vmatmul.mubr.f32.gmra.mxu0 %v3554
    %v3686 = vpop.f32.mrf.mxu0
    %v3687 = vadd.f32 %v3608, %v3686
    %v3688 = vpop.f32.mrf.mxu0
    %v3689 = vadd.f32 %v3612, %v3688
    %3690 = vdwg.mxu0
    %3691 = vmatprep.subr.mxu0 0.0
    %3692 = vmatpush1.msra.mxu0 %v3602
    %3693 = vmatprep.subr.mxu0 0.0
    %3694 = vmatpush1.msra.mxu0 %v3599
    %3695 = vmatprep.subr.mxu0 0.0
    %3696 = vmatpush1.msra.mxu0 %v3596
    %3697 = vmatprep.subr.mxu0 0.0
    %3698 = vmatpush1.msra.mxu0 %v3593
    %3699 = vmatprep.subr.mxu0 0.0
    %3700 = vmatpush1.msra.mxu0 %v3590
    %3701 = vmatprep.subr.mxu0 0.0
    %3702 = vmatpush1.msra.mxu0 %v3587
    %3703 = vmatprep.subr.mxu0 0.0
    %3704 = vmatpush1.msra.mxu0 %v3584
    %3705 = vmatprep.subr.mxu0 0.0
    %3706 = vmatpush1.msra.mxu0 %v3581
    %3707 = vmatprep.subr.mxu0 0.0
    %3708 = vmatpush1.msra.mxu0 %v3578
    %3709 = vmatprep.subr.mxu0 0.0
    %3710 = vmatpush1.msra.mxu0 %v3575
    %3711 = vmatprep.subr.mxu0 0.0
    %3712 = vmatpush1.msra.mxu0 %v3572
    %3713 = vmatprep.subr.mxu0 0.0
    %3714 = vmatpush1.msra.mxu0 %v3569
    %3715 = vmatprep.subr.mxu0 0.0
    %3716 = vmatpush1.msra.mxu0 %v3566
    %3717 = vmatprep.subr.mxu0 0.0
    %3718 = vmatpush1.msra.mxu0 %v3563
    %3719 = vmatprep.subr.mxu0 0.0
    %3720 = vmatpush1.msra.mxu0 %v3560
    %3721 = vmatprep.subr.mxu0 0.0
    %3722 = vmatpush1.msra.mxu0 %v3557
    %3723 = vmatprep.subr.mxu0 0.0
    %3724 = vmatpush2.msra.mxu0 0.0
    %3725 = vmatprep.subr.mxu0 0.0
    %3726 = vmatpush2.msra.mxu0 0.0
    %3727 = vmatprep.subr.mxu0 0.0
    %3728 = vmatpush2.msra.mxu0 0.0
    %3729 = vmatprep.subr.mxu0 0.0
    %3730 = vmatpush2.msra.mxu0 0.0
    %3731 = vmatprep.subr.mxu0 0.0
    %3732 = vmatpush2.msra.mxu0 0.0
    %3733 = vmatprep.subr.mxu0 0.0
    %3734 = vmatpush2.msra.mxu0 0.0
    %3735 = vmatprep.subr.mxu0 0.0
    %3736 = vmatpush2.msra.mxu0 0.0
    %3737 = vmatprep.subr.mxu0 0.0
    %3738 = vmatpush2.msra.mxu0 0.0
    %3739 = vmatprep.subr.mxu0 0.0
    %3740 = vmatpush2.msra.mxu0 0.0
    %3741 = vmatprep.subr.mxu0 0.0
    %3742 = vmatpush2.msra.mxu0 0.0
    %3743 = vmatprep.subr.mxu0 0.0
    %3744 = vmatpush2.msra.mxu0 0.0
    %3745 = vmatprep.subr.mxu0 0.0
    %3746 = vmatpush2.msra.mxu0 0.0
    %3747 = vmatprep.subr.mxu0 0.0
    %3748 = vmatpush2.msra.mxu0 0.0
    %3749 = vmatprep.subr.mxu0 0.0
    %3750 = vmatpush2.msra.mxu0 0.0
    %3751 = vmatprep.subr.mxu0 0.0
    %3752 = vmatpush2.msra.mxu0 0.0
    %3753 = vmatprep.subr.mxu0 0.0
    %3754 = vmatpush2.msra.mxu0 0.0
    %3755 = vmatprep.mubr.f32.mxu0 0.0
    %3756 = vmatmul.mubr.f32.gmra.mxu0 %v3554
    %v3757 = vpop.f32.mrf.mxu0
    %v3758 = vadd.f32 %v3616, %v3757
    %v3759 = vpop.f32.mrf.mxu0
    %3760 = vdwg.mxu0
    %v3761 = vld [vmem:[%s520] sm:$0xff]
    %v3762 = vld [vmem:[%s520 + $0x8] sm:$0xff]
    %v3763 = vld [vmem:[%s520 + $0x10] sm:$0xff]
    %v3764 = vld [vmem:[%s520 + $0x18] sm:$0xff]
    %v3765 = vld [vmem:[%s520 + $0x20] sm:$0xff]
    %v3766 = vld [vmem:[%s520 + $0x28] sm:$0xff]
    %v3767 = vld [vmem:[%s520 + $0x30] sm:$0xff]
    %v3768 = vld [vmem:[%s520 + $0x38] sm:$0xff]
    %v3769 = vld [vmem:[%s520 + $0x40] sm:$0xff]
    %v3770 = vld [vmem:[%s520 + $0x48] sm:$0xff]
    %v3771 = vld [vmem:[%s520 + $0x50] sm:$0xff]
    %v3772 = vld [vmem:[%s520 + $0x58] sm:$0xff]
    %v3773 = vld [vmem:[%s520 + $0x60] sm:$0xff]
    %v3774 = vld [vmem:[%s520 + $0x68] sm:$0xff]
    %v3775 = vld [vmem:[%s520 + $0x70] sm:$0xff]
    %v3776 = vld [vmem:[%s520 + $0x78] sm:$0xff]
    %v3777 = vld [vmem:[%s520 + $0x80] sm:$0xff]
    %v3778 = vld [vmem:[%s520 + $0x88] sm:$0xff]
    %v3779 = vld [vmem:[%s520 + $0x90] sm:$0xff]
    %v3780 = vld [vmem:[%s520 + $0x98] sm:$0xff]
    %v3781 = vld [vmem:[%s520 + $0xa0] sm:$0xff]
    %v3782 = vld [vmem:[%s520 + $0xa8] sm:$0xff]
    %v3783 = vld [vmem:[%s520 + $0xb0] sm:$0xff]
    %v3784 = vld [vmem:[%s520 + $0xb8] sm:$0xff]
    %v3785 = vld [vmem:[%s520 + $0xc0] sm:$0xff]
    %v3786 = vld [vmem:[%s520 + $0xc8] sm:$0xff]
    %v3787 = vld [vmem:[%s520 + $0xd0] sm:$0xff]
    %v3788 = vld [vmem:[%s520 + $0xd8] sm:$0xff]
    %v3789 = vld [vmem:[%s520 + $0xe0] sm:$0xff]
    %v3790 = vld [vmem:[%s520 + $0xe8] sm:$0xff]
    %v3791 = vld [vmem:[%s520 + $0xf0] sm:$0xff]
    %v3792 = vld [vmem:[%s520 + $0xf8] sm:$0xff]
    %v3793 = vld [vmem:[%s520 + $0x100] sm:$0xff]
    %v3794 = vld [vmem:[%s520 + $0x108] sm:$0xff]
    %v3795 = vld [vmem:[%s520 + $0x110] sm:$0xff]
    %v3796 = vld [vmem:[%s520 + $0x118] sm:$0xff]
    %v3797 = vld [vmem:[%s520 + $0x120] sm:$0xff]
    %v3798 = vld [vmem:[%s520 + $0x128] sm:$0xff]
    %v3799 = vld [vmem:[%s520 + $0x130] sm:$0xff]
    %v3800 = vld [vmem:[%s520 + $0x138] sm:$0xff]
    %v3801 = vld [vmem:[%s520 + $0x140] sm:$0xff]
    %v3802 = vld [vmem:[%s520 + $0x148] sm:$0xff]
    %v3803 = vld [vmem:[%s520 + $0x150] sm:$0xff]
    %v3804 = vld [vmem:[%s520 + $0x158] sm:$0xff]
    %v3805 = vld [vmem:[%s520 + $0x160] sm:$0xff]
    %v3806 = vld [vmem:[%s520 + $0x168] sm:$0xff]
    %v3807 = vld [vmem:[%s520 + $0x170] sm:$0xff]
    %v3808 = vld [vmem:[%s520 + $0x178] sm:$0xff]
    %3809 = vmatprep.subr.mxu0 %v3807
    %3810 = vmatpush1.msra.mxu0 %v3806
    %3811 = vmatprep.subr.mxu0 %v3804
    %3812 = vmatpush1.msra.mxu0 %v3803
    %3813 = vmatprep.subr.mxu0 %v3801
    %3814 = vmatpush1.msra.mxu0 %v3800
    %3815 = vmatprep.subr.mxu0 %v3798
    %3816 = vmatpush1.msra.mxu0 %v3797
    %3817 = vmatprep.subr.mxu0 %v3795
    %3818 = vmatpush1.msra.mxu0 %v3794
    %3819 = vmatprep.subr.mxu0 %v3792
    %3820 = vmatpush1.msra.mxu0 %v3791
    %3821 = vmatprep.subr.mxu0 %v3789
    %3822 = vmatpush1.msra.mxu0 %v3788
    %3823 = vmatprep.subr.mxu0 %v3786
    %3824 = vmatpush1.msra.mxu0 %v3785
    %3825 = vmatprep.subr.mxu0 %v3783
    %3826 = vmatpush1.msra.mxu0 %v3782
    %3827 = vmatprep.subr.mxu0 %v3780
    %3828 = vmatpush1.msra.mxu0 %v3779
    %3829 = vmatprep.subr.mxu0 %v3777
    %3830 = vmatpush1.msra.mxu0 %v3776
    %3831 = vmatprep.subr.mxu0 %v3774
    %3832 = vmatpush1.msra.mxu0 %v3773
    %3833 = vmatprep.subr.mxu0 %v3771
    %3834 = vmatpush1.msra.mxu0 %v3770
    %3835 = vmatprep.subr.mxu0 %v3768
    %3836 = vmatpush1.msra.mxu0 %v3767
    %3837 = vmatprep.subr.mxu0 %v3765
    %3838 = vmatpush1.msra.mxu0 %v3764
    %3839 = vmatprep.subr.mxu0 %v3762
    %3840 = vmatpush1.msra.mxu0 %v3761
    %3841 = vmatprep.subr.mxu0 0.0
    %3842 = vmatpush2.msra.mxu0 0.0
    %3843 = vmatprep.subr.mxu0 0.0
    %3844 = vmatpush2.msra.mxu0 0.0
    %3845 = vmatprep.subr.mxu0 0.0
    %3846 = vmatpush2.msra.mxu0 0.0
    %3847 = vmatprep.subr.mxu0 0.0
    %3848 = vmatpush2.msra.mxu0 0.0
    %3849 = vmatprep.subr.mxu0 0.0
    %3850 = vmatpush2.msra.mxu0 0.0
    %3851 = vmatprep.subr.mxu0 0.0
    %3852 = vmatpush2.msra.mxu0 0.0
    %3853 = vmatprep.subr.mxu0 0.0
    %3854 = vmatpush2.msra.mxu0 0.0
    %3855 = vmatprep.subr.mxu0 0.0
    %3856 = vmatpush2.msra.mxu0 0.0
    %3857 = vmatprep.subr.mxu0 0.0
    %3858 = vmatpush2.msra.mxu0 0.0
    %3859 = vmatprep.subr.mxu0 0.0
    %3860 = vmatpush2.msra.mxu0 0.0
    %3861 = vmatprep.subr.mxu0 0.0
    %3862 = vmatpush2.msra.mxu0 0.0
    %3863 = vmatprep.subr.mxu0 0.0
    %3864 = vmatpush2.msra.mxu0 0.0
    %3865 = vmatprep.subr.mxu0 0.0
    %3866 = vmatpush2.msra.mxu0 0.0
    %3867 = vmatprep.subr.mxu0 0.0
    %3868 = vmatpush2.msra.mxu0 0.0
    %3869 = vmatprep.subr.mxu0 0.0
    %3870 = vmatpush2.msra.mxu0 0.0
    %3871 = vmatprep.subr.mxu0 0.0
    %3872 = vmatpush2.msra.mxu0 0.0
    %3873 = vmatprep.mubr.f32.mxu0 0.0
    %3874 = vmatmul.mubr.f32.gmra.mxu0 %v3330
    %v3875 = vpop.f32.mrf.mxu0
    %v3876 = vadd.f32 0.0, %v3875
    %v3877 = vpop.f32.mrf.mxu0
    %v3878 = vadd.f32 0.0, %v3877
    %3879 = vdwg.mxu0
    %3880 = vmatprep.subr.mxu0 0.0
    %3881 = vmatpush1.msra.mxu0 %v3808
    %3882 = vmatprep.subr.mxu0 0.0
    %3883 = vmatpush1.msra.mxu0 %v3805
    %3884 = vmatprep.subr.mxu0 0.0
    %3885 = vmatpush1.msra.mxu0 %v3802
    %3886 = vmatprep.subr.mxu0 0.0
    %3887 = vmatpush1.msra.mxu0 %v3799
    %3888 = vmatprep.subr.mxu0 0.0
    %3889 = vmatpush1.msra.mxu0 %v3796
    %3890 = vmatprep.subr.mxu0 0.0
    %3891 = vmatpush1.msra.mxu0 %v3793
    %3892 = vmatprep.subr.mxu0 0.0
    %3893 = vmatpush1.msra.mxu0 %v3790
    %3894 = vmatprep.subr.mxu0 0.0
    %3895 = vmatpush1.msra.mxu0 %v3787
    %3896 = vmatprep.subr.mxu0 0.0
    %3897 = vmatpush1.msra.mxu0 %v3784
    %3898 = vmatprep.subr.mxu0 0.0
    %3899 = vmatpush1.msra.mxu0 %v3781
    %3900 = vmatprep.subr.mxu0 0.0
    %3901 = vmatpush1.msra.mxu0 %v3778
    %3902 = vmatprep.subr.mxu0 0.0
    %3903 = vmatpush1.msra.mxu0 %v3775
    %3904 = vmatprep.subr.mxu0 0.0
    %3905 = vmatpush1.msra.mxu0 %v3772
    %3906 = vmatprep.subr.mxu0 0.0
    %3907 = vmatpush1.msra.mxu0 %v3769
    %3908 = vmatprep.subr.mxu0 0.0
    %3909 = vmatpush1.msra.mxu0 %v3766
    %3910 = vmatprep.subr.mxu0 0.0
    %3911 = vmatpush1.msra.mxu0 %v3763
    %3912 = vmatprep.subr.mxu0 0.0
    %3913 = vmatpush2.msra.mxu0 0.0
    %3914 = vmatprep.subr.mxu0 0.0
    %3915 = vmatpush2.msra.mxu0 0.0
    %3916 = vmatprep.subr.mxu0 0.0
    %3917 = vmatpush2.msra.mxu0 0.0
    %3918 = vmatprep.subr.mxu0 0.0
    %3919 = vmatpush2.msra.mxu0 0.0
    %3920 = vmatprep.subr.mxu0 0.0
    %3921 = vmatpush2.msra.mxu0 0.0
    %3922 = vmatprep.subr.mxu0 0.0
    %3923 = vmatpush2.msra.mxu0 0.0
    %3924 = vmatprep.subr.mxu0 0.0
    %3925 = vmatpush2.msra.mxu0 0.0
    %3926 = vmatprep.subr.mxu0 0.0
    %3927 = vmatpush2.msra.mxu0 0.0
    %3928 = vmatprep.subr.mxu0 0.0
    %3929 = vmatpush2.msra.mxu0 0.0
    %3930 = vmatprep.subr.mxu0 0.0
    %3931 = vmatpush2.msra.mxu0 0.0
    %3932 = vmatprep.subr.mxu0 0.0
    %3933 = vmatpush2.msra.mxu0 0.0
    %3934 = vmatprep.subr.mxu0 0.0
    %3935 = vmatpush2.msra.mxu0 0.0
    %3936 = vmatprep.subr.mxu0 0.0
    %3937 = vmatpush2.msra.mxu0 0.0
    %3938 = vmatprep.subr.mxu0 0.0
    %3939 = vmatpush2.msra.mxu0 0.0
    %3940 = vmatprep.subr.mxu0 0.0
    %3941 = vmatpush2.msra.mxu0 0.0
    %3942 = vmatprep.subr.mxu0 0.0
    %3943 = vmatpush2.msra.mxu0 0.0
    %3944 = vmatprep.mubr.f32.mxu0 0.0
    %3945 = vmatmul.mubr.f32.gmra.mxu0 %v3330
    %v3946 = vpop.f32.mrf.mxu0
    %v3947 = vadd.f32 0.0, %v3946
    %v3948 = vpop.f32.mrf.mxu0
    %3949 = vdwg.mxu0
    %v3950 = vld [vmem:[%s710] sm:$0x1]
    %v3951 = vadd.f32 %v3687, %v3876
    %v3952 = vxor.u32 %v3951, 2147483648
    %v3953 = vmul.f32 %v3952, 1.442695
    %v3954 = vpow.pop %v3953
    %v3955 = vadd.f32 %v3954, 1.0
    %v3956 = vrcp.pop %v3955
    %v3957 = vmul.f32 1.0, %v3956
    %v3958 = vadd.f32 %v3689, %v3878
    %v3959 = vxor.u32 %v3958, 2147483648
    %v3960 = vmul.f32 %v3959, 1.442695
    %v3961 = vpow.pop %v3960
    %v3962 = vadd.f32 %v3961, 1.0
    %v3963 = vrcp.pop %v3962
    %v3964 = vmul.f32 1.0, %v3963
    %v3966 = vlaneseq
    %v3967 = vshrl.u32 %v3966, 7
    %v3968 = vsub.s32 0, %v3967
    %v3969 = vrot.slane %v3950, %v3968
    %v3971 = vadd.f32 %v3947, %v3969
    %v3972 = vmul.f32 %v3957, %v3971
    %v3973 = vadd.f32 %v3758, %v3972
    %v3974 = vtanh.pop %v3973
    %v3975 = vsub.f32 1.0, %v3964
    %v3976 = vmul.f32 %v3975, %v3974
    %v3977 = vmul.f32 %v3964, %v3330
    %v3978 = vadd.f32 %v3976, %v3977
    %s3979 = scalar_lea.vmem [#allocation10], 40
    %3980 = vst [vmem:[%s3979] sm:$0xff] %v3978
    %s3981 = scalar_lea.vmem [#allocation2], 144
    %v3982 = vld [vmem:[%s3981] sm:$0xff]
    %v3983 = vld [vmem:[%s3981 + $0x8] sm:$0xff]
    %v3984 = vld [vmem:[%s3981 + $0x10] sm:$0xff]
    %v3985 = vld [vmem:[#allocation7] sm:$0xff]
    %v3986 = vld [vmem:[#allocation7 + $0x8] sm:$0xff]
    %v3987 = vld [vmem:[#allocation7 + $0x10] sm:$0xff]
    %v3988 = vld [vmem:[#allocation7 + $0x18] sm:$0xff]
    %v3989 = vld [vmem:[#allocation7 + $0x20] sm:$0xff]
    %v3990 = vld [vmem:[#allocation7 + $0x28] sm:$0xff]
    %v3991 = vld [vmem:[#allocation7 + $0x30] sm:$0xff]
    %v3992 = vld [vmem:[#allocation7 + $0x38] sm:$0xff]
    %v3993 = vld [vmem:[#allocation7 + $0x40] sm:$0xff]
    %v3994 = vld [vmem:[#allocation7 + $0x48] sm:$0xff]
    %v3995 = vld [vmem:[#allocation7 + $0x50] sm:$0xff]
    %v3996 = vld [vmem:[#allocation7 + $0x58] sm:$0xff]
    %v3997 = vld [vmem:[#allocation7 + $0x60] sm:$0xff]
    %v3998 = vld [vmem:[#allocation7 + $0x68] sm:$0xff]
    %v3999 = vld [vmem:[#allocation7 + $0x70] sm:$0xff]
    %v4000 = vld [vmem:[#allocation7 + $0x78] sm:$0xff]
    %v4001 = vld [vmem:[#allocation7 + $0x80] sm:$0xff]
    %v4002 = vld [vmem:[#allocation7 + $0x88] sm:$0xff]
    %v4003 = vld [vmem:[#allocation7 + $0x90] sm:$0xff]
    %v4004 = vld [vmem:[#allocation7 + $0x98] sm:$0xff]
    %v4005 = vld [vmem:[#allocation7 + $0xa0] sm:$0xff]
    %v4006 = vld [vmem:[#allocation7 + $0xa8] sm:$0xff]
    %v4007 = vld [vmem:[#allocation7 + $0xb0] sm:$0xff]
    %v4008 = vld [vmem:[#allocation7 + $0xb8] sm:$0xff]
    %v4009 = vld [vmem:[#allocation7 + $0xc0] sm:$0xff]
    %v4010 = vld [vmem:[#allocation7 + $0xc8] sm:$0xff]
    %v4011 = vld [vmem:[#allocation7 + $0xd0] sm:$0xff]
    %v4012 = vld [vmem:[#allocation7 + $0xd8] sm:$0xff]
    %v4013 = vld [vmem:[#allocation7 + $0xe0] sm:$0xff]
    %v4014 = vld [vmem:[#allocation7 + $0xe8] sm:$0xff]
    %v4015 = vld [vmem:[#allocation7 + $0xf0] sm:$0xff]
    %v4016 = vld [vmem:[#allocation7 + $0xf8] sm:$0xff]
    %v4017 = vld [vmem:[#allocation7 + $0x100] sm:$0xff]
    %v4018 = vld [vmem:[#allocation7 + $0x108] sm:$0xff]
    %v4019 = vld [vmem:[#allocation7 + $0x110] sm:$0xff]
    %v4020 = vld [vmem:[#allocation7 + $0x118] sm:$0xff]
    %v4021 = vld [vmem:[#allocation7 + $0x120] sm:$0xff]
    %v4022 = vld [vmem:[#allocation7 + $0x128] sm:$0xff]
    %v4023 = vld [vmem:[#allocation7 + $0x130] sm:$0xff]
    %v4024 = vld [vmem:[#allocation7 + $0x138] sm:$0xff]
    %v4025 = vld [vmem:[#allocation7 + $0x140] sm:$0xff]
    %v4026 = vld [vmem:[#allocation7 + $0x148] sm:$0xff]
    %v4027 = vld [vmem:[#allocation7 + $0x150] sm:$0xff]
    %v4028 = vld [vmem:[#allocation7 + $0x158] sm:$0xff]
    %v4029 = vld [vmem:[#allocation7 + $0x160] sm:$0xff]
    %v4030 = vld [vmem:[#allocation7 + $0x168] sm:$0xff]
    %v4031 = vld [vmem:[#allocation7 + $0x170] sm:$0xff]
    %v4032 = vld [vmem:[#allocation7 + $0x178] sm:$0xff]
    %4033 = vmatprep.subr.mxu0 %v4031
    %4034 = vmatpush1.msra.mxu0 %v4030
    %4035 = vmatprep.subr.mxu0 %v4028
    %4036 = vmatpush1.msra.mxu0 %v4027
    %4037 = vmatprep.subr.mxu0 %v4025
    %4038 = vmatpush1.msra.mxu0 %v4024
    %4039 = vmatprep.subr.mxu0 %v4022
    %4040 = vmatpush1.msra.mxu0 %v4021
    %4041 = vmatprep.subr.mxu0 %v4019
    %4042 = vmatpush1.msra.mxu0 %v4018
    %4043 = vmatprep.subr.mxu0 %v4016
    %4044 = vmatpush1.msra.mxu0 %v4015
    %4045 = vmatprep.subr.mxu0 %v4013
    %4046 = vmatpush1.msra.mxu0 %v4012
    %4047 = vmatprep.subr.mxu0 %v4010
    %4048 = vmatpush1.msra.mxu0 %v4009
    %4049 = vmatprep.subr.mxu0 %v4007
    %4050 = vmatpush1.msra.mxu0 %v4006
    %4051 = vmatprep.subr.mxu0 %v4004
    %4052 = vmatpush1.msra.mxu0 %v4003
    %4053 = vmatprep.subr.mxu0 %v4001
    %4054 = vmatpush1.msra.mxu0 %v4000
    %4055 = vmatprep.subr.mxu0 %v3998
    %4056 = vmatpush1.msra.mxu0 %v3997
    %4057 = vmatprep.subr.mxu0 %v3995
    %4058 = vmatpush1.msra.mxu0 %v3994
    %4059 = vmatprep.subr.mxu0 %v3992
    %4060 = vmatpush1.msra.mxu0 %v3991
    %4061 = vmatprep.subr.mxu0 %v3989
    %4062 = vmatpush1.msra.mxu0 %v3988
    %4063 = vmatprep.subr.mxu0 %v3986
    %4064 = vmatpush1.msra.mxu0 %v3985
    %4065 = vmatprep.subr.mxu0 0.0
    %4066 = vmatpush2.msra.mxu0 0.0
    %4067 = vmatprep.subr.mxu0 0.0
    %4068 = vmatpush2.msra.mxu0 0.0
    %4069 = vmatprep.subr.mxu0 0.0
    %4070 = vmatpush2.msra.mxu0 0.0
    %4071 = vmatprep.subr.mxu0 0.0
    %4072 = vmatpush2.msra.mxu0 0.0
    %4073 = vmatprep.subr.mxu0 0.0
    %4074 = vmatpush2.msra.mxu0 0.0
    %4075 = vmatprep.subr.mxu0 0.0
    %4076 = vmatpush2.msra.mxu0 0.0
    %4077 = vmatprep.subr.mxu0 0.0
    %4078 = vmatpush2.msra.mxu0 0.0
    %4079 = vmatprep.subr.mxu0 0.0
    %4080 = vmatpush2.msra.mxu0 0.0
    %4081 = vmatprep.subr.mxu0 0.0
    %4082 = vmatpush2.msra.mxu0 0.0
    %4083 = vmatprep.subr.mxu0 0.0
    %4084 = vmatpush2.msra.mxu0 0.0
    %4085 = vmatprep.subr.mxu0 0.0
    %4086 = vmatpush2.msra.mxu0 0.0
    %4087 = vmatprep.subr.mxu0 0.0
    %4088 = vmatpush2.msra.mxu0 0.0
    %4089 = vmatprep.subr.mxu0 0.0
    %4090 = vmatpush2.msra.mxu0 0.0
    %4091 = vmatprep.subr.mxu0 0.0
    %4092 = vmatpush2.msra.mxu0 0.0
    %4093 = vmatprep.subr.mxu0 0.0
    %4094 = vmatpush2.msra.mxu0 0.0
    %4095 = vmatprep.subr.mxu0 0.0
    %4096 = vmatpush2.msra.mxu0 0.0
    %4097 = vmatprep.mubr.f32.mxu0 0.0
    %4098 = vmatmul.mubr.f32.gmra.mxu0 %v3554
    %v4099 = vpop.f32.mrf.mxu0
    %v4100 = vadd.f32 0.0, %v4099
    %v4101 = vpop.f32.mrf.mxu0
    %v4102 = vadd.f32 0.0, %v4101
    %4103 = vdwg.mxu0
    %4104 = vmatprep.subr.mxu0 0.0
    %4105 = vmatpush1.msra.mxu0 %v4032
    %4106 = vmatprep.subr.mxu0 0.0
    %4107 = vmatpush1.msra.mxu0 %v4029
    %4108 = vmatprep.subr.mxu0 0.0
    %4109 = vmatpush1.msra.mxu0 %v4026
    %4110 = vmatprep.subr.mxu0 0.0
    %4111 = vmatpush1.msra.mxu0 %v4023
    %4112 = vmatprep.subr.mxu0 0.0
    %4113 = vmatpush1.msra.mxu0 %v4020
    %4114 = vmatprep.subr.mxu0 0.0
    %4115 = vmatpush1.msra.mxu0 %v4017
    %4116 = vmatprep.subr.mxu0 0.0
    %4117 = vmatpush1.msra.mxu0 %v4014
    %4118 = vmatprep.subr.mxu0 0.0
    %4119 = vmatpush1.msra.mxu0 %v4011
    %4120 = vmatprep.subr.mxu0 0.0
    %4121 = vmatpush1.msra.mxu0 %v4008
    %4122 = vmatprep.subr.mxu0 0.0
    %4123 = vmatpush1.msra.mxu0 %v4005
    %4124 = vmatprep.subr.mxu0 0.0
    %4125 = vmatpush1.msra.mxu0 %v4002
    %4126 = vmatprep.subr.mxu0 0.0
    %4127 = vmatpush1.msra.mxu0 %v3999
    %4128 = vmatprep.subr.mxu0 0.0
    %4129 = vmatpush1.msra.mxu0 %v3996
    %4130 = vmatprep.subr.mxu0 0.0
    %4131 = vmatpush1.msra.mxu0 %v3993
    %4132 = vmatprep.subr.mxu0 0.0
    %4133 = vmatpush1.msra.mxu0 %v3990
    %4134 = vmatprep.subr.mxu0 0.0
    %4135 = vmatpush1.msra.mxu0 %v3987
    %4136 = vmatprep.subr.mxu0 0.0
    %4137 = vmatpush2.msra.mxu0 0.0
    %4138 = vmatprep.subr.mxu0 0.0
    %4139 = vmatpush2.msra.mxu0 0.0
    %4140 = vmatprep.subr.mxu0 0.0
    %4141 = vmatpush2.msra.mxu0 0.0
    %4142 = vmatprep.subr.mxu0 0.0
    %4143 = vmatpush2.msra.mxu0 0.0
    %4144 = vmatprep.subr.mxu0 0.0
    %4145 = vmatpush2.msra.mxu0 0.0
    %4146 = vmatprep.subr.mxu0 0.0
    %4147 = vmatpush2.msra.mxu0 0.0
    %4148 = vmatprep.subr.mxu0 0.0
    %4149 = vmatpush2.msra.mxu0 0.0
    %4150 = vmatprep.subr.mxu0 0.0
    %4151 = vmatpush2.msra.mxu0 0.0
    %4152 = vmatprep.subr.mxu0 0.0
    %4153 = vmatpush2.msra.mxu0 0.0
    %4154 = vmatprep.subr.mxu0 0.0
    %4155 = vmatpush2.msra.mxu0 0.0
    %4156 = vmatprep.subr.mxu0 0.0
    %4157 = vmatpush2.msra.mxu0 0.0
    %4158 = vmatprep.subr.mxu0 0.0
    %4159 = vmatpush2.msra.mxu0 0.0
    %4160 = vmatprep.subr.mxu0 0.0
    %4161 = vmatpush2.msra.mxu0 0.0
    %4162 = vmatprep.subr.mxu0 0.0
    %4163 = vmatpush2.msra.mxu0 0.0
    %4164 = vmatprep.subr.mxu0 0.0
    %4165 = vmatpush2.msra.mxu0 0.0
    %4166 = vmatprep.subr.mxu0 0.0
    %4167 = vmatpush2.msra.mxu0 0.0
    %4168 = vmatprep.mubr.f32.mxu0 0.0
    %4169 = vmatmul.mubr.f32.gmra.mxu0 %v3554
    %v4170 = vpop.f32.mrf.mxu0
    %v4171 = vadd.f32 0.0, %v4170
    %v4172 = vpop.f32.mrf.mxu0
    %4173 = vdwg.mxu0
    %v4174 = vld [vmem:[%s3] sm:$0x1]
    %v4175 = vadd.f32 %v3982, %v4100
    %v4176 = vxor.u32 %v4175, 2147483648
    %v4177 = vmul.f32 %v4176, 1.442695
    %v4178 = vpow.pop %v4177
    %v4179 = vadd.f32 %v4178, 1.0
    %v4180 = vrcp.pop %v4179
    %v4181 = vmul.f32 1.0, %v4180
    %v4182 = vadd.f32 %v3983, %v4102
    %v4183 = vxor.u32 %v4182, 2147483648
    %v4184 = vmul.f32 %v4183, 1.442695
    %v4185 = vpow.pop %v4184
    %v4186 = vadd.f32 %v4185, 1.0
    %v4187 = vrcp.pop %v4186
    %v4188 = vmul.f32 1.0, %v4187
    %v4190 = vlaneseq
    %v4191 = vshrl.u32 %v4190, 7
    %v4192 = vsub.s32 0, %v4191
    %v4193 = vrot.slane %v4174, %v4192
    %v4195 = vadd.f32 %v4171, %v4193
    %v4196 = vmul.f32 %v4181, %v4195
    %v4197 = vadd.f32 %v3984, %v4196
    %v4198 = vtanh.pop %v4197
    %v4199 = vsub.f32 1.0, %v4188
    %v4200 = vmul.f32 %v4199, %v4198
    %v4201 = vmul.f32 %v4188, %v3554
    %v4202 = vadd.f32 %v4200, %v4201
    %v4203 = vld [vmem:[#allocation8] sm:$0xff]
    %v4204 = vld [vmem:[#allocation8 + $0x8] sm:$0xff]
    %v4205 = vld [vmem:[#allocation8 + $0x10] sm:$0xff]
    %v4206 = vld [vmem:[#allocation8 + $0x18] sm:$0xff]
    %v4207 = vld [vmem:[#allocation8 + $0x20] sm:$0xff]
    %v4208 = vld [vmem:[#allocation8 + $0x28] sm:$0xff]
    %v4209 = vld [vmem:[#allocation8 + $0x30] sm:$0xff]
    %v4210 = vld [vmem:[#allocation8 + $0x38] sm:$0xff]
    %v4211 = vld [vmem:[#allocation8 + $0x40] sm:$0xff]
    %v4212 = vld [vmem:[#allocation8 + $0x48] sm:$0xff]
    %v4213 = vld [vmem:[#allocation8 + $0x50] sm:$0xff]
    %v4214 = vld [vmem:[#allocation8 + $0x58] sm:$0xff]
    %v4215 = vld [vmem:[#allocation8 + $0x60] sm:$0xff]
    %v4216 = vld [vmem:[#allocation8 + $0x68] sm:$0xff]
    %v4217 = vld [vmem:[#allocation8 + $0x70] sm:$0xff]
    %v4218 = vld [vmem:[#allocation8 + $0x78] sm:$0xff]
    %v4219 = vld [vmem:[#allocation8 + $0x80] sm:$0xff]
    %v4220 = vld [vmem:[#allocation8 + $0x88] sm:$0xff]
    %v4221 = vld [vmem:[#allocation8 + $0x90] sm:$0xff]
    %v4222 = vld [vmem:[#allocation8 + $0x98] sm:$0xff]
    %v4223 = vld [vmem:[#allocation8 + $0xa0] sm:$0xff]
    %v4224 = vld [vmem:[#allocation8 + $0xa8] sm:$0xff]
    %v4225 = vld [vmem:[#allocation8 + $0xb0] sm:$0xff]
    %v4226 = vld [vmem:[#allocation8 + $0xb8] sm:$0xff]
    %v4227 = vld [vmem:[#allocation8 + $0xc0] sm:$0xff]
    %v4228 = vld [vmem:[#allocation8 + $0xc8] sm:$0xff]
    %v4229 = vld [vmem:[#allocation8 + $0xd0] sm:$0xff]
    %v4230 = vld [vmem:[#allocation8 + $0xd8] sm:$0xff]
    %v4231 = vld [vmem:[#allocation8 + $0xe0] sm:$0xff]
    %v4232 = vld [vmem:[#allocation8 + $0xe8] sm:$0xff]
    %v4233 = vld [vmem:[#allocation8 + $0xf0] sm:$0xff]
    %v4234 = vld [vmem:[#allocation8 + $0xf8] sm:$0xff]
    %v4235 = vld [vmem:[#allocation8 + $0x100] sm:$0xff]
    %v4236 = vld [vmem:[#allocation8 + $0x108] sm:$0xff]
    %v4237 = vld [vmem:[#allocation8 + $0x110] sm:$0xff]
    %v4238 = vld [vmem:[#allocation8 + $0x118] sm:$0xff]
    %v4239 = vld [vmem:[#allocation8 + $0x120] sm:$0xff]
    %v4240 = vld [vmem:[#allocation8 + $0x128] sm:$0xff]
    %v4241 = vld [vmem:[#allocation8 + $0x130] sm:$0xff]
    %v4242 = vld [vmem:[#allocation8 + $0x138] sm:$0xff]
    %v4243 = vld [vmem:[#allocation8 + $0x140] sm:$0xff]
    %v4244 = vld [vmem:[#allocation8 + $0x148] sm:$0xff]
    %v4245 = vld [vmem:[#allocation8 + $0x150] sm:$0xff]
    %v4246 = vld [vmem:[#allocation8 + $0x158] sm:$0xff]
    %v4247 = vld [vmem:[#allocation8 + $0x160] sm:$0xff]
    %v4248 = vld [vmem:[#allocation8 + $0x168] sm:$0xff]
    %v4249 = vld [vmem:[#allocation8 + $0x170] sm:$0xff]
    %v4250 = vld [vmem:[#allocation8 + $0x178] sm:$0xff]
    %v4251 = vld [vmem:[%s5] sm:$0x7]
    %v4253 = vlaneseq
    %v4254 = vshrl.u32 %v4253, 7
    %v4255 = vsub.s32 0, %v4254
    %v4256 = vrot.slane %v4251, %v4255
    %v4257 = vlaneseq
    %v4258 = vshrl.u32 %v4257, 7
    %v4259 = vsub.s32 1, %v4258
    %v4260 = vrot.slane %v4251, %v4259
    %v4261 = vlaneseq
    %v4262 = vshrl.u32 %v4261, 7
    %v4263 = vsub.s32 2, %v4262
    %v4264 = vrot.slane %v4251, %v4263
    %4268 = vmatprep.subr.mxu0 %v4249
    %4269 = vmatpush1.msra.mxu0 %v4248
    %4270 = vmatprep.subr.mxu0 %v4246
    %4271 = vmatpush1.msra.mxu0 %v4245
    %4272 = vmatprep.subr.mxu0 %v4243
    %4273 = vmatpush1.msra.mxu0 %v4242
    %4274 = vmatprep.subr.mxu0 %v4240
    %4275 = vmatpush1.msra.mxu0 %v4239
    %4276 = vmatprep.subr.mxu0 %v4237
    %4277 = vmatpush1.msra.mxu0 %v4236
    %4278 = vmatprep.subr.mxu0 %v4234
    %4279 = vmatpush1.msra.mxu0 %v4233
    %4280 = vmatprep.subr.mxu0 %v4231
    %4281 = vmatpush1.msra.mxu0 %v4230
    %4282 = vmatprep.subr.mxu0 %v4228
    %4283 = vmatpush1.msra.mxu0 %v4227
    %4284 = vmatprep.subr.mxu0 %v4225
    %4285 = vmatpush1.msra.mxu0 %v4224
    %4286 = vmatprep.subr.mxu0 %v4222
    %4287 = vmatpush1.msra.mxu0 %v4221
    %4288 = vmatprep.subr.mxu0 %v4219
    %4289 = vmatpush1.msra.mxu0 %v4218
    %4290 = vmatprep.subr.mxu0 %v4216
    %4291 = vmatpush1.msra.mxu0 %v4215
    %4292 = vmatprep.subr.mxu0 %v4213
    %4293 = vmatpush1.msra.mxu0 %v4212
    %4294 = vmatprep.subr.mxu0 %v4210
    %4295 = vmatpush1.msra.mxu0 %v4209
    %4296 = vmatprep.subr.mxu0 %v4207
    %4297 = vmatpush1.msra.mxu0 %v4206
    %4298 = vmatprep.subr.mxu0 %v4204
    %4299 = vmatpush1.msra.mxu0 %v4203
    %4300 = vmatprep.subr.mxu0 0.0
    %4301 = vmatpush2.msra.mxu0 0.0
    %4302 = vmatprep.subr.mxu0 0.0
    %4303 = vmatpush2.msra.mxu0 0.0
    %4304 = vmatprep.subr.mxu0 0.0
    %4305 = vmatpush2.msra.mxu0 0.0
    %4306 = vmatprep.subr.mxu0 0.0
    %4307 = vmatpush2.msra.mxu0 0.0
    %4308 = vmatprep.subr.mxu0 0.0
    %4309 = vmatpush2.msra.mxu0 0.0
    %4310 = vmatprep.subr.mxu0 0.0
    %4311 = vmatpush2.msra.mxu0 0.0
    %4312 = vmatprep.subr.mxu0 0.0
    %4313 = vmatpush2.msra.mxu0 0.0
    %4314 = vmatprep.subr.mxu0 0.0
    %4315 = vmatpush2.msra.mxu0 0.0
    %4316 = vmatprep.subr.mxu0 0.0
    %4317 = vmatpush2.msra.mxu0 0.0
    %4318 = vmatprep.subr.mxu0 0.0
    %4319 = vmatpush2.msra.mxu0 0.0
    %4320 = vmatprep.subr.mxu0 0.0
    %4321 = vmatpush2.msra.mxu0 0.0
    %4322 = vmatprep.subr.mxu0 0.0
    %4323 = vmatpush2.msra.mxu0 0.0
    %4324 = vmatprep.subr.mxu0 0.0
    %4325 = vmatpush2.msra.mxu0 0.0
    %4326 = vmatprep.subr.mxu0 0.0
    %4327 = vmatpush2.msra.mxu0 0.0
    %4328 = vmatprep.subr.mxu0 0.0
    %4329 = vmatpush2.msra.mxu0 0.0
    %4330 = vmatprep.subr.mxu0 0.0
    %4331 = vmatpush2.msra.mxu0 0.0
    %4332 = vmatprep.mubr.f32.mxu0 0.0
    %4333 = vmatmul.mubr.f32.gmra.mxu0 %v4202
    %v4334 = vpop.f32.mrf.mxu0
    %v4335 = vadd.f32 %v4256, %v4334
    %v4336 = vpop.f32.mrf.mxu0
    %v4337 = vadd.f32 %v4260, %v4336
    %4338 = vdwg.mxu0
    %4339 = vmatprep.subr.mxu0 0.0
    %4340 = vmatpush1.msra.mxu0 %v4250
    %4341 = vmatprep.subr.mxu0 0.0
    %4342 = vmatpush1.msra.mxu0 %v4247
    %4343 = vmatprep.subr.mxu0 0.0
    %4344 = vmatpush1.msra.mxu0 %v4244
    %4345 = vmatprep.subr.mxu0 0.0
    %4346 = vmatpush1.msra.mxu0 %v4241
    %4347 = vmatprep.subr.mxu0 0.0
    %4348 = vmatpush1.msra.mxu0 %v4238
    %4349 = vmatprep.subr.mxu0 0.0
    %4350 = vmatpush1.msra.mxu0 %v4235
    %4351 = vmatprep.subr.mxu0 0.0
    %4352 = vmatpush1.msra.mxu0 %v4232
    %4353 = vmatprep.subr.mxu0 0.0
    %4354 = vmatpush1.msra.mxu0 %v4229
    %4355 = vmatprep.subr.mxu0 0.0
    %4356 = vmatpush1.msra.mxu0 %v4226
    %4357 = vmatprep.subr.mxu0 0.0
    %4358 = vmatpush1.msra.mxu0 %v4223
    %4359 = vmatprep.subr.mxu0 0.0
    %4360 = vmatpush1.msra.mxu0 %v4220
    %4361 = vmatprep.subr.mxu0 0.0
    %4362 = vmatpush1.msra.mxu0 %v4217
    %4363 = vmatprep.subr.mxu0 0.0
    %4364 = vmatpush1.msra.mxu0 %v4214
    %4365 = vmatprep.subr.mxu0 0.0
    %4366 = vmatpush1.msra.mxu0 %v4211
    %4367 = vmatprep.subr.mxu0 0.0
    %4368 = vmatpush1.msra.mxu0 %v4208
    %4369 = vmatprep.subr.mxu0 0.0
    %4370 = vmatpush1.msra.mxu0 %v4205
    %4371 = vmatprep.subr.mxu0 0.0
    %4372 = vmatpush2.msra.mxu0 0.0
    %4373 = vmatprep.subr.mxu0 0.0
    %4374 = vmatpush2.msra.mxu0 0.0
    %4375 = vmatprep.subr.mxu0 0.0
    %4376 = vmatpush2.msra.mxu0 0.0
    %4377 = vmatprep.subr.mxu0 0.0
    %4378 = vmatpush2.msra.mxu0 0.0
    %4379 = vmatprep.subr.mxu0 0.0
    %4380 = vmatpush2.msra.mxu0 0.0
    %4381 = vmatprep.subr.mxu0 0.0
    %4382 = vmatpush2.msra.mxu0 0.0
    %4383 = vmatprep.subr.mxu0 0.0
    %4384 = vmatpush2.msra.mxu0 0.0
    %4385 = vmatprep.subr.mxu0 0.0
    %4386 = vmatpush2.msra.mxu0 0.0
    %4387 = vmatprep.subr.mxu0 0.0
    %4388 = vmatpush2.msra.mxu0 0.0
    %4389 = vmatprep.subr.mxu0 0.0
    %4390 = vmatpush2.msra.mxu0 0.0
    %4391 = vmatprep.subr.mxu0 0.0
    %4392 = vmatpush2.msra.mxu0 0.0
    %4393 = vmatprep.subr.mxu0 0.0
    %4394 = vmatpush2.msra.mxu0 0.0
    %4395 = vmatprep.subr.mxu0 0.0
    %4396 = vmatpush2.msra.mxu0 0.0
    %4397 = vmatprep.subr.mxu0 0.0
    %4398 = vmatpush2.msra.mxu0 0.0
    %4399 = vmatprep.subr.mxu0 0.0
    %4400 = vmatpush2.msra.mxu0 0.0
    %4401 = vmatprep.subr.mxu0 0.0
    %4402 = vmatpush2.msra.mxu0 0.0
    %4403 = vmatprep.mubr.f32.mxu0 0.0
    %4404 = vmatmul.mubr.f32.gmra.mxu0 %v4202
    %v4405 = vpop.f32.mrf.mxu0
    %v4406 = vadd.f32 %v4264, %v4405
    %v4407 = vpop.f32.mrf.mxu0
    %4408 = vdwg.mxu0
    %v4409 = vld [vmem:[%s520] sm:$0xff]
    %v4410 = vld [vmem:[%s520 + $0x8] sm:$0xff]
    %v4411 = vld [vmem:[%s520 + $0x10] sm:$0xff]
    %v4412 = vld [vmem:[%s520 + $0x18] sm:$0xff]
    %v4413 = vld [vmem:[%s520 + $0x20] sm:$0xff]
    %v4414 = vld [vmem:[%s520 + $0x28] sm:$0xff]
    %v4415 = vld [vmem:[%s520 + $0x30] sm:$0xff]
    %v4416 = vld [vmem:[%s520 + $0x38] sm:$0xff]
    %v4417 = vld [vmem:[%s520 + $0x40] sm:$0xff]
    %v4418 = vld [vmem:[%s520 + $0x48] sm:$0xff]
    %v4419 = vld [vmem:[%s520 + $0x50] sm:$0xff]
    %v4420 = vld [vmem:[%s520 + $0x58] sm:$0xff]
    %v4421 = vld [vmem:[%s520 + $0x60] sm:$0xff]
    %v4422 = vld [vmem:[%s520 + $0x68] sm:$0xff]
    %v4423 = vld [vmem:[%s520 + $0x70] sm:$0xff]
    %v4424 = vld [vmem:[%s520 + $0x78] sm:$0xff]
    %v4425 = vld [vmem:[%s520 + $0x80] sm:$0xff]
    %v4426 = vld [vmem:[%s520 + $0x88] sm:$0xff]
    %v4427 = vld [vmem:[%s520 + $0x90] sm:$0xff]
    %v4428 = vld [vmem:[%s520 + $0x98] sm:$0xff]
    %v4429 = vld [vmem:[%s520 + $0xa0] sm:$0xff]
    %v4430 = vld [vmem:[%s520 + $0xa8] sm:$0xff]
    %v4431 = vld [vmem:[%s520 + $0xb0] sm:$0xff]
    %v4432 = vld [vmem:[%s520 + $0xb8] sm:$0xff]
    %v4433 = vld [vmem:[%s520 + $0xc0] sm:$0xff]
    %v4434 = vld [vmem:[%s520 + $0xc8] sm:$0xff]
    %v4435 = vld [vmem:[%s520 + $0xd0] sm:$0xff]
    %v4436 = vld [vmem:[%s520 + $0xd8] sm:$0xff]
    %v4437 = vld [vmem:[%s520 + $0xe0] sm:$0xff]
    %v4438 = vld [vmem:[%s520 + $0xe8] sm:$0xff]
    %v4439 = vld [vmem:[%s520 + $0xf0] sm:$0xff]
    %v4440 = vld [vmem:[%s520 + $0xf8] sm:$0xff]
    %v4441 = vld [vmem:[%s520 + $0x100] sm:$0xff]
    %v4442 = vld [vmem:[%s520 + $0x108] sm:$0xff]
    %v4443 = vld [vmem:[%s520 + $0x110] sm:$0xff]
    %v4444 = vld [vmem:[%s520 + $0x118] sm:$0xff]
    %v4445 = vld [vmem:[%s520 + $0x120] sm:$0xff]
    %v4446 = vld [vmem:[%s520 + $0x128] sm:$0xff]
    %v4447 = vld [vmem:[%s520 + $0x130] sm:$0xff]
    %v4448 = vld [vmem:[%s520 + $0x138] sm:$0xff]
    %v4449 = vld [vmem:[%s520 + $0x140] sm:$0xff]
    %v4450 = vld [vmem:[%s520 + $0x148] sm:$0xff]
    %v4451 = vld [vmem:[%s520 + $0x150] sm:$0xff]
    %v4452 = vld [vmem:[%s520 + $0x158] sm:$0xff]
    %v4453 = vld [vmem:[%s520 + $0x160] sm:$0xff]
    %v4454 = vld [vmem:[%s520 + $0x168] sm:$0xff]
    %v4455 = vld [vmem:[%s520 + $0x170] sm:$0xff]
    %v4456 = vld [vmem:[%s520 + $0x178] sm:$0xff]
    %4457 = vmatprep.subr.mxu0 %v4455
    %4458 = vmatpush1.msra.mxu0 %v4454
    %4459 = vmatprep.subr.mxu0 %v4452
    %4460 = vmatpush1.msra.mxu0 %v4451
    %4461 = vmatprep.subr.mxu0 %v4449
    %4462 = vmatpush1.msra.mxu0 %v4448
    %4463 = vmatprep.subr.mxu0 %v4446
    %4464 = vmatpush1.msra.mxu0 %v4445
    %4465 = vmatprep.subr.mxu0 %v4443
    %4466 = vmatpush1.msra.mxu0 %v4442
    %4467 = vmatprep.subr.mxu0 %v4440
    %4468 = vmatpush1.msra.mxu0 %v4439
    %4469 = vmatprep.subr.mxu0 %v4437
    %4470 = vmatpush1.msra.mxu0 %v4436
    %4471 = vmatprep.subr.mxu0 %v4434
    %4472 = vmatpush1.msra.mxu0 %v4433
    %4473 = vmatprep.subr.mxu0 %v4431
    %4474 = vmatpush1.msra.mxu0 %v4430
    %4475 = vmatprep.subr.mxu0 %v4428
    %4476 = vmatpush1.msra.mxu0 %v4427
    %4477 = vmatprep.subr.mxu0 %v4425
    %4478 = vmatpush1.msra.mxu0 %v4424
    %4479 = vmatprep.subr.mxu0 %v4422
    %4480 = vmatpush1.msra.mxu0 %v4421
    %4481 = vmatprep.subr.mxu0 %v4419
    %4482 = vmatpush1.msra.mxu0 %v4418
    %4483 = vmatprep.subr.mxu0 %v4416
    %4484 = vmatpush1.msra.mxu0 %v4415
    %4485 = vmatprep.subr.mxu0 %v4413
    %4486 = vmatpush1.msra.mxu0 %v4412
    %4487 = vmatprep.subr.mxu0 %v4410
    %4488 = vmatpush1.msra.mxu0 %v4409
    %4489 = vmatprep.subr.mxu0 0.0
    %4490 = vmatpush2.msra.mxu0 0.0
    %4491 = vmatprep.subr.mxu0 0.0
    %4492 = vmatpush2.msra.mxu0 0.0
    %4493 = vmatprep.subr.mxu0 0.0
    %4494 = vmatpush2.msra.mxu0 0.0
    %4495 = vmatprep.subr.mxu0 0.0
    %4496 = vmatpush2.msra.mxu0 0.0
    %4497 = vmatprep.subr.mxu0 0.0
    %4498 = vmatpush2.msra.mxu0 0.0
    %4499 = vmatprep.subr.mxu0 0.0
    %4500 = vmatpush2.msra.mxu0 0.0
    %4501 = vmatprep.subr.mxu0 0.0
    %4502 = vmatpush2.msra.mxu0 0.0
    %4503 = vmatprep.subr.mxu0 0.0
    %4504 = vmatpush2.msra.mxu0 0.0
    %4505 = vmatprep.subr.mxu0 0.0
    %4506 = vmatpush2.msra.mxu0 0.0
    %4507 = vmatprep.subr.mxu0 0.0
    %4508 = vmatpush2.msra.mxu0 0.0
    %4509 = vmatprep.subr.mxu0 0.0
    %4510 = vmatpush2.msra.mxu0 0.0
    %4511 = vmatprep.subr.mxu0 0.0
    %4512 = vmatpush2.msra.mxu0 0.0
    %4513 = vmatprep.subr.mxu0 0.0
    %4514 = vmatpush2.msra.mxu0 0.0
    %4515 = vmatprep.subr.mxu0 0.0
    %4516 = vmatpush2.msra.mxu0 0.0
    %4517 = vmatprep.subr.mxu0 0.0
    %4518 = vmatpush2.msra.mxu0 0.0
    %4519 = vmatprep.subr.mxu0 0.0
    %4520 = vmatpush2.msra.mxu0 0.0
    %4521 = vmatprep.mubr.f32.mxu0 0.0
    %4522 = vmatmul.mubr.f32.gmra.mxu0 %v3978
    %v4523 = vpop.f32.mrf.mxu0
    %v4524 = vadd.f32 0.0, %v4523
    %v4525 = vpop.f32.mrf.mxu0
    %v4526 = vadd.f32 0.0, %v4525
    %4527 = vdwg.mxu0
    %4528 = vmatprep.subr.mxu0 0.0
    %4529 = vmatpush1.msra.mxu0 %v4456
    %4530 = vmatprep.subr.mxu0 0.0
    %4531 = vmatpush1.msra.mxu0 %v4453
    %4532 = vmatprep.subr.mxu0 0.0
    %4533 = vmatpush1.msra.mxu0 %v4450
    %4534 = vmatprep.subr.mxu0 0.0
    %4535 = vmatpush1.msra.mxu0 %v4447
    %4536 = vmatprep.subr.mxu0 0.0
    %4537 = vmatpush1.msra.mxu0 %v4444
    %4538 = vmatprep.subr.mxu0 0.0
    %4539 = vmatpush1.msra.mxu0 %v4441
    %4540 = vmatprep.subr.mxu0 0.0
    %4541 = vmatpush1.msra.mxu0 %v4438
    %4542 = vmatprep.subr.mxu0 0.0
    %4543 = vmatpush1.msra.mxu0 %v4435
    %4544 = vmatprep.subr.mxu0 0.0
    %4545 = vmatpush1.msra.mxu0 %v4432
    %4546 = vmatprep.subr.mxu0 0.0
    %4547 = vmatpush1.msra.mxu0 %v4429
    %4548 = vmatprep.subr.mxu0 0.0
    %4549 = vmatpush1.msra.mxu0 %v4426
    %4550 = vmatprep.subr.mxu0 0.0
    %4551 = vmatpush1.msra.mxu0 %v4423
    %4552 = vmatprep.subr.mxu0 0.0
    %4553 = vmatpush1.msra.mxu0 %v4420
    %4554 = vmatprep.subr.mxu0 0.0
    %4555 = vmatpush1.msra.mxu0 %v4417
    %4556 = vmatprep.subr.mxu0 0.0
    %4557 = vmatpush1.msra.mxu0 %v4414
    %4558 = vmatprep.subr.mxu0 0.0
    %4559 = vmatpush1.msra.mxu0 %v4411
    %4560 = vmatprep.subr.mxu0 0.0
    %4561 = vmatpush2.msra.mxu0 0.0
    %4562 = vmatprep.subr.mxu0 0.0
    %4563 = vmatpush2.msra.mxu0 0.0
    %4564 = vmatprep.subr.mxu0 0.0
    %4565 = vmatpush2.msra.mxu0 0.0
    %4566 = vmatprep.subr.mxu0 0.0
    %4567 = vmatpush2.msra.mxu0 0.0
    %4568 = vmatprep.subr.mxu0 0.0
    %4569 = vmatpush2.msra.mxu0 0.0
    %4570 = vmatprep.subr.mxu0 0.0
    %4571 = vmatpush2.msra.mxu0 0.0
    %4572 = vmatprep.subr.mxu0 0.0
    %4573 = vmatpush2.msra.mxu0 0.0
    %4574 = vmatprep.subr.mxu0 0.0
    %4575 = vmatpush2.msra.mxu0 0.0
    %4576 = vmatprep.subr.mxu0 0.0
    %4577 = vmatpush2.msra.mxu0 0.0
    %4578 = vmatprep.subr.mxu0 0.0
    %4579 = vmatpush2.msra.mxu0 0.0
    %4580 = vmatprep.subr.mxu0 0.0
    %4581 = vmatpush2.msra.mxu0 0.0
    %4582 = vmatprep.subr.mxu0 0.0
    %4583 = vmatpush2.msra.mxu0 0.0
    %4584 = vmatprep.subr.mxu0 0.0
    %4585 = vmatpush2.msra.mxu0 0.0
    %4586 = vmatprep.subr.mxu0 0.0
    %4587 = vmatpush2.msra.mxu0 0.0
    %4588 = vmatprep.subr.mxu0 0.0
    %4589 = vmatpush2.msra.mxu0 0.0
    %4590 = vmatprep.subr.mxu0 0.0
    %4591 = vmatpush2.msra.mxu0 0.0
    %4592 = vmatprep.mubr.f32.mxu0 0.0
    %4593 = vmatmul.mubr.f32.gmra.mxu0 %v3978
    %v4594 = vpop.f32.mrf.mxu0
    %v4595 = vadd.f32 0.0, %v4594
    %v4596 = vpop.f32.mrf.mxu0
    %4597 = vdwg.mxu0
    %v4598 = vld [vmem:[%s710] sm:$0x1]
    %v4599 = vadd.f32 %v4335, %v4524
    %v4600 = vxor.u32 %v4599, 2147483648
    %v4601 = vmul.f32 %v4600, 1.442695
    %v4602 = vpow.pop %v4601
    %v4603 = vadd.f32 %v4602, 1.0
    %v4604 = vrcp.pop %v4603
    %v4605 = vmul.f32 1.0, %v4604
    %v4606 = vadd.f32 %v4337, %v4526
    %v4607 = vxor.u32 %v4606, 2147483648
    %v4608 = vmul.f32 %v4607, 1.442695
    %v4609 = vpow.pop %v4608
    %v4610 = vadd.f32 %v4609, 1.0
    %v4611 = vrcp.pop %v4610
    %v4612 = vmul.f32 1.0, %v4611
    %v4614 = vlaneseq
    %v4615 = vshrl.u32 %v4614, 7
    %v4616 = vsub.s32 0, %v4615
    %v4617 = vrot.slane %v4598, %v4616
    %v4619 = vadd.f32 %v4595, %v4617
    %v4620 = vmul.f32 %v4605, %v4619
    %v4621 = vadd.f32 %v4406, %v4620
    %v4622 = vtanh.pop %v4621
    %v4623 = vsub.f32 1.0, %v4612
    %v4624 = vmul.f32 %v4623, %v4622
    %v4625 = vmul.f32 %v4612, %v3978
    %v4626 = vadd.f32 %v4624, %v4625
    %s4627 = scalar_lea.vmem [#allocation10], 48
    %4628 = vst [vmem:[%s4627] sm:$0xff] %v4626
    %s4629 = scalar_lea.vmem [#allocation2], 168
    %v4630 = vld [vmem:[%s4629] sm:$0xff]
    %v4631 = vld [vmem:[%s4629 + $0x8] sm:$0xff]
    %v4632 = vld [vmem:[%s4629 + $0x10] sm:$0xff]
    %v4633 = vld [vmem:[#allocation7] sm:$0xff]
    %v4634 = vld [vmem:[#allocation7 + $0x8] sm:$0xff]
    %v4635 = vld [vmem:[#allocation7 + $0x10] sm:$0xff]
    %v4636 = vld [vmem:[#allocation7 + $0x18] sm:$0xff]
    %v4637 = vld [vmem:[#allocation7 + $0x20] sm:$0xff]
    %v4638 = vld [vmem:[#allocation7 + $0x28] sm:$0xff]
    %v4639 = vld [vmem:[#allocation7 + $0x30] sm:$0xff]
    %v4640 = vld [vmem:[#allocation7 + $0x38] sm:$0xff]
    %v4641 = vld [vmem:[#allocation7 + $0x40] sm:$0xff]
    %v4642 = vld [vmem:[#allocation7 + $0x48] sm:$0xff]
    %v4643 = vld [vmem:[#allocation7 + $0x50] sm:$0xff]
    %v4644 = vld [vmem:[#allocation7 + $0x58] sm:$0xff]
    %v4645 = vld [vmem:[#allocation7 + $0x60] sm:$0xff]
    %v4646 = vld [vmem:[#allocation7 + $0x68] sm:$0xff]
    %v4647 = vld [vmem:[#allocation7 + $0x70] sm:$0xff]
    %v4648 = vld [vmem:[#allocation7 + $0x78] sm:$0xff]
    %v4649 = vld [vmem:[#allocation7 + $0x80] sm:$0xff]
    %v4650 = vld [vmem:[#allocation7 + $0x88] sm:$0xff]
    %v4651 = vld [vmem:[#allocation7 + $0x90] sm:$0xff]
    %v4652 = vld [vmem:[#allocation7 + $0x98] sm:$0xff]
    %v4653 = vld [vmem:[#allocation7 + $0xa0] sm:$0xff]
    %v4654 = vld [vmem:[#allocation7 + $0xa8] sm:$0xff]
    %v4655 = vld [vmem:[#allocation7 + $0xb0] sm:$0xff]
    %v4656 = vld [vmem:[#allocation7 + $0xb8] sm:$0xff]
    %v4657 = vld [vmem:[#allocation7 + $0xc0] sm:$0xff]
    %v4658 = vld [vmem:[#allocation7 + $0xc8] sm:$0xff]
    %v4659 = vld [vmem:[#allocation7 + $0xd0] sm:$0xff]
    %v4660 = vld [vmem:[#allocation7 + $0xd8] sm:$0xff]
    %v4661 = vld [vmem:[#allocation7 + $0xe0] sm:$0xff]
    %v4662 = vld [vmem:[#allocation7 + $0xe8] sm:$0xff]
    %v4663 = vld [vmem:[#allocation7 + $0xf0] sm:$0xff]
    %v4664 = vld [vmem:[#allocation7 + $0xf8] sm:$0xff]
    %v4665 = vld [vmem:[#allocation7 + $0x100] sm:$0xff]
    %v4666 = vld [vmem:[#allocation7 + $0x108] sm:$0xff]
    %v4667 = vld [vmem:[#allocation7 + $0x110] sm:$0xff]
    %v4668 = vld [vmem:[#allocation7 + $0x118] sm:$0xff]
    %v4669 = vld [vmem:[#allocation7 + $0x120] sm:$0xff]
    %v4670 = vld [vmem:[#allocation7 + $0x128] sm:$0xff]
    %v4671 = vld [vmem:[#allocation7 + $0x130] sm:$0xff]
    %v4672 = vld [vmem:[#allocation7 + $0x138] sm:$0xff]
    %v4673 = vld [vmem:[#allocation7 + $0x140] sm:$0xff]
    %v4674 = vld [vmem:[#allocation7 + $0x148] sm:$0xff]
    %v4675 = vld [vmem:[#allocation7 + $0x150] sm:$0xff]
    %v4676 = vld [vmem:[#allocation7 + $0x158] sm:$0xff]
    %v4677 = vld [vmem:[#allocation7 + $0x160] sm:$0xff]
    %v4678 = vld [vmem:[#allocation7 + $0x168] sm:$0xff]
    %v4679 = vld [vmem:[#allocation7 + $0x170] sm:$0xff]
    %v4680 = vld [vmem:[#allocation7 + $0x178] sm:$0xff]
    %4681 = vmatprep.subr.mxu0 %v4679
    %4682 = vmatpush1.msra.mxu0 %v4678
    %4683 = vmatprep.subr.mxu0 %v4676
    %4684 = vmatpush1.msra.mxu0 %v4675
    %4685 = vmatprep.subr.mxu0 %v4673
    %4686 = vmatpush1.msra.mxu0 %v4672
    %4687 = vmatprep.subr.mxu0 %v4670
    %4688 = vmatpush1.msra.mxu0 %v4669
    %4689 = vmatprep.subr.mxu0 %v4667
    %4690 = vmatpush1.msra.mxu0 %v4666
    %4691 = vmatprep.subr.mxu0 %v4664
    %4692 = vmatpush1.msra.mxu0 %v4663
    %4693 = vmatprep.subr.mxu0 %v4661
    %4694 = vmatpush1.msra.mxu0 %v4660
    %4695 = vmatprep.subr.mxu0 %v4658
    %4696 = vmatpush1.msra.mxu0 %v4657
    %4697 = vmatprep.subr.mxu0 %v4655
    %4698 = vmatpush1.msra.mxu0 %v4654
    %4699 = vmatprep.subr.mxu0 %v4652
    %4700 = vmatpush1.msra.mxu0 %v4651
    %4701 = vmatprep.subr.mxu0 %v4649
    %4702 = vmatpush1.msra.mxu0 %v4648
    %4703 = vmatprep.subr.mxu0 %v4646
    %4704 = vmatpush1.msra.mxu0 %v4645
    %4705 = vmatprep.subr.mxu0 %v4643
    %4706 = vmatpush1.msra.mxu0 %v4642
    %4707 = vmatprep.subr.mxu0 %v4640
    %4708 = vmatpush1.msra.mxu0 %v4639
    %4709 = vmatprep.subr.mxu0 %v4637
    %4710 = vmatpush1.msra.mxu0 %v4636
    %4711 = vmatprep.subr.mxu0 %v4634
    %4712 = vmatpush1.msra.mxu0 %v4633
    %4713 = vmatprep.subr.mxu0 0.0
    %4714 = vmatpush2.msra.mxu0 0.0
    %4715 = vmatprep.subr.mxu0 0.0
    %4716 = vmatpush2.msra.mxu0 0.0
    %4717 = vmatprep.subr.mxu0 0.0
    %4718 = vmatpush2.msra.mxu0 0.0
    %4719 = vmatprep.subr.mxu0 0.0
    %4720 = vmatpush2.msra.mxu0 0.0
    %4721 = vmatprep.subr.mxu0 0.0
    %4722 = vmatpush2.msra.mxu0 0.0
    %4723 = vmatprep.subr.mxu0 0.0
    %4724 = vmatpush2.msra.mxu0 0.0
    %4725 = vmatprep.subr.mxu0 0.0
    %4726 = vmatpush2.msra.mxu0 0.0
    %4727 = vmatprep.subr.mxu0 0.0
    %4728 = vmatpush2.msra.mxu0 0.0
    %4729 = vmatprep.subr.mxu0 0.0
    %4730 = vmatpush2.msra.mxu0 0.0
    %4731 = vmatprep.subr.mxu0 0.0
    %4732 = vmatpush2.msra.mxu0 0.0
    %4733 = vmatprep.subr.mxu0 0.0
    %4734 = vmatpush2.msra.mxu0 0.0
    %4735 = vmatprep.subr.mxu0 0.0
    %4736 = vmatpush2.msra.mxu0 0.0
    %4737 = vmatprep.subr.mxu0 0.0
    %4738 = vmatpush2.msra.mxu0 0.0
    %4739 = vmatprep.subr.mxu0 0.0
    %4740 = vmatpush2.msra.mxu0 0.0
    %4741 = vmatprep.subr.mxu0 0.0
    %4742 = vmatpush2.msra.mxu0 0.0
    %4743 = vmatprep.subr.mxu0 0.0
    %4744 = vmatpush2.msra.mxu0 0.0
    %4745 = vmatprep.mubr.f32.mxu0 0.0
    %4746 = vmatmul.mubr.f32.gmra.mxu0 %v4202
    %v4747 = vpop.f32.mrf.mxu0
    %v4748 = vadd.f32 0.0, %v4747
    %v4749 = vpop.f32.mrf.mxu0
    %v4750 = vadd.f32 0.0, %v4749
    %4751 = vdwg.mxu0
    %4752 = vmatprep.subr.mxu0 0.0
    %4753 = vmatpush1.msra.mxu0 %v4680
    %4754 = vmatprep.subr.mxu0 0.0
    %4755 = vmatpush1.msra.mxu0 %v4677
    %4756 = vmatprep.subr.mxu0 0.0
    %4757 = vmatpush1.msra.mxu0 %v4674
    %4758 = vmatprep.subr.mxu0 0.0
    %4759 = vmatpush1.msra.mxu0 %v4671
    %4760 = vmatprep.subr.mxu0 0.0
    %4761 = vmatpush1.msra.mxu0 %v4668
    %4762 = vmatprep.subr.mxu0 0.0
    %4763 = vmatpush1.msra.mxu0 %v4665
    %4764 = vmatprep.subr.mxu0 0.0
    %4765 = vmatpush1.msra.mxu0 %v4662
    %4766 = vmatprep.subr.mxu0 0.0
    %4767 = vmatpush1.msra.mxu0 %v4659
    %4768 = vmatprep.subr.mxu0 0.0
    %4769 = vmatpush1.msra.mxu0 %v4656
    %4770 = vmatprep.subr.mxu0 0.0
    %4771 = vmatpush1.msra.mxu0 %v4653
    %4772 = vmatprep.subr.mxu0 0.0
    %4773 = vmatpush1.msra.mxu0 %v4650
    %4774 = vmatprep.subr.mxu0 0.0
    %4775 = vmatpush1.msra.mxu0 %v4647
    %4776 = vmatprep.subr.mxu0 0.0
    %4777 = vmatpush1.msra.mxu0 %v4644
    %4778 = vmatprep.subr.mxu0 0.0
    %4779 = vmatpush1.msra.mxu0 %v4641
    %4780 = vmatprep.subr.mxu0 0.0
    %4781 = vmatpush1.msra.mxu0 %v4638
    %4782 = vmatprep.subr.mxu0 0.0
    %4783 = vmatpush1.msra.mxu0 %v4635
    %4784 = vmatprep.subr.mxu0 0.0
    %4785 = vmatpush2.msra.mxu0 0.0
    %4786 = vmatprep.subr.mxu0 0.0
    %4787 = vmatpush2.msra.mxu0 0.0
    %4788 = vmatprep.subr.mxu0 0.0
    %4789 = vmatpush2.msra.mxu0 0.0
    %4790 = vmatprep.subr.mxu0 0.0
    %4791 = vmatpush2.msra.mxu0 0.0
    %4792 = vmatprep.subr.mxu0 0.0
    %4793 = vmatpush2.msra.mxu0 0.0
    %4794 = vmatprep.subr.mxu0 0.0
    %4795 = vmatpush2.msra.mxu0 0.0
    %4796 = vmatprep.subr.mxu0 0.0
    %4797 = vmatpush2.msra.mxu0 0.0
    %4798 = vmatprep.subr.mxu0 0.0
    %4799 = vmatpush2.msra.mxu0 0.0
    %4800 = vmatprep.subr.mxu0 0.0
    %4801 = vmatpush2.msra.mxu0 0.0
    %4802 = vmatprep.subr.mxu0 0.0
    %4803 = vmatpush2.msra.mxu0 0.0
    %4804 = vmatprep.subr.mxu0 0.0
    %4805 = vmatpush2.msra.mxu0 0.0
    %4806 = vmatprep.subr.mxu0 0.0
    %4807 = vmatpush2.msra.mxu0 0.0
    %4808 = vmatprep.subr.mxu0 0.0
    %4809 = vmatpush2.msra.mxu0 0.0
    %4810 = vmatprep.subr.mxu0 0.0
    %4811 = vmatpush2.msra.mxu0 0.0
    %4812 = vmatprep.subr.mxu0 0.0
    %4813 = vmatpush2.msra.mxu0 0.0
    %4814 = vmatprep.subr.mxu0 0.0
    %4815 = vmatpush2.msra.mxu0 0.0
    %4816 = vmatprep.mubr.f32.mxu0 0.0
    %4817 = vmatmul.mubr.f32.gmra.mxu0 %v4202
    %v4818 = vpop.f32.mrf.mxu0
    %v4819 = vadd.f32 0.0, %v4818
    %v4820 = vpop.f32.mrf.mxu0
    %4821 = vdwg.mxu0
    %v4822 = vld [vmem:[%s3] sm:$0x1]
    %v4823 = vadd.f32 %v4630, %v4748
    %v4824 = vxor.u32 %v4823, 2147483648
    %v4825 = vmul.f32 %v4824, 1.442695
    %v4826 = vpow.pop %v4825
    %v4827 = vadd.f32 %v4826, 1.0
    %v4828 = vrcp.pop %v4827
    %v4829 = vmul.f32 1.0, %v4828
    %v4830 = vadd.f32 %v4631, %v4750
    %v4831 = vxor.u32 %v4830, 2147483648
    %v4832 = vmul.f32 %v4831, 1.442695
    %v4833 = vpow.pop %v4832
    %v4834 = vadd.f32 %v4833, 1.0
    %v4835 = vrcp.pop %v4834
    %v4836 = vmul.f32 1.0, %v4835
    %v4838 = vlaneseq
    %v4839 = vshrl.u32 %v4838, 7
    %v4840 = vsub.s32 0, %v4839
    %v4841 = vrot.slane %v4822, %v4840
    %v4843 = vadd.f32 %v4819, %v4841
    %v4844 = vmul.f32 %v4829, %v4843
    %v4845 = vadd.f32 %v4632, %v4844
    %v4846 = vtanh.pop %v4845
    %v4847 = vsub.f32 1.0, %v4836
    %v4848 = vmul.f32 %v4847, %v4846
    %v4849 = vmul.f32 %v4836, %v4202
    %v4850 = vadd.f32 %v4848, %v4849
    %v4851 = vld [vmem:[#allocation8] sm:$0xff]
    %v4852 = vld [vmem:[#allocation8 + $0x8] sm:$0xff]
    %v4853 = vld [vmem:[#allocation8 + $0x10] sm:$0xff]
    %v4854 = vld [vmem:[#allocation8 + $0x18] sm:$0xff]
    %v4855 = vld [vmem:[#allocation8 + $0x20] sm:$0xff]
    %v4856 = vld [vmem:[#allocation8 + $0x28] sm:$0xff]
    %v4857 = vld [vmem:[#allocation8 + $0x30] sm:$0xff]
    %v4858 = vld [vmem:[#allocation8 + $0x38] sm:$0xff]
    %v4859 = vld [vmem:[#allocation8 + $0x40] sm:$0xff]
    %v4860 = vld [vmem:[#allocation8 + $0x48] sm:$0xff]
    %v4861 = vld [vmem:[#allocation8 + $0x50] sm:$0xff]
    %v4862 = vld [vmem:[#allocation8 + $0x58] sm:$0xff]
    %v4863 = vld [vmem:[#allocation8 + $0x60] sm:$0xff]
    %v4864 = vld [vmem:[#allocation8 + $0x68] sm:$0xff]
    %v4865 = vld [vmem:[#allocation8 + $0x70] sm:$0xff]
    %v4866 = vld [vmem:[#allocation8 + $0x78] sm:$0xff]
    %v4867 = vld [vmem:[#allocation8 + $0x80] sm:$0xff]
    %v4868 = vld [vmem:[#allocation8 + $0x88] sm:$0xff]
    %v4869 = vld [vmem:[#allocation8 + $0x90] sm:$0xff]
    %v4870 = vld [vmem:[#allocation8 + $0x98] sm:$0xff]
    %v4871 = vld [vmem:[#allocation8 + $0xa0] sm:$0xff]
    %v4872 = vld [vmem:[#allocation8 + $0xa8] sm:$0xff]
    %v4873 = vld [vmem:[#allocation8 + $0xb0] sm:$0xff]
    %v4874 = vld [vmem:[#allocation8 + $0xb8] sm:$0xff]
    %v4875 = vld [vmem:[#allocation8 + $0xc0] sm:$0xff]
    %v4876 = vld [vmem:[#allocation8 + $0xc8] sm:$0xff]
    %v4877 = vld [vmem:[#allocation8 + $0xd0] sm:$0xff]
    %v4878 = vld [vmem:[#allocation8 + $0xd8] sm:$0xff]
    %v4879 = vld [vmem:[#allocation8 + $0xe0] sm:$0xff]
    %v4880 = vld [vmem:[#allocation8 + $0xe8] sm:$0xff]
    %v4881 = vld [vmem:[#allocation8 + $0xf0] sm:$0xff]
    %v4882 = vld [vmem:[#allocation8 + $0xf8] sm:$0xff]
    %v4883 = vld [vmem:[#allocation8 + $0x100] sm:$0xff]
    %v4884 = vld [vmem:[#allocation8 + $0x108] sm:$0xff]
    %v4885 = vld [vmem:[#allocation8 + $0x110] sm:$0xff]
    %v4886 = vld [vmem:[#allocation8 + $0x118] sm:$0xff]
    %v4887 = vld [vmem:[#allocation8 + $0x120] sm:$0xff]
    %v4888 = vld [vmem:[#allocation8 + $0x128] sm:$0xff]
    %v4889 = vld [vmem:[#allocation8 + $0x130] sm:$0xff]
    %v4890 = vld [vmem:[#allocation8 + $0x138] sm:$0xff]
    %v4891 = vld [vmem:[#allocation8 + $0x140] sm:$0xff]
    %v4892 = vld [vmem:[#allocation8 + $0x148] sm:$0xff]
    %v4893 = vld [vmem:[#allocation8 + $0x150] sm:$0xff]
    %v4894 = vld [vmem:[#allocation8 + $0x158] sm:$0xff]
    %v4895 = vld [vmem:[#allocation8 + $0x160] sm:$0xff]
    %v4896 = vld [vmem:[#allocation8 + $0x168] sm:$0xff]
    %v4897 = vld [vmem:[#allocation8 + $0x170] sm:$0xff]
    %v4898 = vld [vmem:[#allocation8 + $0x178] sm:$0xff]
    %v4899 = vld [vmem:[%s5] sm:$0x7]
    %v4901 = vlaneseq
    %v4902 = vshrl.u32 %v4901, 7
    %v4903 = vsub.s32 0, %v4902
    %v4904 = vrot.slane %v4899, %v4903
    %v4905 = vlaneseq
    %v4906 = vshrl.u32 %v4905, 7
    %v4907 = vsub.s32 1, %v4906
    %v4908 = vrot.slane %v4899, %v4907
    %v4909 = vlaneseq
    %v4910 = vshrl.u32 %v4909, 7
    %v4911 = vsub.s32 2, %v4910
    %v4912 = vrot.slane %v4899, %v4911
    %4916 = vmatprep.subr.mxu0 %v4897
    %4917 = vmatpush1.msra.mxu0 %v4896
    %4918 = vmatprep.subr.mxu0 %v4894
    %4919 = vmatpush1.msra.mxu0 %v4893
    %4920 = vmatprep.subr.mxu0 %v4891
    %4921 = vmatpush1.msra.mxu0 %v4890
    %4922 = vmatprep.subr.mxu0 %v4888
    %4923 = vmatpush1.msra.mxu0 %v4887
    %4924 = vmatprep.subr.mxu0 %v4885
    %4925 = vmatpush1.msra.mxu0 %v4884
    %4926 = vmatprep.subr.mxu0 %v4882
    %4927 = vmatpush1.msra.mxu0 %v4881
    %4928 = vmatprep.subr.mxu0 %v4879
    %4929 = vmatpush1.msra.mxu0 %v4878
    %4930 = vmatprep.subr.mxu0 %v4876
    %4931 = vmatpush1.msra.mxu0 %v4875
    %4932 = vmatprep.subr.mxu0 %v4873
    %4933 = vmatpush1.msra.mxu0 %v4872
    %4934 = vmatprep.subr.mxu0 %v4870
    %4935 = vmatpush1.msra.mxu0 %v4869
    %4936 = vmatprep.subr.mxu0 %v4867
    %4937 = vmatpush1.msra.mxu0 %v4866
    %4938 = vmatprep.subr.mxu0 %v4864
    %4939 = vmatpush1.msra.mxu0 %v4863
    %4940 = vmatprep.subr.mxu0 %v4861
    %4941 = vmatpush1.msra.mxu0 %v4860
    %4942 = vmatprep.subr.mxu0 %v4858
    %4943 = vmatpush1.msra.mxu0 %v4857
    %4944 = vmatprep.subr.mxu0 %v4855
    %4945 = vmatpush1.msra.mxu0 %v4854
    %4946 = vmatprep.subr.mxu0 %v4852
    %4947 = vmatpush1.msra.mxu0 %v4851
    %4948 = vmatprep.subr.mxu0 0.0
    %4949 = vmatpush2.msra.mxu0 0.0
    %4950 = vmatprep.subr.mxu0 0.0
    %4951 = vmatpush2.msra.mxu0 0.0
    %4952 = vmatprep.subr.mxu0 0.0
    %4953 = vmatpush2.msra.mxu0 0.0
    %4954 = vmatprep.subr.mxu0 0.0
    %4955 = vmatpush2.msra.mxu0 0.0
    %4956 = vmatprep.subr.mxu0 0.0
    %4957 = vmatpush2.msra.mxu0 0.0
    %4958 = vmatprep.subr.mxu0 0.0
    %4959 = vmatpush2.msra.mxu0 0.0
    %4960 = vmatprep.subr.mxu0 0.0
    %4961 = vmatpush2.msra.mxu0 0.0
    %4962 = vmatprep.subr.mxu0 0.0
    %4963 = vmatpush2.msra.mxu0 0.0
    %4964 = vmatprep.subr.mxu0 0.0
    %4965 = vmatpush2.msra.mxu0 0.0
    %4966 = vmatprep.subr.mxu0 0.0
    %4967 = vmatpush2.msra.mxu0 0.0
    %4968 = vmatprep.subr.mxu0 0.0
    %4969 = vmatpush2.msra.mxu0 0.0
    %4970 = vmatprep.subr.mxu0 0.0
    %4971 = vmatpush2.msra.mxu0 0.0
    %4972 = vmatprep.subr.mxu0 0.0
    %4973 = vmatpush2.msra.mxu0 0.0
    %4974 = vmatprep.subr.mxu0 0.0
    %4975 = vmatpush2.msra.mxu0 0.0
    %4976 = vmatprep.subr.mxu0 0.0
    %4977 = vmatpush2.msra.mxu0 0.0
    %4978 = vmatprep.subr.mxu0 0.0
    %4979 = vmatpush2.msra.mxu0 0.0
    %4980 = vmatprep.mubr.f32.mxu0 0.0
    %4981 = vmatmul.mubr.f32.gmra.mxu0 %v4850
    %v4982 = vpop.f32.mrf.mxu0
    %v4983 = vadd.f32 %v4904, %v4982
    %v4984 = vpop.f32.mrf.mxu0
    %v4985 = vadd.f32 %v4908, %v4984
    %4986 = vdwg.mxu0
    %4987 = vmatprep.subr.mxu0 0.0
    %4988 = vmatpush1.msra.mxu0 %v4898
    %4989 = vmatprep.subr.mxu0 0.0
    %4990 = vmatpush1.msra.mxu0 %v4895
    %4991 = vmatprep.subr.mxu0 0.0
    %4992 = vmatpush1.msra.mxu0 %v4892
    %4993 = vmatprep.subr.mxu0 0.0
    %4994 = vmatpush1.msra.mxu0 %v4889
    %4995 = vmatprep.subr.mxu0 0.0
    %4996 = vmatpush1.msra.mxu0 %v4886
    %4997 = vmatprep.subr.mxu0 0.0
    %4998 = vmatpush1.msra.mxu0 %v4883
    %4999 = vmatprep.subr.mxu0 0.0
    %5000 = vmatpush1.msra.mxu0 %v4880
    %5001 = vmatprep.subr.mxu0 0.0
    %5002 = vmatpush1.msra.mxu0 %v4877
    %5003 = vmatprep.subr.mxu0 0.0
    %5004 = vmatpush1.msra.mxu0 %v4874
    %5005 = vmatprep.subr.mxu0 0.0
    %5006 = vmatpush1.msra.mxu0 %v4871
    %5007 = vmatprep.subr.mxu0 0.0
    %5008 = vmatpush1.msra.mxu0 %v4868
    %5009 = vmatprep.subr.mxu0 0.0
    %5010 = vmatpush1.msra.mxu0 %v4865
    %5011 = vmatprep.subr.mxu0 0.0
    %5012 = vmatpush1.msra.mxu0 %v4862
    %5013 = vmatprep.subr.mxu0 0.0
    %5014 = vmatpush1.msra.mxu0 %v4859
    %5015 = vmatprep.subr.mxu0 0.0
    %5016 = vmatpush1.msra.mxu0 %v4856
    %5017 = vmatprep.subr.mxu0 0.0
    %5018 = vmatpush1.msra.mxu0 %v4853
    %5019 = vmatprep.subr.mxu0 0.0
    %5020 = vmatpush2.msra.mxu0 0.0
    %5021 = vmatprep.subr.mxu0 0.0
    %5022 = vmatpush2.msra.mxu0 0.0
    %5023 = vmatprep.subr.mxu0 0.0
    %5024 = vmatpush2.msra.mxu0 0.0
    %5025 = vmatprep.subr.mxu0 0.0
    %5026 = vmatpush2.msra.mxu0 0.0
    %5027 = vmatprep.subr.mxu0 0.0
    %5028 = vmatpush2.msra.mxu0 0.0
    %5029 = vmatprep.subr.mxu0 0.0
    %5030 = vmatpush2.msra.mxu0 0.0
    %5031 = vmatprep.subr.mxu0 0.0
    %5032 = vmatpush2.msra.mxu0 0.0
    %5033 = vmatprep.subr.mxu0 0.0
    %5034 = vmatpush2.msra.mxu0 0.0
    %5035 = vmatprep.subr.mxu0 0.0
    %5036 = vmatpush2.msra.mxu0 0.0
    %5037 = vmatprep.subr.mxu0 0.0
    %5038 = vmatpush2.msra.mxu0 0.0
    %5039 = vmatprep.subr.mxu0 0.0
    %5040 = vmatpush2.msra.mxu0 0.0
    %5041 = vmatprep.subr.mxu0 0.0
    %5042 = vmatpush2.msra.mxu0 0.0
    %5043 = vmatprep.subr.mxu0 0.0
    %5044 = vmatpush2.msra.mxu0 0.0
    %5045 = vmatprep.subr.mxu0 0.0
    %5046 = vmatpush2.msra.mxu0 0.0
    %5047 = vmatprep.subr.mxu0 0.0
    %5048 = vmatpush2.msra.mxu0 0.0
    %5049 = vmatprep.subr.mxu0 0.0
    %5050 = vmatpush2.msra.mxu0 0.0
    %5051 = vmatprep.mubr.f32.mxu0 0.0
    %5052 = vmatmul.mubr.f32.gmra.mxu0 %v4850
    %v5053 = vpop.f32.mrf.mxu0
    %v5054 = vadd.f32 %v4912, %v5053
    %v5055 = vpop.f32.mrf.mxu0
    %5056 = vdwg.mxu0
    %v5057 = vld [vmem:[%s520] sm:$0xff]
    %v5058 = vld [vmem:[%s520 + $0x8] sm:$0xff]
    %v5059 = vld [vmem:[%s520 + $0x10] sm:$0xff]
    %v5060 = vld [vmem:[%s520 + $0x18] sm:$0xff]
    %v5061 = vld [vmem:[%s520 + $0x20] sm:$0xff]
    %v5062 = vld [vmem:[%s520 + $0x28] sm:$0xff]
    %v5063 = vld [vmem:[%s520 + $0x30] sm:$0xff]
    %v5064 = vld [vmem:[%s520 + $0x38] sm:$0xff]
    %v5065 = vld [vmem:[%s520 + $0x40] sm:$0xff]
    %v5066 = vld [vmem:[%s520 + $0x48] sm:$0xff]
    %v5067 = vld [vmem:[%s520 + $0x50] sm:$0xff]
    %v5068 = vld [vmem:[%s520 + $0x58] sm:$0xff]
    %v5069 = vld [vmem:[%s520 + $0x60] sm:$0xff]
    %v5070 = vld [vmem:[%s520 + $0x68] sm:$0xff]
    %v5071 = vld [vmem:[%s520 + $0x70] sm:$0xff]
    %v5072 = vld [vmem:[%s520 + $0x78] sm:$0xff]
    %v5073 = vld [vmem:[%s520 + $0x80] sm:$0xff]
    %v5074 = vld [vmem:[%s520 + $0x88] sm:$0xff]
    %v5075 = vld [vmem:[%s520 + $0x90] sm:$0xff]
    %v5076 = vld [vmem:[%s520 + $0x98] sm:$0xff]
    %v5077 = vld [vmem:[%s520 + $0xa0] sm:$0xff]
    %v5078 = vld [vmem:[%s520 + $0xa8] sm:$0xff]
    %v5079 = vld [vmem:[%s520 + $0xb0] sm:$0xff]
    %v5080 = vld [vmem:[%s520 + $0xb8] sm:$0xff]
    %v5081 = vld [vmem:[%s520 + $0xc0] sm:$0xff]
    %v5082 = vld [vmem:[%s520 + $0xc8] sm:$0xff]
    %v5083 = vld [vmem:[%s520 + $0xd0] sm:$0xff]
    %v5084 = vld [vmem:[%s520 + $0xd8] sm:$0xff]
    %v5085 = vld [vmem:[%s520 + $0xe0] sm:$0xff]
    %v5086 = vld [vmem:[%s520 + $0xe8] sm:$0xff]
    %v5087 = vld [vmem:[%s520 + $0xf0] sm:$0xff]
    %v5088 = vld [vmem:[%s520 + $0xf8] sm:$0xff]
    %v5089 = vld [vmem:[%s520 + $0x100] sm:$0xff]
    %v5090 = vld [vmem:[%s520 + $0x108] sm:$0xff]
    %v5091 = vld [vmem:[%s520 + $0x110] sm:$0xff]
    %v5092 = vld [vmem:[%s520 + $0x118] sm:$0xff]
    %v5093 = vld [vmem:[%s520 + $0x120] sm:$0xff]
    %v5094 = vld [vmem:[%s520 + $0x128] sm:$0xff]
    %v5095 = vld [vmem:[%s520 + $0x130] sm:$0xff]
    %v5096 = vld [vmem:[%s520 + $0x138] sm:$0xff]
    %v5097 = vld [vmem:[%s520 + $0x140] sm:$0xff]
    %v5098 = vld [vmem:[%s520 + $0x148] sm:$0xff]
    %v5099 = vld [vmem:[%s520 + $0x150] sm:$0xff]
    %v5100 = vld [vmem:[%s520 + $0x158] sm:$0xff]
    %v5101 = vld [vmem:[%s520 + $0x160] sm:$0xff]
    %v5102 = vld [vmem:[%s520 + $0x168] sm:$0xff]
    %v5103 = vld [vmem:[%s520 + $0x170] sm:$0xff]
    %v5104 = vld [vmem:[%s520 + $0x178] sm:$0xff]
    %5105 = vmatprep.subr.mxu0 %v5103
    %5106 = vmatpush1.msra.mxu0 %v5102
    %5107 = vmatprep.subr.mxu0 %v5100
    %5108 = vmatpush1.msra.mxu0 %v5099
    %5109 = vmatprep.subr.mxu0 %v5097
    %5110 = vmatpush1.msra.mxu0 %v5096
    %5111 = vmatprep.subr.mxu0 %v5094
    %5112 = vmatpush1.msra.mxu0 %v5093
    %5113 = vmatprep.subr.mxu0 %v5091
    %5114 = vmatpush1.msra.mxu0 %v5090
    %5115 = vmatprep.subr.mxu0 %v5088
    %5116 = vmatpush1.msra.mxu0 %v5087
    %5117 = vmatprep.subr.mxu0 %v5085
    %5118 = vmatpush1.msra.mxu0 %v5084
    %5119 = vmatprep.subr.mxu0 %v5082
    %5120 = vmatpush1.msra.mxu0 %v5081
    %5121 = vmatprep.subr.mxu0 %v5079
    %5122 = vmatpush1.msra.mxu0 %v5078
    %5123 = vmatprep.subr.mxu0 %v5076
    %5124 = vmatpush1.msra.mxu0 %v5075
    %5125 = vmatprep.subr.mxu0 %v5073
    %5126 = vmatpush1.msra.mxu0 %v5072
    %5127 = vmatprep.subr.mxu0 %v5070
    %5128 = vmatpush1.msra.mxu0 %v5069
    %5129 = vmatprep.subr.mxu0 %v5067
    %5130 = vmatpush1.msra.mxu0 %v5066
    %5131 = vmatprep.subr.mxu0 %v5064
    %5132 = vmatpush1.msra.mxu0 %v5063
    %5133 = vmatprep.subr.mxu0 %v5061
    %5134 = vmatpush1.msra.mxu0 %v5060
    %5135 = vmatprep.subr.mxu0 %v5058
    %5136 = vmatpush1.msra.mxu0 %v5057
    %5137 = vmatprep.subr.mxu0 0.0
    %5138 = vmatpush2.msra.mxu0 0.0
    %5139 = vmatprep.subr.mxu0 0.0
    %5140 = vmatpush2.msra.mxu0 0.0
    %5141 = vmatprep.subr.mxu0 0.0
    %5142 = vmatpush2.msra.mxu0 0.0
    %5143 = vmatprep.subr.mxu0 0.0
    %5144 = vmatpush2.msra.mxu0 0.0
    %5145 = vmatprep.subr.mxu0 0.0
    %5146 = vmatpush2.msra.mxu0 0.0
    %5147 = vmatprep.subr.mxu0 0.0
    %5148 = vmatpush2.msra.mxu0 0.0
    %5149 = vmatprep.subr.mxu0 0.0
    %5150 = vmatpush2.msra.mxu0 0.0
    %5151 = vmatprep.subr.mxu0 0.0
    %5152 = vmatpush2.msra.mxu0 0.0
    %5153 = vmatprep.subr.mxu0 0.0
    %5154 = vmatpush2.msra.mxu0 0.0
    %5155 = vmatprep.subr.mxu0 0.0
    %5156 = vmatpush2.msra.mxu0 0.0
    %5157 = vmatprep.subr.mxu0 0.0
    %5158 = vmatpush2.msra.mxu0 0.0
    %5159 = vmatprep.subr.mxu0 0.0
    %5160 = vmatpush2.msra.mxu0 0.0
    %5161 = vmatprep.subr.mxu0 0.0
    %5162 = vmatpush2.msra.mxu0 0.0
    %5163 = vmatprep.subr.mxu0 0.0
    %5164 = vmatpush2.msra.mxu0 0.0
    %5165 = vmatprep.subr.mxu0 0.0
    %5166 = vmatpush2.msra.mxu0 0.0
    %5167 = vmatprep.subr.mxu0 0.0
    %5168 = vmatpush2.msra.mxu0 0.0
    %5169 = vmatprep.mubr.f32.mxu0 0.0
    %5170 = vmatmul.mubr.f32.gmra.mxu0 %v4626
    %v5171 = vpop.f32.mrf.mxu0
    %v5172 = vadd.f32 0.0, %v5171
    %v5173 = vpop.f32.mrf.mxu0
    %v5174 = vadd.f32 0.0, %v5173
    %5175 = vdwg.mxu0
    %5176 = vmatprep.subr.mxu0 0.0
    %5177 = vmatpush1.msra.mxu0 %v5104
    %5178 = vmatprep.subr.mxu0 0.0
    %5179 = vmatpush1.msra.mxu0 %v5101
    %5180 = vmatprep.subr.mxu0 0.0
    %5181 = vmatpush1.msra.mxu0 %v5098
    %5182 = vmatprep.subr.mxu0 0.0
    %5183 = vmatpush1.msra.mxu0 %v5095
    %5184 = vmatprep.subr.mxu0 0.0
    %5185 = vmatpush1.msra.mxu0 %v5092
    %5186 = vmatprep.subr.mxu0 0.0
    %5187 = vmatpush1.msra.mxu0 %v5089
    %5188 = vmatprep.subr.mxu0 0.0
    %5189 = vmatpush1.msra.mxu0 %v5086
    %5190 = vmatprep.subr.mxu0 0.0
    %5191 = vmatpush1.msra.mxu0 %v5083
    %5192 = vmatprep.subr.mxu0 0.0
    %5193 = vmatpush1.msra.mxu0 %v5080
    %5194 = vmatprep.subr.mxu0 0.0
    %5195 = vmatpush1.msra.mxu0 %v5077
    %5196 = vmatprep.subr.mxu0 0.0
    %5197 = vmatpush1.msra.mxu0 %v5074
    %5198 = vmatprep.subr.mxu0 0.0
    %5199 = vmatpush1.msra.mxu0 %v5071
    %5200 = vmatprep.subr.mxu0 0.0
    %5201 = vmatpush1.msra.mxu0 %v5068
    %5202 = vmatprep.subr.mxu0 0.0
    %5203 = vmatpush1.msra.mxu0 %v5065
    %5204 = vmatprep.subr.mxu0 0.0
    %5205 = vmatpush1.msra.mxu0 %v5062
    %5206 = vmatprep.subr.mxu0 0.0
    %5207 = vmatpush1.msra.mxu0 %v5059
    %5208 = vmatprep.subr.mxu0 0.0
    %5209 = vmatpush2.msra.mxu0 0.0
    %5210 = vmatprep.subr.mxu0 0.0
    %5211 = vmatpush2.msra.mxu0 0.0
    %5212 = vmatprep.subr.mxu0 0.0
    %5213 = vmatpush2.msra.mxu0 0.0
    %5214 = vmatprep.subr.mxu0 0.0
    %5215 = vmatpush2.msra.mxu0 0.0
    %5216 = vmatprep.subr.mxu0 0.0
    %5217 = vmatpush2.msra.mxu0 0.0
    %5218 = vmatprep.subr.mxu0 0.0
    %5219 = vmatpush2.msra.mxu0 0.0
    %5220 = vmatprep.subr.mxu0 0.0
    %5221 = vmatpush2.msra.mxu0 0.0
    %5222 = vmatprep.subr.mxu0 0.0
    %5223 = vmatpush2.msra.mxu0 0.0
    %5224 = vmatprep.subr.mxu0 0.0
    %5225 = vmatpush2.msra.mxu0 0.0
    %5226 = vmatprep.subr.mxu0 0.0
    %5227 = vmatpush2.msra.mxu0 0.0
    %5228 = vmatprep.subr.mxu0 0.0
    %5229 = vmatpush2.msra.mxu0 0.0
    %5230 = vmatprep.subr.mxu0 0.0
    %5231 = vmatpush2.msra.mxu0 0.0
    %5232 = vmatprep.subr.mxu0 0.0
    %5233 = vmatpush2.msra.mxu0 0.0
    %5234 = vmatprep.subr.mxu0 0.0
    %5235 = vmatpush2.msra.mxu0 0.0
    %5236 = vmatprep.subr.mxu0 0.0
    %5237 = vmatpush2.msra.mxu0 0.0
    %5238 = vmatprep.subr.mxu0 0.0
    %5239 = vmatpush2.msra.mxu0 0.0
    %5240 = vmatprep.mubr.f32.mxu0 0.0
    %5241 = vmatmul.mubr.f32.gmra.mxu0 %v4626
    %v5242 = vpop.f32.mrf.mxu0
    %v5243 = vadd.f32 0.0, %v5242
    %v5244 = vpop.f32.mrf.mxu0
    %5245 = vdwg.mxu0
    %v5246 = vld [vmem:[%s710] sm:$0x1]
    %v5247 = vadd.f32 %v4983, %v5172
    %v5248 = vxor.u32 %v5247, 2147483648
    %v5249 = vmul.f32 %v5248, 1.442695
    %v5250 = vpow.pop %v5249
    %v5251 = vadd.f32 %v5250, 1.0
    %v5252 = vrcp.pop %v5251
    %v5253 = vmul.f32 1.0, %v5252
    %v5254 = vadd.f32 %v4985, %v5174
    %v5255 = vxor.u32 %v5254, 2147483648
    %v5256 = vmul.f32 %v5255, 1.442695
    %v5257 = vpow.pop %v5256
    %v5258 = vadd.f32 %v5257, 1.0
    %v5259 = vrcp.pop %v5258
    %v5260 = vmul.f32 1.0, %v5259
    %v5262 = vlaneseq
    %v5263 = vshrl.u32 %v5262, 7
    %v5264 = vsub.s32 0, %v5263
    %v5265 = vrot.slane %v5246, %v5264
    %v5267 = vadd.f32 %v5243, %v5265
    %v5268 = vmul.f32 %v5253, %v5267
    %v5269 = vadd.f32 %v5054, %v5268
    %v5270 = vtanh.pop %v5269
    %v5271 = vsub.f32 1.0, %v5260
    %v5272 = vmul.f32 %v5271, %v5270
    %v5273 = vmul.f32 %v5260, %v4626
    %v5274 = vadd.f32 %v5272, %v5273
    %s5275 = scalar_lea.vmem [#allocation10], 56
    %5276 = vst [vmem:[%s5275] sm:$0xff] %v5274
    %5277 = vst [vmem:[#allocation11] sm:$0xff] %v4850
    %5278 = vst [vmem:[%s91] sm:$0xff] %v5274
    // Predicated region
    $region46: #{tpu_custom_call.1} parent=1 // pred_check
      _
    $region47: #{tpu_custom_call.1} parent=1 // pred_check_branch
      %5280 = sbr.rel (0) target = $region49
    $region48: #{tpu_custom_call.1} parent=1 // pred_region
      %s5282 = ssub.s32 1024, 1024
      %5283 = vsyncadd [#allocation4], %s5282
      %s5284 = sshll.u32 [#allocation10], 4
      %s5285 = int_to_ptr.vmem [resolvable:$true] %s5284
      %5290 = dma.vmem_to_hbm [thread:$0]  %s5285, 1024, %s6, [#allocation4], 128, 128, 8
    $region49: #{tpu_custom_call.1} parent=1 // pred_fallthru
      _
    // Predicated region
    $region50: #{tpu_custom_call.1} parent=1 // pred_check
      _
    $region51: #{tpu_custom_call.1} parent=1 // pred_check_branch
      %5292 = sbr.rel (0) target = $region53
    $region52: #{tpu_custom_call.1} parent=1 // pred_region
      %s5294 = ssub.s32 256, 256
      %5295 = vsyncadd [#allocation12], %s5294
      %s5296 = sshll.u32 [#allocation11], 4
      %s5297 = int_to_ptr.vmem [resolvable:$true] %s5296
      %5302 = dma.vmem_to_hbm [thread:$0]  %s5297, 256, %s7, [#allocation12], 128, 128, 8
    $region53: #{tpu_custom_call.1} parent=1 // pred_fallthru
      _
    // Predicated region
    $region54: #{tpu_custom_call.1} parent=1 // pred_check
      _
    $region55: #{tpu_custom_call.1} parent=1 // pred_check_branch
      %5304 = sbr.rel (0) target = $region57
    $region56: #{tpu_custom_call.1} parent=1 // pred_region
      %5305 = dma.done [#allocation4], 1024
    $region57: #{tpu_custom_call.1} parent=1 // pred_fallthru
      _
    // Predicated region
    $region58: #{tpu_custom_call.1} parent=1 // pred_check
      _
    $region59: #{tpu_custom_call.1} parent=1 // pred_check_branch
      %5307 = sbr.rel (0) target = $region61
    $region60: #{tpu_custom_call.1} parent=1 // pred_region
      %5308 = dma.done [#allocation12], 256
    $region61: #{tpu_custom_call.1} parent=1 // pred_fallthru
      _
    %5309 = vsyncpa [#allocation3], 1
    %5310 = vsyncpa [#allocation6], 1
    %5311 = vsyncpa [#allocation9], 1
    %5312 = vsyncpa [#allocation4], 1
    %5313 = vsyncpa [#allocation12], 1

</llo_original>
